<compile_context>
chip_gen: v5e
topology: v5e:2x2
jax: 0.10.0
libtpu: 0.0.40
codegen_flags: <defaults>
</compile_context>

<pallas_src>
import functools

import jax
import jax.numpy as jnp
from jax.experimental import pallas as pl
from jax.experimental.pallas import tpu as pltpu

# ----------------------------- hyper parameters -----------------------------
B = 2                      # batch
N = 8                      # num_nodes
IN_STEPS = 12
OUT_STEPS = 12
INPUT_DIM = 5              # [flow, tod, dow, weekend, holiday]
PERIODS = (24, 7)
INPUT_EMB = 8
PERIOD_EMB = (4, 4)
WEEKEND_EMB = 2
HOLIDAY_EMB = 2
SPATIAL_EMB = 4
ADAPTIVE_EMB = 4
DIM_FEAT = INPUT_EMB + sum(PERIOD_EMB) + WEEKEND_EMB + HOLIDAY_EMB + SPATIAL_EMB + ADAPTIVE_EMB  # 28
RNN_UNITS = 16
RNN_LAYERS = 3
NUM_GRU = RNN_LAYERS - 1   # 2
EMBED_DIM = 8
OUTPUT_DIM = 1
RECENT = 2                 # recent_stamp
GAT_HIDDEN = 256
D_IN = DIM_FEAT + INPUT_DIM   # 33 : DSTRNN input dim
BN = B * N                    # flattened (batch, node) rows
EH = EMBED_DIM * RNN_UNITS    # 128 : lanes per (support, gate) weight block


# ---------------------- in-kernel elementwise helpers ------------------------
def _sigmoid(v):
    return 1.0 / (1.0 + jnp.exp(-v))


def _elu(v):
    return jnp.where(v > 0, v, jnp.exp(jnp.minimum(v, 0.0)) - 1.0)


def _gelu_tanh(v):
    # TODO(synk): torch nn.GELU defaults to exact erf GELU; tanh approximation
    # is used here because erf has no guaranteed Mosaic lowering.
    c0 = jnp.float32(0.7978845608028654)
    return 0.5 * v * (1.0 + jnp.tanh(c0 * (v + 0.044715 * v * v * v)))


# ------------------------------ fused kernel --------------------------------
def _dstrnn_kernel(
    # streamed per grid step t
    x_ref,                                                    # (1, BN, D_IN)
    gW_ref, ga_ref, gw1_ref, gb1_ref, gw2_ref, gb2_ref,       # GAT[t]
    nrm_ref,                                                  # norms[t] (1,2,H)
    # streamed per (t % NUM_GRU)
    rWx_ref, rWszr_ref, rWsu_ref, rln_ref, rbp_ref,
    # constants (VMEM resident)
    te_ref, ne_ref, adj_ref,
    c0Wx_ref, c0Wszr_ref, c0Wsu_ref, c0ln_ref, c0bp_ref,      # gru0
    onrm_ref, wend_ref, bend_ref,                             # output head
    # output
    out_ref,                                                  # (BN, OUT_STEPS)
    # scratch (persist across grid steps)
    s0_scr, st_scr, prev_scr,
):
    t = pl.program_id(0)
    x2 = x_ref[0]                                             # (BN, D_IN)

    @pl.when(t == 0)
    def _init():
        s0_scr[...] = jnp.zeros_like(s0_scr)
        st_scr[...] = jnp.zeros_like(st_scr)
        prev_scr[...] = x2                                    # prev = x[:, 0]

    # shared LayerNorm statistics of (node_emb + time_emb[t]); per-GCN affine
    # (gamma/beta) is applied inside each gate.  eps = 1e-12 (GCN.norm).
    ne = ne_ref[...]                                          # (N, E)
    te_t = te_ref[pl.ds(t, 1), :]                             # (1, E)
    s = ne + te_t
    mu = jnp.mean(s, axis=-1, keepdims=True)
    var = jnp.mean((s - mu) ** 2, axis=-1, keepdims=True)
    nhat = (s - mu) * jax.lax.rsqrt(var + 1e-12)              # (N, E)

    def gcn_gate(ln_all, bp_all, g, p0, p1):
        # p0 / p1: (BN, EH) pre-computed x @ W for support k=0 / k=1.
        gamma = ln_all[g, 0:1, :]
        beta = ln_all[g, 1:2, :]
        ne_g = nhat * gamma + beta                            # (N, E)
        logits = jnp.dot(ne_g, ne_g.T, preferred_element_type=jnp.float32)
        logits = logits - jnp.max(logits, axis=1, keepdims=True)
        pe = jnp.exp(logits)
        emb = pe / jnp.sum(pe, axis=1, keepdims=True)         # softmax(dim=1), (N,N)
        # graph propagation applied after the weight matmul (associativity):
        q = p0 + jnp.concatenate(
            [jnp.dot(emb, p1[0:N], preferred_element_type=jnp.float32),
             jnp.dot(emb, p1[N:BN], preferred_element_type=jnp.float32)],
            axis=0)                                           # (BN, EH)
        bias = jnp.dot(ne_g, bp_all[g], preferred_element_type=jnp.float32)  # (N, H)
        acc = jnp.concatenate([bias, bias], axis=0)           # (BN, H)
        ne2 = jnp.concatenate([ne_g, ne_g], axis=0)           # (BN, E)
        for d in range(EMBED_DIM):                            # VPU contraction over E
            acc = acc + ne2[:, d:d + 1] * q[:, d * RNN_UNITS:(d + 1) * RNN_UNITS]
        return acc                                            # (BN, H)

    def gru_cell(xa, state, wx, wszr, wsu, ln_all, bp_all):
        # x-part of all 3 gates / both supports in one lane-dense matmul.
        px = jnp.dot(xa, wx, preferred_element_type=jnp.float32)       # (BN, 6*EH)
        ps = jnp.dot(state, wszr, preferred_element_type=jnp.float32)  # (BN, 4*EH)
        z = _sigmoid(gcn_gate(ln_all, bp_all, 0,
                              px[:, 0:EH] + ps[:, 0:EH],
                              px[:, EH:2 * EH] + ps[:, EH:2 * EH]))
        r = _sigmoid(gcn_gate(ln_all, bp_all, 1,
                              px[:, 2 * EH:3 * EH] + ps[:, 2 * EH:3 * EH],
                              px[:, 3 * EH:4 * EH] + ps[:, 3 * EH:4 * EH]))
        pu = jnp.dot(z * state, wsu, preferred_element_type=jnp.float32)  # (BN, 2*EH)
        hc = jnp.tanh(gcn_gate(ln_all, bp_all, 2,
                               px[:, 4 * EH:5 * EH] + pu[:, 0:EH],
                               px[:, 5 * EH:6 * EH] + pu[:, EH:2 * EH]))
        return r * state + (1.0 - r) * hc

    # ----------------- phase 1: gru0 + GAT[t] + LayerNorm -----------------
    base = gru_cell(x2, s0_scr[...],
                    c0Wx_ref[...], c0Wszr_ref[...], c0Wsu_ref[...],
                    c0ln_ref[...], c0bp_ref[...])
    s0_scr[...] = base

    prev = prev_scr[...]                                      # (BN, D_IN)
    # h = cat([ht, h], dim=1) -> per-batch rows [prev nodes ; x nodes]
    h = jnp.concatenate([prev[0:N], x2[0:N], prev[N:BN], x2[N:BN]], axis=0)  # (2BN, D_IN)
    wh = jnp.dot(h, gW_ref[0], preferred_element_type=jnp.float32)           # (2BN, GH)
    f = jnp.dot(wh, ga_ref[0], preferred_element_type=jnp.float32)           # (2BN, 2)
    adj = adj_ref[...]
    rows = []
    for b in range(B):                                        # tiny (2N,2N) attention
        o = b * 2 * N
        whb = wh[o:o + 2 * N]                                 # (2N, GH)
        e = f[o:o + 2 * N, 0:1] + f[o:o + 2 * N, 1:2].T       # e[i,j]=Wh1[i]+Wh2[j]
        e = jnp.where(e > 0, e, 0.2 * e)                      # LeakyReLU(0.2)
        e = jnp.where(adj > 0, e, jnp.float32(-9e15))
        # F.softmax(attention, dim=1): normalize over the row (i) axis.
        e = e - jnp.max(e, axis=0, keepdims=True)
        pe = jnp.exp(e)
        att = pe / jnp.sum(pe, axis=0, keepdims=True)
        hp = jnp.dot(att, whb, preferred_element_type=jnp.float32)           # (2N, GH)
        rows.append(jnp.concatenate([hp[0:N], hp[N:2 * N]], axis=1))         # (N, 2GH)
    hcat = _elu(jnp.concatenate(rows, axis=0))                               # (BN, 2GH)
    y = jnp.dot(hcat, gw1_ref[0], preferred_element_type=jnp.float32) + gb1_ref[0]
    y = _gelu_tanh(y)
    y = jnp.dot(y, gw2_ref[0], preferred_element_type=jnp.float32) + gb2_ref[0]
    att_out = jnp.abs(y)        # Mlp ends with abs(); the outer F.elu is identity on >=0

    inner = base + att_out                                    # norms[t], eps=1e-5
    m2 = jnp.mean(inner, axis=-1, keepdims=True)
    v2 = jnp.mean((inner - m2) ** 2, axis=-1, keepdims=True)
    nrm = nrm_ref[0]
    inner = (inner - m2) * jax.lax.rsqrt(v2 + 1e-5) * nrm[0:1, :] + nrm[1:2, :]

    prev_scr[...] = x2                                        # prev = x[:, t]

    # ----------------- phase 2: grus[t % NUM_GRU] on inner -----------------
    idx = t % NUM_GRU
    new_s = gru_cell(inner, st_scr[idx],
                     rWx_ref[0], rWszr_ref[0], rWsu_ref[0], rln_ref[0], rbp_ref[0])
    st_scr[idx] = new_s

    # ----------------- output head (last step only) -----------------
    @pl.when(t == pl.num_programs(0) - 1)
    def _head():
        onrm = onrm_ref[...]

        def _ln12(v):
            m = jnp.mean(v, axis=-1, keepdims=True)
            va = jnp.mean((v - m) ** 2, axis=-1, keepdims=True)
            return (v - m) * jax.lax.rsqrt(va + 1e-12) * onrm[0:1, :] + onrm[1:2, :]

        # stack([states[0], states[1], base])[:, -RECENT:] == [states[1], base]
        feat = jnp.concatenate([_ln12(st_scr[NUM_GRU - 1]), _ln12(base)], axis=1)
        out_ref[...] = (
            jnp.dot(feat, wend_ref[...], preferred_element_type=jnp.float32)
            + bend_ref[...]
        )


# ------------------------------ host-side glue -------------------------------
def _const_spec(shape):
    zeros = (0,) * len(shape)
    return pl.BlockSpec(shape, lambda t, _z=zeros: _z)


def _step_spec(shape_rest):
    zeros = (0,) * len(shape_rest)
    return pl.BlockSpec((1,) + tuple(shape_rest), lambda t, _z=zeros: (t,) + _z)


def _gru_spec(shape_rest):
    zeros = (0,) * len(shape_rest)
    return pl.BlockSpec((1,) + tuple(shape_rest),
                        lambda t, _z=zeros: (t % NUM_GRU,) + _z)


def fused_dstrnn(k, xs):
    in_specs = [
        _step_spec((BN, D_IN)),                               # x[t]
        _step_spec((D_IN, GAT_HIDDEN)),                       # GAT W
        _step_spec((GAT_HIDDEN, 2)),                          # GAT [a1|a2]
        _step_spec((2 * GAT_HIDDEN, GAT_HIDDEN)),             # MLP w1
        _step_spec((1, GAT_HIDDEN)),                          # MLP b1
        _step_spec((GAT_HIDDEN, RNN_UNITS)),                  # MLP w2
        _step_spec((1, RNN_UNITS)),                           # MLP b2
        _step_spec((2, RNN_UNITS)),                           # norms[t] gamma/beta
        _gru_spec((RNN_UNITS, 6 * EH)),                       # grus Wx
        _gru_spec((RNN_UNITS, 4 * EH)),                       # grus Ws (z,r)
        _gru_spec((RNN_UNITS, 2 * EH)),                       # grus Ws (u)
        _gru_spec((3, 2, EMBED_DIM)),                         # grus LN gamma/beta
        _gru_spec((3, EMBED_DIM, RNN_UNITS)),                 # grus bias pool
        _const_spec((IN_STEPS, EMBED_DIM)),                   # time embeddings
        _const_spec((N, EMBED_DIM)),                          # node embeddings
        _const_spec((2 * N, 2 * N)),                          # padded adjacency
        _const_spec((D_IN, 6 * EH)),                          # gru0 Wx
        _const_spec((RNN_UNITS, 4 * EH)),                     # gru0 Ws (z,r)
        _const_spec((RNN_UNITS, 2 * EH)),                     # gru0 Ws (u)
        _const_spec((3, 2, EMBED_DIM)),                       # gru0 LN
        _const_spec((3, EMBED_DIM, RNN_UNITS)),               # gru0 bias pool
        _const_spec((2, RNN_UNITS)),                          # final LayerNorm
        _const_spec((RECENT * RNN_UNITS, OUT_STEPS * OUTPUT_DIM)),  # end_conv W
        _const_spec((1, OUT_STEPS * OUTPUT_DIM)),             # end_conv bias
    ]
    grid_spec = pltpu.PrefetchScalarGridSpec(
        num_scalar_prefetch=0,
        grid=(IN_STEPS,),
        in_specs=in_specs,
        out_specs=pl.BlockSpec((BN, OUT_STEPS * OUTPUT_DIM), lambda t: (0, 0)),
        scratch_shapes=[
            pltpu.VMEM((BN, RNN_UNITS), jnp.float32),          # gru0 state
            pltpu.VMEM((NUM_GRU, BN, RNN_UNITS), jnp.float32), # inner GRU states
            pltpu.VMEM((BN, D_IN), jnp.float32),               # prev = x[:, t-1]
        ],
    )
    return pl.pallas_call(
        _dstrnn_kernel,
        out_shape=jax.ShapeDtypeStruct((BN, OUT_STEPS * OUTPUT_DIM), jnp.float32),
        grid_spec=grid_spec,
        compiler_params=pltpu.CompilerParams(
            dimension_semantics=("arbitrary",),    # sequential recurrence over time
            vmem_limit_bytes=32 * 1024 * 1024,
        ),
    )(
        xs,
        k["gat_W"], k["gat_a"], k["gat_w1"], k["gat_b1"], k["gat_w2"], k["gat_b2"],
        k["norm_gb"],
        k["g_Wx"], k["g_Wszr"], k["g_Wsu"], k["g_ln"], k["g_bp"],
        k["te"], k["ne"], k["adj"],
        k["c0_Wx"], k["c0_Wszr"], k["c0_Wsu"], k["c0_ln"], k["c0_bp"],
        k["out_norm"], k["Wend"], k["bend"],
    )


# -------------------------- parameter init & packing -------------------------
def init_params(key):
    keys = iter(jax.random.split(key, 512))

    def nrm(shape, s=0.1):
        return jax.random.normal(next(keys), shape, jnp.float32) * s

    p = {}
    p["input_proj_w"] = nrm((INPUT_DIM, INPUT_EMB))
    p["input_proj_b"] = nrm((INPUT_EMB,))
    p["period_emb"] = [nrm((PERIODS[i], PERIOD_EMB[i])) for i in range(len(PERIODS))]
    p["weekend_emb"] = nrm((2, WEEKEND_EMB))
    p["holiday_emb"] = nrm((2, HOLIDAY_EMB))
    p["node_emb"] = nrm((N, SPATIAL_EMB))
    p["adaptive_emb"] = nrm((IN_STEPS, N, ADAPTIVE_EMB))

    p["node_embeddings"] = nrm((N, EMBED_DIM), 1.0)
    p["time_embeddings"] = nrm((IN_STEPS, EMBED_DIM), 1.0)

    def gcn_params(cin):
        return {"wp": nrm((EMBED_DIM, 2, cin, RNN_UNITS)),
                "bp": nrm((EMBED_DIM, RNN_UNITS)),
                "g": jnp.ones((EMBED_DIM,), jnp.float32),
                "b": jnp.zeros((EMBED_DIM,), jnp.float32)}

    def gru_params(din):
        cin = din + RNN_UNITS
        return {"z": gcn_params(cin), "r": gcn_params(cin), "u": gcn_params(cin)}

    p["gru0"] = gru_params(D_IN)
    p["grus"] = [gru_params(RNN_UNITS) for _ in range(NUM_GRU)]

    def gat_params():
        return {"W": nrm((D_IN, GAT_HIDDEN)),
                "a1": nrm((GAT_HIDDEN, 1)),
                "a2": nrm((GAT_HIDDEN, 1)),
                "w1": nrm((2 * GAT_HIDDEN, GAT_HIDDEN)),
                "b1": nrm((GAT_HIDDEN,)),
                "w2": nrm((GAT_HIDDEN, RNN_UNITS)),
                "b2": nrm((RNN_UNITS,))}

    p["gats"] = [gat_params() for _ in range(IN_STEPS)]
    p["norms_g"] = jnp.ones((IN_STEPS, RNN_UNITS), jnp.float32)
    p["norms_b"] = jnp.zeros((IN_STEPS, RNN_UNITS), jnp.float32)
    p["out_norm_g"] = jnp.ones((RNN_UNITS,), jnp.float32)
    p["out_norm_b"] = jnp.zeros((RNN_UNITS,), jnp.float32)
    p["end_w"] = nrm((OUT_STEPS * OUTPUT_DIM, RECENT, 1, RNN_UNITS))
    p["end_b"] = nrm((OUT_STEPS * OUTPUT_DIM,))
    return p


def build_adj_big():
    # synthetic deterministic ring adjacency with self loops, padded exactly as
    # GraphAttentionLayer does: big = [[adj, I], [0, adj]].
    idx = jnp.arange(N)
    d = jnp.abs(idx[:, None] - idx[None, :])
    d = jnp.minimum(d, N - d)
    adj = (d <= 1).astype(jnp.float32)
    eye = jnp.eye(N, dtype=jnp.float32)
    big = jnp.zeros((2 * N, 2 * N), jnp.float32)
    big = big.at[:N, :N].set(adj)
    big = big.at[:N, N:].set(eye)
    big = big.at[N:, N:].set(adj)
    return big


def _split_wp(wp, dx):
    # wp: (E, 2, Cin, H)  ->  Wx: (dx, 2*E*H), Ws: (H, 2*E*H)
    # columns are laid out [k=0 block | k=1 block], each block column d*H+o.
    e, _, cin, h = wp.shape
    m = jnp.transpose(wp, (1, 2, 0, 3)).reshape(2, cin, e * h)
    wx = jnp.concatenate([m[0, :dx], m[1, :dx]], axis=-1)
    ws = jnp.concatenate([m[0, dx:], m[1, dx:]], axis=-1)
    return wx, ws


def _pack_cell(cell, dx):
    wxz, wsz = _split_wp(cell["z"]["wp"], dx)
    wxr, wsr = _split_wp(cell["r"]["wp"], dx)
    wxu, wsu = _split_wp(cell["u"]["wp"], dx)
    return {
        "Wx": jnp.concatenate([wxz, wxr, wxu], axis=-1),       # (dx, 6*EH)
        "Wszr": jnp.concatenate([wsz, wsr], axis=-1),          # (H, 4*EH)
        "Wsu": wsu,                                            # (H, 2*EH)
        "ln": jnp.stack([jnp.stack([cell[g]["g"], cell[g]["b"]], 0)
                         for g in ("z", "r", "u")], 0),        # (3, 2, E)
        "bp": jnp.stack([cell[g]["bp"] for g in ("z", "r", "u")], 0),  # (3, E, H)
    }


def pack_params(p):
    k = {}
    c0 = _pack_cell(p["gru0"], D_IN)
    k["c0_Wx"], k["c0_Wszr"], k["c0_Wsu"] = c0["Wx"], c0["Wszr"], c0["Wsu"]
    k["c0_ln"], k["c0_bp"] = c0["ln"], c0["bp"]

    cells = [_pack_cell(c, RNN_UNITS) for c in p["grus"]]
    k["g_Wx"] = jnp.stack([c["Wx"] for c in cells], 0)
    k["g_Wszr"] = jnp.stack([c["Wszr"] for c in cells], 0)
    k["g_Wsu"] = jnp.stack([c["Wsu"] for c in cells], 0)
    k["g_ln"] = jnp.stack([c["ln"] for c in cells], 0)
    k["g_bp"] = jnp.stack([c["bp"] for c in cells], 0)

    g = p["gats"]
    k["gat_W"] = jnp.stack([gt["W"] for gt in g], 0)
    k["gat_a"] = jnp.stack([jnp.concatenate([gt["a1"], gt["a2"]], axis=1) for gt in g], 0)
    k["gat_w1"] = jnp.stack([gt["w1"] for gt in g], 0)
    k["gat_b1"] = jnp.stack([gt["b1"].reshape(1, -1) for gt in g], 0)
    k["gat_w2"] = jnp.stack([gt["w2"] for gt in g], 0)
    k["gat_b2"] = jnp.stack([gt["b2"].reshape(1, -1) for gt in g], 0)

    k["norm_gb"] = jnp.stack([p["norms_g"], p["norms_b"]], axis=1)      # (T, 2, H)
    k["te"] = p["time_embeddings"]
    k["ne"] = p["node_embeddings"]
    k["adj"] = build_adj_big()
    k["out_norm"] = jnp.stack([p["out_norm_g"], p["out_norm_b"]], 0)    # (2, H)
    # end_conv (Conv2d(recent, out_steps, kernel=(1, hidden))) as matmul weight
    k["Wend"] = p["end_w"].reshape(OUT_STEPS * OUTPUT_DIM, RECENT * RNN_UNITS).T
    k["bend"] = p["end_b"].reshape(1, -1)
    return k


# ------------------------------ model forward --------------------------------
def encoder_forward(p, x):
    # Embedding gathers / broadcast concat are left to XLA (one-time, tiny).
    xin = x[..., :INPUT_DIM]
    proj = jnp.einsum("btnd,de->btne", xin, p["input_proj_w"]) + p["input_proj_b"]
    feats = [proj]
    for i in range(len(PERIODS)):
        idx = (x[..., 1 + i] * PERIODS[i]).astype(jnp.int32)   # .long() truncation
        feats.append(jnp.take(p["period_emb"][i], idx, axis=0))
    feats.append(jnp.take(p["weekend_emb"], x[..., 3].astype(jnp.int32), axis=0))
    feats.append(jnp.take(p["holiday_emb"], x[..., 4].astype(jnp.int32), axis=0))
    feats.append(jnp.broadcast_to(p["node_emb"][None, None], (B, IN_STEPS, N, SPATIAL_EMB)))
    feats.append(jnp.broadcast_to(p["adaptive_emb"][None], (B, IN_STEPS, N, ADAPTIVE_EMB)))
    return jnp.concatenate(feats, axis=-1)                     # (B, T, N, DIM_FEAT)


def network_forward(p, packed, x):
    enc = encoder_forward(p, x)
    dat = jnp.concatenate([x, enc], axis=-1)                   # (B, T, N, D_IN)
    xs = jnp.transpose(dat, (1, 0, 2, 3)).reshape(IN_STEPS, BN, D_IN)
    y = fused_dstrnn(packed, xs)                               # (BN, OUT*OD)
    y = y.reshape(B, N, OUT_STEPS * OUTPUT_DIM)
    y = jnp.transpose(y, (0, 2, 1))                            # (B, OUT*OD, N)
    y = y.reshape(B, OUT_STEPS, OUTPUT_DIM, N)
    return jnp.transpose(y, (0, 1, 3, 2))                      # (B, OUT, N, OD)


# ----------------------------------- main ------------------------------------
if __name__ == "__main__":
    key = jax.random.PRNGKey(0)
    kp, k1, k2, k3, k4, k5 = jax.random.split(key, 6)
    params = init_params(kp)
    packed = pack_params(params)

    flow = jax.random.normal(k1, (B, IN_STEPS, N, 1), jnp.float32)
    tod = jax.random.randint(k2, (B, IN_STEPS, N, 1), 0, PERIODS[0]).astype(jnp.float32) / PERIODS[0]
    dow = jax.random.randint(k3, (B, IN_STEPS, N, 1), 0, PERIODS[1]).astype(jnp.float32) / PERIODS[1]
    wkd = jax.random.randint(k4, (B, IN_STEPS, N, 1), 0, 2).astype(jnp.float32)
    hol = jax.random.randint(k5, (B, IN_STEPS, N, 1), 0, 2).astype(jnp.float32)
    x = jnp.concatenate([flow, tod, dow, wkd, hol], axis=-1)   # (B, T, N, 5)

    fwd = jax.jit(functools.partial(network_forward, params, packed))
    out = jax.block_until_ready(fwd(x))
    assert out.shape == (B, OUT_STEPS, N, OUTPUT_DIM), out.shape
    assert bool(jnp.all(jnp.isfinite(out)))
    print("KERNEL_OK")
</pallas_src>

<mosaic_0001>
module attributes {stable_mosaic.version = 11 : i64} {
  func.func @_dstrnn_kernel(%arg0: i32, %arg1: memref<1x16x33xf32, #tpu.memory_space<vmem>>, %arg2: memref<1x33x256xf32, #tpu.memory_space<vmem>>, %arg3: memref<1x256x2xf32, #tpu.memory_space<vmem>>, %arg4: memref<1x512x256xf32, #tpu.memory_space<vmem>>, %arg5: memref<1x1x256xf32, #tpu.memory_space<vmem>>, %arg6: memref<1x256x16xf32, #tpu.memory_space<vmem>>, %arg7: memref<1x1x16xf32, #tpu.memory_space<vmem>>, %arg8: memref<1x2x16xf32, #tpu.memory_space<vmem>>, %arg9: memref<1x16x768xf32, #tpu.memory_space<vmem>>, %arg10: memref<1x16x512xf32, #tpu.memory_space<vmem>>, %arg11: memref<1x16x256xf32, #tpu.memory_space<vmem>>, %arg12: memref<1x3x2x8xf32, #tpu.memory_space<vmem>>, %arg13: memref<1x3x8x16xf32, #tpu.memory_space<vmem>>, %arg14: memref<12x8xf32, #tpu.memory_space<vmem>>, %arg15: memref<8x8xf32, #tpu.memory_space<vmem>>, %arg16: memref<16x16xf32, #tpu.memory_space<vmem>>, %arg17: memref<33x768xf32, #tpu.memory_space<vmem>>, %arg18: memref<16x512xf32, #tpu.memory_space<vmem>>, %arg19: memref<16x256xf32, #tpu.memory_space<vmem>>, %arg20: memref<3x2x8xf32, #tpu.memory_space<vmem>>, %arg21: memref<3x8x16xf32, #tpu.memory_space<vmem>>, %arg22: memref<2x16xf32, #tpu.memory_space<vmem>>, %arg23: memref<32x12xf32, #tpu.memory_space<vmem>>, %arg24: memref<1x12xf32, #tpu.memory_space<vmem>>, %arg25: memref<16x12xf32, #tpu.memory_space<vmem>>, %arg26: memref<16x16xf32, #tpu.memory_space<vmem>>, %arg27: memref<2x16x16xf32, #tpu.memory_space<vmem>>, %arg28: memref<16x33xf32, #tpu.memory_space<vmem>>) attributes {dimension_semantics = [#tpu.dimension_semantics<arbitrary>], iteration_bounds = array<i64: 12>, scalar_prefetch = 0 : i64, scratch_operands = 3 : i64, tpu.core_type = #tpu.core_type<tc>, window_params = [{transform_indices = @transform_0, window_bounds = array<i64: 1, 16, 33>}, {transform_indices = @transform_1, window_bounds = array<i64: 1, 33, 256>}, {transform_indices = @transform_2, window_bounds = array<i64: 1, 256, 2>}, {transform_indices = @transform_3, window_bounds = array<i64: 1, 512, 256>}, {transform_indices = @transform_4, window_bounds = array<i64: 1, 1, 256>}, {transform_indices = @transform_5, window_bounds = array<i64: 1, 256, 16>}, {transform_indices = @transform_6, window_bounds = array<i64: 1, 1, 16>}, {transform_indices = @transform_7, window_bounds = array<i64: 1, 2, 16>}, {transform_indices = @transform_8, window_bounds = array<i64: 1, 16, 768>}, {transform_indices = @transform_9, window_bounds = array<i64: 1, 16, 512>}, {transform_indices = @transform_10, window_bounds = array<i64: 1, 16, 256>}, {transform_indices = @transform_11, window_bounds = array<i64: 1, 3, 2, 8>}, {transform_indices = @transform_12, window_bounds = array<i64: 1, 3, 8, 16>}, {pipeline_mode = #tpu.pipeline_mode<synchronous>, transform_indices = @transform_13, window_bounds = array<i64: 12, 8>}, {pipeline_mode = #tpu.pipeline_mode<synchronous>, transform_indices = @transform_14, window_bounds = array<i64: 8, 8>}, {pipeline_mode = #tpu.pipeline_mode<synchronous>, transform_indices = @transform_15, window_bounds = array<i64: 16, 16>}, {pipeline_mode = #tpu.pipeline_mode<synchronous>, transform_indices = @transform_16, window_bounds = array<i64: 33, 768>}, {pipeline_mode = #tpu.pipeline_mode<synchronous>, transform_indices = @transform_17, window_bounds = array<i64: 16, 512>}, {pipeline_mode = #tpu.pipeline_mode<synchronous>, transform_indices = @transform_18, window_bounds = array<i64: 16, 256>}, {pipeline_mode = #tpu.pipeline_mode<synchronous>, transform_indices = @transform_19, window_bounds = array<i64: 3, 2, 8>}, {pipeline_mode = #tpu.pipeline_mode<synchronous>, transform_indices = @transform_20, window_bounds = array<i64: 3, 8, 16>}, {pipeline_mode = #tpu.pipeline_mode<synchronous>, transform_indices = @transform_21, window_bounds = array<i64: 2, 16>}, {pipeline_mode = #tpu.pipeline_mode<synchronous>, transform_indices = @transform_22, window_bounds = array<i64: 32, 12>}, {pipeline_mode = #tpu.pipeline_mode<synchronous>, transform_indices = @transform_23, window_bounds = array<i64: 1, 12>}, {pipeline_mode = #tpu.pipeline_mode<synchronous>, transform_indices = @transform_24, window_bounds = array<i64: 16, 12>}]} {
    %c0 = arith.constant 0 : index
    %c0_0 = arith.constant 0 : index
    %c0_1 = arith.constant 0 : index
    %0 = vector.load %arg1[%c0, %c0_0, %c0_1] : memref<1x16x33xf32, #tpu.memory_space<vmem>>, vector<1x16x33xf32>
    %1 = vector.shape_cast %0 : vector<1x16x33xf32> to vector<16x33xf32>
    %c0_i32 = arith.constant 0 : i32
    %2 = arith.cmpi eq, %arg0, %c0_i32 : i32
    %3 = arith.extui %2 : i1 to i32
    %c0_i32_2 = arith.constant 0 : i32
    %4 = arith.cmpi ne, %3, %c0_i32_2 : i32
    scf.if %4 {
      %cst_165 = arith.constant 0.000000e+00 : f32
      %705 = vector.broadcast %cst_165 : f32 to vector<16x16xf32>
      %c0_166 = arith.constant 0 : index
      %c0_167 = arith.constant 0 : index
      %706 = vector.load %arg26[%c0_166, %c0_167] : memref<16x16xf32, #tpu.memory_space<vmem>>, vector<16x16xf32>
      tpu.vector_store %arg26[%c0_166, %c0_167], %705 {strides = array<i32>} : memref<16x16xf32, #tpu.memory_space<vmem>>, vector<16x16xf32>,
      %cst_168 = arith.constant 0.000000e+00 : f32
      %707 = vector.broadcast %cst_168 : f32 to vector<2x16x16xf32>
      %c0_169 = arith.constant 0 : index
      %c0_170 = arith.constant 0 : index
      %c0_171 = arith.constant 0 : index
      %708 = vector.load %arg27[%c0_169, %c0_170, %c0_171] : memref<2x16x16xf32, #tpu.memory_space<vmem>>, vector<2x16x16xf32>
      tpu.vector_store %arg27[%c0_169, %c0_170, %c0_171], %707 {strides = array<i32>} : memref<2x16x16xf32, #tpu.memory_space<vmem>>, vector<2x16x16xf32>,
      %c0_172 = arith.constant 0 : index
      %c0_173 = arith.constant 0 : index
      %709 = vector.load %arg28[%c0_172, %c0_173] : memref<16x33xf32, #tpu.memory_space<vmem>>, vector<16x33xf32>
      tpu.vector_store %arg28[%c0_172, %c0_173], %1 {strides = array<i32>} : memref<16x33xf32, #tpu.memory_space<vmem>>, vector<16x33xf32>,
    } else {
    }
    %c0_3 = arith.constant 0 : index
    %c0_4 = arith.constant 0 : index
    %5 = vector.load %arg15[%c0_3, %c0_4] : memref<8x8xf32, #tpu.memory_space<vmem>>, vector<8x8xf32>
    %6 = arith.index_cast %arg0 : i32 to index
    %c0_5 = arith.constant 0 : index
    %7 = vector.load %arg14[%6, %c0_5] : memref<12x8xf32, #tpu.memory_space<vmem>>, vector<1x8xf32>
    %8 = vector.broadcast %7 : vector<1x8xf32> to vector<8x8xf32>
    %9 = arith.addf %5, %8 : vector<8x8xf32>
    %cst = arith.constant dense<0.000000e+00> : vector<8xf32>
    %10 = vector.multi_reduction <add>, %9, %cst [1] : vector<8x8xf32> to vector<8xf32>
    %11 = vector.shape_cast %10 : vector<8xf32> to vector<8x1xf32>
    %cst_6 = arith.constant 8.000000e+00 : f32
    %12 = vector.broadcast %cst_6 : f32 to vector<8x1xf32>
    %13 = arith.divf %11, %12 : vector<8x1xf32>
    %14 = vector.broadcast %13 : vector<8x1xf32> to vector<8x8xf32>
    %15 = arith.subf %9, %14 : vector<8x8xf32>
    %16 = arith.mulf %15, %15 : vector<8x8xf32>
    %cst_7 = arith.constant dense<0.000000e+00> : vector<8xf32>
    %17 = vector.multi_reduction <add>, %16, %cst_7 [1] : vector<8x8xf32> to vector<8xf32>
    %18 = vector.shape_cast %17 : vector<8xf32> to vector<8x1xf32>
    %cst_8 = arith.constant 8.000000e+00 : f32
    %19 = vector.broadcast %cst_8 : f32 to vector<8x1xf32>
    %20 = arith.divf %18, %19 : vector<8x1xf32>
    %21 = vector.broadcast %13 : vector<8x1xf32> to vector<8x8xf32>
    %22 = arith.subf %9, %21 : vector<8x8xf32>
    %cst_9 = arith.constant 9.99999996E-13 : f32
    %23 = vector.broadcast %cst_9 : f32 to vector<8x1xf32>
    %24 = arith.addf %20, %23 : vector<8x1xf32>
    %25 = math.rsqrt %24 : vector<8x1xf32>
    %26 = vector.broadcast %25 : vector<8x1xf32> to vector<8x8xf32>
    %27 = arith.mulf %22, %26 : vector<8x8xf32>
    %c0_10 = arith.constant 0 : index
    %c0_11 = arith.constant 0 : index
    %28 = vector.load %arg26[%c0_10, %c0_11] : memref<16x16xf32, #tpu.memory_space<vmem>>, vector<16x16xf32>
    %c0_12 = arith.constant 0 : index
    %c0_13 = arith.constant 0 : index
    %29 = vector.load %arg17[%c0_12, %c0_13] : memref<33x768xf32, #tpu.memory_space<vmem>>, vector<33x768xf32>
    %c0_14 = arith.constant 0 : index
    %c0_15 = arith.constant 0 : index
    %30 = vector.load %arg18[%c0_14, %c0_15] : memref<16x512xf32, #tpu.memory_space<vmem>>, vector<16x512xf32>
    %c0_16 = arith.constant 0 : index
    %c0_17 = arith.constant 0 : index
    %31 = vector.load %arg19[%c0_16, %c0_17] : memref<16x256xf32, #tpu.memory_space<vmem>>, vector<16x256xf32>
    %c0_18 = arith.constant 0 : index
    %c0_19 = arith.constant 0 : index
    %c0_20 = arith.constant 0 : index
    %32 = vector.load %arg20[%c0_18, %c0_19, %c0_20] : memref<3x2x8xf32, #tpu.memory_space<vmem>>, vector<3x2x8xf32>
    %c0_21 = arith.constant 0 : index
    %c0_22 = arith.constant 0 : index
    %c0_23 = arith.constant 0 : index
    %33 = vector.load %arg21[%c0_21, %c0_22, %c0_23] : memref<3x8x16xf32, #tpu.memory_space<vmem>>, vector<3x8x16xf32>
    %cst_24 = arith.constant dense<0.000000e+00> : vector<16x768xf32>
    %34 = tpu.matmul %1, %29, %cst_24 {dimension_numbers = #tpu.dot_dimension_numbers<[1], [0], [0], [1], [0, 0, 1, 1], [], []>} : vector<16x33xf32>, vector<33x768xf32>, vector<16x768xf32> -> vector<16x768xf32>
    %cst_25 = arith.constant dense<0.000000e+00> : vector<16x512xf32>
    %35 = tpu.matmul %28, %30, %cst_25 {dimension_numbers = #tpu.dot_dimension_numbers<[1], [0], [0], [1], [0, 0, 1, 1], [], []>} : vector<16x16xf32>, vector<16x512xf32>, vector<16x512xf32> -> vector<16x512xf32>
    %36 = vector.extract_strided_slice %34 {offsets = [0, 0], sizes = [16, 128], strides = [1, 1]} : vector<16x768xf32> to vector<16x128xf32>
    %37 = vector.extract_strided_slice %35 {offsets = [0, 0], sizes = [16, 128], strides = [1, 1]} : vector<16x512xf32> to vector<16x128xf32>
    %38 = arith.addf %36, %37 : vector<16x128xf32>
    %39 = vector.extract_strided_slice %34 {offsets = [0, 128], sizes = [16, 128], strides = [1, 1]} : vector<16x768xf32> to vector<16x128xf32>
    %40 = vector.extract_strided_slice %35 {offsets = [0, 128], sizes = [16, 128], strides = [1, 1]} : vector<16x512xf32> to vector<16x128xf32>
    %41 = arith.addf %39, %40 : vector<16x128xf32>
    %42 = vector.extract_strided_slice %32 {offsets = [0, 0, 0], sizes = [1, 1, 8], strides = [1, 1, 1]} : vector<3x2x8xf32> to vector<1x1x8xf32>
    %43 = vector.shape_cast %42 : vector<1x1x8xf32> to vector<1x8xf32>
    %44 = vector.extract_strided_slice %32 {offsets = [0, 1, 0], sizes = [1, 1, 8], strides = [1, 1, 1]} : vector<3x2x8xf32> to vector<1x1x8xf32>
    %45 = vector.shape_cast %44 : vector<1x1x8xf32> to vector<1x8xf32>
    %46 = vector.broadcast %43 : vector<1x8xf32> to vector<8x8xf32>
    %47 = arith.mulf %27, %46 : vector<8x8xf32>
    %48 = vector.broadcast %45 : vector<1x8xf32> to vector<8x8xf32>
    %49 = arith.addf %47, %48 : vector<8x8xf32>
    %50 = tpu.transpose %49, [1, 0] : vector<8x8xf32> -> vector<8x8xf32>
    %cst_26 = arith.constant dense<0.000000e+00> : vector<8x8xf32>
    %51 = tpu.matmul %49, %50, %cst_26 {dimension_numbers = #tpu.dot_dimension_numbers<[1], [0], [0], [1], [0, 0, 1, 1], [], []>} : vector<8x8xf32>, vector<8x8xf32>, vector<8x8xf32> -> vector<8x8xf32>
    %cst_27 = arith.constant dense<0xFF800000> : vector<8xf32>
    %52 = vector.multi_reduction <maximumf>, %51, %cst_27 [1] : vector<8x8xf32> to vector<8xf32>
    %53 = vector.shape_cast %52 : vector<8xf32> to vector<8x1xf32>
    %54 = vector.broadcast %53 : vector<8x1xf32> to vector<8x8xf32>
    %55 = arith.subf %51, %54 : vector<8x8xf32>
    %56 = math.exp %55 : vector<8x8xf32>
    %cst_28 = arith.constant dense<0.000000e+00> : vector<8xf32>
    %57 = vector.multi_reduction <add>, %56, %cst_28 [1] : vector<8x8xf32> to vector<8xf32>
    %58 = vector.shape_cast %57 : vector<8xf32> to vector<8x1xf32>
    %59 = vector.broadcast %58 : vector<8x1xf32> to vector<8x8xf32>
    %60 = arith.divf %56, %59 : vector<8x8xf32>
    %61 = vector.extract_strided_slice %41 {offsets = [0, 0], sizes = [8, 128], strides = [1, 1]} : vector<16x128xf32> to vector<8x128xf32>
    %cst_29 = arith.constant dense<0.000000e+00> : vector<8x128xf32>
    %62 = tpu.matmul %60, %61, %cst_29 {dimension_numbers = #tpu.dot_dimension_numbers<[1], [0], [0], [1], [0, 0, 1, 1], [], []>} : vector<8x8xf32>, vector<8x128xf32>, vector<8x128xf32> -> vector<8x128xf32>
    %63 = vector.extract_strided_slice %41 {offsets = [8, 0], sizes = [8, 128], strides = [1, 1]} : vector<16x128xf32> to vector<8x128xf32>
    %cst_30 = arith.constant dense<0.000000e+00> : vector<8x128xf32>
    %64 = tpu.matmul %60, %63, %cst_30 {dimension_numbers = #tpu.dot_dimension_numbers<[1], [0], [0], [1], [0, 0, 1, 1], [], []>} : vector<8x8xf32>, vector<8x128xf32>, vector<8x128xf32> -> vector<8x128xf32>
    %65 = tpu.concatenate %62, %64 in 0 : vector<8x128xf32>, vector<8x128xf32> -> vector<16x128xf32>
    %66 = arith.addf %38, %65 : vector<16x128xf32>
    %67 = vector.extract_strided_slice %33 {offsets = [0, 0, 0], sizes = [1, 8, 16], strides = [1, 1, 1]} : vector<3x8x16xf32> to vector<1x8x16xf32>
    %68 = vector.shape_cast %67 : vector<1x8x16xf32> to vector<8x16xf32>
    %cst_31 = arith.constant dense<0.000000e+00> : vector<8x16xf32>
    %69 = tpu.matmul %49, %68, %cst_31 {dimension_numbers = #tpu.dot_dimension_numbers<[1], [0], [0], [1], [0, 0, 1, 1], [], []>} : vector<8x8xf32>, vector<8x16xf32>, vector<8x16xf32> -> vector<8x16xf32>
    %70 = tpu.concatenate %69, %69 in 0 : vector<8x16xf32>, vector<8x16xf32> -> vector<16x16xf32>
    %71 = tpu.concatenate %49, %49 in 0 : vector<8x8xf32>, vector<8x8xf32> -> vector<16x8xf32>
    %72 = vector.extract_strided_slice %71 {offsets = [0, 0], sizes = [16, 1], strides = [1, 1]} : vector<16x8xf32> to vector<16x1xf32>
    %73 = vector.extract_strided_slice %66 {offsets = [0, 0], sizes = [16, 16], strides = [1, 1]} : vector<16x128xf32> to vector<16x16xf32>
    %74 = vector.broadcast %72 : vector<16x1xf32> to vector<16x16xf32>
    %75 = arith.mulf %74, %73 : vector<16x16xf32>
    %76 = arith.addf %70, %75 : vector<16x16xf32>
    %77 = vector.extract_strided_slice %71 {offsets = [0, 1], sizes = [16, 1], strides = [1, 1]} : vector<16x8xf32> to vector<16x1xf32>
    %78 = vector.extract_strided_slice %66 {offsets = [0, 16], sizes = [16, 16], strides = [1, 1]} : vector<16x128xf32> to vector<16x16xf32>
    %79 = vector.broadcast %77 : vector<16x1xf32> to vector<16x16xf32>
    %80 = arith.mulf %79, %78 : vector<16x16xf32>
    %81 = arith.addf %76, %80 : vector<16x16xf32>
    %82 = vector.extract_strided_slice %71 {offsets = [0, 2], sizes = [16, 1], strides = [1, 1]} : vector<16x8xf32> to vector<16x1xf32>
    %83 = vector.extract_strided_slice %66 {offsets = [0, 32], sizes = [16, 16], strides = [1, 1]} : vector<16x128xf32> to vector<16x16xf32>
    %84 = vector.broadcast %82 : vector<16x1xf32> to vector<16x16xf32>
    %85 = arith.mulf %84, %83 : vector<16x16xf32>
    %86 = arith.addf %81, %85 : vector<16x16xf32>
    %87 = vector.extract_strided_slice %71 {offsets = [0, 3], sizes = [16, 1], strides = [1, 1]} : vector<16x8xf32> to vector<16x1xf32>
    %88 = vector.extract_strided_slice %66 {offsets = [0, 48], sizes = [16, 16], strides = [1, 1]} : vector<16x128xf32> to vector<16x16xf32>
    %89 = vector.broadcast %87 : vector<16x1xf32> to vector<16x16xf32>
    %90 = arith.mulf %89, %88 : vector<16x16xf32>
    %91 = arith.addf %86, %90 : vector<16x16xf32>
    %92 = vector.extract_strided_slice %71 {offsets = [0, 4], sizes = [16, 1], strides = [1, 1]} : vector<16x8xf32> to vector<16x1xf32>
    %93 = vector.extract_strided_slice %66 {offsets = [0, 64], sizes = [16, 16], strides = [1, 1]} : vector<16x128xf32> to vector<16x16xf32>
    %94 = vector.broadcast %92 : vector<16x1xf32> to vector<16x16xf32>
    %95 = arith.mulf %94, %93 : vector<16x16xf32>
    %96 = arith.addf %91, %95 : vector<16x16xf32>
    %97 = vector.extract_strided_slice %71 {offsets = [0, 5], sizes = [16, 1], strides = [1, 1]} : vector<16x8xf32> to vector<16x1xf32>
    %98 = vector.extract_strided_slice %66 {offsets = [0, 80], sizes = [16, 16], strides = [1, 1]} : vector<16x128xf32> to vector<16x16xf32>
    %99 = vector.broadcast %97 : vector<16x1xf32> to vector<16x16xf32>
    %100 = arith.mulf %99, %98 : vector<16x16xf32>
    %101 = arith.addf %96, %100 : vector<16x16xf32>
    %102 = vector.extract_strided_slice %71 {offsets = [0, 6], sizes = [16, 1], strides = [1, 1]} : vector<16x8xf32> to vector<16x1xf32>
    %103 = vector.extract_strided_slice %66 {offsets = [0, 96], sizes = [16, 16], strides = [1, 1]} : vector<16x128xf32> to vector<16x16xf32>
    %104 = vector.broadcast %102 : vector<16x1xf32> to vector<16x16xf32>
    %105 = arith.mulf %104, %103 : vector<16x16xf32>
    %106 = arith.addf %101, %105 : vector<16x16xf32>
    %107 = vector.extract_strided_slice %71 {offsets = [0, 7], sizes = [16, 1], strides = [1, 1]} : vector<16x8xf32> to vector<16x1xf32>
    %108 = vector.extract_strided_slice %66 {offsets = [0, 112], sizes = [16, 16], strides = [1, 1]} : vector<16x128xf32> to vector<16x16xf32>
    %109 = vector.broadcast %107 : vector<16x1xf32> to vector<16x16xf32>
    %110 = arith.mulf %109, %108 : vector<16x16xf32>
    %111 = arith.addf %106, %110 : vector<16x16xf32>
    %cst_32 = arith.constant 0.000000e+00 : f32
    %112 = vector.broadcast %cst_32 : f32 to vector<16x16xf32>
    %113 = arith.subf %112, %111 : vector<16x16xf32>
    %114 = math.exp %113 : vector<16x16xf32>
    %cst_33 = arith.constant 1.000000e+00 : f32
    %115 = vector.broadcast %cst_33 : f32 to vector<16x16xf32>
    %116 = arith.addf %115, %114 : vector<16x16xf32>
    %cst_34 = arith.constant 1.000000e+00 : f32
    %117 = vector.broadcast %cst_34 : f32 to vector<16x16xf32>
    %118 = arith.divf %117, %116 : vector<16x16xf32>
    %119 = vector.extract_strided_slice %34 {offsets = [0, 256], sizes = [16, 128], strides = [1, 1]} : vector<16x768xf32> to vector<16x128xf32>
    %120 = vector.extract_strided_slice %35 {offsets = [0, 256], sizes = [16, 128], strides = [1, 1]} : vector<16x512xf32> to vector<16x128xf32>
    %121 = arith.addf %119, %120 : vector<16x128xf32>
    %122 = vector.extract_strided_slice %34 {offsets = [0, 384], sizes = [16, 128], strides = [1, 1]} : vector<16x768xf32> to vector<16x128xf32>
    %123 = vector.extract_strided_slice %35 {offsets = [0, 384], sizes = [16, 128], strides = [1, 1]} : vector<16x512xf32> to vector<16x128xf32>
    %124 = arith.addf %122, %123 : vector<16x128xf32>
    %125 = vector.extract_strided_slice %32 {offsets = [1, 0, 0], sizes = [1, 1, 8], strides = [1, 1, 1]} : vector<3x2x8xf32> to vector<1x1x8xf32>
    %126 = vector.shape_cast %125 : vector<1x1x8xf32> to vector<1x8xf32>
    %127 = vector.extract_strided_slice %32 {offsets = [1, 1, 0], sizes = [1, 1, 8], strides = [1, 1, 1]} : vector<3x2x8xf32> to vector<1x1x8xf32>
    %128 = vector.shape_cast %127 : vector<1x1x8xf32> to vector<1x8xf32>
    %129 = vector.broadcast %126 : vector<1x8xf32> to vector<8x8xf32>
    %130 = arith.mulf %27, %129 : vector<8x8xf32>
    %131 = vector.broadcast %128 : vector<1x8xf32> to vector<8x8xf32>
    %132 = arith.addf %130, %131 : vector<8x8xf32>
    %133 = tpu.transpose %132, [1, 0] : vector<8x8xf32> -> vector<8x8xf32>
    %cst_35 = arith.constant dense<0.000000e+00> : vector<8x8xf32>
    %134 = tpu.matmul %132, %133, %cst_35 {dimension_numbers = #tpu.dot_dimension_numbers<[1], [0], [0], [1], [0, 0, 1, 1], [], []>} : vector<8x8xf32>, vector<8x8xf32>, vector<8x8xf32> -> vector<8x8xf32>
    %cst_36 = arith.constant dense<0xFF800000> : vector<8xf32>
    %135 = vector.multi_reduction <maximumf>, %134, %cst_36 [1] : vector<8x8xf32> to vector<8xf32>
    %136 = vector.shape_cast %135 : vector<8xf32> to vector<8x1xf32>
    %137 = vector.broadcast %136 : vector<8x1xf32> to vector<8x8xf32>
    %138 = arith.subf %134, %137 : vector<8x8xf32>
    %139 = math.exp %138 : vector<8x8xf32>
    %cst_37 = arith.constant dense<0.000000e+00> : vector<8xf32>
    %140 = vector.multi_reduction <add>, %139, %cst_37 [1] : vector<8x8xf32> to vector<8xf32>
    %141 = vector.shape_cast %140 : vector<8xf32> to vector<8x1xf32>
    %142 = vector.broadcast %141 : vector<8x1xf32> to vector<8x8xf32>
    %143 = arith.divf %139, %142 : vector<8x8xf32>
    %144 = vector.extract_strided_slice %124 {offsets = [0, 0], sizes = [8, 128], strides = [1, 1]} : vector<16x128xf32> to vector<8x128xf32>
    %cst_38 = arith.constant dense<0.000000e+00> : vector<8x128xf32>
    %145 = tpu.matmul %143, %144, %cst_38 {dimension_numbers = #tpu.dot_dimension_numbers<[1], [0], [0], [1], [0, 0, 1, 1], [], []>} : vector<8x8xf32>, vector<8x128xf32>, vector<8x128xf32> -> vector<8x128xf32>
    %146 = vector.extract_strided_slice %124 {offsets = [8, 0], sizes = [8, 128], strides = [1, 1]} : vector<16x128xf32> to vector<8x128xf32>
    %cst_39 = arith.constant dense<0.000000e+00> : vector<8x128xf32>
    %147 = tpu.matmul %143, %146, %cst_39 {dimension_numbers = #tpu.dot_dimension_numbers<[1], [0], [0], [1], [0, 0, 1, 1], [], []>} : vector<8x8xf32>, vector<8x128xf32>, vector<8x128xf32> -> vector<8x128xf32>
    %148 = tpu.concatenate %145, %147 in 0 : vector<8x128xf32>, vector<8x128xf32> -> vector<16x128xf32>
    %149 = arith.addf %121, %148 : vector<16x128xf32>
    %150 = vector.extract_strided_slice %33 {offsets = [1, 0, 0], sizes = [1, 8, 16], strides = [1, 1, 1]} : vector<3x8x16xf32> to vector<1x8x16xf32>
    %151 = vector.shape_cast %150 : vector<1x8x16xf32> to vector<8x16xf32>
    %cst_40 = arith.constant dense<0.000000e+00> : vector<8x16xf32>
    %152 = tpu.matmul %132, %151, %cst_40 {dimension_numbers = #tpu.dot_dimension_numbers<[1], [0], [0], [1], [0, 0, 1, 1], [], []>} : vector<8x8xf32>, vector<8x16xf32>, vector<8x16xf32> -> vector<8x16xf32>
    %153 = tpu.concatenate %152, %152 in 0 : vector<8x16xf32>, vector<8x16xf32> -> vector<16x16xf32>
    %154 = tpu.concatenate %132, %132 in 0 : vector<8x8xf32>, vector<8x8xf32> -> vector<16x8xf32>
    %155 = vector.extract_strided_slice %154 {offsets = [0, 0], sizes = [16, 1], strides = [1, 1]} : vector<16x8xf32> to vector<16x1xf32>
    %156 = vector.extract_strided_slice %149 {offsets = [0, 0], sizes = [16, 16], strides = [1, 1]} : vector<16x128xf32> to vector<16x16xf32>
    %157 = vector.broadcast %155 : vector<16x1xf32> to vector<16x16xf32>
    %158 = arith.mulf %157, %156 : vector<16x16xf32>
    %159 = arith.addf %153, %158 : vector<16x16xf32>
    %160 = vector.extract_strided_slice %154 {offsets = [0, 1], sizes = [16, 1], strides = [1, 1]} : vector<16x8xf32> to vector<16x1xf32>
    %161 = vector.extract_strided_slice %149 {offsets = [0, 16], sizes = [16, 16], strides = [1, 1]} : vector<16x128xf32> to vector<16x16xf32>
    %162 = vector.broadcast %160 : vector<16x1xf32> to vector<16x16xf32>
    %163 = arith.mulf %162, %161 : vector<16x16xf32>
    %164 = arith.addf %159, %163 : vector<16x16xf32>
    %165 = vector.extract_strided_slice %154 {offsets = [0, 2], sizes = [16, 1], strides = [1, 1]} : vector<16x8xf32> to vector<16x1xf32>
    %166 = vector.extract_strided_slice %149 {offsets = [0, 32], sizes = [16, 16], strides = [1, 1]} : vector<16x128xf32> to vector<16x16xf32>
    %167 = vector.broadcast %165 : vector<16x1xf32> to vector<16x16xf32>
    %168 = arith.mulf %167, %166 : vector<16x16xf32>
    %169 = arith.addf %164, %168 : vector<16x16xf32>
    %170 = vector.extract_strided_slice %154 {offsets = [0, 3], sizes = [16, 1], strides = [1, 1]} : vector<16x8xf32> to vector<16x1xf32>
    %171 = vector.extract_strided_slice %149 {offsets = [0, 48], sizes = [16, 16], strides = [1, 1]} : vector<16x128xf32> to vector<16x16xf32>
    %172 = vector.broadcast %170 : vector<16x1xf32> to vector<16x16xf32>
    %173 = arith.mulf %172, %171 : vector<16x16xf32>
    %174 = arith.addf %169, %173 : vector<16x16xf32>
    %175 = vector.extract_strided_slice %154 {offsets = [0, 4], sizes = [16, 1], strides = [1, 1]} : vector<16x8xf32> to vector<16x1xf32>
    %176 = vector.extract_strided_slice %149 {offsets = [0, 64], sizes = [16, 16], strides = [1, 1]} : vector<16x128xf32> to vector<16x16xf32>
    %177 = vector.broadcast %175 : vector<16x1xf32> to vector<16x16xf32>
    %178 = arith.mulf %177, %176 : vector<16x16xf32>
    %179 = arith.addf %174, %178 : vector<16x16xf32>
    %180 = vector.extract_strided_slice %154 {offsets = [0, 5], sizes = [16, 1], strides = [1, 1]} : vector<16x8xf32> to vector<16x1xf32>
    %181 = vector.extract_strided_slice %149 {offsets = [0, 80], sizes = [16, 16], strides = [1, 1]} : vector<16x128xf32> to vector<16x16xf32>
    %182 = vector.broadcast %180 : vector<16x1xf32> to vector<16x16xf32>
    %183 = arith.mulf %182, %181 : vector<16x16xf32>
    %184 = arith.addf %179, %183 : vector<16x16xf32>
    %185 = vector.extract_strided_slice %154 {offsets = [0, 6], sizes = [16, 1], strides = [1, 1]} : vector<16x8xf32> to vector<16x1xf32>
    %186 = vector.extract_strided_slice %149 {offsets = [0, 96], sizes = [16, 16], strides = [1, 1]} : vector<16x128xf32> to vector<16x16xf32>
    %187 = vector.broadcast %185 : vector<16x1xf32> to vector<16x16xf32>
    %188 = arith.mulf %187, %186 : vector<16x16xf32>
    %189 = arith.addf %184, %188 : vector<16x16xf32>
    %190 = vector.extract_strided_slice %154 {offsets = [0, 7], sizes = [16, 1], strides = [1, 1]} : vector<16x8xf32> to vector<16x1xf32>
    %191 = vector.extract_strided_slice %149 {offsets = [0, 112], sizes = [16, 16], strides = [1, 1]} : vector<16x128xf32> to vector<16x16xf32>
    %192 = vector.broadcast %190 : vector<16x1xf32> to vector<16x16xf32>
    %193 = arith.mulf %192, %191 : vector<16x16xf32>
    %194 = arith.addf %189, %193 : vector<16x16xf32>
    %cst_41 = arith.constant 0.000000e+00 : f32
    %195 = vector.broadcast %cst_41 : f32 to vector<16x16xf32>
    %196 = arith.subf %195, %194 : vector<16x16xf32>
    %197 = math.exp %196 : vector<16x16xf32>
    %cst_42 = arith.constant 1.000000e+00 : f32
    %198 = vector.broadcast %cst_42 : f32 to vector<16x16xf32>
    %199 = arith.addf %198, %197 : vector<16x16xf32>
    %cst_43 = arith.constant 1.000000e+00 : f32
    %200 = vector.broadcast %cst_43 : f32 to vector<16x16xf32>
    %201 = arith.divf %200, %199 : vector<16x16xf32>
    %202 = arith.mulf %118, %28 : vector<16x16xf32>
    %cst_44 = arith.constant dense<0.000000e+00> : vector<16x256xf32>
    %203 = tpu.matmul %202, %31, %cst_44 {dimension_numbers = #tpu.dot_dimension_numbers<[1], [0], [0], [1], [0, 0, 1, 1], [], []>} : vector<16x16xf32>, vector<16x256xf32>, vector<16x256xf32> -> vector<16x256xf32>
    %204 = vector.extract_strided_slice %34 {offsets = [0, 512], sizes = [16, 128], strides = [1, 1]} : vector<16x768xf32> to vector<16x128xf32>
    %205 = vector.extract_strided_slice %203 {offsets = [0, 0], sizes = [16, 128], strides = [1, 1]} : vector<16x256xf32> to vector<16x128xf32>
    %206 = arith.addf %204, %205 : vector<16x128xf32>
    %207 = vector.extract_strided_slice %34 {offsets = [0, 640], sizes = [16, 128], strides = [1, 1]} : vector<16x768xf32> to vector<16x128xf32>
    %208 = vector.extract_strided_slice %203 {offsets = [0, 128], sizes = [16, 128], strides = [1, 1]} : vector<16x256xf32> to vector<16x128xf32>
    %209 = arith.addf %207, %208 : vector<16x128xf32>
    %210 = vector.extract_strided_slice %32 {offsets = [2, 0, 0], sizes = [1, 1, 8], strides = [1, 1, 1]} : vector<3x2x8xf32> to vector<1x1x8xf32>
    %211 = vector.shape_cast %210 : vector<1x1x8xf32> to vector<1x8xf32>
    %212 = vector.extract_strided_slice %32 {offsets = [2, 1, 0], sizes = [1, 1, 8], strides = [1, 1, 1]} : vector<3x2x8xf32> to vector<1x1x8xf32>
    %213 = vector.shape_cast %212 : vector<1x1x8xf32> to vector<1x8xf32>
    %214 = vector.broadcast %211 : vector<1x8xf32> to vector<8x8xf32>
    %215 = arith.mulf %27, %214 : vector<8x8xf32>
    %216 = vector.broadcast %213 : vector<1x8xf32> to vector<8x8xf32>
    %217 = arith.addf %215, %216 : vector<8x8xf32>
    %218 = tpu.transpose %217, [1, 0] : vector<8x8xf32> -> vector<8x8xf32>
    %cst_45 = arith.constant dense<0.000000e+00> : vector<8x8xf32>
    %219 = tpu.matmul %217, %218, %cst_45 {dimension_numbers = #tpu.dot_dimension_numbers<[1], [0], [0], [1], [0, 0, 1, 1], [], []>} : vector<8x8xf32>, vector<8x8xf32>, vector<8x8xf32> -> vector<8x8xf32>
    %cst_46 = arith.constant dense<0xFF800000> : vector<8xf32>
    %220 = vector.multi_reduction <maximumf>, %219, %cst_46 [1] : vector<8x8xf32> to vector<8xf32>
    %221 = vector.shape_cast %220 : vector<8xf32> to vector<8x1xf32>
    %222 = vector.broadcast %221 : vector<8x1xf32> to vector<8x8xf32>
    %223 = arith.subf %219, %222 : vector<8x8xf32>
    %224 = math.exp %223 : vector<8x8xf32>
    %cst_47 = arith.constant dense<0.000000e+00> : vector<8xf32>
    %225 = vector.multi_reduction <add>, %224, %cst_47 [1] : vector<8x8xf32> to vector<8xf32>
    %226 = vector.shape_cast %225 : vector<8xf32> to vector<8x1xf32>
    %227 = vector.broadcast %226 : vector<8x1xf32> to vector<8x8xf32>
    %228 = arith.divf %224, %227 : vector<8x8xf32>
    %229 = vector.extract_strided_slice %209 {offsets = [0, 0], sizes = [8, 128], strides = [1, 1]} : vector<16x128xf32> to vector<8x128xf32>
    %cst_48 = arith.constant dense<0.000000e+00> : vector<8x128xf32>
    %230 = tpu.matmul %228, %229, %cst_48 {dimension_numbers = #tpu.dot_dimension_numbers<[1], [0], [0], [1], [0, 0, 1, 1], [], []>} : vector<8x8xf32>, vector<8x128xf32>, vector<8x128xf32> -> vector<8x128xf32>
    %231 = vector.extract_strided_slice %209 {offsets = [8, 0], sizes = [8, 128], strides = [1, 1]} : vector<16x128xf32> to vector<8x128xf32>
    %cst_49 = arith.constant dense<0.000000e+00> : vector<8x128xf32>
    %232 = tpu.matmul %228, %231, %cst_49 {dimension_numbers = #tpu.dot_dimension_numbers<[1], [0], [0], [1], [0, 0, 1, 1], [], []>} : vector<8x8xf32>, vector<8x128xf32>, vector<8x128xf32> -> vector<8x128xf32>
    %233 = tpu.concatenate %230, %232 in 0 : vector<8x128xf32>, vector<8x128xf32> -> vector<16x128xf32>
    %234 = arith.addf %206, %233 : vector<16x128xf32>
    %235 = vector.extract_strided_slice %33 {offsets = [2, 0, 0], sizes = [1, 8, 16], strides = [1, 1, 1]} : vector<3x8x16xf32> to vector<1x8x16xf32>
    %236 = vector.shape_cast %235 : vector<1x8x16xf32> to vector<8x16xf32>
    %cst_50 = arith.constant dense<0.000000e+00> : vector<8x16xf32>
    %237 = tpu.matmul %217, %236, %cst_50 {dimension_numbers = #tpu.dot_dimension_numbers<[1], [0], [0], [1], [0, 0, 1, 1], [], []>} : vector<8x8xf32>, vector<8x16xf32>, vector<8x16xf32> -> vector<8x16xf32>
    %238 = tpu.concatenate %237, %237 in 0 : vector<8x16xf32>, vector<8x16xf32> -> vector<16x16xf32>
    %239 = tpu.concatenate %217, %217 in 0 : vector<8x8xf32>, vector<8x8xf32> -> vector<16x8xf32>
    %240 = vector.extract_strided_slice %239 {offsets = [0, 0], sizes = [16, 1], strides = [1, 1]} : vector<16x8xf32> to vector<16x1xf32>
    %241 = vector.extract_strided_slice %234 {offsets = [0, 0], sizes = [16, 16], strides = [1, 1]} : vector<16x128xf32> to vector<16x16xf32>
    %242 = vector.broadcast %240 : vector<16x1xf32> to vector<16x16xf32>
    %243 = arith.mulf %242, %241 : vector<16x16xf32>
    %244 = arith.addf %238, %243 : vector<16x16xf32>
    %245 = vector.extract_strided_slice %239 {offsets = [0, 1], sizes = [16, 1], strides = [1, 1]} : vector<16x8xf32> to vector<16x1xf32>
    %246 = vector.extract_strided_slice %234 {offsets = [0, 16], sizes = [16, 16], strides = [1, 1]} : vector<16x128xf32> to vector<16x16xf32>
    %247 = vector.broadcast %245 : vector<16x1xf32> to vector<16x16xf32>
    %248 = arith.mulf %247, %246 : vector<16x16xf32>
    %249 = arith.addf %244, %248 : vector<16x16xf32>
    %250 = vector.extract_strided_slice %239 {offsets = [0, 2], sizes = [16, 1], strides = [1, 1]} : vector<16x8xf32> to vector<16x1xf32>
    %251 = vector.extract_strided_slice %234 {offsets = [0, 32], sizes = [16, 16], strides = [1, 1]} : vector<16x128xf32> to vector<16x16xf32>
    %252 = vector.broadcast %250 : vector<16x1xf32> to vector<16x16xf32>
    %253 = arith.mulf %252, %251 : vector<16x16xf32>
    %254 = arith.addf %249, %253 : vector<16x16xf32>
    %255 = vector.extract_strided_slice %239 {offsets = [0, 3], sizes = [16, 1], strides = [1, 1]} : vector<16x8xf32> to vector<16x1xf32>
    %256 = vector.extract_strided_slice %234 {offsets = [0, 48], sizes = [16, 16], strides = [1, 1]} : vector<16x128xf32> to vector<16x16xf32>
    %257 = vector.broadcast %255 : vector<16x1xf32> to vector<16x16xf32>
    %258 = arith.mulf %257, %256 : vector<16x16xf32>
    %259 = arith.addf %254, %258 : vector<16x16xf32>
    %260 = vector.extract_strided_slice %239 {offsets = [0, 4], sizes = [16, 1], strides = [1, 1]} : vector<16x8xf32> to vector<16x1xf32>
    %261 = vector.extract_strided_slice %234 {offsets = [0, 64], sizes = [16, 16], strides = [1, 1]} : vector<16x128xf32> to vector<16x16xf32>
    %262 = vector.broadcast %260 : vector<16x1xf32> to vector<16x16xf32>
    %263 = arith.mulf %262, %261 : vector<16x16xf32>
    %264 = arith.addf %259, %263 : vector<16x16xf32>
    %265 = vector.extract_strided_slice %239 {offsets = [0, 5], sizes = [16, 1], strides = [1, 1]} : vector<16x8xf32> to vector<16x1xf32>
    %266 = vector.extract_strided_slice %234 {offsets = [0, 80], sizes = [16, 16], strides = [1, 1]} : vector<16x128xf32> to vector<16x16xf32>
    %267 = vector.broadcast %265 : vector<16x1xf32> to vector<16x16xf32>
    %268 = arith.mulf %267, %266 : vector<16x16xf32>
    %269 = arith.addf %264, %268 : vector<16x16xf32>
    %270 = vector.extract_strided_slice %239 {offsets = [0, 6], sizes = [16, 1], strides = [1, 1]} : vector<16x8xf32> to vector<16x1xf32>
    %271 = vector.extract_strided_slice %234 {offsets = [0, 96], sizes = [16, 16], strides = [1, 1]} : vector<16x128xf32> to vector<16x16xf32>
    %272 = vector.broadcast %270 : vector<16x1xf32> to vector<16x16xf32>
    %273 = arith.mulf %272, %271 : vector<16x16xf32>
    %274 = arith.addf %269, %273 : vector<16x16xf32>
    %275 = vector.extract_strided_slice %239 {offsets = [0, 7], sizes = [16, 1], strides = [1, 1]} : vector<16x8xf32> to vector<16x1xf32>
    %276 = vector.extract_strided_slice %234 {offsets = [0, 112], sizes = [16, 16], strides = [1, 1]} : vector<16x128xf32> to vector<16x16xf32>
    %277 = vector.broadcast %275 : vector<16x1xf32> to vector<16x16xf32>
    %278 = arith.mulf %277, %276 : vector<16x16xf32>
    %279 = arith.addf %274, %278 : vector<16x16xf32>
    %280 = math.tanh %279 : vector<16x16xf32>
    %281 = arith.mulf %201, %28 : vector<16x16xf32>
    %cst_51 = arith.constant 1.000000e+00 : f32
    %282 = vector.broadcast %cst_51 : f32 to vector<16x16xf32>
    %283 = arith.subf %282, %201 : vector<16x16xf32>
    %284 = arith.mulf %283, %280 : vector<16x16xf32>
    %285 = arith.addf %281, %284 : vector<16x16xf32>
    %c0_52 = arith.constant 0 : index
    %c0_53 = arith.constant 0 : index
    %286 = vector.load %arg26[%c0_52, %c0_53] : memref<16x16xf32, #tpu.memory_space<vmem>>, vector<16x16xf32>
    tpu.vector_store %arg26[%c0_52, %c0_53], %285 {strides = array<i32>} : memref<16x16xf32, #tpu.memory_space<vmem>>, vector<16x16xf32>,
    %c0_54 = arith.constant 0 : index
    %c0_55 = arith.constant 0 : index
    %287 = vector.load %arg28[%c0_54, %c0_55] : memref<16x33xf32, #tpu.memory_space<vmem>>, vector<16x33xf32>
    %288 = vector.extract_strided_slice %287 {offsets = [0, 0], sizes = [8, 33], strides = [1, 1]} : vector<16x33xf32> to vector<8x33xf32>
    %289 = vector.extract_strided_slice %1 {offsets = [0, 0], sizes = [8, 33], strides = [1, 1]} : vector<16x33xf32> to vector<8x33xf32>
    %290 = vector.extract_strided_slice %287 {offsets = [8, 0], sizes = [8, 33], strides = [1, 1]} : vector<16x33xf32> to vector<8x33xf32>
    %291 = vector.extract_strided_slice %1 {offsets = [8, 0], sizes = [8, 33], strides = [1, 1]} : vector<16x33xf32> to vector<8x33xf32>
    %292 = tpu.concatenate %288, %289, %290, %291 in 0 : vector<8x33xf32>, vector<8x33xf32>, vector<8x33xf32>, vector<8x33xf32> -> vector<32x33xf32>
    %c0_56 = arith.constant 0 : index
    %c0_57 = arith.constant 0 : index
    %c0_58 = arith.constant 0 : index
    %293 = vector.load %arg2[%c0_56, %c0_57, %c0_58] : memref<1x33x256xf32, #tpu.memory_space<vmem>>, vector<1x33x256xf32>
    %294 = vector.shape_cast %293 : vector<1x33x256xf32> to vector<33x256xf32>
    %cst_59 = arith.constant dense<0.000000e+00> : vector<32x256xf32>
    %295 = tpu.matmul %292, %294, %cst_59 {dimension_numbers = #tpu.dot_dimension_numbers<[1], [0], [0], [1], [0, 0, 1, 1], [], []>} : vector<32x33xf32>, vector<33x256xf32>, vector<32x256xf32> -> vector<32x256xf32>
    %c0_60 = arith.constant 0 : index
    %c0_61 = arith.constant 0 : index
    %c0_62 = arith.constant 0 : index
    %296 = vector.load %arg3[%c0_60, %c0_61, %c0_62] : memref<1x256x2xf32, #tpu.memory_space<vmem>>, vector<1x256x2xf32>
    %297 = vector.shape_cast %296 : vector<1x256x2xf32> to vector<256x2xf32>
    %cst_63 = arith.constant dense<0.000000e+00> : vector<32x2xf32>
    %298 = tpu.matmul %295, %297, %cst_63 {dimension_numbers = #tpu.dot_dimension_numbers<[1], [0], [0], [1], [0, 0, 1, 1], [], []>} : vector<32x256xf32>, vector<256x2xf32>, vector<32x2xf32> -> vector<32x2xf32>
    %c0_64 = arith.constant 0 : index
    %c0_65 = arith.constant 0 : index
    %299 = vector.load %arg16[%c0_64, %c0_65] : memref<16x16xf32, #tpu.memory_space<vmem>>, vector<16x16xf32>
    %300 = vector.extract_strided_slice %295 {offsets = [0, 0], sizes = [16, 256], strides = [1, 1]} : vector<32x256xf32> to vector<16x256xf32>
    %301 = vector.extract_strided_slice %298 {offsets = [0, 0], sizes = [16, 1], strides = [1, 1]} : vector<32x2xf32> to vector<16x1xf32>
    %302 = vector.extract_strided_slice %298 {offsets = [0, 1], sizes = [16, 1], strides = [1, 1]} : vector<32x2xf32> to vector<16x1xf32>
    %303 = tpu.transpose %302, [1, 0] : vector<16x1xf32> -> vector<1x16xf32>
    %304 = vector.broadcast %301 : vector<16x1xf32> to vector<16x16xf32>
    %305 = vector.broadcast %303 : vector<1x16xf32> to vector<16x16xf32>
    %306 = arith.addf %304, %305 : vector<16x16xf32>
    %cst_66 = arith.constant 0.000000e+00 : f32
    %307 = vector.broadcast %cst_66 : f32 to vector<16x16xf32>
    %308 = arith.cmpf ogt, %306, %307 : vector<16x16xf32>
    %cst_67 = arith.constant 2.000000e-01 : f32
    %309 = vector.broadcast %cst_67 : f32 to vector<16x16xf32>
    %310 = arith.mulf %309, %306 : vector<16x16xf32>
    %311 = arith.select %308, %306, %310 : vector<16x16xi1>, vector<16x16xf32>
    %cst_68 = arith.constant 0.000000e+00 : f32
    %312 = vector.broadcast %cst_68 : f32 to vector<16x16xf32>
    %313 = arith.cmpf ogt, %299, %312 : vector<16x16xf32>
    %cst_69 = arith.constant -9.000000e+15 : f32
    %314 = vector.broadcast %cst_69 : f32 to vector<16x16xf32>
    %315 = arith.select %313, %311, %314 : vector<16x16xi1>, vector<16x16xf32>
    %cst_70 = arith.constant dense<0xFF800000> : vector<16xf32>
    %316 = vector.multi_reduction <maximumf>, %315, %cst_70 [0] : vector<16x16xf32> to vector<16xf32>
    %317 = vector.shape_cast %316 : vector<16xf32> to vector<1x16xf32>
    %318 = vector.broadcast %317 : vector<1x16xf32> to vector<16x16xf32>
    %319 = arith.subf %315, %318 : vector<16x16xf32>
    %320 = math.exp %319 : vector<16x16xf32>
    %cst_71 = arith.constant dense<0.000000e+00> : vector<16xf32>
    %321 = vector.multi_reduction <add>, %320, %cst_71 [0] : vector<16x16xf32> to vector<16xf32>
    %322 = vector.shape_cast %321 : vector<16xf32> to vector<1x16xf32>
    %323 = vector.broadcast %322 : vector<1x16xf32> to vector<16x16xf32>
    %324 = arith.divf %320, %323 : vector<16x16xf32>
    %cst_72 = arith.constant dense<0.000000e+00> : vector<16x256xf32>
    %325 = tpu.matmul %324, %300, %cst_72 {dimension_numbers = #tpu.dot_dimension_numbers<[1], [0], [0], [1], [0, 0, 1, 1], [], []>} : vector<16x16xf32>, vector<16x256xf32>, vector<16x256xf32> -> vector<16x256xf32>
    %326 = vector.extract_strided_slice %325 {offsets = [0, 0], sizes = [8, 256], strides = [1, 1]} : vector<16x256xf32> to vector<8x256xf32>
    %327 = vector.extract_strided_slice %325 {offsets = [8, 0], sizes = [8, 256], strides = [1, 1]} : vector<16x256xf32> to vector<8x256xf32>
    %328 = tpu.concatenate %326, %327 in 1 : vector<8x256xf32>, vector<8x256xf32> -> vector<8x512xf32>
    %329 = vector.extract_strided_slice %295 {offsets = [16, 0], sizes = [16, 256], strides = [1, 1]} : vector<32x256xf32> to vector<16x256xf32>
    %330 = vector.extract_strided_slice %298 {offsets = [16, 0], sizes = [16, 1], strides = [1, 1]} : vector<32x2xf32> to vector<16x1xf32>
    %331 = vector.extract_strided_slice %298 {offsets = [16, 1], sizes = [16, 1], strides = [1, 1]} : vector<32x2xf32> to vector<16x1xf32>
    %332 = tpu.transpose %331, [1, 0] : vector<16x1xf32> -> vector<1x16xf32>
    %333 = vector.broadcast %330 : vector<16x1xf32> to vector<16x16xf32>
    %334 = vector.broadcast %332 : vector<1x16xf32> to vector<16x16xf32>
    %335 = arith.addf %333, %334 : vector<16x16xf32>
    %cst_73 = arith.constant 0.000000e+00 : f32
    %336 = vector.broadcast %cst_73 : f32 to vector<16x16xf32>
    %337 = arith.cmpf ogt, %335, %336 : vector<16x16xf32>
    %cst_74 = arith.constant 2.000000e-01 : f32
    %338 = vector.broadcast %cst_74 : f32 to vector<16x16xf32>
    %339 = arith.mulf %338, %335 : vector<16x16xf32>
    %340 = arith.select %337, %335, %339 : vector<16x16xi1>, vector<16x16xf32>
    %cst_75 = arith.constant 0.000000e+00 : f32
    %341 = vector.broadcast %cst_75 : f32 to vector<16x16xf32>
    %342 = arith.cmpf ogt, %299, %341 : vector<16x16xf32>
    %cst_76 = arith.constant -9.000000e+15 : f32
    %343 = vector.broadcast %cst_76 : f32 to vector<16x16xf32>
    %344 = arith.select %342, %340, %343 : vector<16x16xi1>, vector<16x16xf32>
    %cst_77 = arith.constant dense<0xFF800000> : vector<16xf32>
    %345 = vector.multi_reduction <maximumf>, %344, %cst_77 [0] : vector<16x16xf32> to vector<16xf32>
    %346 = vector.shape_cast %345 : vector<16xf32> to vector<1x16xf32>
    %347 = vector.broadcast %346 : vector<1x16xf32> to vector<16x16xf32>
    %348 = arith.subf %344, %347 : vector<16x16xf32>
    %349 = math.exp %348 : vector<16x16xf32>
    %cst_78 = arith.constant dense<0.000000e+00> : vector<16xf32>
    %350 = vector.multi_reduction <add>, %349, %cst_78 [0] : vector<16x16xf32> to vector<16xf32>
    %351 = vector.shape_cast %350 : vector<16xf32> to vector<1x16xf32>
    %352 = vector.broadcast %351 : vector<1x16xf32> to vector<16x16xf32>
    %353 = arith.divf %349, %352 : vector<16x16xf32>
    %cst_79 = arith.constant dense<0.000000e+00> : vector<16x256xf32>
    %354 = tpu.matmul %353, %329, %cst_79 {dimension_numbers = #tpu.dot_dimension_numbers<[1], [0], [0], [1], [0, 0, 1, 1], [], []>} : vector<16x16xf32>, vector<16x256xf32>, vector<16x256xf32> -> vector<16x256xf32>
    %355 = vector.extract_strided_slice %354 {offsets = [0, 0], sizes = [8, 256], strides = [1, 1]} : vector<16x256xf32> to vector<8x256xf32>
    %356 = vector.extract_strided_slice %354 {offsets = [8, 0], sizes = [8, 256], strides = [1, 1]} : vector<16x256xf32> to vector<8x256xf32>
    %357 = tpu.concatenate %355, %356 in 1 : vector<8x256xf32>, vector<8x256xf32> -> vector<8x512xf32>
    %358 = tpu.concatenate %328, %357 in 0 : vector<8x512xf32>, vector<8x512xf32> -> vector<16x512xf32>
    %cst_80 = arith.constant 0.000000e+00 : f32
    %359 = vector.broadcast %cst_80 : f32 to vector<16x512xf32>
    %360 = arith.cmpf ogt, %358, %359 : vector<16x512xf32>
    %cst_81 = arith.constant 0.000000e+00 : f32
    %361 = vector.broadcast %cst_81 : f32 to vector<16x512xf32>
    %362 = arith.minimumf %358, %361 : vector<16x512xf32>
    %363 = math.exp %362 : vector<16x512xf32>
    %cst_82 = arith.constant 1.000000e+00 : f32
    %364 = vector.broadcast %cst_82 : f32 to vector<16x512xf32>
    %365 = arith.subf %363, %364 : vector<16x512xf32>
    %366 = arith.select %360, %358, %365 : vector<16x512xi1>, vector<16x512xf32>
    %c0_83 = arith.constant 0 : index
    %c0_84 = arith.constant 0 : index
    %c0_85 = arith.constant 0 : index
    %367 = vector.load %arg4[%c0_83, %c0_84, %c0_85] : memref<1x512x256xf32, #tpu.memory_space<vmem>>, vector<1x512x256xf32>
    %368 = vector.shape_cast %367 : vector<1x512x256xf32> to vector<512x256xf32>
    %cst_86 = arith.constant dense<0.000000e+00> : vector<16x256xf32>
    %369 = tpu.matmul %366, %368, %cst_86 {dimension_numbers = #tpu.dot_dimension_numbers<[1], [0], [0], [1], [0, 0, 1, 1], [], []>} : vector<16x512xf32>, vector<512x256xf32>, vector<16x256xf32> -> vector<16x256xf32>
    %c0_87 = arith.constant 0 : index
    %c0_88 = arith.constant 0 : index
    %c0_89 = arith.constant 0 : index
    %370 = vector.load %arg5[%c0_87, %c0_88, %c0_89] : memref<1x1x256xf32, #tpu.memory_space<vmem>>, vector<1x1x256xf32>
    %371 = vector.shape_cast %370 : vector<1x1x256xf32> to vector<1x256xf32>
    %372 = vector.broadcast %371 : vector<1x256xf32> to vector<16x256xf32>
    %373 = arith.addf %369, %372 : vector<16x256xf32>
    %cst_90 = arith.constant 5.000000e-01 : f32
    %374 = vector.broadcast %cst_90 : f32 to vector<16x256xf32>
    %375 = arith.mulf %374, %373 : vector<16x256xf32>
    %cst_91 = arith.constant 4.471500e-02 : f32
    %376 = vector.broadcast %cst_91 : f32 to vector<16x256xf32>
    %377 = arith.mulf %376, %373 : vector<16x256xf32>
    %378 = arith.mulf %377, %373 : vector<16x256xf32>
    %379 = arith.mulf %378, %373 : vector<16x256xf32>
    %380 = arith.addf %373, %379 : vector<16x256xf32>
    %cst_92 = arith.constant 0.797884583 : f32
    %381 = vector.broadcast %cst_92 : f32 to vector<16x256xf32>
    %382 = arith.mulf %381, %380 : vector<16x256xf32>
    %383 = math.tanh %382 : vector<16x256xf32>
    %cst_93 = arith.constant 1.000000e+00 : f32
    %384 = vector.broadcast %cst_93 : f32 to vector<16x256xf32>
    %385 = arith.addf %384, %383 : vector<16x256xf32>
    %386 = arith.mulf %375, %385 : vector<16x256xf32>
    %c0_94 = arith.constant 0 : index
    %c0_95 = arith.constant 0 : index
    %c0_96 = arith.constant 0 : index
    %387 = vector.load %arg6[%c0_94, %c0_95, %c0_96] : memref<1x256x16xf32, #tpu.memory_space<vmem>>, vector<1x256x16xf32>
    %388 = vector.shape_cast %387 : vector<1x256x16xf32> to vector<256x16xf32>
    %cst_97 = arith.constant dense<0.000000e+00> : vector<16x16xf32>
    %389 = tpu.matmul %386, %388, %cst_97 {dimension_numbers = #tpu.dot_dimension_numbers<[1], [0], [0], [1], [0, 0, 1, 1], [], []>} : vector<16x256xf32>, vector<256x16xf32>, vector<16x16xf32> -> vector<16x16xf32>
    %c0_98 = arith.constant 0 : index
    %c0_99 = arith.constant 0 : index
    %c0_100 = arith.constant 0 : index
    %390 = vector.load %arg7[%c0_98, %c0_99, %c0_100] : memref<1x1x16xf32, #tpu.memory_space<vmem>>, vector<1x1x16xf32>
    %391 = vector.shape_cast %390 : vector<1x1x16xf32> to vector<1x16xf32>
    %392 = vector.broadcast %391 : vector<1x16xf32> to vector<16x16xf32>
    %393 = arith.addf %389, %392 : vector<16x16xf32>
    %394 = math.absf %393 : vector<16x16xf32>
    %395 = arith.addf %285, %394 : vector<16x16xf32>
    %cst_101 = arith.constant dense<0.000000e+00> : vector<16xf32>
    %396 = vector.multi_reduction <add>, %395, %cst_101 [1] : vector<16x16xf32> to vector<16xf32>
    %397 = vector.shape_cast %396 : vector<16xf32> to vector<16x1xf32>
    %cst_102 = arith.constant 1.600000e+01 : f32
    %398 = vector.broadcast %cst_102 : f32 to vector<16x1xf32>
    %399 = arith.divf %397, %398 : vector<16x1xf32>
    %400 = vector.broadcast %399 : vector<16x1xf32> to vector<16x16xf32>
    %401 = arith.subf %395, %400 : vector<16x16xf32>
    %402 = arith.mulf %401, %401 : vector<16x16xf32>
    %cst_103 = arith.constant dense<0.000000e+00> : vector<16xf32>
    %403 = vector.multi_reduction <add>, %402, %cst_103 [1] : vector<16x16xf32> to vector<16xf32>
    %404 = vector.shape_cast %403 : vector<16xf32> to vector<16x1xf32>
    %cst_104 = arith.constant 1.600000e+01 : f32
    %405 = vector.broadcast %cst_104 : f32 to vector<16x1xf32>
    %406 = arith.divf %404, %405 : vector<16x1xf32>
    %c0_105 = arith.constant 0 : index
    %c0_106 = arith.constant 0 : index
    %c0_107 = arith.constant 0 : index
    %407 = vector.load %arg8[%c0_105, %c0_106, %c0_107] : memref<1x2x16xf32, #tpu.memory_space<vmem>>, vector<1x2x16xf32>
    %408 = vector.shape_cast %407 : vector<1x2x16xf32> to vector<2x16xf32>
    %409 = vector.broadcast %399 : vector<16x1xf32> to vector<16x16xf32>
    %410 = arith.subf %395, %409 : vector<16x16xf32>
    %cst_108 = arith.constant 9.99999974E-6 : f32
    %411 = vector.broadcast %cst_108 : f32 to vector<16x1xf32>
    %412 = arith.addf %406, %411 : vector<16x1xf32>
    %413 = math.rsqrt %412 : vector<16x1xf32>
    %414 = vector.broadcast %413 : vector<16x1xf32> to vector<16x16xf32>
    %415 = arith.mulf %410, %414 : vector<16x16xf32>
    %416 = vector.extract_strided_slice %408 {offsets = [0, 0], sizes = [1, 16], strides = [1, 1]} : vector<2x16xf32> to vector<1x16xf32>
    %417 = vector.broadcast %416 : vector<1x16xf32> to vector<16x16xf32>
    %418 = arith.mulf %415, %417 : vector<16x16xf32>
    %419 = vector.extract_strided_slice %408 {offsets = [1, 0], sizes = [1, 16], strides = [1, 1]} : vector<2x16xf32> to vector<1x16xf32>
    %420 = vector.broadcast %419 : vector<1x16xf32> to vector<16x16xf32>
    %421 = arith.addf %418, %420 : vector<16x16xf32>
    %c0_109 = arith.constant 0 : index
    %c0_110 = arith.constant 0 : index
    %422 = vector.load %arg28[%c0_109, %c0_110] : memref<16x33xf32, #tpu.memory_space<vmem>>, vector<16x33xf32>
    tpu.vector_store %arg28[%c0_109, %c0_110], %1 {strides = array<i32>} : memref<16x33xf32, #tpu.memory_space<vmem>>, vector<16x33xf32>,
    %c2_i32 = arith.constant 2 : i32
    %c0_i32_111 = arith.constant 0 : i32
    %423 = arith.cmpi eq, %c2_i32, %c0_i32_111 : i32
    %c1_i32 = arith.constant 1 : i32
    %424 = arith.select %423, %c1_i32, %c2_i32 : i32
    %425 = arith.remsi %arg0, %424 : i32
    %c0_i32_112 = arith.constant 0 : i32
    %426 = arith.cmpi ne, %425, %c0_i32_112 : i32
    %c0_i32_113 = arith.constant 0 : i32
    %427 = arith.cmpi slt, %425, %c0_i32_113 : i32
    %c0_i32_114 = arith.constant 0 : i32
    %428 = arith.cmpi slt, %424, %c0_i32_114 : i32
    %429 = arith.xori %427, %428 : i1
    %430 = arith.andi %429, %426 : i1
    %431 = arith.addi %425, %424 : i32
    %432 = arith.select %430, %431, %425 : i32
    %433 = arith.index_cast %432 : i32 to index
    %c0_115 = arith.constant 0 : index
    %c0_116 = arith.constant 0 : index
    %434 = vector.load %arg27[%433, %c0_115, %c0_116] : memref<2x16x16xf32, #tpu.memory_space<vmem>>, vector<1x16x16xf32>
    %435 = vector.shape_cast %434 : vector<1x16x16xf32> to vector<16x16xf32>
    %c0_117 = arith.constant 0 : index
    %c0_118 = arith.constant 0 : index
    %c0_119 = arith.constant 0 : index
    %436 = vector.load %arg9[%c0_117, %c0_118, %c0_119] : memref<1x16x768xf32, #tpu.memory_space<vmem>>, vector<1x16x768xf32>
    %437 = vector.shape_cast %436 : vector<1x16x768xf32> to vector<16x768xf32>
    %c0_120 = arith.constant 0 : index
    %c0_121 = arith.constant 0 : index
    %c0_122 = arith.constant 0 : index
    %438 = vector.load %arg10[%c0_120, %c0_121, %c0_122] : memref<1x16x512xf32, #tpu.memory_space<vmem>>, vector<1x16x512xf32>
    %439 = vector.shape_cast %438 : vector<1x16x512xf32> to vector<16x512xf32>
    %c0_123 = arith.constant 0 : index
    %c0_124 = arith.constant 0 : index
    %c0_125 = arith.constant 0 : index
    %440 = vector.load %arg11[%c0_123, %c0_124, %c0_125] : memref<1x16x256xf32, #tpu.memory_space<vmem>>, vector<1x16x256xf32>
    %441 = vector.shape_cast %440 : vector<1x16x256xf32> to vector<16x256xf32>
    %c0_126 = arith.constant 0 : index
    %c0_127 = arith.constant 0 : index
    %c0_128 = arith.constant 0 : index
    %c0_129 = arith.constant 0 : index
    %442 = vector.load %arg12[%c0_126, %c0_127, %c0_128, %c0_129] : memref<1x3x2x8xf32, #tpu.memory_space<vmem>>, vector<1x3x2x8xf32>
    %443 = vector.shape_cast %442 : vector<1x3x2x8xf32> to vector<3x2x8xf32>
    %c0_130 = arith.constant 0 : index
    %c0_131 = arith.constant 0 : index
    %c0_132 = arith.constant 0 : index
    %c0_133 = arith.constant 0 : index
    %444 = vector.load %arg13[%c0_130, %c0_131, %c0_132, %c0_133] : memref<1x3x8x16xf32, #tpu.memory_space<vmem>>, vector<1x3x8x16xf32>
    %445 = vector.shape_cast %444 : vector<1x3x8x16xf32> to vector<3x8x16xf32>
    %cst_134 = arith.constant dense<0.000000e+00> : vector<16x768xf32>
    %446 = tpu.matmul %421, %437, %cst_134 {dimension_numbers = #tpu.dot_dimension_numbers<[1], [0], [0], [1], [0, 0, 1, 1], [], []>} : vector<16x16xf32>, vector<16x768xf32>, vector<16x768xf32> -> vector<16x768xf32>
    %cst_135 = arith.constant dense<0.000000e+00> : vector<16x512xf32>
    %447 = tpu.matmul %435, %439, %cst_135 {dimension_numbers = #tpu.dot_dimension_numbers<[1], [0], [0], [1], [0, 0, 1, 1], [], []>} : vector<16x16xf32>, vector<16x512xf32>, vector<16x512xf32> -> vector<16x512xf32>
    %448 = vector.extract_strided_slice %446 {offsets = [0, 0], sizes = [16, 128], strides = [1, 1]} : vector<16x768xf32> to vector<16x128xf32>
    %449 = vector.extract_strided_slice %447 {offsets = [0, 0], sizes = [16, 128], strides = [1, 1]} : vector<16x512xf32> to vector<16x128xf32>
    %450 = arith.addf %448, %449 : vector<16x128xf32>
    %451 = vector.extract_strided_slice %446 {offsets = [0, 128], sizes = [16, 128], strides = [1, 1]} : vector<16x768xf32> to vector<16x128xf32>
    %452 = vector.extract_strided_slice %447 {offsets = [0, 128], sizes = [16, 128], strides = [1, 1]} : vector<16x512xf32> to vector<16x128xf32>
    %453 = arith.addf %451, %452 : vector<16x128xf32>
    %454 = vector.extract_strided_slice %443 {offsets = [0, 0, 0], sizes = [1, 1, 8], strides = [1, 1, 1]} : vector<3x2x8xf32> to vector<1x1x8xf32>
    %455 = vector.shape_cast %454 : vector<1x1x8xf32> to vector<1x8xf32>
    %456 = vector.extract_strided_slice %443 {offsets = [0, 1, 0], sizes = [1, 1, 8], strides = [1, 1, 1]} : vector<3x2x8xf32> to vector<1x1x8xf32>
    %457 = vector.shape_cast %456 : vector<1x1x8xf32> to vector<1x8xf32>
    %458 = vector.broadcast %455 : vector<1x8xf32> to vector<8x8xf32>
    %459 = arith.mulf %27, %458 : vector<8x8xf32>
    %460 = vector.broadcast %457 : vector<1x8xf32> to vector<8x8xf32>
    %461 = arith.addf %459, %460 : vector<8x8xf32>
    %462 = tpu.transpose %461, [1, 0] : vector<8x8xf32> -> vector<8x8xf32>
    %cst_136 = arith.constant dense<0.000000e+00> : vector<8x8xf32>
    %463 = tpu.matmul %461, %462, %cst_136 {dimension_numbers = #tpu.dot_dimension_numbers<[1], [0], [0], [1], [0, 0, 1, 1], [], []>} : vector<8x8xf32>, vector<8x8xf32>, vector<8x8xf32> -> vector<8x8xf32>
    %cst_137 = arith.constant dense<0xFF800000> : vector<8xf32>
    %464 = vector.multi_reduction <maximumf>, %463, %cst_137 [1] : vector<8x8xf32> to vector<8xf32>
    %465 = vector.shape_cast %464 : vector<8xf32> to vector<8x1xf32>
    %466 = vector.broadcast %465 : vector<8x1xf32> to vector<8x8xf32>
    %467 = arith.subf %463, %466 : vector<8x8xf32>
    %468 = math.exp %467 : vector<8x8xf32>
    %cst_138 = arith.constant dense<0.000000e+00> : vector<8xf32>
    %469 = vector.multi_reduction <add>, %468, %cst_138 [1] : vector<8x8xf32> to vector<8xf32>
    %470 = vector.shape_cast %469 : vector<8xf32> to vector<8x1xf32>
    %471 = vector.broadcast %470 : vector<8x1xf32> to vector<8x8xf32>
    %472 = arith.divf %468, %471 : vector<8x8xf32>
    %473 = vector.extract_strided_slice %453 {offsets = [0, 0], sizes = [8, 128], strides = [1, 1]} : vector<16x128xf32> to vector<8x128xf32>
    %cst_139 = arith.constant dense<0.000000e+00> : vector<8x128xf32>
    %474 = tpu.matmul %472, %473, %cst_139 {dimension_numbers = #tpu.dot_dimension_numbers<[1], [0], [0], [1], [0, 0, 1, 1], [], []>} : vector<8x8xf32>, vector<8x128xf32>, vector<8x128xf32> -> vector<8x128xf32>
    %475 = vector.extract_strided_slice %453 {offsets = [8, 0], sizes = [8, 128], strides = [1, 1]} : vector<16x128xf32> to vector<8x128xf32>
    %cst_140 = arith.constant dense<0.000000e+00> : vector<8x128xf32>
    %476 = tpu.matmul %472, %475, %cst_140 {dimension_numbers = #tpu.dot_dimension_numbers<[1], [0], [0], [1], [0, 0, 1, 1], [], []>} : vector<8x8xf32>, vector<8x128xf32>, vector<8x128xf32> -> vector<8x128xf32>
    %477 = tpu.concatenate %474, %476 in 0 : vector<8x128xf32>, vector<8x128xf32> -> vector<16x128xf32>
    %478 = arith.addf %450, %477 : vector<16x128xf32>
    %479 = vector.extract_strided_slice %445 {offsets = [0, 0, 0], sizes = [1, 8, 16], strides = [1, 1, 1]} : vector<3x8x16xf32> to vector<1x8x16xf32>
    %480 = vector.shape_cast %479 : vector<1x8x16xf32> to vector<8x16xf32>
    %cst_141 = arith.constant dense<0.000000e+00> : vector<8x16xf32>
    %481 = tpu.matmul %461, %480, %cst_141 {dimension_numbers = #tpu.dot_dimension_numbers<[1], [0], [0], [1], [0, 0, 1, 1], [], []>} : vector<8x8xf32>, vector<8x16xf32>, vector<8x16xf32> -> vector<8x16xf32>
    %482 = tpu.concatenate %481, %481 in 0 : vector<8x16xf32>, vector<8x16xf32> -> vector<16x16xf32>
    %483 = tpu.concatenate %461, %461 in 0 : vector<8x8xf32>, vector<8x8xf32> -> vector<16x8xf32>
    %484 = vector.extract_strided_slice %483 {offsets = [0, 0], sizes = [16, 1], strides = [1, 1]} : vector<16x8xf32> to vector<16x1xf32>
    %485 = vector.extract_strided_slice %478 {offsets = [0, 0], sizes = [16, 16], strides = [1, 1]} : vector<16x128xf32> to vector<16x16xf32>
    %486 = vector.broadcast %484 : vector<16x1xf32> to vector<16x16xf32>
    %487 = arith.mulf %486, %485 : vector<16x16xf32>
    %488 = arith.addf %482, %487 : vector<16x16xf32>
    %489 = vector.extract_strided_slice %483 {offsets = [0, 1], sizes = [16, 1], strides = [1, 1]} : vector<16x8xf32> to vector<16x1xf32>
    %490 = vector.extract_strided_slice %478 {offsets = [0, 16], sizes = [16, 16], strides = [1, 1]} : vector<16x128xf32> to vector<16x16xf32>
    %491 = vector.broadcast %489 : vector<16x1xf32> to vector<16x16xf32>
    %492 = arith.mulf %491, %490 : vector<16x16xf32>
    %493 = arith.addf %488, %492 : vector<16x16xf32>
    %494 = vector.extract_strided_slice %483 {offsets = [0, 2], sizes = [16, 1], strides = [1, 1]} : vector<16x8xf32> to vector<16x1xf32>
    %495 = vector.extract_strided_slice %478 {offsets = [0, 32], sizes = [16, 16], strides = [1, 1]} : vector<16x128xf32> to vector<16x16xf32>
    %496 = vector.broadcast %494 : vector<16x1xf32> to vector<16x16xf32>
    %497 = arith.mulf %496, %495 : vector<16x16xf32>
    %498 = arith.addf %493, %497 : vector<16x16xf32>
    %499 = vector.extract_strided_slice %483 {offsets = [0, 3], sizes = [16, 1], strides = [1, 1]} : vector<16x8xf32> to vector<16x1xf32>
    %500 = vector.extract_strided_slice %478 {offsets = [0, 48], sizes = [16, 16], strides = [1, 1]} : vector<16x128xf32> to vector<16x16xf32>
    %501 = vector.broadcast %499 : vector<16x1xf32> to vector<16x16xf32>
    %502 = arith.mulf %501, %500 : vector<16x16xf32>
    %503 = arith.addf %498, %502 : vector<16x16xf32>
    %504 = vector.extract_strided_slice %483 {offsets = [0, 4], sizes = [16, 1], strides = [1, 1]} : vector<16x8xf32> to vector<16x1xf32>
    %505 = vector.extract_strided_slice %478 {offsets = [0, 64], sizes = [16, 16], strides = [1, 1]} : vector<16x128xf32> to vector<16x16xf32>
    %506 = vector.broadcast %504 : vector<16x1xf32> to vector<16x16xf32>
    %507 = arith.mulf %506, %505 : vector<16x16xf32>
    %508 = arith.addf %503, %507 : vector<16x16xf32>
    %509 = vector.extract_strided_slice %483 {offsets = [0, 5], sizes = [16, 1], strides = [1, 1]} : vector<16x8xf32> to vector<16x1xf32>
    %510 = vector.extract_strided_slice %478 {offsets = [0, 80], sizes = [16, 16], strides = [1, 1]} : vector<16x128xf32> to vector<16x16xf32>
    %511 = vector.broadcast %509 : vector<16x1xf32> to vector<16x16xf32>
    %512 = arith.mulf %511, %510 : vector<16x16xf32>
    %513 = arith.addf %508, %512 : vector<16x16xf32>
    %514 = vector.extract_strided_slice %483 {offsets = [0, 6], sizes = [16, 1], strides = [1, 1]} : vector<16x8xf32> to vector<16x1xf32>
    %515 = vector.extract_strided_slice %478 {offsets = [0, 96], sizes = [16, 16], strides = [1, 1]} : vector<16x128xf32> to vector<16x16xf32>
    %516 = vector.broadcast %514 : vector<16x1xf32> to vector<16x16xf32>
    %517 = arith.mulf %516, %515 : vector<16x16xf32>
    %518 = arith.addf %513, %517 : vector<16x16xf32>
    %519 = vector.extract_strided_slice %483 {offsets = [0, 7], sizes = [16, 1], strides = [1, 1]} : vector<16x8xf32> to vector<16x1xf32>
    %520 = vector.extract_strided_slice %478 {offsets = [0, 112], sizes = [16, 16], strides = [1, 1]} : vector<16x128xf32> to vector<16x16xf32>
    %521 = vector.broadcast %519 : vector<16x1xf32> to vector<16x16xf32>
    %522 = arith.mulf %521, %520 : vector<16x16xf32>
    %523 = arith.addf %518, %522 : vector<16x16xf32>
    %cst_142 = arith.constant 0.000000e+00 : f32
    %524 = vector.broadcast %cst_142 : f32 to vector<16x16xf32>
    %525 = arith.subf %524, %523 : vector<16x16xf32>
    %526 = math.exp %525 : vector<16x16xf32>
    %cst_143 = arith.constant 1.000000e+00 : f32
    %527 = vector.broadcast %cst_143 : f32 to vector<16x16xf32>
    %528 = arith.addf %527, %526 : vector<16x16xf32>
    %cst_144 = arith.constant 1.000000e+00 : f32
    %529 = vector.broadcast %cst_144 : f32 to vector<16x16xf32>
    %530 = arith.divf %529, %528 : vector<16x16xf32>
    %531 = vector.extract_strided_slice %446 {offsets = [0, 256], sizes = [16, 128], strides = [1, 1]} : vector<16x768xf32> to vector<16x128xf32>
    %532 = vector.extract_strided_slice %447 {offsets = [0, 256], sizes = [16, 128], strides = [1, 1]} : vector<16x512xf32> to vector<16x128xf32>
    %533 = arith.addf %531, %532 : vector<16x128xf32>
    %534 = vector.extract_strided_slice %446 {offsets = [0, 384], sizes = [16, 128], strides = [1, 1]} : vector<16x768xf32> to vector<16x128xf32>
    %535 = vector.extract_strided_slice %447 {offsets = [0, 384], sizes = [16, 128], strides = [1, 1]} : vector<16x512xf32> to vector<16x128xf32>
    %536 = arith.addf %534, %535 : vector<16x128xf32>
    %537 = vector.extract_strided_slice %443 {offsets = [1, 0, 0], sizes = [1, 1, 8], strides = [1, 1, 1]} : vector<3x2x8xf32> to vector<1x1x8xf32>
    %538 = vector.shape_cast %537 : vector<1x1x8xf32> to vector<1x8xf32>
    %539 = vector.extract_strided_slice %443 {offsets = [1, 1, 0], sizes = [1, 1, 8], strides = [1, 1, 1]} : vector<3x2x8xf32> to vector<1x1x8xf32>
    %540 = vector.shape_cast %539 : vector<1x1x8xf32> to vector<1x8xf32>
    %541 = vector.broadcast %538 : vector<1x8xf32> to vector<8x8xf32>
    %542 = arith.mulf %27, %541 : vector<8x8xf32>
    %543 = vector.broadcast %540 : vector<1x8xf32> to vector<8x8xf32>
    %544 = arith.addf %542, %543 : vector<8x8xf32>
    %545 = tpu.transpose %544, [1, 0] : vector<8x8xf32> -> vector<8x8xf32>
    %cst_145 = arith.constant dense<0.000000e+00> : vector<8x8xf32>
    %546 = tpu.matmul %544, %545, %cst_145 {dimension_numbers = #tpu.dot_dimension_numbers<[1], [0], [0], [1], [0, 0, 1, 1], [], []>} : vector<8x8xf32>, vector<8x8xf32>, vector<8x8xf32> -> vector<8x8xf32>
    %cst_146 = arith.constant dense<0xFF800000> : vector<8xf32>
    %547 = vector.multi_reduction <maximumf>, %546, %cst_146 [1] : vector<8x8xf32> to vector<8xf32>
    %548 = vector.shape_cast %547 : vector<8xf32> to vector<8x1xf32>
    %549 = vector.broadcast %548 : vector<8x1xf32> to vector<8x8xf32>
    %550 = arith.subf %546, %549 : vector<8x8xf32>
    %551 = math.exp %550 : vector<8x8xf32>
    %cst_147 = arith.constant dense<0.000000e+00> : vector<8xf32>
    %552 = vector.multi_reduction <add>, %551, %cst_147 [1] : vector<8x8xf32> to vector<8xf32>
    %553 = vector.shape_cast %552 : vector<8xf32> to vector<8x1xf32>
    %554 = vector.broadcast %553 : vector<8x1xf32> to vector<8x8xf32>
    %555 = arith.divf %551, %554 : vector<8x8xf32>
    %556 = vector.extract_strided_slice %536 {offsets = [0, 0], sizes = [8, 128], strides = [1, 1]} : vector<16x128xf32> to vector<8x128xf32>
    %cst_148 = arith.constant dense<0.000000e+00> : vector<8x128xf32>
    %557 = tpu.matmul %555, %556, %cst_148 {dimension_numbers = #tpu.dot_dimension_numbers<[1], [0], [0], [1], [0, 0, 1, 1], [], []>} : vector<8x8xf32>, vector<8x128xf32>, vector<8x128xf32> -> vector<8x128xf32>
    %558 = vector.extract_strided_slice %536 {offsets = [8, 0], sizes = [8, 128], strides = [1, 1]} : vector<16x128xf32> to vector<8x128xf32>
    %cst_149 = arith.constant dense<0.000000e+00> : vector<8x128xf32>
    %559 = tpu.matmul %555, %558, %cst_149 {dimension_numbers = #tpu.dot_dimension_numbers<[1], [0], [0], [1], [0, 0, 1, 1], [], []>} : vector<8x8xf32>, vector<8x128xf32>, vector<8x128xf32> -> vector<8x128xf32>
    %560 = tpu.concatenate %557, %559 in 0 : vector<8x128xf32>, vector<8x128xf32> -> vector<16x128xf32>
    %561 = arith.addf %533, %560 : vector<16x128xf32>
    %562 = vector.extract_strided_slice %445 {offsets = [1, 0, 0], sizes = [1, 8, 16], strides = [1, 1, 1]} : vector<3x8x16xf32> to vector<1x8x16xf32>
    %563 = vector.shape_cast %562 : vector<1x8x16xf32> to vector<8x16xf32>
    %cst_150 = arith.constant dense<0.000000e+00> : vector<8x16xf32>
    %564 = tpu.matmul %544, %563, %cst_150 {dimension_numbers = #tpu.dot_dimension_numbers<[1], [0], [0], [1], [0, 0, 1, 1], [], []>} : vector<8x8xf32>, vector<8x16xf32>, vector<8x16xf32> -> vector<8x16xf32>
    %565 = tpu.concatenate %564, %564 in 0 : vector<8x16xf32>, vector<8x16xf32> -> vector<16x16xf32>
    %566 = tpu.concatenate %544, %544 in 0 : vector<8x8xf32>, vector<8x8xf32> -> vector<16x8xf32>
    %567 = vector.extract_strided_slice %566 {offsets = [0, 0], sizes = [16, 1], strides = [1, 1]} : vector<16x8xf32> to vector<16x1xf32>
    %568 = vector.extract_strided_slice %561 {offsets = [0, 0], sizes = [16, 16], strides = [1, 1]} : vector<16x128xf32> to vector<16x16xf32>
    %569 = vector.broadcast %567 : vector<16x1xf32> to vector<16x16xf32>
    %570 = arith.mulf %569, %568 : vector<16x16xf32>
    %571 = arith.addf %565, %570 : vector<16x16xf32>
    %572 = vector.extract_strided_slice %566 {offsets = [0, 1], sizes = [16, 1], strides = [1, 1]} : vector<16x8xf32> to vector<16x1xf32>
    %573 = vector.extract_strided_slice %561 {offsets = [0, 16], sizes = [16, 16], strides = [1, 1]} : vector<16x128xf32> to vector<16x16xf32>
    %574 = vector.broadcast %572 : vector<16x1xf32> to vector<16x16xf32>
    %575 = arith.mulf %574, %573 : vector<16x16xf32>
    %576 = arith.addf %571, %575 : vector<16x16xf32>
    %577 = vector.extract_strided_slice %566 {offsets = [0, 2], sizes = [16, 1], strides = [1, 1]} : vector<16x8xf32> to vector<16x1xf32>
    %578 = vector.extract_strided_slice %561 {offsets = [0, 32], sizes = [16, 16], strides = [1, 1]} : vector<16x128xf32> to vector<16x16xf32>
    %579 = vector.broadcast %577 : vector<16x1xf32> to vector<16x16xf32>
    %580 = arith.mulf %579, %578 : vector<16x16xf32>
    %581 = arith.addf %576, %580 : vector<16x16xf32>
    %582 = vector.extract_strided_slice %566 {offsets = [0, 3], sizes = [16, 1], strides = [1, 1]} : vector<16x8xf32> to vector<16x1xf32>
    %583 = vector.extract_strided_slice %561 {offsets = [0, 48], sizes = [16, 16], strides = [1, 1]} : vector<16x128xf32> to vector<16x16xf32>
    %584 = vector.broadcast %582 : vector<16x1xf32> to vector<16x16xf32>
    %585 = arith.mulf %584, %583 : vector<16x16xf32>
    %586 = arith.addf %581, %585 : vector<16x16xf32>
    %587 = vector.extract_strided_slice %566 {offsets = [0, 4], sizes = [16, 1], strides = [1, 1]} : vector<16x8xf32> to vector<16x1xf32>
    %588 = vector.extract_strided_slice %561 {offsets = [0, 64], sizes = [16, 16], strides = [1, 1]} : vector<16x128xf32> to vector<16x16xf32>
    %589 = vector.broadcast %587 : vector<16x1xf32> to vector<16x16xf32>
    %590 = arith.mulf %589, %588 : vector<16x16xf32>
    %591 = arith.addf %586, %590 : vector<16x16xf32>
    %592 = vector.extract_strided_slice %566 {offsets = [0, 5], sizes = [16, 1], strides = [1, 1]} : vector<16x8xf32> to vector<16x1xf32>
    %593 = vector.extract_strided_slice %561 {offsets = [0, 80], sizes = [16, 16], strides = [1, 1]} : vector<16x128xf32> to vector<16x16xf32>
    %594 = vector.broadcast %592 : vector<16x1xf32> to vector<16x16xf32>
    %595 = arith.mulf %594, %593 : vector<16x16xf32>
    %596 = arith.addf %591, %595 : vector<16x16xf32>
    %597 = vector.extract_strided_slice %566 {offsets = [0, 6], sizes = [16, 1], strides = [1, 1]} : vector<16x8xf32> to vector<16x1xf32>
    %598 = vector.extract_strided_slice %561 {offsets = [0, 96], sizes = [16, 16], strides = [1, 1]} : vector<16x128xf32> to vector<16x16xf32>
    %599 = vector.broadcast %597 : vector<16x1xf32> to vector<16x16xf32>
    %600 = arith.mulf %599, %598 : vector<16x16xf32>
    %601 = arith.addf %596, %600 : vector<16x16xf32>
    %602 = vector.extract_strided_slice %566 {offsets = [0, 7], sizes = [16, 1], strides = [1, 1]} : vector<16x8xf32> to vector<16x1xf32>
    %603 = vector.extract_strided_slice %561 {offsets = [0, 112], sizes = [16, 16], strides = [1, 1]} : vector<16x128xf32> to vector<16x16xf32>
    %604 = vector.broadcast %602 : vector<16x1xf32> to vector<16x16xf32>
    %605 = arith.mulf %604, %603 : vector<16x16xf32>
    %606 = arith.addf %601, %605 : vector<16x16xf32>
    %cst_151 = arith.constant 0.000000e+00 : f32
    %607 = vector.broadcast %cst_151 : f32 to vector<16x16xf32>
    %608 = arith.subf %607, %606 : vector<16x16xf32>
    %609 = math.exp %608 : vector<16x16xf32>
    %cst_152 = arith.constant 1.000000e+00 : f32
    %610 = vector.broadcast %cst_152 : f32 to vector<16x16xf32>
    %611 = arith.addf %610, %609 : vector<16x16xf32>
    %cst_153 = arith.constant 1.000000e+00 : f32
    %612 = vector.broadcast %cst_153 : f32 to vector<16x16xf32>
    %613 = arith.divf %612, %611 : vector<16x16xf32>
    %614 = arith.mulf %530, %435 : vector<16x16xf32>
    %cst_154 = arith.constant dense<0.000000e+00> : vector<16x256xf32>
    %615 = tpu.matmul %614, %441, %cst_154 {dimension_numbers = #tpu.dot_dimension_numbers<[1], [0], [0], [1], [0, 0, 1, 1], [], []>} : vector<16x16xf32>, vector<16x256xf32>, vector<16x256xf32> -> vector<16x256xf32>
    %616 = vector.extract_strided_slice %446 {offsets = [0, 512], sizes = [16, 128], strides = [1, 1]} : vector<16x768xf32> to vector<16x128xf32>
    %617 = vector.extract_strided_slice %615 {offsets = [0, 0], sizes = [16, 128], strides = [1, 1]} : vector<16x256xf32> to vector<16x128xf32>
    %618 = arith.addf %616, %617 : vector<16x128xf32>
    %619 = vector.extract_strided_slice %446 {offsets = [0, 640], sizes = [16, 128], strides = [1, 1]} : vector<16x768xf32> to vector<16x128xf32>
    %620 = vector.extract_strided_slice %615 {offsets = [0, 128], sizes = [16, 128], strides = [1, 1]} : vector<16x256xf32> to vector<16x128xf32>
    %621 = arith.addf %619, %620 : vector<16x128xf32>
    %622 = vector.extract_strided_slice %443 {offsets = [2, 0, 0], sizes = [1, 1, 8], strides = [1, 1, 1]} : vector<3x2x8xf32> to vector<1x1x8xf32>
    %623 = vector.shape_cast %622 : vector<1x1x8xf32> to vector<1x8xf32>
    %624 = vector.extract_strided_slice %443 {offsets = [2, 1, 0], sizes = [1, 1, 8], strides = [1, 1, 1]} : vector<3x2x8xf32> to vector<1x1x8xf32>
    %625 = vector.shape_cast %624 : vector<1x1x8xf32> to vector<1x8xf32>
    %626 = vector.broadcast %623 : vector<1x8xf32> to vector<8x8xf32>
    %627 = arith.mulf %27, %626 : vector<8x8xf32>
    %628 = vector.broadcast %625 : vector<1x8xf32> to vector<8x8xf32>
    %629 = arith.addf %627, %628 : vector<8x8xf32>
    %630 = tpu.transpose %629, [1, 0] : vector<8x8xf32> -> vector<8x8xf32>
    %cst_155 = arith.constant dense<0.000000e+00> : vector<8x8xf32>
    %631 = tpu.matmul %629, %630, %cst_155 {dimension_numbers = #tpu.dot_dimension_numbers<[1], [0], [0], [1], [0, 0, 1, 1], [], []>} : vector<8x8xf32>, vector<8x8xf32>, vector<8x8xf32> -> vector<8x8xf32>
    %cst_156 = arith.constant dense<0xFF800000> : vector<8xf32>
    %632 = vector.multi_reduction <maximumf>, %631, %cst_156 [1] : vector<8x8xf32> to vector<8xf32>
    %633 = vector.shape_cast %632 : vector<8xf32> to vector<8x1xf32>
    %634 = vector.broadcast %633 : vector<8x1xf32> to vector<8x8xf32>
    %635 = arith.subf %631, %634 : vector<8x8xf32>
    %636 = math.exp %635 : vector<8x8xf32>
    %cst_157 = arith.constant dense<0.000000e+00> : vector<8xf32>
    %637 = vector.multi_reduction <add>, %636, %cst_157 [1] : vector<8x8xf32> to vector<8xf32>
    %638 = vector.shape_cast %637 : vector<8xf32> to vector<8x1xf32>
    %639 = vector.broadcast %638 : vector<8x1xf32> to vector<8x8xf32>
    %640 = arith.divf %636, %639 : vector<8x8xf32>
    %641 = vector.extract_strided_slice %621 {offsets = [0, 0], sizes = [8, 128], strides = [1, 1]} : vector<16x128xf32> to vector<8x128xf32>
    %cst_158 = arith.constant dense<0.000000e+00> : vector<8x128xf32>
    %642 = tpu.matmul %640, %641, %cst_158 {dimension_numbers = #tpu.dot_dimension_numbers<[1], [0], [0], [1], [0, 0, 1, 1], [], []>} : vector<8x8xf32>, vector<8x128xf32>, vector<8x128xf32> -> vector<8x128xf32>
    %643 = vector.extract_strided_slice %621 {offsets = [8, 0], sizes = [8, 128], strides = [1, 1]} : vector<16x128xf32> to vector<8x128xf32>
    %cst_159 = arith.constant dense<0.000000e+00> : vector<8x128xf32>
    %644 = tpu.matmul %640, %643, %cst_159 {dimension_numbers = #tpu.dot_dimension_numbers<[1], [0], [0], [1], [0, 0, 1, 1], [], []>} : vector<8x8xf32>, vector<8x128xf32>, vector<8x128xf32> -> vector<8x128xf32>
    %645 = tpu.concatenate %642, %644 in 0 : vector<8x128xf32>, vector<8x128xf32> -> vector<16x128xf32>
    %646 = arith.addf %618, %645 : vector<16x128xf32>
    %647 = vector.extract_strided_slice %445 {offsets = [2, 0, 0], sizes = [1, 8, 16], strides = [1, 1, 1]} : vector<3x8x16xf32> to vector<1x8x16xf32>
    %648 = vector.shape_cast %647 : vector<1x8x16xf32> to vector<8x16xf32>
    %cst_160 = arith.constant dense<0.000000e+00> : vector<8x16xf32>
    %649 = tpu.matmul %629, %648, %cst_160 {dimension_numbers = #tpu.dot_dimension_numbers<[1], [0], [0], [1], [0, 0, 1, 1], [], []>} : vector<8x8xf32>, vector<8x16xf32>, vector<8x16xf32> -> vector<8x16xf32>
    %650 = tpu.concatenate %649, %649 in 0 : vector<8x16xf32>, vector<8x16xf32> -> vector<16x16xf32>
    %651 = tpu.concatenate %629, %629 in 0 : vector<8x8xf32>, vector<8x8xf32> -> vector<16x8xf32>
    %652 = vector.extract_strided_slice %651 {offsets = [0, 0], sizes = [16, 1], strides = [1, 1]} : vector<16x8xf32> to vector<16x1xf32>
    %653 = vector.extract_strided_slice %646 {offsets = [0, 0], sizes = [16, 16], strides = [1, 1]} : vector<16x128xf32> to vector<16x16xf32>
    %654 = vector.broadcast %652 : vector<16x1xf32> to vector<16x16xf32>
    %655 = arith.mulf %654, %653 : vector<16x16xf32>
    %656 = arith.addf %650, %655 : vector<16x16xf32>
    %657 = vector.extract_strided_slice %651 {offsets = [0, 1], sizes = [16, 1], strides = [1, 1]} : vector<16x8xf32> to vector<16x1xf32>
    %658 = vector.extract_strided_slice %646 {offsets = [0, 16], sizes = [16, 16], strides = [1, 1]} : vector<16x128xf32> to vector<16x16xf32>
    %659 = vector.broadcast %657 : vector<16x1xf32> to vector<16x16xf32>
    %660 = arith.mulf %659, %658 : vector<16x16xf32>
    %661 = arith.addf %656, %660 : vector<16x16xf32>
    %662 = vector.extract_strided_slice %651 {offsets = [0, 2], sizes = [16, 1], strides = [1, 1]} : vector<16x8xf32> to vector<16x1xf32>
    %663 = vector.extract_strided_slice %646 {offsets = [0, 32], sizes = [16, 16], strides = [1, 1]} : vector<16x128xf32> to vector<16x16xf32>
    %664 = vector.broadcast %662 : vector<16x1xf32> to vector<16x16xf32>
    %665 = arith.mulf %664, %663 : vector<16x16xf32>
    %666 = arith.addf %661, %665 : vector<16x16xf32>
    %667 = vector.extract_strided_slice %651 {offsets = [0, 3], sizes = [16, 1], strides = [1, 1]} : vector<16x8xf32> to vector<16x1xf32>
    %668 = vector.extract_strided_slice %646 {offsets = [0, 48], sizes = [16, 16], strides = [1, 1]} : vector<16x128xf32> to vector<16x16xf32>
    %669 = vector.broadcast %667 : vector<16x1xf32> to vector<16x16xf32>
    %670 = arith.mulf %669, %668 : vector<16x16xf32>
    %671 = arith.addf %666, %670 : vector<16x16xf32>
    %672 = vector.extract_strided_slice %651 {offsets = [0, 4], sizes = [16, 1], strides = [1, 1]} : vector<16x8xf32> to vector<16x1xf32>
    %673 = vector.extract_strided_slice %646 {offsets = [0, 64], sizes = [16, 16], strides = [1, 1]} : vector<16x128xf32> to vector<16x16xf32>
    %674 = vector.broadcast %672 : vector<16x1xf32> to vector<16x16xf32>
    %675 = arith.mulf %674, %673 : vector<16x16xf32>
    %676 = arith.addf %671, %675 : vector<16x16xf32>
    %677 = vector.extract_strided_slice %651 {offsets = [0, 5], sizes = [16, 1], strides = [1, 1]} : vector<16x8xf32> to vector<16x1xf32>
    %678 = vector.extract_strided_slice %646 {offsets = [0, 80], sizes = [16, 16], strides = [1, 1]} : vector<16x128xf32> to vector<16x16xf32>
    %679 = vector.broadcast %677 : vector<16x1xf32> to vector<16x16xf32>
    %680 = arith.mulf %679, %678 : vector<16x16xf32>
    %681 = arith.addf %676, %680 : vector<16x16xf32>
    %682 = vector.extract_strided_slice %651 {offsets = [0, 6], sizes = [16, 1], strides = [1, 1]} : vector<16x8xf32> to vector<16x1xf32>
    %683 = vector.extract_strided_slice %646 {offsets = [0, 96], sizes = [16, 16], strides = [1, 1]} : vector<16x128xf32> to vector<16x16xf32>
    %684 = vector.broadcast %682 : vector<16x1xf32> to vector<16x16xf32>
    %685 = arith.mulf %684, %683 : vector<16x16xf32>
    %686 = arith.addf %681, %685 : vector<16x16xf32>
    %687 = vector.extract_strided_slice %651 {offsets = [0, 7], sizes = [16, 1], strides = [1, 1]} : vector<16x8xf32> to vector<16x1xf32>
    %688 = vector.extract_strided_slice %646 {offsets = [0, 112], sizes = [16, 16], strides = [1, 1]} : vector<16x128xf32> to vector<16x16xf32>
    %689 = vector.broadcast %687 : vector<16x1xf32> to vector<16x16xf32>
    %690 = arith.mulf %689, %688 : vector<16x16xf32>
    %691 = arith.addf %686, %690 : vector<16x16xf32>
    %692 = math.tanh %691 : vector<16x16xf32>
    %693 = arith.mulf %613, %435 : vector<16x16xf32>
    %cst_161 = arith.constant 1.000000e+00 : f32
    %694 = vector.broadcast %cst_161 : f32 to vector<16x16xf32>
    %695 = arith.subf %694, %613 : vector<16x16xf32>
    %696 = arith.mulf %695, %692 : vector<16x16xf32>
    %697 = arith.addf %693, %696 : vector<16x16xf32>
    %698 = arith.index_cast %432 : i32 to index
    %c0_162 = arith.constant 0 : index
    %c0_163 = arith.constant 0 : index
    %699 = vector.load %arg27[%698, %c0_162, %c0_163] : memref<2x16x16xf32, #tpu.memory_space<vmem>>, vector<1x16x16xf32>
    %700 = vector.shape_cast %699 : vector<1x16x16xf32> to vector<16x16xf32>
    %701 = vector.shape_cast %697 : vector<16x16xf32> to vector<1x16x16xf32>
    tpu.vector_store %arg27[%698, %c0_162, %c0_163], %701 {strides = array<i32>} : memref<2x16x16xf32, #tpu.memory_space<vmem>>, vector<1x16x16xf32>,
    %c11_i32 = arith.constant 11 : i32
    %702 = arith.cmpi eq, %arg0, %c11_i32 : i32
    %703 = arith.extui %702 : i1 to i32
    %c0_i32_164 = arith.constant 0 : i32
    %704 = arith.cmpi ne, %703, %c0_i32_164 : i32
    scf.if %704 {
      %c0_165 = arith.constant 0 : index
      %c0_166 = arith.constant 0 : index
      %705 = vector.load %arg22[%c0_165, %c0_166] : memref<2x16xf32, #tpu.memory_space<vmem>>, vector<2x16xf32>
      %c1 = arith.constant 1 : index
      %c0_167 = arith.constant 0 : index
      %c0_168 = arith.constant 0 : index
      %706 = vector.load %arg27[%c1, %c0_167, %c0_168] : memref<2x16x16xf32, #tpu.memory_space<vmem>>, vector<1x16x16xf32>
      %707 = vector.shape_cast %706 : vector<1x16x16xf32> to vector<16x16xf32>
      %cst_169 = arith.constant dense<0.000000e+00> : vector<16xf32>
      %708 = vector.multi_reduction <add>, %707, %cst_169 [1] : vector<16x16xf32> to vector<16xf32>
      %709 = vector.shape_cast %708 : vector<16xf32> to vector<16x1xf32>
      %cst_170 = arith.constant 1.600000e+01 : f32
      %710 = vector.broadcast %cst_170 : f32 to vector<16x1xf32>
      %711 = arith.divf %709, %710 : vector<16x1xf32>
      %712 = vector.broadcast %711 : vector<16x1xf32> to vector<16x16xf32>
      %713 = arith.subf %707, %712 : vector<16x16xf32>
      %714 = arith.mulf %713, %713 : vector<16x16xf32>
      %cst_171 = arith.constant dense<0.000000e+00> : vector<16xf32>
      %715 = vector.multi_reduction <add>, %714, %cst_171 [1] : vector<16x16xf32> to vector<16xf32>
      %716 = vector.shape_cast %715 : vector<16xf32> to vector<16x1xf32>
      %cst_172 = arith.constant 1.600000e+01 : f32
      %717 = vector.broadcast %cst_172 : f32 to vector<16x1xf32>
      %718 = arith.divf %716, %717 : vector<16x1xf32>
      %719 = vector.broadcast %711 : vector<16x1xf32> to vector<16x16xf32>
      %720 = arith.subf %707, %719 : vector<16x16xf32>
      %cst_173 = arith.constant 9.99999996E-13 : f32
      %721 = vector.broadcast %cst_173 : f32 to vector<16x1xf32>
      %722 = arith.addf %718, %721 : vector<16x1xf32>
      %723 = math.rsqrt %722 : vector<16x1xf32>
      %724 = vector.broadcast %723 : vector<16x1xf32> to vector<16x16xf32>
      %725 = arith.mulf %720, %724 : vector<16x16xf32>
      %726 = vector.extract_strided_slice %705 {offsets = [0, 0], sizes = [1, 16], strides = [1, 1]} : vector<2x16xf32> to vector<1x16xf32>
      %727 = vector.broadcast %726 : vector<1x16xf32> to vector<16x16xf32>
      %728 = arith.mulf %725, %727 : vector<16x16xf32>
      %729 = vector.extract_strided_slice %705 {offsets = [1, 0], sizes = [1, 16], strides = [1, 1]} : vector<2x16xf32> to vector<1x16xf32>
      %730 = vector.broadcast %729 : vector<1x16xf32> to vector<16x16xf32>
      %731 = arith.addf %728, %730 : vector<16x16xf32>
      %cst_174 = arith.constant dense<0.000000e+00> : vector<16xf32>
      %732 = vector.multi_reduction <add>, %285, %cst_174 [1] : vector<16x16xf32> to vector<16xf32>
      %733 = vector.shape_cast %732 : vector<16xf32> to vector<16x1xf32>
      %cst_175 = arith.constant 1.600000e+01 : f32
      %734 = vector.broadcast %cst_175 : f32 to vector<16x1xf32>
      %735 = arith.divf %733, %734 : vector<16x1xf32>
      %736 = vector.broadcast %735 : vector<16x1xf32> to vector<16x16xf32>
      %737 = arith.subf %285, %736 : vector<16x16xf32>
      %738 = arith.mulf %737, %737 : vector<16x16xf32>
      %cst_176 = arith.constant dense<0.000000e+00> : vector<16xf32>
      %739 = vector.multi_reduction <add>, %738, %cst_176 [1] : vector<16x16xf32> to vector<16xf32>
      %740 = vector.shape_cast %739 : vector<16xf32> to vector<16x1xf32>
      %cst_177 = arith.constant 1.600000e+01 : f32
      %741 = vector.broadcast %cst_177 : f32 to vector<16x1xf32>
      %742 = arith.divf %740, %741 : vector<16x1xf32>
      %743 = vector.broadcast %735 : vector<16x1xf32> to vector<16x16xf32>
      %744 = arith.subf %285, %743 : vector<16x16xf32>
      %cst_178 = arith.constant 9.99999996E-13 : f32
      %745 = vector.broadcast %cst_178 : f32 to vector<16x1xf32>
      %746 = arith.addf %742, %745 : vector<16x1xf32>
      %747 = math.rsqrt %746 : vector<16x1xf32>
      %748 = vector.broadcast %747 : vector<16x1xf32> to vector<16x16xf32>
      %749 = arith.mulf %744, %748 : vector<16x16xf32>
      %750 = vector.extract_strided_slice %705 {offsets = [0, 0], sizes = [1, 16], strides = [1, 1]} : vector<2x16xf32> to vector<1x16xf32>
      %751 = vector.broadcast %750 : vector<1x16xf32> to vector<16x16xf32>
      %752 = arith.mulf %749, %751 : vector<16x16xf32>
      %753 = vector.extract_strided_slice %705 {offsets = [1, 0], sizes = [1, 16], strides = [1, 1]} : vector<2x16xf32> to vector<1x16xf32>
      %754 = vector.broadcast %753 : vector<1x16xf32> to vector<16x16xf32>
      %755 = arith.addf %752, %754 : vector<16x16xf32>
      %756 = tpu.concatenate %731, %755 in 1 : vector<16x16xf32>, vector<16x16xf32> -> vector<16x32xf32>
      %c0_179 = arith.constant 0 : index
      %c0_180 = arith.constant 0 : index
      %757 = vector.load %arg23[%c0_179, %c0_180] : memref<32x12xf32, #tpu.memory_space<vmem>>, vector<32x12xf32>
      %cst_181 = arith.constant dense<0.000000e+00> : vector<16x12xf32>
      %758 = tpu.matmul %756, %757, %cst_181 {dimension_numbers = #tpu.dot_dimension_numbers<[1], [0], [0], [1], [0, 0, 1, 1], [], []>} : vector<16x32xf32>, vector<32x12xf32>, vector<16x12xf32> -> vector<16x12xf32>
      %c0_182 = arith.constant 0 : index
      %c0_183 = arith.constant 0 : index
      %759 = vector.load %arg24[%c0_182, %c0_183] : memref<1x12xf32, #tpu.memory_space<vmem>>, vector<1x12xf32>
      %760 = vector.broadcast %759 : vector<1x12xf32> to vector<16x12xf32>
      %761 = arith.addf %758, %760 : vector<16x12xf32>
      %c0_184 = arith.constant 0 : index
      %c0_185 = arith.constant 0 : index
      %762 = vector.load %arg25[%c0_184, %c0_185] : memref<16x12xf32, #tpu.memory_space<vmem>>, vector<16x12xf32>
      tpu.vector_store %arg25[%c0_184, %c0_185], %761 {strides = array<i32>} : memref<16x12xf32, #tpu.memory_space<vmem>>, vector<16x12xf32>,
    } else {
    }
    return
  }
  func.func @transform_0(%arg0: i32) -> (i32, i32, i32) {
    %c0_i32 = arith.constant 0 : i32
    %c0_i32_0 = arith.constant 0 : i32
    %c0_i32_1 = arith.constant 0 : i32
    return %arg0, %c0_i32, %c0_i32_0 : i32, i32, i32
  }
  func.func @transform_1(%arg0: i32) -> (i32, i32, i32) {
    %c0_i32 = arith.constant 0 : i32
    %c0_i32_0 = arith.constant 0 : i32
    %c0_i32_1 = arith.constant 0 : i32
    return %arg0, %c0_i32, %c0_i32_0 : i32, i32, i32
  }
  func.func @transform_2(%arg0: i32) -> (i32, i32, i32) {
    %c0_i32 = arith.constant 0 : i32
    %c0_i32_0 = arith.constant 0 : i32
    %c0_i32_1 = arith.constant 0 : i32
    return %arg0, %c0_i32, %c0_i32_0 : i32, i32, i32
  }
  func.func @transform_3(%arg0: i32) -> (i32, i32, i32) {
    %c0_i32 = arith.constant 0 : i32
    %c0_i32_0 = arith.constant 0 : i32
    %c0_i32_1 = arith.constant 0 : i32
    return %arg0, %c0_i32, %c0_i32_0 : i32, i32, i32
  }
  func.func @transform_4(%arg0: i32) -> (i32, i32, i32) {
    %c0_i32 = arith.constant 0 : i32
    %c0_i32_0 = arith.constant 0 : i32
    %c0_i32_1 = arith.constant 0 : i32
    return %arg0, %c0_i32, %c0_i32_0 : i32, i32, i32
  }
  func.func @transform_5(%arg0: i32) -> (i32, i32, i32) {
    %c0_i32 = arith.constant 0 : i32
    %c0_i32_0 = arith.constant 0 : i32
    %c0_i32_1 = arith.constant 0 : i32
    return %arg0, %c0_i32, %c0_i32_0 : i32, i32, i32
  }
  func.func @transform_6(%arg0: i32) -> (i32, i32, i32) {
    %c0_i32 = arith.constant 0 : i32
    %c0_i32_0 = arith.constant 0 : i32
    %c0_i32_1 = arith.constant 0 : i32
    return %arg0, %c0_i32, %c0_i32_0 : i32, i32, i32
  }
  func.func @transform_7(%arg0: i32) -> (i32, i32, i32) {
    %c0_i32 = arith.constant 0 : i32
    %c0_i32_0 = arith.constant 0 : i32
    %c0_i32_1 = arith.constant 0 : i32
    return %arg0, %c0_i32, %c0_i32_0 : i32, i32, i32
  }
  func.func @transform_8(%arg0: i32) -> (i32, i32, i32) {
    %c2_i32 = arith.constant 2 : i32
    %c0_i32 = arith.constant 0 : i32
    %0 = arith.cmpi eq, %c2_i32, %c0_i32 : i32
    %c1_i32 = arith.constant 1 : i32
    %1 = arith.select %0, %c1_i32, %c2_i32 : i32
    %2 = arith.remsi %arg0, %1 : i32
    %c0_i32_0 = arith.constant 0 : i32
    %3 = arith.cmpi ne, %2, %c0_i32_0 : i32
    %c0_i32_1 = arith.constant 0 : i32
    %4 = arith.cmpi slt, %2, %c0_i32_1 : i32
    %c0_i32_2 = arith.constant 0 : i32
    %5 = arith.cmpi slt, %1, %c0_i32_2 : i32
    %6 = arith.xori %4, %5 : i1
    %7 = arith.andi %6, %3 : i1
    %8 = arith.addi %2, %1 : i32
    %9 = arith.select %7, %8, %2 : i32
    %c0_i32_3 = arith.constant 0 : i32
    %c0_i32_4 = arith.constant 0 : i32
    %c0_i32_5 = arith.constant 0 : i32
    return %9, %c0_i32_3, %c0_i32_4 : i32, i32, i32
  }
  func.func @transform_9(%arg0: i32) -> (i32, i32, i32) {
    %c2_i32 = arith.constant 2 : i32
    %c0_i32 = arith.constant 0 : i32
    %0 = arith.cmpi eq, %c2_i32, %c0_i32 : i32
    %c1_i32 = arith.constant 1 : i32
    %1 = arith.select %0, %c1_i32, %c2_i32 : i32
    %2 = arith.remsi %arg0, %1 : i32
    %c0_i32_0 = arith.constant 0 : i32
    %3 = arith.cmpi ne, %2, %c0_i32_0 : i32
    %c0_i32_1 = arith.constant 0 : i32
    %4 = arith.cmpi slt, %2, %c0_i32_1 : i32
    %c0_i32_2 = arith.constant 0 : i32
    %5 = arith.cmpi slt, %1, %c0_i32_2 : i32
    %6 = arith.xori %4, %5 : i1
    %7 = arith.andi %6, %3 : i1
    %8 = arith.addi %2, %1 : i32
    %9 = arith.select %7, %8, %2 : i32
    %c0_i32_3 = arith.constant 0 : i32
    %c0_i32_4 = arith.constant 0 : i32
    %c0_i32_5 = arith.constant 0 : i32
    return %9, %c0_i32_3, %c0_i32_4 : i32, i32, i32
  }
  func.func @transform_10(%arg0: i32) -> (i32, i32, i32) {
    %c2_i32 = arith.constant 2 : i32
    %c0_i32 = arith.constant 0 : i32
    %0 = arith.cmpi eq, %c2_i32, %c0_i32 : i32
    %c1_i32 = arith.constant 1 : i32
    %1 = arith.select %0, %c1_i32, %c2_i32 : i32
    %2 = arith.remsi %arg0, %1 : i32
    %c0_i32_0 = arith.constant 0 : i32
    %3 = arith.cmpi ne, %2, %c0_i32_0 : i32
    %c0_i32_1 = arith.constant 0 : i32
    %4 = arith.cmpi slt, %2, %c0_i32_1 : i32
    %c0_i32_2 = arith.constant 0 : i32
    %5 = arith.cmpi slt, %1, %c0_i32_2 : i32
    %6 = arith.xori %4, %5 : i1
    %7 = arith.andi %6, %3 : i1
    %8 = arith.addi %2, %1 : i32
    %9 = arith.select %7, %8, %2 : i32
    %c0_i32_3 = arith.constant 0 : i32
    %c0_i32_4 = arith.constant 0 : i32
    %c0_i32_5 = arith.constant 0 : i32
    return %9, %c0_i32_3, %c0_i32_4 : i32, i32, i32
  }
  func.func @transform_11(%arg0: i32) -> (i32, i32, i32, i32) {
    %c2_i32 = arith.constant 2 : i32
    %c0_i32 = arith.constant 0 : i32
    %0 = arith.cmpi eq, %c2_i32, %c0_i32 : i32
    %c1_i32 = arith.constant 1 : i32
    %1 = arith.select %0, %c1_i32, %c2_i32 : i32
    %2 = arith.remsi %arg0, %1 : i32
    %c0_i32_0 = arith.constant 0 : i32
    %3 = arith.cmpi ne, %2, %c0_i32_0 : i32
    %c0_i32_1 = arith.constant 0 : i32
    %4 = arith.cmpi slt, %2, %c0_i32_1 : i32
    %c0_i32_2 = arith.constant 0 : i32
    %5 = arith.cmpi slt, %1, %c0_i32_2 : i32
    %6 = arith.xori %4, %5 : i1
    %7 = arith.andi %6, %3 : i1
    %8 = arith.addi %2, %1 : i32
    %9 = arith.select %7, %8, %2 : i32
    %c0_i32_3 = arith.constant 0 : i32
    %c0_i32_4 = arith.constant 0 : i32
    %c0_i32_5 = arith.constant 0 : i32
    %c0_i32_6 = arith.constant 0 : i32
    return %9, %c0_i32_3, %c0_i32_4, %c0_i32_5 : i32, i32, i32, i32
  }
  func.func @transform_12(%arg0: i32) -> (i32, i32, i32, i32) {
    %c2_i32 = arith.constant 2 : i32
    %c0_i32 = arith.constant 0 : i32
    %0 = arith.cmpi eq, %c2_i32, %c0_i32 : i32
    %c1_i32 = arith.constant 1 : i32
    %1 = arith.select %0, %c1_i32, %c2_i32 : i32
    %2 = arith.remsi %arg0, %1 : i32
    %c0_i32_0 = arith.constant 0 : i32
    %3 = arith.cmpi ne, %2, %c0_i32_0 : i32
    %c0_i32_1 = arith.constant 0 : i32
    %4 = arith.cmpi slt, %2, %c0_i32_1 : i32
    %c0_i32_2 = arith.constant 0 : i32
    %5 = arith.cmpi slt, %1, %c0_i32_2 : i32
    %6 = arith.xori %4, %5 : i1
    %7 = arith.andi %6, %3 : i1
    %8 = arith.addi %2, %1 : i32
    %9 = arith.select %7, %8, %2 : i32
    %c0_i32_3 = arith.constant 0 : i32
    %c0_i32_4 = arith.constant 0 : i32
    %c0_i32_5 = arith.constant 0 : i32
    %c0_i32_6 = arith.constant 0 : i32
    return %9, %c0_i32_3, %c0_i32_4, %c0_i32_5 : i32, i32, i32, i32
  }
  func.func @transform_13(%arg0: i32) -> (i32, i32) {
    %c0_i32 = arith.constant 0 : i32
    %c0_i32_0 = arith.constant 0 : i32
    %c0_i32_1 = arith.constant 0 : i32
    return %c0_i32, %c0_i32_0 : i32, i32
  }
  func.func @transform_14(%arg0: i32) -> (i32, i32) {
    %c0_i32 = arith.constant 0 : i32
    %c0_i32_0 = arith.constant 0 : i32
    %c0_i32_1 = arith.constant 0 : i32
    return %c0_i32, %c0_i32_0 : i32, i32
  }
  func.func @transform_15(%arg0: i32) -> (i32, i32) {
    %c0_i32 = arith.constant 0 : i32
    %c0_i32_0 = arith.constant 0 : i32
    %c0_i32_1 = arith.constant 0 : i32
    return %c0_i32, %c0_i32_0 : i32, i32
  }
  func.func @transform_16(%arg0: i32) -> (i32, i32) {
    %c0_i32 = arith.constant 0 : i32
    %c0_i32_0 = arith.constant 0 : i32
    %c0_i32_1 = arith.constant 0 : i32
    return %c0_i32, %c0_i32_0 : i32, i32
  }
  func.func @transform_17(%arg0: i32) -> (i32, i32) {
    %c0_i32 = arith.constant 0 : i32
    %c0_i32_0 = arith.constant 0 : i32
    %c0_i32_1 = arith.constant 0 : i32
    return %c0_i32, %c0_i32_0 : i32, i32
  }
  func.func @transform_18(%arg0: i32) -> (i32, i32) {
    %c0_i32 = arith.constant 0 : i32
    %c0_i32_0 = arith.constant 0 : i32
    %c0_i32_1 = arith.constant 0 : i32
    return %c0_i32, %c0_i32_0 : i32, i32
  }
  func.func @transform_19(%arg0: i32) -> (i32, i32, i32) {
    %c0_i32 = arith.constant 0 : i32
    %c0_i32_0 = arith.constant 0 : i32
    %c0_i32_1 = arith.constant 0 : i32
    %c0_i32_2 = arith.constant 0 : i32
    return %c0_i32, %c0_i32_0, %c0_i32_1 : i32, i32, i32
  }
  func.func @transform_20(%arg0: i32) -> (i32, i32, i32) {
    %c0_i32 = arith.constant 0 : i32
    %c0_i32_0 = arith.constant 0 : i32
    %c0_i32_1 = arith.constant 0 : i32
    %c0_i32_2 = arith.constant 0 : i32
    return %c0_i32, %c0_i32_0, %c0_i32_1 : i32, i32, i32
  }
  func.func @transform_21(%arg0: i32) -> (i32, i32) {
    %c0_i32 = arith.constant 0 : i32
    %c0_i32_0 = arith.constant 0 : i32
    %c0_i32_1 = arith.constant 0 : i32
    return %c0_i32, %c0_i32_0 : i32, i32
  }
  func.func @transform_22(%arg0: i32) -> (i32, i32) {
    %c0_i32 = arith.constant 0 : i32
    %c0_i32_0 = arith.constant 0 : i32
    %c0_i32_1 = arith.constant 0 : i32
    return %c0_i32, %c0_i32_0 : i32, i32
  }
  func.func @transform_23(%arg0: i32) -> (i32, i32) {
    %c0_i32 = arith.constant 0 : i32
    %c0_i32_0 = arith.constant 0 : i32
    %c0_i32_1 = arith.constant 0 : i32
    return %c0_i32, %c0_i32_0 : i32, i32
  }
  func.func @transform_24(%arg0: i32) -> (i32, i32) {
    %c0_i32 = arith.constant 0 : i32
    %c0_i32_0 = arith.constant 0 : i32
    %c0_i32_1 = arith.constant 0 : i32
    return %c0_i32, %c0_i32_0 : i32, i32
  }
}

</mosaic_0001>

<llo_original>
// kernel: network_forward.1
$region0: #{network_forward.1}
  #allocation0 [shape = 'u32[]', space=smem, size = 0x4, offset = 0x4, fixed_abs, tag = 'smem constant byte address 0x4 - core index']
  #allocation1 [shape = 'u32[72,128]{1,0:T(1,128)}', space=vmem, size = 0x9000, scoped, tag = 'internal scratch']
  #allocation2 [shape = 'f32[16,16]{1,0:T(8,128)}', space=vmem, size = 0x2000, scoped, tag = 'scratch operand']
  #allocation3 [shape = 'f32[2,16,16]{2,1,0:T(8,128)}', space=vmem, size = 0x4000, scoped, tag = 'scratch operand']
  #allocation4 [shape = 'f32[16,33]{1,0:T(8,128)}', space=vmem, size = 0x2000, scoped, tag = 'scratch operand']
  %s0 = inlined_call_operand.vmem [shape: f32[12,16,33], index: 0, kind: input, shape index: {}]
  %s1 = inlined_call_operand.vmem [shape: f32[12,33,256], index: 1, kind: input, shape index: {}]
  %s2 = inlined_call_operand.vmem [shape: f32[12,256,2], index: 2, kind: input, shape index: {}]
  %s3 = inlined_call_operand.hbm [shape: f32[12,512,256], index: 3, kind: input, shape index: {}]
  %s4 = inlined_call_operand.vmem [shape: f32[12,1,256], index: 4, kind: input, shape index: {}]
  %s5 = inlined_call_operand.vmem [shape: f32[12,256,16], index: 5, kind: input, shape index: {}]
  %s6 = inlined_call_operand.vmem [shape: f32[12,1,16], index: 6, kind: input, shape index: {}]
  %s7 = inlined_call_operand.vmem [shape: f32[12,2,16], index: 7, kind: input, shape index: {}]
  %s8 = inlined_call_operand.vmem [shape: f32[2,16,768], index: 8, kind: input, shape index: {}]
  %s9 = inlined_call_operand.vmem [shape: f32[2,16,512], index: 9, kind: input, shape index: {}]
  %s10 = inlined_call_operand.vmem [shape: f32[2,16,256], index: 10, kind: input, shape index: {}]
  %s11 = inlined_call_operand.vmem [shape: f32[2,3,2,8], index: 11, kind: input, shape index: {}]
  %s12 = inlined_call_operand.vmem [shape: f32[2,3,8,16], index: 12, kind: input, shape index: {}]
  %s13 = inlined_call_operand.vmem [shape: f32[12,8], index: 13, kind: input, shape index: {}]
  %s14 = inlined_call_operand.vmem [shape: f32[8,8], index: 14, kind: input, shape index: {}]
  %s15 = inlined_call_operand.vmem [shape: f32[16,16], index: 15, kind: input, shape index: {}]
  %s16 = inlined_call_operand.vmem [shape: f32[33,768], index: 16, kind: input, shape index: {}]
  %s17 = inlined_call_operand.vmem [shape: f32[16,512], index: 17, kind: input, shape index: {}]
  %s18 = inlined_call_operand.vmem [shape: f32[16,256], index: 18, kind: input, shape index: {}]
  %s19 = inlined_call_operand.vmem [shape: f32[3,2,8], index: 19, kind: input, shape index: {}]
  %s20 = inlined_call_operand.vmem [shape: f32[3,8,16], index: 20, kind: input, shape index: {}]
  %s21 = inlined_call_operand.vmem [shape: f32[2,16], index: 21, kind: input, shape index: {}]
  %s22 = inlined_call_operand.vmem [shape: f32[32,12], index: 22, kind: input, shape index: {}]
  %s23 = inlined_call_operand.vmem [shape: f32[1,12], index: 23, kind: input, shape index: {}]
  %s24 = inlined_call_operand.hbm [shape: f32[16,12], index: 24, kind: output, shape index: {}]
  %s25 = sld [smem:[#allocation0]]
  $region141: #{network_forward.1} parent=0
    _
  %s27 = ssub.s32 1, %s25
  %s28 = scalar_select 0, %s27, %s25
  $region1: #{network_forward.1} parent=0
    #allocation5 [shape = 'u8[1048576]{0}', space=vmem, size = 0x100000, scoped, tag = 'input window, operand 3']
    #allocation6 [shape = 's32[2]{0}', space=sflag, size = 0x8, scoped, tag = 'scoped memory for network_forward.1']
    #allocation7 [shape = 's32[2]{0}', space=sflag, size = 0x8, scoped, tag = 'scoped memory for network_forward.1']
    #allocation8 [shape = 'u8[8192]{0}', space=vmem, size = 0x2000, scoped, tag = 'output window, operand 0, single buffered']
    %29 = vsyncpa [#allocation6], 0
    %s30 = scalar_lea.sflag [#allocation6], 1
    %31 = vsyncpa %s30, 0
    %32 = vsyncpa [#allocation7], 0
    loop: start=0, step=1, limit=14
    $region2: #{network_forward.1} parent=1 // loop_pre_header
      _
    $region3: #{network_forward.1} parent=1 // loop_header
      %s34 = sphi 0, %s38
      %p35 = scmp.ge.s32.totalorder %s34, 14
      %s44 = sphi 0, %s46
      %s47 = sphi 0, %s44
      %s48 = sphi 0, %s47
      %s64 = sphi 0, %s48
      %s70 = sphi 0, %s72
      %s73 = sphi 0, %s70
      %s74 = sphi 0, %s73
      %s90 = sphi 0, %s74
      %s96 = sphi 0, %s98
      %s99 = sphi 0, %s96
      %s100 = sphi 0, %s99
      %s116 = sphi 0, %s100
      %s122 = sphi 0, %s124
      %s125 = sphi 0, %s122
      %s126 = sphi 0, %s125
      %s142 = sphi 0, %s126
      %s148 = sphi 0, %s150
      %s151 = sphi 0, %s148
      %s152 = sphi 0, %s151
      %s168 = sphi 0, %s152
      %s174 = sphi 0, %s176
      %s177 = sphi 0, %s174
      %s178 = sphi 0, %s177
      %s194 = sphi 0, %s178
      %s200 = sphi 0, %s202
      %s203 = sphi 0, %s200
      %s204 = sphi 0, %s203
      %s220 = sphi 0, %s204
      %s226 = sphi 0, %s228
      %s229 = sphi 0, %s226
      %s230 = sphi 0, %s229
      %s246 = sphi 0, %s230
      %s276 = sphi 0, %s278
      %s279 = sphi 0, %s276
      %s280 = sphi 0, %s279
      %s296 = sphi 0, %s280
      %s326 = sphi 0, %s328
      %s329 = sphi 0, %s326
      %s330 = sphi 0, %s329
      %s346 = sphi 0, %s330
      %s376 = sphi 0, %s378
      %s379 = sphi 0, %s376
      %s380 = sphi 0, %s379
      %s396 = sphi 0, %s380
      %s426 = sphi 0, %s428
      %s429 = sphi 0, %s426
      %s430 = sphi 0, %s429
      %s446 = sphi 0, %s430
      %s476 = sphi 0, %s478
      %s479 = sphi 0, %s476
      %s480 = sphi 0, %s479
      %s496 = sphi 0, %s480
      %s500 = sphi 0, %s500
      %s502 = sphi 0, %s500
      %s503 = sphi 0, %s502
      %s517 = sphi 0, %s503
      %s521 = sphi 0, %s521
      %s523 = sphi 0, %s521
      %s524 = sphi 0, %s523
      %s538 = sphi 0, %s524
      %s542 = sphi 0, %s542
      %s544 = sphi 0, %s542
      %s545 = sphi 0, %s544
      %s559 = sphi 0, %s545
      %s563 = sphi 0, %s563
      %s565 = sphi 0, %s563
      %s566 = sphi 0, %s565
      %s580 = sphi 0, %s566
      %s584 = sphi 0, %s584
      %s586 = sphi 0, %s584
      %s587 = sphi 0, %s586
      %s601 = sphi 0, %s587
      %s605 = sphi 0, %s605
      %s607 = sphi 0, %s605
      %s608 = sphi 0, %s607
      %s622 = sphi 0, %s608
      %s626 = sphi 0, %s626
      %s628 = sphi 0, %s626
      %s629 = sphi 0, %s628
      %s643 = sphi 0, %s629
      %s647 = sphi 0, %s647
      %s649 = sphi 0, %s647
      %s650 = sphi 0, %s649
      %s664 = sphi 0, %s650
      %s668 = sphi 0, %s668
      %s670 = sphi 0, %s668
      %s671 = sphi 0, %s670
      %s685 = sphi 0, %s671
      %s689 = sphi 0, %s689
      %s691 = sphi 0, %s689
      %s692 = sphi 0, %s691
      %s706 = sphi 0, %s692
      %s710 = sphi 0, %s710
      %s712 = sphi 0, %s710
      %s713 = sphi 0, %s712
      %s727 = sphi 0, %s713
      %s731 = sphi 0, %s731
      %s733 = sphi 0, %s731
      %s734 = sphi 0, %s733
      %s748 = sphi 0, %s734
    $region4: #{network_forward.1} parent=1 // loop_header_branch
      %37 = sbr.rel (%p35) target = $region8
    $region5: #{network_forward.1} parent=1 // loop_body
      %s39 = ssub.s32 %s34, 1
      %s40 = ssub.s32 %s34, 2
      %s41 = sadd.s32 %s34, 1
      %s42 = ssub.s32 %s34, %s41
      %p43 = scmp.eq.s32.totalorder %s42, 0
      %s45 = sadd.s32 %s44, 1
      %s46 = scalar_select %p43, %s44, %s45
      %p49 = pneg %p43
      %p50 = scmp.eq.s32.totalorder %s34, 11
      %p51 = por %p49, %p50
      %p52 = scmp.ne.s32.totalorder %s44, %s47
      %p53 = scmp.eq.s32.totalorder %s34, 0
      %p54 = por %p52, %p53
      %p55 = scmp.ne.s32.totalorder %s44, %s47
      %p56 = scmp.eq.s32.totalorder %s39, 11
      %p57 = por %p55, %p56
      %p58 = scmp.ne.s32.totalorder %s47, %s48
      %p59 = scmp.eq.s32.totalorder %s39, 0
      %p60 = por %p58, %p59
      %p61 = scmp.ne.s32.totalorder %s47, %s48
      %p62 = scmp.eq.s32.totalorder %s40, 11
      %p63 = por %p61, %p62
      %p65 = scmp.ne.s32.totalorder %s48, %s64
      %p66 = scmp.eq.s32.totalorder %s40, 0
      %p67 = por %p65, %p66
      %s68 = ssub.s32 %s34, %s41
      %p69 = scmp.eq.s32.totalorder %s68, 0
      %s71 = sadd.s32 %s70, 1
      %s72 = scalar_select %p69, %s70, %s71
      %p75 = pneg %p69
      %p76 = scmp.eq.s32.totalorder %s34, 11
      %p77 = por %p75, %p76
      %p78 = scmp.ne.s32.totalorder %s70, %s73
      %p79 = scmp.eq.s32.totalorder %s34, 0
      %p80 = por %p78, %p79
      %p81 = scmp.ne.s32.totalorder %s70, %s73
      %p82 = scmp.eq.s32.totalorder %s39, 11
      %p83 = por %p81, %p82
      %p84 = scmp.ne.s32.totalorder %s73, %s74
      %p85 = scmp.eq.s32.totalorder %s39, 0
      %p86 = por %p84, %p85
      %p87 = scmp.ne.s32.totalorder %s73, %s74
      %p88 = scmp.eq.s32.totalorder %s40, 11
      %p89 = por %p87, %p88
      %p91 = scmp.ne.s32.totalorder %s74, %s90
      %p92 = scmp.eq.s32.totalorder %s40, 0
      %p93 = por %p91, %p92
      %s94 = ssub.s32 %s34, %s41
      %p95 = scmp.eq.s32.totalorder %s94, 0
      %s97 = sadd.s32 %s96, 1
      %s98 = scalar_select %p95, %s96, %s97
      %p101 = pneg %p95
      %p102 = scmp.eq.s32.totalorder %s34, 11
      %p103 = por %p101, %p102
      %p104 = scmp.ne.s32.totalorder %s96, %s99
      %p105 = scmp.eq.s32.totalorder %s34, 0
      %p106 = por %p104, %p105
      %p107 = scmp.ne.s32.totalorder %s96, %s99
      %p108 = scmp.eq.s32.totalorder %s39, 11
      %p109 = por %p107, %p108
      %p110 = scmp.ne.s32.totalorder %s99, %s100
      %p111 = scmp.eq.s32.totalorder %s39, 0
      %p112 = por %p110, %p111
      %p113 = scmp.ne.s32.totalorder %s99, %s100
      %p114 = scmp.eq.s32.totalorder %s40, 11
      %p115 = por %p113, %p114
      %p117 = scmp.ne.s32.totalorder %s100, %s116
      %p118 = scmp.eq.s32.totalorder %s40, 0
      %p119 = por %p117, %p118
      %s120 = ssub.s32 %s34, %s41
      %p121 = scmp.eq.s32.totalorder %s120, 0
      %s123 = sadd.s32 %s122, 1
      %s124 = scalar_select %p121, %s122, %s123
      %p127 = pneg %p121
      %p128 = scmp.eq.s32.totalorder %s34, 11
      %p129 = por %p127, %p128
      %p130 = scmp.ne.s32.totalorder %s122, %s125
      %p131 = scmp.eq.s32.totalorder %s34, 0
      %p132 = por %p130, %p131
      %p133 = scmp.ne.s32.totalorder %s122, %s125
      %p134 = scmp.eq.s32.totalorder %s39, 11
      %p135 = por %p133, %p134
      %p136 = scmp.ne.s32.totalorder %s125, %s126
      %p137 = scmp.eq.s32.totalorder %s39, 0
      %p138 = por %p136, %p137
      %p139 = scmp.ne.s32.totalorder %s125, %s126
      %p140 = scmp.eq.s32.totalorder %s40, 11
      %p141 = por %p139, %p140
      %p143 = scmp.ne.s32.totalorder %s126, %s142
      %p144 = scmp.eq.s32.totalorder %s40, 0
      %p145 = por %p143, %p144
      %s146 = ssub.s32 %s34, %s41
      %p147 = scmp.eq.s32.totalorder %s146, 0
      %s149 = sadd.s32 %s148, 1
      %s150 = scalar_select %p147, %s148, %s149
      %p153 = pneg %p147
      %p154 = scmp.eq.s32.totalorder %s34, 11
      %p155 = por %p153, %p154
      %p156 = scmp.ne.s32.totalorder %s148, %s151
      %p157 = scmp.eq.s32.totalorder %s34, 0
      %p158 = por %p156, %p157
      %p159 = scmp.ne.s32.totalorder %s148, %s151
      %p160 = scmp.eq.s32.totalorder %s39, 11
      %p161 = por %p159, %p160
      %p162 = scmp.ne.s32.totalorder %s151, %s152
      %p163 = scmp.eq.s32.totalorder %s39, 0
      %p164 = por %p162, %p163
      %p165 = scmp.ne.s32.totalorder %s151, %s152
      %p166 = scmp.eq.s32.totalorder %s40, 11
      %p167 = por %p165, %p166
      %p169 = scmp.ne.s32.totalorder %s152, %s168
      %p170 = scmp.eq.s32.totalorder %s40, 0
      %p171 = por %p169, %p170
      %s172 = ssub.s32 %s34, %s41
      %p173 = scmp.eq.s32.totalorder %s172, 0
      %s175 = sadd.s32 %s174, 1
      %s176 = scalar_select %p173, %s174, %s175
      %p179 = pneg %p173
      %p180 = scmp.eq.s32.totalorder %s34, 11
      %p181 = por %p179, %p180
      %p182 = scmp.ne.s32.totalorder %s174, %s177
      %p183 = scmp.eq.s32.totalorder %s34, 0
      %p184 = por %p182, %p183
      %p185 = scmp.ne.s32.totalorder %s174, %s177
      %p186 = scmp.eq.s32.totalorder %s39, 11
      %p187 = por %p185, %p186
      %p188 = scmp.ne.s32.totalorder %s177, %s178
      %p189 = scmp.eq.s32.totalorder %s39, 0
      %p190 = por %p188, %p189
      %p191 = scmp.ne.s32.totalorder %s177, %s178
      %p192 = scmp.eq.s32.totalorder %s40, 11
      %p193 = por %p191, %p192
      %p195 = scmp.ne.s32.totalorder %s178, %s194
      %p196 = scmp.eq.s32.totalorder %s40, 0
      %p197 = por %p195, %p196
      %s198 = ssub.s32 %s34, %s41
      %p199 = scmp.eq.s32.totalorder %s198, 0
      %s201 = sadd.s32 %s200, 1
      %s202 = scalar_select %p199, %s200, %s201
      %p205 = pneg %p199
      %p206 = scmp.eq.s32.totalorder %s34, 11
      %p207 = por %p205, %p206
      %p208 = scmp.ne.s32.totalorder %s200, %s203
      %p209 = scmp.eq.s32.totalorder %s34, 0
      %p210 = por %p208, %p209
      %p211 = scmp.ne.s32.totalorder %s200, %s203
      %p212 = scmp.eq.s32.totalorder %s39, 11
      %p213 = por %p211, %p212
      %p214 = scmp.ne.s32.totalorder %s203, %s204
      %p215 = scmp.eq.s32.totalorder %s39, 0
      %p216 = por %p214, %p215
      %p217 = scmp.ne.s32.totalorder %s203, %s204
      %p218 = scmp.eq.s32.totalorder %s40, 11
      %p219 = por %p217, %p218
      %p221 = scmp.ne.s32.totalorder %s204, %s220
      %p222 = scmp.eq.s32.totalorder %s40, 0
      %p223 = por %p221, %p222
      %s224 = ssub.s32 %s34, %s41
      %p225 = scmp.eq.s32.totalorder %s224, 0
      %s227 = sadd.s32 %s226, 1
      %s228 = scalar_select %p225, %s226, %s227
      %p231 = pneg %p225
      %p232 = scmp.eq.s32.totalorder %s34, 11
      %p233 = por %p231, %p232
      %p234 = scmp.ne.s32.totalorder %s226, %s229
      %p235 = scmp.eq.s32.totalorder %s34, 0
      %p236 = por %p234, %p235
      %p237 = scmp.ne.s32.totalorder %s226, %s229
      %p238 = scmp.eq.s32.totalorder %s39, 11
      %p239 = por %p237, %p238
      %p240 = scmp.ne.s32.totalorder %s229, %s230
      %p241 = scmp.eq.s32.totalorder %s39, 0
      %p242 = por %p240, %p241
      %p243 = scmp.ne.s32.totalorder %s229, %s230
      %p244 = scmp.eq.s32.totalorder %s40, 11
      %p245 = por %p243, %p244
      %p247 = scmp.ne.s32.totalorder %s230, %s246
      %p248 = scmp.eq.s32.totalorder %s40, 0
      %p249 = por %p247, %p248
      %p250 = scmp.lt.s32.totalorder %s34, 0
      %s251 = ssub.s32 0, %s34
      %s252 = scalar_select %p250, %s251, %s34
      %s253 = sand.u32 %s252, 1
      %s254 = ssub.s32 0, %s253
      %s255 = scalar_select %p250, %s254, %s253
      %p256 = scmp.ne.s32.totalorder %s255, 0
      %p257 = scmp.lt.s32.totalorder %s255, 0
      %p258 = pnand %p257, %p256
      %p259 = pneg %p258
      %s260 = sadd.s32 %s255, 2
      %s261 = scalar_select %p259, %s260, %s255
      %p262 = scmp.lt.s32.totalorder %s41, 0
      %s263 = ssub.s32 0, %s41
      %s264 = scalar_select %p262, %s263, %s41
      %s265 = sand.u32 %s264, 1
      %s266 = ssub.s32 0, %s265
      %s267 = scalar_select %p262, %s266, %s265
      %p268 = scmp.ne.s32.totalorder %s267, 0
      %p269 = scmp.lt.s32.totalorder %s267, 0
      %p270 = pnand %p269, %p268
      %p271 = pneg %p270
      %s272 = sadd.s32 %s267, 2
      %s273 = scalar_select %p271, %s272, %s267
      %s274 = ssub.s32 %s261, %s273
      %p275 = scmp.eq.s32.totalorder %s274, 0
      %s277 = sadd.s32 %s276, 1
      %s278 = scalar_select %p275, %s276, %s277
      %p281 = pneg %p275
      %p282 = scmp.eq.s32.totalorder %s34, 11
      %p283 = por %p281, %p282
      %p284 = scmp.ne.s32.totalorder %s276, %s279
      %p285 = scmp.eq.s32.totalorder %s34, 0
      %p286 = por %p284, %p285
      %p287 = scmp.ne.s32.totalorder %s276, %s279
      %p288 = scmp.eq.s32.totalorder %s39, 11
      %p289 = por %p287, %p288
      %p290 = scmp.ne.s32.totalorder %s279, %s280
      %p291 = scmp.eq.s32.totalorder %s39, 0
      %p292 = por %p290, %p291
      %p293 = scmp.ne.s32.totalorder %s279, %s280
      %p294 = scmp.eq.s32.totalorder %s40, 11
      %p295 = por %p293, %p294
      %p297 = scmp.ne.s32.totalorder %s280, %s296
      %p298 = scmp.eq.s32.totalorder %s40, 0
      %p299 = por %p297, %p298
      %p300 = scmp.lt.s32.totalorder %s34, 0
      %s301 = ssub.s32 0, %s34
      %s302 = scalar_select %p300, %s301, %s34
      %s303 = sand.u32 %s302, 1
      %s304 = ssub.s32 0, %s303
      %s305 = scalar_select %p300, %s304, %s303
      %p306 = scmp.ne.s32.totalorder %s305, 0
      %p307 = scmp.lt.s32.totalorder %s305, 0
      %p308 = pnand %p307, %p306
      %p309 = pneg %p308
      %s310 = sadd.s32 %s305, 2
      %s311 = scalar_select %p309, %s310, %s305
      %p312 = scmp.lt.s32.totalorder %s41, 0
      %s313 = ssub.s32 0, %s41
      %s314 = scalar_select %p312, %s313, %s41
      %s315 = sand.u32 %s314, 1
      %s316 = ssub.s32 0, %s315
      %s317 = scalar_select %p312, %s316, %s315
      %p318 = scmp.ne.s32.totalorder %s317, 0
      %p319 = scmp.lt.s32.totalorder %s317, 0
      %p320 = pnand %p319, %p318
      %p321 = pneg %p320
      %s322 = sadd.s32 %s317, 2
      %s323 = scalar_select %p321, %s322, %s317
      %s324 = ssub.s32 %s311, %s323
      %p325 = scmp.eq.s32.totalorder %s324, 0
      %s327 = sadd.s32 %s326, 1
      %s328 = scalar_select %p325, %s326, %s327
      %p331 = pneg %p325
      %p332 = scmp.eq.s32.totalorder %s34, 11
      %p333 = por %p331, %p332
      %p334 = scmp.ne.s32.totalorder %s326, %s329
      %p335 = scmp.eq.s32.totalorder %s34, 0
      %p336 = por %p334, %p335
      %p337 = scmp.ne.s32.totalorder %s326, %s329
      %p338 = scmp.eq.s32.totalorder %s39, 11
      %p339 = por %p337, %p338
      %p340 = scmp.ne.s32.totalorder %s329, %s330
      %p341 = scmp.eq.s32.totalorder %s39, 0
      %p342 = por %p340, %p341
      %p343 = scmp.ne.s32.totalorder %s329, %s330
      %p344 = scmp.eq.s32.totalorder %s40, 11
      %p345 = por %p343, %p344
      %p347 = scmp.ne.s32.totalorder %s330, %s346
      %p348 = scmp.eq.s32.totalorder %s40, 0
      %p349 = por %p347, %p348
      %p350 = scmp.lt.s32.totalorder %s34, 0
      %s351 = ssub.s32 0, %s34
      %s352 = scalar_select %p350, %s351, %s34
      %s353 = sand.u32 %s352, 1
      %s354 = ssub.s32 0, %s353
      %s355 = scalar_select %p350, %s354, %s353
      %p356 = scmp.ne.s32.totalorder %s355, 0
      %p357 = scmp.lt.s32.totalorder %s355, 0
      %p358 = pnand %p357, %p356
      %p359 = pneg %p358
      %s360 = sadd.s32 %s355, 2
      %s361 = scalar_select %p359, %s360, %s355
      %p362 = scmp.lt.s32.totalorder %s41, 0
      %s363 = ssub.s32 0, %s41
      %s364 = scalar_select %p362, %s363, %s41
      %s365 = sand.u32 %s364, 1
      %s366 = ssub.s32 0, %s365
      %s367 = scalar_select %p362, %s366, %s365
      %p368 = scmp.ne.s32.totalorder %s367, 0
      %p369 = scmp.lt.s32.totalorder %s367, 0
      %p370 = pnand %p369, %p368
      %p371 = pneg %p370
      %s372 = sadd.s32 %s367, 2
      %s373 = scalar_select %p371, %s372, %s367
      %s374 = ssub.s32 %s361, %s373
      %p375 = scmp.eq.s32.totalorder %s374, 0
      %s377 = sadd.s32 %s376, 1
      %s378 = scalar_select %p375, %s376, %s377
      %p381 = pneg %p375
      %p382 = scmp.eq.s32.totalorder %s34, 11
      %p383 = por %p381, %p382
      %p384 = scmp.ne.s32.totalorder %s376, %s379
      %p385 = scmp.eq.s32.totalorder %s34, 0
      %p386 = por %p384, %p385
      %p387 = scmp.ne.s32.totalorder %s376, %s379
      %p388 = scmp.eq.s32.totalorder %s39, 11
      %p389 = por %p387, %p388
      %p390 = scmp.ne.s32.totalorder %s379, %s380
      %p391 = scmp.eq.s32.totalorder %s39, 0
      %p392 = por %p390, %p391
      %p393 = scmp.ne.s32.totalorder %s379, %s380
      %p394 = scmp.eq.s32.totalorder %s40, 11
      %p395 = por %p393, %p394
      %p397 = scmp.ne.s32.totalorder %s380, %s396
      %p398 = scmp.eq.s32.totalorder %s40, 0
      %p399 = por %p397, %p398
      %p400 = scmp.lt.s32.totalorder %s34, 0
      %s401 = ssub.s32 0, %s34
      %s402 = scalar_select %p400, %s401, %s34
      %s403 = sand.u32 %s402, 1
      %s404 = ssub.s32 0, %s403
      %s405 = scalar_select %p400, %s404, %s403
      %p406 = scmp.ne.s32.totalorder %s405, 0
      %p407 = scmp.lt.s32.totalorder %s405, 0
      %p408 = pnand %p407, %p406
      %p409 = pneg %p408
      %s410 = sadd.s32 %s405, 2
      %s411 = scalar_select %p409, %s410, %s405
      %p412 = scmp.lt.s32.totalorder %s41, 0
      %s413 = ssub.s32 0, %s41
      %s414 = scalar_select %p412, %s413, %s41
      %s415 = sand.u32 %s414, 1
      %s416 = ssub.s32 0, %s415
      %s417 = scalar_select %p412, %s416, %s415
      %p418 = scmp.ne.s32.totalorder %s417, 0
      %p419 = scmp.lt.s32.totalorder %s417, 0
      %p420 = pnand %p419, %p418
      %p421 = pneg %p420
      %s422 = sadd.s32 %s417, 2
      %s423 = scalar_select %p421, %s422, %s417
      %s424 = ssub.s32 %s411, %s423
      %p425 = scmp.eq.s32.totalorder %s424, 0
      %s427 = sadd.s32 %s426, 1
      %s428 = scalar_select %p425, %s426, %s427
      %p431 = pneg %p425
      %p432 = scmp.eq.s32.totalorder %s34, 11
      %p433 = por %p431, %p432
      %p434 = scmp.ne.s32.totalorder %s426, %s429
      %p435 = scmp.eq.s32.totalorder %s34, 0
      %p436 = por %p434, %p435
      %p437 = scmp.ne.s32.totalorder %s426, %s429
      %p438 = scmp.eq.s32.totalorder %s39, 11
      %p439 = por %p437, %p438
      %p440 = scmp.ne.s32.totalorder %s429, %s430
      %p441 = scmp.eq.s32.totalorder %s39, 0
      %p442 = por %p440, %p441
      %p443 = scmp.ne.s32.totalorder %s429, %s430
      %p444 = scmp.eq.s32.totalorder %s40, 11
      %p445 = por %p443, %p444
      %p447 = scmp.ne.s32.totalorder %s430, %s446
      %p448 = scmp.eq.s32.totalorder %s40, 0
      %p449 = por %p447, %p448
      %p450 = scmp.lt.s32.totalorder %s34, 0
      %s451 = ssub.s32 0, %s34
      %s452 = scalar_select %p450, %s451, %s34
      %s453 = sand.u32 %s452, 1
      %s454 = ssub.s32 0, %s453
      %s455 = scalar_select %p450, %s454, %s453
      %p456 = scmp.ne.s32.totalorder %s455, 0
      %p457 = scmp.lt.s32.totalorder %s455, 0
      %p458 = pnand %p457, %p456
      %p459 = pneg %p458
      %s460 = sadd.s32 %s455, 2
      %s461 = scalar_select %p459, %s460, %s455
      %p462 = scmp.lt.s32.totalorder %s41, 0
      %s463 = ssub.s32 0, %s41
      %s464 = scalar_select %p462, %s463, %s41
      %s465 = sand.u32 %s464, 1
      %s466 = ssub.s32 0, %s465
      %s467 = scalar_select %p462, %s466, %s465
      %p468 = scmp.ne.s32.totalorder %s467, 0
      %p469 = scmp.lt.s32.totalorder %s467, 0
      %p470 = pnand %p469, %p468
      %p471 = pneg %p470
      %s472 = sadd.s32 %s467, 2
      %s473 = scalar_select %p471, %s472, %s467
      %s474 = ssub.s32 %s461, %s473
      %p475 = scmp.eq.s32.totalorder %s474, 0
      %s477 = sadd.s32 %s476, 1
      %s478 = scalar_select %p475, %s476, %s477
      %p481 = pneg %p475
      %p482 = scmp.eq.s32.totalorder %s34, 11
      %p483 = por %p481, %p482
      %p484 = scmp.ne.s32.totalorder %s476, %s479
      %p485 = scmp.eq.s32.totalorder %s34, 0
      %p486 = por %p484, %p485
      %p487 = scmp.ne.s32.totalorder %s476, %s479
      %p488 = scmp.eq.s32.totalorder %s39, 11
      %p489 = por %p487, %p488
      %p490 = scmp.ne.s32.totalorder %s479, %s480
      %p491 = scmp.eq.s32.totalorder %s39, 0
      %p492 = por %p490, %p491
      %p493 = scmp.ne.s32.totalorder %s479, %s480
      %p494 = scmp.eq.s32.totalorder %s40, 11
      %p495 = por %p493, %p494
      %p497 = scmp.ne.s32.totalorder %s480, %s496
      %p498 = scmp.eq.s32.totalorder %s40, 0
      %p499 = por %p497, %p498
      %s501 = sadd.s32 %s500, 1
      %p504 = scmp.eq.s32.totalorder %s34, 11
      %p505 = scmp.ne.s32.totalorder %s500, %s502
      %p506 = scmp.eq.s32.totalorder %s34, 0
      %p507 = por %p505, %p506
      %p508 = scmp.ne.s32.totalorder %s500, %s502
      %p509 = scmp.eq.s32.totalorder %s39, 11
      %p510 = por %p508, %p509
      %p511 = scmp.ne.s32.totalorder %s502, %s503
      %p512 = scmp.eq.s32.totalorder %s39, 0
      %p513 = por %p511, %p512
      %p514 = scmp.ne.s32.totalorder %s502, %s503
      %p515 = scmp.eq.s32.totalorder %s40, 11
      %p516 = por %p514, %p515
      %p518 = scmp.ne.s32.totalorder %s503, %s517
      %p519 = scmp.eq.s32.totalorder %s40, 0
      %p520 = por %p518, %p519
      %s522 = sadd.s32 %s521, 1
      %p525 = scmp.eq.s32.totalorder %s34, 11
      %p526 = scmp.ne.s32.totalorder %s521, %s523
      %p527 = scmp.eq.s32.totalorder %s34, 0
      %p528 = por %p526, %p527
      %p529 = scmp.ne.s32.totalorder %s521, %s523
      %p530 = scmp.eq.s32.totalorder %s39, 11
      %p531 = por %p529, %p530
      %p532 = scmp.ne.s32.totalorder %s523, %s524
      %p533 = scmp.eq.s32.totalorder %s39, 0
      %p534 = por %p532, %p533
      %p535 = scmp.ne.s32.totalorder %s523, %s524
      %p536 = scmp.eq.s32.totalorder %s40, 11
      %p537 = por %p535, %p536
      %p539 = scmp.ne.s32.totalorder %s524, %s538
      %p540 = scmp.eq.s32.totalorder %s40, 0
      %p541 = por %p539, %p540
      %s543 = sadd.s32 %s542, 1
      %p546 = scmp.eq.s32.totalorder %s34, 11
      %p547 = scmp.ne.s32.totalorder %s542, %s544
      %p548 = scmp.eq.s32.totalorder %s34, 0
      %p549 = por %p547, %p548
      %p550 = scmp.ne.s32.totalorder %s542, %s544
      %p551 = scmp.eq.s32.totalorder %s39, 11
      %p552 = por %p550, %p551
      %p553 = scmp.ne.s32.totalorder %s544, %s545
      %p554 = scmp.eq.s32.totalorder %s39, 0
      %p555 = por %p553, %p554
      %p556 = scmp.ne.s32.totalorder %s544, %s545
      %p557 = scmp.eq.s32.totalorder %s40, 11
      %p558 = por %p556, %p557
      %p560 = scmp.ne.s32.totalorder %s545, %s559
      %p561 = scmp.eq.s32.totalorder %s40, 0
      %p562 = por %p560, %p561
      %s564 = sadd.s32 %s563, 1
      %p567 = scmp.eq.s32.totalorder %s34, 11
      %p568 = scmp.ne.s32.totalorder %s563, %s565
      %p569 = scmp.eq.s32.totalorder %s34, 0
      %p570 = por %p568, %p569
      %p571 = scmp.ne.s32.totalorder %s563, %s565
      %p572 = scmp.eq.s32.totalorder %s39, 11
      %p573 = por %p571, %p572
      %p574 = scmp.ne.s32.totalorder %s565, %s566
      %p575 = scmp.eq.s32.totalorder %s39, 0
      %p576 = por %p574, %p575
      %p577 = scmp.ne.s32.totalorder %s565, %s566
      %p578 = scmp.eq.s32.totalorder %s40, 11
      %p579 = por %p577, %p578
      %p581 = scmp.ne.s32.totalorder %s566, %s580
      %p582 = scmp.eq.s32.totalorder %s40, 0
      %p583 = por %p581, %p582
      %s585 = sadd.s32 %s584, 1
      %p588 = scmp.eq.s32.totalorder %s34, 11
      %p589 = scmp.ne.s32.totalorder %s584, %s586
      %p590 = scmp.eq.s32.totalorder %s34, 0
      %p591 = por %p589, %p590
      %p592 = scmp.ne.s32.totalorder %s584, %s586
      %p593 = scmp.eq.s32.totalorder %s39, 11
      %p594 = por %p592, %p593
      %p595 = scmp.ne.s32.totalorder %s586, %s587
      %p596 = scmp.eq.s32.totalorder %s39, 0
      %p597 = por %p595, %p596
      %p598 = scmp.ne.s32.totalorder %s586, %s587
      %p599 = scmp.eq.s32.totalorder %s40, 11
      %p600 = por %p598, %p599
      %p602 = scmp.ne.s32.totalorder %s587, %s601
      %p603 = scmp.eq.s32.totalorder %s40, 0
      %p604 = por %p602, %p603
      %s606 = sadd.s32 %s605, 1
      %p609 = scmp.eq.s32.totalorder %s34, 11
      %p610 = scmp.ne.s32.totalorder %s605, %s607
      %p611 = scmp.eq.s32.totalorder %s34, 0
      %p612 = por %p610, %p611
      %p613 = scmp.ne.s32.totalorder %s605, %s607
      %p614 = scmp.eq.s32.totalorder %s39, 11
      %p615 = por %p613, %p614
      %p616 = scmp.ne.s32.totalorder %s607, %s608
      %p617 = scmp.eq.s32.totalorder %s39, 0
      %p618 = por %p616, %p617
      %p619 = scmp.ne.s32.totalorder %s607, %s608
      %p620 = scmp.eq.s32.totalorder %s40, 11
      %p621 = por %p619, %p620
      %p623 = scmp.ne.s32.totalorder %s608, %s622
      %p624 = scmp.eq.s32.totalorder %s40, 0
      %p625 = por %p623, %p624
      %s627 = sadd.s32 %s626, 1
      %p630 = scmp.eq.s32.totalorder %s34, 11
      %p631 = scmp.ne.s32.totalorder %s626, %s628
      %p632 = scmp.eq.s32.totalorder %s34, 0
      %p633 = por %p631, %p632
      %p634 = scmp.ne.s32.totalorder %s626, %s628
      %p635 = scmp.eq.s32.totalorder %s39, 11
      %p636 = por %p634, %p635
      %p637 = scmp.ne.s32.totalorder %s628, %s629
      %p638 = scmp.eq.s32.totalorder %s39, 0
      %p639 = por %p637, %p638
      %p640 = scmp.ne.s32.totalorder %s628, %s629
      %p641 = scmp.eq.s32.totalorder %s40, 11
      %p642 = por %p640, %p641
      %p644 = scmp.ne.s32.totalorder %s629, %s643
      %p645 = scmp.eq.s32.totalorder %s40, 0
      %p646 = por %p644, %p645
      %s648 = sadd.s32 %s647, 1
      %p651 = scmp.eq.s32.totalorder %s34, 11
      %p652 = scmp.ne.s32.totalorder %s647, %s649
      %p653 = scmp.eq.s32.totalorder %s34, 0
      %p654 = por %p652, %p653
      %p655 = scmp.ne.s32.totalorder %s647, %s649
      %p656 = scmp.eq.s32.totalorder %s39, 11
      %p657 = por %p655, %p656
      %p658 = scmp.ne.s32.totalorder %s649, %s650
      %p659 = scmp.eq.s32.totalorder %s39, 0
      %p660 = por %p658, %p659
      %p661 = scmp.ne.s32.totalorder %s649, %s650
      %p662 = scmp.eq.s32.totalorder %s40, 11
      %p663 = por %p661, %p662
      %p665 = scmp.ne.s32.totalorder %s650, %s664
      %p666 = scmp.eq.s32.totalorder %s40, 0
      %p667 = por %p665, %p666
      %s669 = sadd.s32 %s668, 1
      %p672 = scmp.eq.s32.totalorder %s34, 11
      %p673 = scmp.ne.s32.totalorder %s668, %s670
      %p674 = scmp.eq.s32.totalorder %s34, 0
      %p675 = por %p673, %p674
      %p676 = scmp.ne.s32.totalorder %s668, %s670
      %p677 = scmp.eq.s32.totalorder %s39, 11
      %p678 = por %p676, %p677
      %p679 = scmp.ne.s32.totalorder %s670, %s671
      %p680 = scmp.eq.s32.totalorder %s39, 0
      %p681 = por %p679, %p680
      %p682 = scmp.ne.s32.totalorder %s670, %s671
      %p683 = scmp.eq.s32.totalorder %s40, 11
      %p684 = por %p682, %p683
      %p686 = scmp.ne.s32.totalorder %s671, %s685
      %p687 = scmp.eq.s32.totalorder %s40, 0
      %p688 = por %p686, %p687
      %s690 = sadd.s32 %s689, 1
      %p693 = scmp.eq.s32.totalorder %s34, 11
      %p694 = scmp.ne.s32.totalorder %s689, %s691
      %p695 = scmp.eq.s32.totalorder %s34, 0
      %p696 = por %p694, %p695
      %p697 = scmp.ne.s32.totalorder %s689, %s691
      %p698 = scmp.eq.s32.totalorder %s39, 11
      %p699 = por %p697, %p698
      %p700 = scmp.ne.s32.totalorder %s691, %s692
      %p701 = scmp.eq.s32.totalorder %s39, 0
      %p702 = por %p700, %p701
      %p703 = scmp.ne.s32.totalorder %s691, %s692
      %p704 = scmp.eq.s32.totalorder %s40, 11
      %p705 = por %p703, %p704
      %p707 = scmp.ne.s32.totalorder %s692, %s706
      %p708 = scmp.eq.s32.totalorder %s40, 0
      %p709 = por %p707, %p708
      %s711 = sadd.s32 %s710, 1
      %p714 = scmp.eq.s32.totalorder %s34, 11
      %p715 = scmp.ne.s32.totalorder %s710, %s712
      %p716 = scmp.eq.s32.totalorder %s34, 0
      %p717 = por %p715, %p716
      %p718 = scmp.ne.s32.totalorder %s710, %s712
      %p719 = scmp.eq.s32.totalorder %s39, 11
      %p720 = por %p718, %p719
      %p721 = scmp.ne.s32.totalorder %s712, %s713
      %p722 = scmp.eq.s32.totalorder %s39, 0
      %p723 = por %p721, %p722
      %p724 = scmp.ne.s32.totalorder %s712, %s713
      %p725 = scmp.eq.s32.totalorder %s40, 11
      %p726 = por %p724, %p725
      %p728 = scmp.ne.s32.totalorder %s713, %s727
      %p729 = scmp.eq.s32.totalorder %s40, 0
      %p730 = por %p728, %p729
      %s732 = sadd.s32 %s731, 1
      %p735 = scmp.eq.s32.totalorder %s34, 11
      %p736 = scmp.ne.s32.totalorder %s731, %s733
      %p737 = scmp.eq.s32.totalorder %s34, 0
      %p738 = por %p736, %p737
      %p739 = scmp.ne.s32.totalorder %s731, %s733
      %p740 = scmp.eq.s32.totalorder %s39, 11
      %p741 = por %p739, %p740
      %p742 = scmp.ne.s32.totalorder %s733, %s734
      %p743 = scmp.eq.s32.totalorder %s39, 0
      %p744 = por %p742, %p743
      %p745 = scmp.ne.s32.totalorder %s733, %s734
      %p746 = scmp.eq.s32.totalorder %s40, 11
      %p747 = por %p745, %p746
      %p749 = scmp.ne.s32.totalorder %s734, %s748
      %p750 = scmp.eq.s32.totalorder %s40, 0
      %p751 = por %p749, %p750
      %p752 = scmp.le.s32.totalorder 1, %s34
      %p753 = scmp.lt.s32.totalorder %s34, 13
      %p754 = pnand %p752, %p753
      %p755 = pneg %p754
      // Predicated region
      $region9: #{network_forward.1} parent=5 // pred_check
        _
      $region10: #{network_forward.1} parent=5 // pred_check_branch
        %757 = sbr.rel (%p754) target = $region12
      $region11: #{network_forward.1} parent=5 // pred_region
        %s758 = ssub.s32 %s34, 1
        // Predicated region
        $region13: #{network_forward.1} parent=11 // pred_check
          %p759 = pneg %p513
        $region14: #{network_forward.1} parent=11 // pred_check_branch
          %761 = sbr.rel (%p759) target = $region16
        $region15: #{network_forward.1} parent=11 // pred_region
          _
        $region16: #{network_forward.1} parent=11 // pred_fallthru
          _
        // Predicated region
        $region17: #{network_forward.1} parent=11 // pred_check
          %p762 = pneg %p534
        $region18: #{network_forward.1} parent=11 // pred_check_branch
          %764 = sbr.rel (%p762) target = $region20
        $region19: #{network_forward.1} parent=11 // pred_region
          _
        $region20: #{network_forward.1} parent=11 // pred_fallthru
          _
        // Predicated region
        $region21: #{network_forward.1} parent=11 // pred_check
          %p765 = pneg %p555
        $region22: #{network_forward.1} parent=11 // pred_check_branch
          %767 = sbr.rel (%p765) target = $region24
        $region23: #{network_forward.1} parent=11 // pred_region
          _
        $region24: #{network_forward.1} parent=11 // pred_fallthru
          _
        // Predicated region
        $region25: #{network_forward.1} parent=11 // pred_check
          %p768 = pneg %p576
        $region26: #{network_forward.1} parent=11 // pred_check_branch
          %770 = sbr.rel (%p768) target = $region28
        $region27: #{network_forward.1} parent=11 // pred_region
          _
        $region28: #{network_forward.1} parent=11 // pred_fallthru
          _
        // Predicated region
        $region29: #{network_forward.1} parent=11 // pred_check
          %p771 = pneg %p597
        $region30: #{network_forward.1} parent=11 // pred_check_branch
          %773 = sbr.rel (%p771) target = $region32
        $region31: #{network_forward.1} parent=11 // pred_region
          _
        $region32: #{network_forward.1} parent=11 // pred_fallthru
          _
        // Predicated region
        $region33: #{network_forward.1} parent=11 // pred_check
          %p774 = pneg %p618
        $region34: #{network_forward.1} parent=11 // pred_check_branch
          %776 = sbr.rel (%p774) target = $region36
        $region35: #{network_forward.1} parent=11 // pred_region
          _
        $region36: #{network_forward.1} parent=11 // pred_fallthru
          _
        // Predicated region
        $region37: #{network_forward.1} parent=11 // pred_check
          %p777 = pneg %p639
        $region38: #{network_forward.1} parent=11 // pred_check_branch
          %779 = sbr.rel (%p777) target = $region40
        $region39: #{network_forward.1} parent=11 // pred_region
          _
        $region40: #{network_forward.1} parent=11 // pred_fallthru
          _
        // Predicated region
        $region41: #{network_forward.1} parent=11 // pred_check
          %p780 = pneg %p660
        $region42: #{network_forward.1} parent=11 // pred_check_branch
          %782 = sbr.rel (%p780) target = $region44
        $region43: #{network_forward.1} parent=11 // pred_region
          _
        $region44: #{network_forward.1} parent=11 // pred_fallthru
          _
        // Predicated region
        $region45: #{network_forward.1} parent=11 // pred_check
          %p783 = pneg %p681
        $region46: #{network_forward.1} parent=11 // pred_check_branch
          %785 = sbr.rel (%p783) target = $region48
        $region47: #{network_forward.1} parent=11 // pred_region
          _
        $region48: #{network_forward.1} parent=11 // pred_fallthru
          _
        // Predicated region
        $region49: #{network_forward.1} parent=11 // pred_check
          %p786 = pneg %p702
        $region50: #{network_forward.1} parent=11 // pred_check_branch
          %788 = sbr.rel (%p786) target = $region52
        $region51: #{network_forward.1} parent=11 // pred_region
          _
        $region52: #{network_forward.1} parent=11 // pred_fallthru
          _
        // Predicated region
        $region53: #{network_forward.1} parent=11 // pred_check
          %p789 = pneg %p723
        $region54: #{network_forward.1} parent=11 // pred_check_branch
          %791 = sbr.rel (%p789) target = $region56
        $region55: #{network_forward.1} parent=11 // pred_region
          _
        $region56: #{network_forward.1} parent=11 // pred_fallthru
          _
      $region12: #{network_forward.1} parent=5 // pred_fallthru
        _
      %p792 = scmp.lt.s32.totalorder %s34, 12
      // Predicated region
      $region57: #{network_forward.1} parent=5 // pred_check
        %p793 = pneg %p792
      $region58: #{network_forward.1} parent=5 // pred_check_branch
        %795 = sbr.rel (%p793) target = $region60
      $region59: #{network_forward.1} parent=5 // pred_region
        // Predicated region
        $region61: #{network_forward.1} parent=59 // pred_check
          %p796 = pneg %p54
        $region62: #{network_forward.1} parent=59 // pred_check_branch
          %798 = sbr.rel (%p796) target = $region64
        $region63: #{network_forward.1} parent=59 // pred_region
          %p799 = scmp.lt.s32.totalorder %s34, 11
          %s800 = scalar_select %p799, %s34, 11
          %s801 = smul.addr %s800, 2
          %s802 = smul.addr %s801, 8
          %s803 = scalar_lea.vmem %s0, %s802
        $region64: #{network_forward.1} parent=59 // pred_fallthru
          _
        // Predicated region
        $region65: #{network_forward.1} parent=59 // pred_check
          %p804 = pneg %p80
        $region66: #{network_forward.1} parent=59 // pred_check_branch
          %806 = sbr.rel (%p804) target = $region68
        $region67: #{network_forward.1} parent=59 // pred_region
          %p807 = scmp.lt.s32.totalorder %s34, 11
          %s808 = scalar_select %p807, %s34, 11
          %s809 = smul.addr %s808, 10
          %s810 = smul.addr %s809, 8
          %s811 = scalar_lea.vmem %s1, %s810
        $region68: #{network_forward.1} parent=59 // pred_fallthru
          _
        // Predicated region
        $region69: #{network_forward.1} parent=59 // pred_check
          %p812 = pneg %p106
        $region70: #{network_forward.1} parent=59 // pred_check_branch
          %814 = sbr.rel (%p812) target = $region72
        $region71: #{network_forward.1} parent=59 // pred_region
          %p815 = scmp.lt.s32.totalorder %s34, 11
          %s816 = scalar_select %p815, %s34, 11
          %s817 = smul.addr %s816, 32
          %s818 = smul.addr %s817, 8
          %s819 = scalar_lea.vmem %s2, %s818
        $region72: #{network_forward.1} parent=59 // pred_fallthru
          _
        // Predicated region
        $region73: #{network_forward.1} parent=59 // pred_check
          %p820 = pneg %p132
        $region74: #{network_forward.1} parent=59 // pred_check_branch
          %822 = sbr.rel (%p820) target = $region76
        $region75: #{network_forward.1} parent=59 // pred_region
          %s823 = sand.u32 %s122, 1
          %s824 = scalar_lea.sflag [#allocation6], %s823
          %s825 = sand.u32 %s122, 1
          %s826 = smul.addr %s825, 1024
          %s827 = scalar_lea.vmem [#allocation5], %s826
          %829 = vsyncadd %s824, 0
          %s830 = smul.addr %s34, 128
          %s831 = smul.addr %s830, 8
          %s832 = scalar_lea.hbm %s3, %s831
          %s833 = sshll.u32 %s832, 4
          %s834 = int_to_ptr.hbm [resolvable:$true] %s833
          %s835 = sshll.u32 %s827, 4
          %s836 = int_to_ptr.vmem [resolvable:$true] %s835
          %841 = dma.hbm_to_vmem [thread:$0]  %s834, 16384, %s836, %s824, 256, 256, 16
        $region76: #{network_forward.1} parent=59 // pred_fallthru
          _
        // Predicated region
        $region77: #{network_forward.1} parent=59 // pred_check
          %p842 = pneg %p158
        $region78: #{network_forward.1} parent=59 // pred_check_branch
          %844 = sbr.rel (%p842) target = $region80
        $region79: #{network_forward.1} parent=59 // pred_region
          %p845 = scmp.lt.s32.totalorder %s34, 11
          %s846 = scalar_select %p845, %s34, 11
          %s847 = smul.addr %s846, 2
          %s848 = scalar_lea.vmem %s4, %s847
        $region80: #{network_forward.1} parent=59 // pred_fallthru
          _
        // Predicated region
        $region81: #{network_forward.1} parent=59 // pred_check
          %p849 = pneg %p184
        $region82: #{network_forward.1} parent=59 // pred_check_branch
          %851 = sbr.rel (%p849) target = $region84
        $region83: #{network_forward.1} parent=59 // pred_region
          %p852 = scmp.lt.s32.totalorder %s34, 11
          %s853 = scalar_select %p852, %s34, 11
          %s854 = smul.addr %s853, 32
          %s855 = smul.addr %s854, 8
          %s856 = scalar_lea.vmem %s5, %s855
        $region84: #{network_forward.1} parent=59 // pred_fallthru
          _
        // Predicated region
        $region85: #{network_forward.1} parent=59 // pred_check
          %p857 = pneg %p210
        $region86: #{network_forward.1} parent=59 // pred_check_branch
          %859 = sbr.rel (%p857) target = $region88
        $region87: #{network_forward.1} parent=59 // pred_region
          %p860 = scmp.lt.s32.totalorder %s34, 11
          %s861 = scalar_select %p860, %s34, 11
          %s862 = scalar_lea.vmem %s6, %s861
        $region88: #{network_forward.1} parent=59 // pred_fallthru
          _
        // Predicated region
        $region89: #{network_forward.1} parent=59 // pred_check
          %p863 = pneg %p236
        $region90: #{network_forward.1} parent=59 // pred_check_branch
          %865 = sbr.rel (%p863) target = $region92
        $region91: #{network_forward.1} parent=59 // pred_region
          %p866 = scmp.lt.s32.totalorder %s34, 11
          %s867 = scalar_select %p866, %s34, 11
          %s868 = smul.addr %s867, 2
          %s869 = scalar_lea.vmem %s7, %s868
        $region92: #{network_forward.1} parent=59 // pred_fallthru
          _
        // Predicated region
        $region93: #{network_forward.1} parent=59 // pred_check
          %p870 = pneg %p286
        $region94: #{network_forward.1} parent=59 // pred_check_branch
          %872 = sbr.rel (%p870) target = $region96
        $region95: #{network_forward.1} parent=59 // pred_region
          %p873 = scmp.lt.s32.totalorder %s34, 0
          %s874 = ssub.s32 0, %s34
          %s875 = scalar_select %p873, %s874, %s34
          %s876 = sand.u32 %s875, 1
          %s877 = ssub.s32 0, %s876
          %s878 = scalar_select %p873, %s877, %s876
          %p879 = scmp.ne.s32.totalorder %s878, 0
          %p880 = scmp.lt.s32.totalorder %s878, 0
          %p881 = pnand %p880, %p879
          %p882 = pneg %p881
          %s883 = sadd.s32 %s878, 2
          %s884 = scalar_select %p882, %s883, %s878
          %p885 = scmp.lt.s32.totalorder %s884, 1
          %s886 = scalar_select %p885, %s884, 1
          %s887 = smul.addr %s886, 12
          %s888 = smul.addr %s887, 8
          %s889 = scalar_lea.vmem %s8, %s888
          %p890 = scmp.lt.s32.totalorder %s34, 0
          %s891 = ssub.s32 0, %s34
          %s892 = scalar_select %p890, %s891, %s34
          %s893 = sand.u32 %s892, 1
          %s894 = ssub.s32 0, %s893
          %s895 = scalar_select %p890, %s894, %s893
          %p896 = scmp.ne.s32.totalorder %s895, 0
          %p897 = scmp.lt.s32.totalorder %s895, 0
          %p898 = pnand %p897, %p896
          %p899 = pneg %p898
          %s900 = sadd.s32 %s895, 2
          %s901 = scalar_select %p899, %s900, %s895
        $region96: #{network_forward.1} parent=59 // pred_fallthru
          _
        // Predicated region
        $region97: #{network_forward.1} parent=59 // pred_check
          %p902 = pneg %p336
        $region98: #{network_forward.1} parent=59 // pred_check_branch
          %904 = sbr.rel (%p902) target = $region100
        $region99: #{network_forward.1} parent=59 // pred_region
          %p905 = scmp.lt.s32.totalorder %s34, 0
          %s906 = ssub.s32 0, %s34
          %s907 = scalar_select %p905, %s906, %s34
          %s908 = sand.u32 %s907, 1
          %s909 = ssub.s32 0, %s908
          %s910 = scalar_select %p905, %s909, %s908
          %p911 = scmp.ne.s32.totalorder %s910, 0
          %p912 = scmp.lt.s32.totalorder %s910, 0
          %p913 = pnand %p912, %p911
          %p914 = pneg %p913
          %s915 = sadd.s32 %s910, 2
          %s916 = scalar_select %p914, %s915, %s910
          %p917 = scmp.lt.s32.totalorder %s916, 1
          %s918 = scalar_select %p917, %s916, 1
          %s919 = smul.addr %s918, 8
          %s920 = smul.addr %s919, 8
          %s921 = scalar_lea.vmem %s9, %s920
          %p922 = scmp.lt.s32.totalorder %s34, 0
          %s923 = ssub.s32 0, %s34
          %s924 = scalar_select %p922, %s923, %s34
          %s925 = sand.u32 %s924, 1
          %s926 = ssub.s32 0, %s925
          %s927 = scalar_select %p922, %s926, %s925
          %p928 = scmp.ne.s32.totalorder %s927, 0
          %p929 = scmp.lt.s32.totalorder %s927, 0
          %p930 = pnand %p929, %p928
          %p931 = pneg %p930
          %s932 = sadd.s32 %s927, 2
          %s933 = scalar_select %p931, %s932, %s927
        $region100: #{network_forward.1} parent=59 // pred_fallthru
          _
        // Predicated region
        $region101: #{network_forward.1} parent=59 // pred_check
          %p934 = pneg %p386
        $region102: #{network_forward.1} parent=59 // pred_check_branch
          %936 = sbr.rel (%p934) target = $region104
        $region103: #{network_forward.1} parent=59 // pred_region
          %p937 = scmp.lt.s32.totalorder %s34, 0
          %s938 = ssub.s32 0, %s34
          %s939 = scalar_select %p937, %s938, %s34
          %s940 = sand.u32 %s939, 1
          %s941 = ssub.s32 0, %s940
          %s942 = scalar_select %p937, %s941, %s940
          %p943 = scmp.ne.s32.totalorder %s942, 0
          %p944 = scmp.lt.s32.totalorder %s942, 0
          %p945 = pnand %p944, %p943
          %p946 = pneg %p945
          %s947 = sadd.s32 %s942, 2
          %s948 = scalar_select %p946, %s947, %s942
          %p949 = scmp.lt.s32.totalorder %s948, 1
          %s950 = scalar_select %p949, %s948, 1
          %s951 = smul.addr %s950, 4
          %s952 = smul.addr %s951, 8
          %s953 = scalar_lea.vmem %s10, %s952
          %p954 = scmp.lt.s32.totalorder %s34, 0
          %s955 = ssub.s32 0, %s34
          %s956 = scalar_select %p954, %s955, %s34
          %s957 = sand.u32 %s956, 1
          %s958 = ssub.s32 0, %s957
          %s959 = scalar_select %p954, %s958, %s957
          %p960 = scmp.ne.s32.totalorder %s959, 0
          %p961 = scmp.lt.s32.totalorder %s959, 0
          %p962 = pnand %p961, %p960
          %p963 = pneg %p962
          %s964 = sadd.s32 %s959, 2
          %s965 = scalar_select %p963, %s964, %s959
        $region104: #{network_forward.1} parent=59 // pred_fallthru
          _
        // Predicated region
        $region105: #{network_forward.1} parent=59 // pred_check
          %p966 = pneg %p436
        $region106: #{network_forward.1} parent=59 // pred_check_branch
          %968 = sbr.rel (%p966) target = $region108
        $region107: #{network_forward.1} parent=59 // pred_region
          %p969 = scmp.lt.s32.totalorder %s34, 0
          %s970 = ssub.s32 0, %s34
          %s971 = scalar_select %p969, %s970, %s34
          %s972 = sand.u32 %s971, 1
          %s973 = ssub.s32 0, %s972
          %s974 = scalar_select %p969, %s973, %s972
          %p975 = scmp.ne.s32.totalorder %s974, 0
          %p976 = scmp.lt.s32.totalorder %s974, 0
          %p977 = pnand %p976, %p975
          %p978 = pneg %p977
          %s979 = sadd.s32 %s974, 2
          %s980 = scalar_select %p978, %s979, %s974
          %p981 = scmp.lt.s32.totalorder %s980, 1
          %s982 = scalar_select %p981, %s980, 1
          %s983 = smul.addr %s982, 3
          %s984 = smul.addr %s983, 2
          %s985 = scalar_lea.vmem %s11, %s984
          %p986 = scmp.lt.s32.totalorder %s34, 0
          %s987 = ssub.s32 0, %s34
          %s988 = scalar_select %p986, %s987, %s34
          %s989 = sand.u32 %s988, 1
          %s990 = ssub.s32 0, %s989
          %s991 = scalar_select %p986, %s990, %s989
          %p992 = scmp.ne.s32.totalorder %s991, 0
          %p993 = scmp.lt.s32.totalorder %s991, 0
          %p994 = pnand %p993, %p992
          %p995 = pneg %p994
          %s996 = sadd.s32 %s991, 2
          %s997 = scalar_select %p995, %s996, %s991
        $region108: #{network_forward.1} parent=59 // pred_fallthru
          _
        // Predicated region
        $region109: #{network_forward.1} parent=59 // pred_check
          %p998 = pneg %p486
        $region110: #{network_forward.1} parent=59 // pred_check_branch
          %1000 = sbr.rel (%p998) target = $region112
        $region111: #{network_forward.1} parent=59 // pred_region
          %p1001 = scmp.lt.s32.totalorder %s34, 0
          %s1002 = ssub.s32 0, %s34
          %s1003 = scalar_select %p1001, %s1002, %s34
          %s1004 = sand.u32 %s1003, 1
          %s1005 = ssub.s32 0, %s1004
          %s1006 = scalar_select %p1001, %s1005, %s1004
          %p1007 = scmp.ne.s32.totalorder %s1006, 0
          %p1008 = scmp.lt.s32.totalorder %s1006, 0
          %p1009 = pnand %p1008, %p1007
          %p1010 = pneg %p1009
          %s1011 = sadd.s32 %s1006, 2
          %s1012 = scalar_select %p1010, %s1011, %s1006
          %p1013 = scmp.lt.s32.totalorder %s1012, 1
          %s1014 = scalar_select %p1013, %s1012, 1
          %s1015 = smul.addr %s1014, 3
          %s1016 = smul.addr %s1015, 8
          %s1017 = scalar_lea.vmem %s12, %s1016
          %p1018 = scmp.lt.s32.totalorder %s34, 0
          %s1019 = ssub.s32 0, %s34
          %s1020 = scalar_select %p1018, %s1019, %s34
          %s1021 = sand.u32 %s1020, 1
          %s1022 = ssub.s32 0, %s1021
          %s1023 = scalar_select %p1018, %s1022, %s1021
          %p1024 = scmp.ne.s32.totalorder %s1023, 0
          %p1025 = scmp.lt.s32.totalorder %s1023, 0
          %p1026 = pnand %p1025, %p1024
          %p1027 = pneg %p1026
          %s1028 = sadd.s32 %s1023, 2
          %s1029 = scalar_select %p1027, %s1028, %s1023
        $region112: #{network_forward.1} parent=59 // pred_fallthru
          _
      $region60: #{network_forward.1} parent=5 // pred_fallthru
        _
      %p1030 = scmp.le.s32.totalorder 1, %s34
      %p1031 = scmp.lt.s32.totalorder %s34, 13
      %p1032 = pnand %p1030, %p1031
      %p1033 = pneg %p1032
      // Predicated region
      $region113: #{network_forward.1} parent=5 // pred_check
        _
      $region114: #{network_forward.1} parent=5 // pred_check_branch
        %1035 = sbr.rel (%p1032) target = $region116
      $region115: #{network_forward.1} parent=5 // pred_region
        %s1036 = ssub.s32 %s34, 1
        %s1037 = sand.u32 %s125, 1
        %s1038 = scalar_lea.sflag [#allocation6], %s1037
        %s1039 = sand.u32 %s125, 1
        %s1040 = smul.addr %s1039, 1024
        %s1041 = scalar_lea.vmem [#allocation5], %s1040
        // Predicated region
        $region117: #{network_forward.1} parent=115 // pred_check
          %p1042 = pneg %p138
        $region118: #{network_forward.1} parent=115 // pred_check_branch
          %1044 = sbr.rel (%p1042) target = $region120
        $region119: #{network_forward.1} parent=115 // pred_region
          %1046 = dma.done %s1038, 16384
        $region120: #{network_forward.1} parent=115 // pred_fallthru
          _
        %p1047 = scmp.lt.s32.totalorder %s39, 11
        %s1048 = scalar_select %p1047, %s39, 11
        %s1049 = smul.addr %s1048, 2
        %s1050 = smul.addr %s1049, 8
        %s1051 = scalar_lea.vmem %s0, %s1050
        %p1052 = pneg %p60
        %p1053 = pneg %p57
        %p1054 = scmp.lt.s32.totalorder %s39, 11
        %s1055 = scalar_select %p1054, %s39, 11
        %s1056 = smul.addr %s1055, 10
        %s1057 = smul.addr %s1056, 8
        %s1058 = scalar_lea.vmem %s1, %s1057
        %p1059 = pneg %p86
        %p1060 = pneg %p83
        %p1061 = scmp.lt.s32.totalorder %s39, 11
        %s1062 = scalar_select %p1061, %s39, 11
        %s1063 = smul.addr %s1062, 32
        %s1064 = smul.addr %s1063, 8
        %s1065 = scalar_lea.vmem %s2, %s1064
        %p1066 = pneg %p112
        %p1067 = pneg %p109
        %s1068 = sand.u32 %s125, 1
        %s1069 = scalar_lea.sflag [#allocation6], %s1068
        %s1070 = sand.u32 %s125, 1
        %s1071 = smul.addr %s1070, 1024
        %s1072 = scalar_lea.vmem [#allocation5], %s1071
        %p1073 = pneg %p138
        %p1074 = pneg %p135
        %p1075 = scmp.lt.s32.totalorder %s39, 11
        %s1076 = scalar_select %p1075, %s39, 11
        %s1077 = smul.addr %s1076, 2
        %s1078 = scalar_lea.vmem %s4, %s1077
        %p1079 = pneg %p164
        %p1080 = pneg %p161
        %p1081 = scmp.lt.s32.totalorder %s39, 11
        %s1082 = scalar_select %p1081, %s39, 11
        %s1083 = smul.addr %s1082, 32
        %s1084 = smul.addr %s1083, 8
        %s1085 = scalar_lea.vmem %s5, %s1084
        %p1086 = pneg %p190
        %p1087 = pneg %p187
        %p1088 = scmp.lt.s32.totalorder %s39, 11
        %s1089 = scalar_select %p1088, %s39, 11
        %s1090 = scalar_lea.vmem %s6, %s1089
        %p1091 = pneg %p216
        %p1092 = pneg %p213
        %p1093 = scmp.lt.s32.totalorder %s39, 11
        %s1094 = scalar_select %p1093, %s39, 11
        %s1095 = smul.addr %s1094, 2
        %s1096 = scalar_lea.vmem %s7, %s1095
        %p1097 = pneg %p242
        %p1098 = pneg %p239
        %p1099 = scmp.lt.s32.totalorder %s39, 0
        %s1100 = ssub.s32 0, %s39
        %s1101 = scalar_select %p1099, %s1100, %s39
        %s1102 = sand.u32 %s1101, 1
        %s1103 = ssub.s32 0, %s1102
        %s1104 = scalar_select %p1099, %s1103, %s1102
        %p1105 = scmp.ne.s32.totalorder %s1104, 0
        %p1106 = scmp.lt.s32.totalorder %s1104, 0
        %p1107 = pnand %p1106, %p1105
        %p1108 = pneg %p1107
        %s1109 = sadd.s32 %s1104, 2
        %s1110 = scalar_select %p1108, %s1109, %s1104
        %p1111 = scmp.lt.s32.totalorder %s1110, 1
        %s1112 = scalar_select %p1111, %s1110, 1
        %s1113 = smul.addr %s1112, 12
        %s1114 = smul.addr %s1113, 8
        %s1115 = scalar_lea.vmem %s8, %s1114
        %p1116 = pneg %p292
        %p1117 = pneg %p289
        %p1118 = scmp.lt.s32.totalorder %s39, 0
        %s1119 = ssub.s32 0, %s39
        %s1120 = scalar_select %p1118, %s1119, %s39
        %s1121 = sand.u32 %s1120, 1
        %s1122 = ssub.s32 0, %s1121
        %s1123 = scalar_select %p1118, %s1122, %s1121
        %p1124 = scmp.ne.s32.totalorder %s1123, 0
        %p1125 = scmp.lt.s32.totalorder %s1123, 0
        %p1126 = pnand %p1125, %p1124
        %p1127 = pneg %p1126
        %s1128 = sadd.s32 %s1123, 2
        %s1129 = scalar_select %p1127, %s1128, %s1123
        %p1130 = scmp.lt.s32.totalorder %s1129, 1
        %s1131 = scalar_select %p1130, %s1129, 1
        %s1132 = smul.addr %s1131, 8
        %s1133 = smul.addr %s1132, 8
        %s1134 = scalar_lea.vmem %s9, %s1133
        %p1135 = pneg %p342
        %p1136 = pneg %p339
        %p1137 = scmp.lt.s32.totalorder %s39, 0
        %s1138 = ssub.s32 0, %s39
        %s1139 = scalar_select %p1137, %s1138, %s39
        %s1140 = sand.u32 %s1139, 1
        %s1141 = ssub.s32 0, %s1140
        %s1142 = scalar_select %p1137, %s1141, %s1140
        %p1143 = scmp.ne.s32.totalorder %s1142, 0
        %p1144 = scmp.lt.s32.totalorder %s1142, 0
        %p1145 = pnand %p1144, %p1143
        %p1146 = pneg %p1145
        %s1147 = sadd.s32 %s1142, 2
        %s1148 = scalar_select %p1146, %s1147, %s1142
        %p1149 = scmp.lt.s32.totalorder %s1148, 1
        %s1150 = scalar_select %p1149, %s1148, 1
        %s1151 = smul.addr %s1150, 4
        %s1152 = smul.addr %s1151, 8
        %s1153 = scalar_lea.vmem %s10, %s1152
        %p1154 = pneg %p392
        %p1155 = pneg %p389
        %p1156 = scmp.lt.s32.totalorder %s39, 0
        %s1157 = ssub.s32 0, %s39
        %s1158 = scalar_select %p1156, %s1157, %s39
        %s1159 = sand.u32 %s1158, 1
        %s1160 = ssub.s32 0, %s1159
        %s1161 = scalar_select %p1156, %s1160, %s1159
        %p1162 = scmp.ne.s32.totalorder %s1161, 0
        %p1163 = scmp.lt.s32.totalorder %s1161, 0
        %p1164 = pnand %p1163, %p1162
        %p1165 = pneg %p1164
        %s1166 = sadd.s32 %s1161, 2
        %s1167 = scalar_select %p1165, %s1166, %s1161
        %p1168 = scmp.lt.s32.totalorder %s1167, 1
        %s1169 = scalar_select %p1168, %s1167, 1
        %s1170 = smul.addr %s1169, 3
        %s1171 = smul.addr %s1170, 2
        %s1172 = scalar_lea.vmem %s11, %s1171
        %p1173 = pneg %p442
        %p1174 = pneg %p439
        %p1175 = scmp.lt.s32.totalorder %s39, 0
        %s1176 = ssub.s32 0, %s39
        %s1177 = scalar_select %p1175, %s1176, %s39
        %s1178 = sand.u32 %s1177, 1
        %s1179 = ssub.s32 0, %s1178
        %s1180 = scalar_select %p1175, %s1179, %s1178
        %p1181 = scmp.ne.s32.totalorder %s1180, 0
        %p1182 = scmp.lt.s32.totalorder %s1180, 0
        %p1183 = pnand %p1182, %p1181
        %p1184 = pneg %p1183
        %s1185 = sadd.s32 %s1180, 2
        %s1186 = scalar_select %p1184, %s1185, %s1180
        %p1187 = scmp.lt.s32.totalorder %s1186, 1
        %s1188 = scalar_select %p1187, %s1186, 1
        %s1189 = smul.addr %s1188, 3
        %s1190 = smul.addr %s1189, 8
        %s1191 = scalar_lea.vmem %s12, %s1190
        %p1192 = pneg %p492
        %p1193 = pneg %p489
        %p1194 = pneg %p513
        %p1195 = pneg %p510
        %p1196 = pneg %p534
        %p1197 = pneg %p531
        %p1198 = pneg %p555
        %p1199 = pneg %p552
        %p1200 = pneg %p576
        %p1201 = pneg %p573
        %p1202 = pneg %p597
        %p1203 = pneg %p594
        %p1204 = pneg %p618
        %p1205 = pneg %p615
        %p1206 = pneg %p639
        %p1207 = pneg %p636
        %p1208 = pneg %p660
        %p1209 = pneg %p657
        %p1210 = pneg %p681
        %p1211 = pneg %p678
        %p1212 = pneg %p702
        %p1213 = pneg %p699
        %p1214 = pneg %p723
        %p1215 = pneg %p720
        %p1216 = pneg %p744
        %p1217 = pneg %p741
        %p1218 = scmp.lt.s32.totalorder %s39, 11
        %s1219 = scalar_select %p1218, %s39, 11
        %s1220 = smul.addr %s1219, 2
        %s1221 = smul.addr %s1220, 8
        %s1222 = scalar_lea.vmem %s0, %s1221
        %p1223 = scmp.lt.s32.totalorder %s39, 11
        %s1224 = scalar_select %p1223, %s39, 11
        %s1225 = smul.addr %s1224, 10
        %s1226 = smul.addr %s1225, 8
        %s1227 = scalar_lea.vmem %s1, %s1226
        %p1228 = scmp.lt.s32.totalorder %s39, 11
        %s1229 = scalar_select %p1228, %s39, 11
        %s1230 = smul.addr %s1229, 32
        %s1231 = smul.addr %s1230, 8
        %s1232 = scalar_lea.vmem %s2, %s1231
        %p1233 = scmp.lt.s32.totalorder %s39, 11
        %s1234 = scalar_select %p1233, %s39, 11
        %s1235 = smul.addr %s1234, 2
        %s1236 = scalar_lea.vmem %s4, %s1235
        %p1237 = scmp.lt.s32.totalorder %s39, 11
        %s1238 = scalar_select %p1237, %s39, 11
        %s1239 = smul.addr %s1238, 32
        %s1240 = smul.addr %s1239, 8
        %s1241 = scalar_lea.vmem %s5, %s1240
        %p1242 = scmp.lt.s32.totalorder %s39, 11
        %s1243 = scalar_select %p1242, %s39, 11
        %s1244 = scalar_lea.vmem %s6, %s1243
        %p1245 = scmp.lt.s32.totalorder %s39, 11
        %s1246 = scalar_select %p1245, %s39, 11
        %s1247 = smul.addr %s1246, 2
        %s1248 = scalar_lea.vmem %s7, %s1247
        %p1249 = scmp.lt.s32.totalorder %s39, 0
        %s1250 = ssub.s32 0, %s39
        %s1251 = scalar_select %p1249, %s1250, %s39
        %s1252 = sand.u32 %s1251, 1
        %s1253 = ssub.s32 0, %s1252
        %s1254 = scalar_select %p1249, %s1253, %s1252
        %p1255 = scmp.ne.s32.totalorder %s1254, 0
        %p1256 = scmp.lt.s32.totalorder %s1254, 0
        %p1257 = pnand %p1256, %p1255
        %p1258 = pneg %p1257
        %s1259 = sadd.s32 %s1254, 2
        %s1260 = scalar_select %p1258, %s1259, %s1254
        %p1261 = scmp.lt.s32.totalorder %s1260, 1
        %s1262 = scalar_select %p1261, %s1260, 1
        %s1263 = smul.addr %s1262, 12
        %s1264 = smul.addr %s1263, 8
        %s1265 = scalar_lea.vmem %s8, %s1264
        %p1266 = scmp.lt.s32.totalorder %s39, 0
        %s1267 = ssub.s32 0, %s39
        %s1268 = scalar_select %p1266, %s1267, %s39
        %s1269 = sand.u32 %s1268, 1
        %s1270 = ssub.s32 0, %s1269
        %s1271 = scalar_select %p1266, %s1270, %s1269
        %p1272 = scmp.ne.s32.totalorder %s1271, 0
        %p1273 = scmp.lt.s32.totalorder %s1271, 0
        %p1274 = pnand %p1273, %p1272
        %p1275 = pneg %p1274
        %s1276 = sadd.s32 %s1271, 2
        %s1277 = scalar_select %p1275, %s1276, %s1271
        %p1278 = scmp.lt.s32.totalorder %s39, 0
        %s1279 = ssub.s32 0, %s39
        %s1280 = scalar_select %p1278, %s1279, %s39
        %s1281 = sand.u32 %s1280, 1
        %s1282 = ssub.s32 0, %s1281
        %s1283 = scalar_select %p1278, %s1282, %s1281
        %p1284 = scmp.ne.s32.totalorder %s1283, 0
        %p1285 = scmp.lt.s32.totalorder %s1283, 0
        %p1286 = pnand %p1285, %p1284
        %p1287 = pneg %p1286
        %s1288 = sadd.s32 %s1283, 2
        %s1289 = scalar_select %p1287, %s1288, %s1283
        %p1290 = scmp.lt.s32.totalorder %s1289, 1
        %s1291 = scalar_select %p1290, %s1289, 1
        %s1292 = smul.addr %s1291, 8
        %s1293 = smul.addr %s1292, 8
        %s1294 = scalar_lea.vmem %s9, %s1293
        %p1295 = scmp.lt.s32.totalorder %s39, 0
        %s1296 = ssub.s32 0, %s39
        %s1297 = scalar_select %p1295, %s1296, %s39
        %s1298 = sand.u32 %s1297, 1
        %s1299 = ssub.s32 0, %s1298
        %s1300 = scalar_select %p1295, %s1299, %s1298
        %p1301 = scmp.ne.s32.totalorder %s1300, 0
        %p1302 = scmp.lt.s32.totalorder %s1300, 0
        %p1303 = pnand %p1302, %p1301
        %p1304 = pneg %p1303
        %s1305 = sadd.s32 %s1300, 2
        %s1306 = scalar_select %p1304, %s1305, %s1300
        %p1307 = scmp.lt.s32.totalorder %s39, 0
        %s1308 = ssub.s32 0, %s39
        %s1309 = scalar_select %p1307, %s1308, %s39
        %s1310 = sand.u32 %s1309, 1
        %s1311 = ssub.s32 0, %s1310
        %s1312 = scalar_select %p1307, %s1311, %s1310
        %p1313 = scmp.ne.s32.totalorder %s1312, 0
        %p1314 = scmp.lt.s32.totalorder %s1312, 0
        %p1315 = pnand %p1314, %p1313
        %p1316 = pneg %p1315
        %s1317 = sadd.s32 %s1312, 2
        %s1318 = scalar_select %p1316, %s1317, %s1312
        %p1319 = scmp.lt.s32.totalorder %s1318, 1
        %s1320 = scalar_select %p1319, %s1318, 1
        %s1321 = smul.addr %s1320, 4
        %s1322 = smul.addr %s1321, 8
        %s1323 = scalar_lea.vmem %s10, %s1322
        %p1324 = scmp.lt.s32.totalorder %s39, 0
        %s1325 = ssub.s32 0, %s39
        %s1326 = scalar_select %p1324, %s1325, %s39
        %s1327 = sand.u32 %s1326, 1
        %s1328 = ssub.s32 0, %s1327
        %s1329 = scalar_select %p1324, %s1328, %s1327
        %p1330 = scmp.ne.s32.totalorder %s1329, 0
        %p1331 = scmp.lt.s32.totalorder %s1329, 0
        %p1332 = pnand %p1331, %p1330
        %p1333 = pneg %p1332
        %s1334 = sadd.s32 %s1329, 2
        %s1335 = scalar_select %p1333, %s1334, %s1329
        %p1336 = scmp.lt.s32.totalorder %s39, 0
        %s1337 = ssub.s32 0, %s39
        %s1338 = scalar_select %p1336, %s1337, %s39
        %s1339 = sand.u32 %s1338, 1
        %s1340 = ssub.s32 0, %s1339
        %s1341 = scalar_select %p1336, %s1340, %s1339
        %p1342 = scmp.ne.s32.totalorder %s1341, 0
        %p1343 = scmp.lt.s32.totalorder %s1341, 0
        %p1344 = pnand %p1343, %p1342
        %p1345 = pneg %p1344
        %s1346 = sadd.s32 %s1341, 2
        %s1347 = scalar_select %p1345, %s1346, %s1341
        %p1348 = scmp.lt.s32.totalorder %s1347, 1
        %s1349 = scalar_select %p1348, %s1347, 1
        %s1350 = smul.addr %s1349, 3
        %s1351 = smul.addr %s1350, 2
        %s1352 = scalar_lea.vmem %s11, %s1351
        %p1353 = scmp.lt.s32.totalorder %s39, 0
        %s1354 = ssub.s32 0, %s39
        %s1355 = scalar_select %p1353, %s1354, %s39
        %s1356 = sand.u32 %s1355, 1
        %s1357 = ssub.s32 0, %s1356
        %s1358 = scalar_select %p1353, %s1357, %s1356
        %p1359 = scmp.ne.s32.totalorder %s1358, 0
        %p1360 = scmp.lt.s32.totalorder %s1358, 0
        %p1361 = pnand %p1360, %p1359
        %p1362 = pneg %p1361
        %s1363 = sadd.s32 %s1358, 2
        %s1364 = scalar_select %p1362, %s1363, %s1358
        %p1365 = scmp.lt.s32.totalorder %s39, 0
        %s1366 = ssub.s32 0, %s39
        %s1367 = scalar_select %p1365, %s1366, %s39
        %s1368 = sand.u32 %s1367, 1
        %s1369 = ssub.s32 0, %s1368
        %s1370 = scalar_select %p1365, %s1369, %s1368
        %p1371 = scmp.ne.s32.totalorder %s1370, 0
        %p1372 = scmp.lt.s32.totalorder %s1370, 0
        %p1373 = pnand %p1372, %p1371
        %p1374 = pneg %p1373
        %s1375 = sadd.s32 %s1370, 2
        %s1376 = scalar_select %p1374, %s1375, %s1370
        %p1377 = scmp.lt.s32.totalorder %s1376, 1
        %s1378 = scalar_select %p1377, %s1376, 1
        %s1379 = smul.addr %s1378, 3
        %s1380 = smul.addr %s1379, 8
        %s1381 = scalar_lea.vmem %s12, %s1380
        %p1382 = scmp.lt.s32.totalorder %s39, 0
        %s1383 = ssub.s32 0, %s39
        %s1384 = scalar_select %p1382, %s1383, %s39
        %s1385 = sand.u32 %s1384, 1
        %s1386 = ssub.s32 0, %s1385
        %s1387 = scalar_select %p1382, %s1386, %s1385
        %p1388 = scmp.ne.s32.totalorder %s1387, 0
        %p1389 = scmp.lt.s32.totalorder %s1387, 0
        %p1390 = pnand %p1389, %p1388
        %p1391 = pneg %p1390
        %s1392 = sadd.s32 %s1387, 2
        %s1393 = scalar_select %p1391, %s1392, %s1387
        %v1394 = vld [vmem:[%s1222] sm:$0xff]
        %v1395 = vld [vmem:[%s1222 + $0x8] sm:$0xff]
        %p1396 = scmp.eq.s32.totalorder %s39, 0
        // Predicated region
        $region121: #{network_forward.1} parent=115 // pred_check
          %p1397 = pneg %p1396
        $region122: #{network_forward.1} parent=115 // pred_check_branch
          %1399 = sbr.rel (%p1397) target = $region124
        $region123: #{network_forward.1} parent=115 // pred_region
          %vm1400 = vcmask 130048
          %1401 = vst.msk [vmem:[#allocation2] sm:$0xff] %vm1400, 0.0
          %1402 = vst.msk [vmem:[#allocation2 + $0x8] sm:$0xff] %vm1400, 0.0
          %1403 = vst.msk [vmem:[#allocation3] sm:$0xff] %vm1400, 0.0
          %1404 = vst.msk [vmem:[#allocation3 + $0x8] sm:$0xff] %vm1400, 0.0
          %1405 = vst.msk [vmem:[#allocation3 + $0x10] sm:$0xff] %vm1400, 0.0
          %1406 = vst.msk [vmem:[#allocation3 + $0x18] sm:$0xff] %vm1400, 0.0
          %vm1407 = vcmask 269312
          %1408 = vst.msk [vmem:[#allocation4] sm:$0xff] %vm1407, %v1394
          %1409 = vst.msk [vmem:[#allocation4 + $0x8] sm:$0xff] %vm1407, %v1395
        $region124: #{network_forward.1} parent=115 // pred_fallthru
          _
        %v1410 = vld [vmem:[%s14] sm:$0xff]
        %s1411 = scalar_lea.vmem %s13, %s39
        %v1412 = vld [vmem:[%s1411] sm:$0x1]
        %v1413 = vperm.slane %v1412, 0
        %v1414 = vadd.f32 %v1410, %v1413
        %vm1415 = vcmask 64512
        %v1416 = vsel %vm1415, %v1414, 0.0
        %1417 = vadd.xlane.f32.xlu0 %v1416
        %v1418 = vpop.xlane.xlu0 %1417
        %v1419 = vrcp.pop 8.0
        %v1420 = vmul.f32 8.0, %v1419
        %v1421 = vsub.f32 1.0, %v1420
        %v1422 = vmul.f32 %v1419, %v1421
        %v1423 = vadd.f32 %v1419, %v1422
        %vm1424 = vweird.f32 %v1419
        %v1425 = vsel %vm1424, %v1419, %v1423
        %v1426 = vmul.f32 %v1418, %v1425
        %v1427 = vsub.f32 %v1414, %v1426
        %v1428 = vmul.f32 %v1427, %v1427
        %v1429 = vsel %vm1415, %v1428, 0.0
        %1430 = vadd.xlane.f32.xlu0 %v1429
        %v1431 = vpop.xlane.xlu0 %1430
        %v1432 = vmul.f32 %v1431, %v1425
        %v1433 = vadd.f32 %v1432, 1e-12
        %v1434 = vrsqrt.pop %v1433
        %v1435 = vmul.f32 %v1434, %v1433
        %v1436 = vmul.f32 %v1435, %v1434
        %v1437 = vmul.f32 0.5, %v1436
        %v1438 = vsub.f32 1.5, %v1437
        %v1439 = vmul.f32 %v1434, %v1438
        %vm1440 = vweird.f32 %v1433
        %vm1441 = vweird.f32 %v1434
        %vm1442 = vmor %vm1440, %vm1441
        %v1443 = vsel %vm1442, %v1434, %v1439
        %v1444 = vmul.f32 %v1427, %v1443
        %v1445 = vld [vmem:[#allocation2] sm:$0xff]
        %v1446 = vld [vmem:[#allocation2 + $0x8] sm:$0xff]
        %v1447 = vld [vmem:[%s16] sm:$0xff]
        %v1448 = vld [vmem:[%s16 + $0x8] sm:$0xff]
        %v1449 = vld [vmem:[%s16 + $0x10] sm:$0xff]
        %v1450 = vld [vmem:[%s16 + $0x18] sm:$0xff]
        %v1451 = vld [vmem:[%s16 + $0x20] sm:$0xff]
        %v1452 = vld [vmem:[%s16 + $0x28] sm:$0xff]
        %v1453 = vld [vmem:[%s16 + $0x30] sm:$0xff]
        %v1454 = vld [vmem:[%s16 + $0x38] sm:$0xff]
        %v1455 = vld [vmem:[%s16 + $0x40] sm:$0xff]
        %v1456 = vld [vmem:[%s16 + $0x48] sm:$0xff]
        %v1457 = vld [vmem:[%s16 + $0x50] sm:$0xff]
        %v1458 = vld [vmem:[%s16 + $0x58] sm:$0xff]
        %v1459 = vld [vmem:[%s16 + $0x60] sm:$0xff]
        %v1460 = vld [vmem:[%s16 + $0x68] sm:$0xff]
        %v1461 = vld [vmem:[%s16 + $0x70] sm:$0xff]
        %v1462 = vld [vmem:[%s16 + $0x78] sm:$0xff]
        %v1463 = vld [vmem:[%s16 + $0x80] sm:$0xff]
        %v1464 = vld [vmem:[%s16 + $0x88] sm:$0xff]
        %v1465 = vld [vmem:[%s16 + $0x90] sm:$0xff]
        %v1466 = vld [vmem:[%s16 + $0x98] sm:$0xff]
        %v1467 = vld [vmem:[%s16 + $0xa0] sm:$0xff]
        %v1468 = vld [vmem:[%s16 + $0xa8] sm:$0xff]
        %v1469 = vld [vmem:[%s16 + $0xb0] sm:$0xff]
        %v1470 = vld [vmem:[%s16 + $0xb8] sm:$0xff]
        %v1471 = vld [vmem:[%s16 + $0xc0] sm:$0x1]
        %v1472 = vld [vmem:[%s16 + $0xc8] sm:$0x1]
        %v1473 = vld [vmem:[%s16 + $0xd0] sm:$0x1]
        %v1474 = vld [vmem:[%s16 + $0xd8] sm:$0x1]
        %v1475 = vld [vmem:[%s16 + $0xe0] sm:$0x1]
        %v1476 = vld [vmem:[%s16 + $0xe8] sm:$0x1]
        %v1477 = vld [vmem:[%s17] sm:$0xff]
        %v1478 = vld [vmem:[%s17 + $0x8] sm:$0xff]
        %v1479 = vld [vmem:[%s17 + $0x10] sm:$0xff]
        %v1480 = vld [vmem:[%s17 + $0x18] sm:$0xff]
        %v1481 = vld [vmem:[%s17 + $0x20] sm:$0xff]
        %v1482 = vld [vmem:[%s17 + $0x28] sm:$0xff]
        %v1483 = vld [vmem:[%s17 + $0x30] sm:$0xff]
        %v1484 = vld [vmem:[%s17 + $0x38] sm:$0xff]
        %v1485 = vld [vmem:[%s18] sm:$0xff]
        %v1486 = vld [vmem:[%s18 + $0x8] sm:$0xff]
        %v1487 = vld [vmem:[%s18 + $0x10] sm:$0xff]
        %v1488 = vld [vmem:[%s18 + $0x18] sm:$0xff]
        %v1489 = vld [vmem:[%s19] sm:$0x3]
        %v1490 = vld [vmem:[%s19 + $0x2] sm:$0x3]
        %v1491 = vld [vmem:[%s19 + $0x4] sm:$0x3]
        %v1492 = vld [vmem:[%s20] sm:$0xff]
        %v1493 = vld [vmem:[%s20 + $0x8] sm:$0xff]
        %v1494 = vld [vmem:[%s20 + $0x10] sm:$0xff]
        %vm1495 = vcmask 269312
        %v1497 = vsel %vm1495, %v1394, 0
        %v1500 = vsel %vm1495, %v1395, 0
        %vm1502 = vcmask 1040384
        %v1504 = vsel %vm1502, %v1471, 0
        %v1507 = vsel %vm1502, %v1472, 0
        %v1510 = vsel %vm1502, %v1473, 0
        %v1513 = vsel %vm1502, %v1474, 0
        %v1516 = vsel %vm1502, %v1475, 0
        %v1519 = vsel %vm1502, %v1476, 0
        %1521 = vmatpush.msra.mxu0 0.0
        %1522 = vmatpush.msra.mxu0 0.0
        %1523 = vmatpush.msra.mxu0 0.0
        %1524 = vmatpush.msra.mxu0 0.0
        %1525 = vmatpush.msra.mxu0 0.0
        %1526 = vmatpush.msra.mxu0 0.0
        %1527 = vmatpush.msra.mxu0 0.0
        %1528 = vmatpush.msra.mxu0 0.0
        %1529 = vmatpush.msra.mxu0 0.0
        %1530 = vmatpush.msra.mxu0 0.0
        %1531 = vmatpush.msra.mxu0 0.0
        %1532 = vmatpush.msra.mxu0 %v1504
        %1533 = vmatpush.msra.mxu0 %v1465
        %1534 = vmatpush.msra.mxu0 %v1459
        %1535 = vmatpush.msra.mxu0 %v1453
        %1536 = vmatpush.msra.mxu0 %v1447
        %1537 = vmatmul.f32.gmra.mxu0 %v1497
        %v1538 = vpop.f32.mrf.mxu0
        %v1539 = vadd.f32 0.0, %v1538
        %1540 = vmatmul.f32.gmra.mxu0 %v1500
        %v1541 = vpop.f32.mrf.mxu0
        %v1542 = vadd.f32 0.0, %v1541
        %1543 = vdwg.mxu0
        %1544 = vmatpush.msra.mxu0 0.0
        %1545 = vmatpush.msra.mxu0 0.0
        %1546 = vmatpush.msra.mxu0 0.0
        %1547 = vmatpush.msra.mxu0 0.0
        %1548 = vmatpush.msra.mxu0 0.0
        %1549 = vmatpush.msra.mxu0 0.0
        %1550 = vmatpush.msra.mxu0 0.0
        %1551 = vmatpush.msra.mxu0 0.0
        %1552 = vmatpush.msra.mxu0 0.0
        %1553 = vmatpush.msra.mxu0 0.0
        %1554 = vmatpush.msra.mxu0 0.0
        %1555 = vmatpush.msra.mxu0 %v1507
        %1556 = vmatpush.msra.mxu0 %v1466
        %1557 = vmatpush.msra.mxu0 %v1460
        %1558 = vmatpush.msra.mxu0 %v1454
        %1559 = vmatpush.msra.mxu0 %v1448
        %1560 = vmatmul.f32.gmra.mxu0 %v1497
        %v1561 = vpop.f32.mrf.mxu0
        %v1562 = vadd.f32 0.0, %v1561
        %1563 = vmatmul.f32.gmra.mxu0 %v1500
        %v1564 = vpop.f32.mrf.mxu0
        %v1565 = vadd.f32 0.0, %v1564
        %1566 = vdwg.mxu0
        %1567 = vmatpush.msra.mxu0 0.0
        %1568 = vmatpush.msra.mxu0 0.0
        %1569 = vmatpush.msra.mxu0 0.0
        %1570 = vmatpush.msra.mxu0 0.0
        %1571 = vmatpush.msra.mxu0 0.0
        %1572 = vmatpush.msra.mxu0 0.0
        %1573 = vmatpush.msra.mxu0 0.0
        %1574 = vmatpush.msra.mxu0 0.0
        %1575 = vmatpush.msra.mxu0 0.0
        %1576 = vmatpush.msra.mxu0 0.0
        %1577 = vmatpush.msra.mxu0 0.0
        %1578 = vmatpush.msra.mxu0 %v1510
        %1579 = vmatpush.msra.mxu0 %v1467
        %1580 = vmatpush.msra.mxu0 %v1461
        %1581 = vmatpush.msra.mxu0 %v1455
        %1582 = vmatpush.msra.mxu0 %v1449
        %1583 = vmatmul.f32.gmra.mxu0 %v1497
        %v1584 = vpop.f32.mrf.mxu0
        %v1585 = vadd.f32 0.0, %v1584
        %1586 = vmatmul.f32.gmra.mxu0 %v1500
        %v1587 = vpop.f32.mrf.mxu0
        %v1588 = vadd.f32 0.0, %v1587
        %1589 = vdwg.mxu0
        %1590 = vmatpush.msra.mxu0 0.0
        %1591 = vmatpush.msra.mxu0 0.0
        %1592 = vmatpush.msra.mxu0 0.0
        %1593 = vmatpush.msra.mxu0 0.0
        %1594 = vmatpush.msra.mxu0 0.0
        %1595 = vmatpush.msra.mxu0 0.0
        %1596 = vmatpush.msra.mxu0 0.0
        %1597 = vmatpush.msra.mxu0 0.0
        %1598 = vmatpush.msra.mxu0 0.0
        %1599 = vmatpush.msra.mxu0 0.0
        %1600 = vmatpush.msra.mxu0 0.0
        %1601 = vmatpush.msra.mxu0 %v1513
        %1602 = vmatpush.msra.mxu0 %v1468
        %1603 = vmatpush.msra.mxu0 %v1462
        %1604 = vmatpush.msra.mxu0 %v1456
        %1605 = vmatpush.msra.mxu0 %v1450
        %1606 = vmatmul.f32.gmra.mxu0 %v1497
        %v1607 = vpop.f32.mrf.mxu0
        %v1608 = vadd.f32 0.0, %v1607
        %1609 = vmatmul.f32.gmra.mxu0 %v1500
        %v1610 = vpop.f32.mrf.mxu0
        %v1611 = vadd.f32 0.0, %v1610
        %1612 = vdwg.mxu0
        %1613 = vmatpush.msra.mxu0 0.0
        %1614 = vmatpush.msra.mxu0 0.0
        %1615 = vmatpush.msra.mxu0 0.0
        %1616 = vmatpush.msra.mxu0 0.0
        %1617 = vmatpush.msra.mxu0 0.0
        %1618 = vmatpush.msra.mxu0 0.0
        %1619 = vmatpush.msra.mxu0 0.0
        %1620 = vmatpush.msra.mxu0 0.0
        %1621 = vmatpush.msra.mxu0 0.0
        %1622 = vmatpush.msra.mxu0 0.0
        %1623 = vmatpush.msra.mxu0 0.0
        %1624 = vmatpush.msra.mxu0 %v1516
        %1625 = vmatpush.msra.mxu0 %v1469
        %1626 = vmatpush.msra.mxu0 %v1463
        %1627 = vmatpush.msra.mxu0 %v1457
        %1628 = vmatpush.msra.mxu0 %v1451
        %1629 = vmatmul.f32.gmra.mxu0 %v1497
        %v1630 = vpop.f32.mrf.mxu0
        %v1631 = vadd.f32 0.0, %v1630
        %1632 = vmatmul.f32.gmra.mxu0 %v1500
        %v1633 = vpop.f32.mrf.mxu0
        %v1634 = vadd.f32 0.0, %v1633
        %1635 = vdwg.mxu0
        %1636 = vmatpush.msra.mxu0 0.0
        %1637 = vmatpush.msra.mxu0 0.0
        %1638 = vmatpush.msra.mxu0 0.0
        %1639 = vmatpush.msra.mxu0 0.0
        %1640 = vmatpush.msra.mxu0 0.0
        %1641 = vmatpush.msra.mxu0 0.0
        %1642 = vmatpush.msra.mxu0 0.0
        %1643 = vmatpush.msra.mxu0 0.0
        %1644 = vmatpush.msra.mxu0 0.0
        %1645 = vmatpush.msra.mxu0 0.0
        %1646 = vmatpush.msra.mxu0 0.0
        %1647 = vmatpush.msra.mxu0 %v1519
        %1648 = vmatpush.msra.mxu0 %v1470
        %1649 = vmatpush.msra.mxu0 %v1464
        %1650 = vmatpush.msra.mxu0 %v1458
        %1651 = vmatpush.msra.mxu0 %v1452
        %1652 = vmatmul.f32.gmra.mxu0 %v1497
        %v1653 = vpop.f32.mrf.mxu0
        %v1654 = vadd.f32 0.0, %v1653
        %1655 = vmatmul.f32.gmra.mxu0 %v1500
        %v1656 = vpop.f32.mrf.mxu0
        %v1657 = vadd.f32 0.0, %v1656
        %1658 = vdwg.mxu0
        %vm1659 = vcmask 130048
        %v1661 = vsel %vm1659, %v1445, 0
        %v1664 = vsel %vm1659, %v1446, 0
        %1666 = vmatpush.msra.mxu0 0.0
        %1667 = vmatpush.msra.mxu0 0.0
        %1668 = vmatpush.msra.mxu0 0.0
        %1669 = vmatpush.msra.mxu0 0.0
        %1670 = vmatpush.msra.mxu0 0.0
        %1671 = vmatpush.msra.mxu0 0.0
        %1672 = vmatpush.msra.mxu0 0.0
        %1673 = vmatpush.msra.mxu0 0.0
        %1674 = vmatpush.msra.mxu0 0.0
        %1675 = vmatpush.msra.mxu0 0.0
        %1676 = vmatpush.msra.mxu0 0.0
        %1677 = vmatpush.msra.mxu0 0.0
        %1678 = vmatpush.msra.mxu0 0.0
        %1679 = vmatpush.msra.mxu0 0.0
        %1680 = vmatpush.msra.mxu0 %v1481
        %1681 = vmatpush.msra.mxu0 %v1477
        %1682 = vmatmul.f32.gmra.mxu0 %v1661
        %v1683 = vpop.f32.mrf.mxu0
        %v1684 = vadd.f32 0.0, %v1683
        %1685 = vmatmul.f32.gmra.mxu0 %v1664
        %v1686 = vpop.f32.mrf.mxu0
        %v1687 = vadd.f32 0.0, %v1686
        %1688 = vdwg.mxu0
        %1689 = vmatpush.msra.mxu0 0.0
        %1690 = vmatpush.msra.mxu0 0.0
        %1691 = vmatpush.msra.mxu0 0.0
        %1692 = vmatpush.msra.mxu0 0.0
        %1693 = vmatpush.msra.mxu0 0.0
        %1694 = vmatpush.msra.mxu0 0.0
        %1695 = vmatpush.msra.mxu0 0.0
        %1696 = vmatpush.msra.mxu0 0.0
        %1697 = vmatpush.msra.mxu0 0.0
        %1698 = vmatpush.msra.mxu0 0.0
        %1699 = vmatpush.msra.mxu0 0.0
        %1700 = vmatpush.msra.mxu0 0.0
        %1701 = vmatpush.msra.mxu0 0.0
        %1702 = vmatpush.msra.mxu0 0.0
        %1703 = vmatpush.msra.mxu0 %v1482
        %1704 = vmatpush.msra.mxu0 %v1478
        %1705 = vmatmul.f32.gmra.mxu0 %v1661
        %v1706 = vpop.f32.mrf.mxu0
        %v1707 = vadd.f32 0.0, %v1706
        %1708 = vmatmul.f32.gmra.mxu0 %v1664
        %v1709 = vpop.f32.mrf.mxu0
        %v1710 = vadd.f32 0.0, %v1709
        %1711 = vdwg.mxu0
        %1712 = vmatpush.msra.mxu0 0.0
        %1713 = vmatpush.msra.mxu0 0.0
        %1714 = vmatpush.msra.mxu0 0.0
        %1715 = vmatpush.msra.mxu0 0.0
        %1716 = vmatpush.msra.mxu0 0.0
        %1717 = vmatpush.msra.mxu0 0.0
        %1718 = vmatpush.msra.mxu0 0.0
        %1719 = vmatpush.msra.mxu0 0.0
        %1720 = vmatpush.msra.mxu0 0.0
        %1721 = vmatpush.msra.mxu0 0.0
        %1722 = vmatpush.msra.mxu0 0.0
        %1723 = vmatpush.msra.mxu0 0.0
        %1724 = vmatpush.msra.mxu0 0.0
        %1725 = vmatpush.msra.mxu0 0.0
        %1726 = vmatpush.msra.mxu0 %v1483
        %1727 = vmatpush.msra.mxu0 %v1479
        %1728 = vmatmul.f32.gmra.mxu0 %v1661
        %v1729 = vpop.f32.mrf.mxu0
        %v1730 = vadd.f32 0.0, %v1729
        %1731 = vmatmul.f32.gmra.mxu0 %v1664
        %v1732 = vpop.f32.mrf.mxu0
        %v1733 = vadd.f32 0.0, %v1732
        %1734 = vdwg.mxu0
        %1735 = vmatpush.msra.mxu0 0.0
        %1736 = vmatpush.msra.mxu0 0.0
        %1737 = vmatpush.msra.mxu0 0.0
        %1738 = vmatpush.msra.mxu0 0.0
        %1739 = vmatpush.msra.mxu0 0.0
        %1740 = vmatpush.msra.mxu0 0.0
        %1741 = vmatpush.msra.mxu0 0.0
        %1742 = vmatpush.msra.mxu0 0.0
        %1743 = vmatpush.msra.mxu0 0.0
        %1744 = vmatpush.msra.mxu0 0.0
        %1745 = vmatpush.msra.mxu0 0.0
        %1746 = vmatpush.msra.mxu0 0.0
        %1747 = vmatpush.msra.mxu0 0.0
        %1748 = vmatpush.msra.mxu0 0.0
        %1749 = vmatpush.msra.mxu0 %v1484
        %1750 = vmatpush.msra.mxu0 %v1480
        %1751 = vmatmul.f32.gmra.mxu0 %v1661
        %v1752 = vpop.f32.mrf.mxu0
        %v1753 = vadd.f32 0.0, %v1752
        %1754 = vmatmul.f32.gmra.mxu0 %v1664
        %v1755 = vpop.f32.mrf.mxu0
        %v1756 = vadd.f32 0.0, %v1755
        %1757 = vdwg.mxu0
        %v1758 = vadd.f32 %v1539, %v1684
        %v1759 = vadd.f32 %v1542, %v1687
        %v1760 = vadd.f32 %v1562, %v1707
        %v1761 = vadd.f32 %v1565, %v1710
        %v1762 = vperm.slane %v1489, 0
        %v1763 = vmul.f32 %v1444, %v1762
        %v1764 = vperm.slane %v1489, 1
        %v1765 = vadd.f32 %v1763, %v1764
        %v1767 = vsel %vm1415, %v1765, 0
        %1769 = vmatpush.xpose.msra.mxu0 0.0
        %1770 = vmatpush.xpose.msra.mxu0 0.0
        %1771 = vmatpush.xpose.msra.mxu0 0.0
        %1772 = vmatpush.xpose.msra.mxu0 0.0
        %1773 = vmatpush.xpose.msra.mxu0 0.0
        %1774 = vmatpush.xpose.msra.mxu0 0.0
        %1775 = vmatpush.xpose.msra.mxu0 0.0
        %1776 = vmatpush.xpose.msra.mxu0 0.0
        %1777 = vmatpush.xpose.msra.mxu0 0.0
        %1778 = vmatpush.xpose.msra.mxu0 0.0
        %1779 = vmatpush.xpose.msra.mxu0 0.0
        %1780 = vmatpush.xpose.msra.mxu0 0.0
        %1781 = vmatpush.xpose.msra.mxu0 0.0
        %1782 = vmatpush.xpose.msra.mxu0 0.0
        %1783 = vmatpush.xpose.msra.mxu0 0.0
        %1784 = vmatpush.xpose.msra.mxu0 %v1767
        %1785 = vmatmul.f32.gmra.mxu0 %v1767
        %v1786 = vpop.f32.mrf.mxu0
        %v1787 = vadd.f32 0.0, %v1786
        %1788 = vdwg.mxu0
        %v1789 = vsel %vm1415, %v1787, -inf
        %1790 = vmax.xlane.f32.xlu0 %v1789
        %v1791 = vpop.xlane.xlu0 %1790
        %v1792 = vsub.f32 %v1787, %v1791
        %v1793 = vmul.f32 %v1792, 1.442695
        %v1794 = vpow.pop %v1793
        %v1795 = vsel %vm1415, %v1794, 0.0
        %1796 = vadd.xlane.f32.xlu0 %v1795
        %v1797 = vpop.xlane.xlu0 %1796
        %v1798 = vrcp.pop %v1797
        %v1799 = vmul.f32 %v1797, %v1798
        %v1800 = vsub.f32 1.0, %v1799
        %v1801 = vmul.f32 %v1798, %v1800
        %v1802 = vadd.f32 %v1798, %v1801
        %vm1803 = vweird.f32 %v1797
        %vm1804 = vweird.f32 %v1798
        %vm1805 = vmor %vm1803, %vm1804
        %v1806 = vsel %vm1805, %v1798, %v1802
        %v1807 = vand.u32 2147483647, %v1797
        %vm1808 = vcmp.eq.f32.partialorder %v1807, 8.507059e+37
        %v1809 = vand.u32 %v1797, 2147483648
        %v1810 = vor.u32 1.1754944e-38, %v1809
        %v1811 = vsel %vm1808, %v1810, %v1806
        %v1812 = vmul.f32 %v1794, %v1811
        %v1814 = vsel %vm1415, %v1812, 0
        %1816 = vmatpush.msra.mxu0 0.0
        %1817 = vmatpush.msra.mxu0 0.0
        %1818 = vmatpush.msra.mxu0 0.0
        %1819 = vmatpush.msra.mxu0 0.0
        %1820 = vmatpush.msra.mxu0 0.0
        %1821 = vmatpush.msra.mxu0 0.0
        %1822 = vmatpush.msra.mxu0 0.0
        %1823 = vmatpush.msra.mxu0 0.0
        %1824 = vmatpush.msra.mxu0 0.0
        %1825 = vmatpush.msra.mxu0 0.0
        %1826 = vmatpush.msra.mxu0 0.0
        %1827 = vmatpush.msra.mxu0 0.0
        %1828 = vmatpush.msra.mxu0 0.0
        %1829 = vmatpush.msra.mxu0 0.0
        %1830 = vmatpush.msra.mxu0 0.0
        %1831 = vmatpush.msra.mxu0 %v1760
        %1832 = vmatmul.f32.gmra.mxu0 %v1814
        %v1833 = vpop.f32.mrf.mxu0
        %v1834 = vadd.f32 0.0, %v1833
        %1835 = vdwg.mxu0
        %1836 = vmatpush.msra.mxu0 0.0
        %1837 = vmatpush.msra.mxu0 0.0
        %1838 = vmatpush.msra.mxu0 0.0
        %1839 = vmatpush.msra.mxu0 0.0
        %1840 = vmatpush.msra.mxu0 0.0
        %1841 = vmatpush.msra.mxu0 0.0
        %1842 = vmatpush.msra.mxu0 0.0
        %1843 = vmatpush.msra.mxu0 0.0
        %1844 = vmatpush.msra.mxu0 0.0
        %1845 = vmatpush.msra.mxu0 0.0
        %1846 = vmatpush.msra.mxu0 0.0
        %1847 = vmatpush.msra.mxu0 0.0
        %1848 = vmatpush.msra.mxu0 0.0
        %1849 = vmatpush.msra.mxu0 0.0
        %1850 = vmatpush.msra.mxu0 0.0
        %1851 = vmatpush.msra.mxu0 %v1761
        %1852 = vmatmul.f32.gmra.mxu0 %v1814
        %v1853 = vpop.f32.mrf.mxu0
        %v1854 = vadd.f32 0.0, %v1853
        %1855 = vdwg.mxu0
        %v1856 = vadd.f32 %v1758, %v1834
        %v1857 = vadd.f32 %v1759, %v1854
        %1858 = vmatpush.msra.mxu0 0.0
        %1859 = vmatpush.msra.mxu0 0.0
        %1860 = vmatpush.msra.mxu0 0.0
        %1861 = vmatpush.msra.mxu0 0.0
        %1862 = vmatpush.msra.mxu0 0.0
        %1863 = vmatpush.msra.mxu0 0.0
        %1864 = vmatpush.msra.mxu0 0.0
        %1865 = vmatpush.msra.mxu0 0.0
        %1866 = vmatpush.msra.mxu0 0.0
        %1867 = vmatpush.msra.mxu0 0.0
        %1868 = vmatpush.msra.mxu0 0.0
        %1869 = vmatpush.msra.mxu0 0.0
        %1870 = vmatpush.msra.mxu0 0.0
        %1871 = vmatpush.msra.mxu0 0.0
        %1872 = vmatpush.msra.mxu0 0.0
        %1873 = vmatpush.msra.mxu0 %v1492
        %1874 = vmatmul.f32.gmra.mxu0 %v1767
        %v1875 = vpop.f32.mrf.mxu0
        %v1876 = vadd.f32 0.0, %v1875
        %1877 = vdwg.mxu0
        %1878 = vset.pattern.permute.xlu0 0
        %1879 = vperm.xlu0 %1878, %v1765
        %v1880 = vpop.permute.xlu0 %1879
        %v1882 = vmul.f32 %v1880, %v1856
        %v1883 = vmul.f32 %v1880, %v1857
        %v1884 = vadd.f32 %v1876, %v1882
        %v1885 = vadd.f32 %v1876, %v1883
        %1886 = vset.pattern.permute.xlu0 1
        %1887 = vperm.xlu0 %1886, %v1765
        %v1888 = vpop.permute.xlu0 %1887
        %v1890 = vmul.f32 %v1888, %v1856
        %v1891 = vmul.f32 %v1888, %v1857
        %1894 = vrot.lane.b32.xlu0 %v1890, 112
        %v1895 = vpop.permute.xlu0 %1894
        %1896 = vrot.lane.b32.xlu0 %v1891, 112
        %v1897 = vpop.permute.xlu0 %1896
        %v1900 = vadd.f32 %v1884, %v1895
        %v1901 = vadd.f32 %v1885, %v1897
        %1902 = vset.pattern.permute.xlu0 2
        %1903 = vperm.xlu0 %1902, %v1765
        %v1904 = vpop.permute.xlu0 %1903
        %v1906 = vmul.f32 %v1904, %v1856
        %v1907 = vmul.f32 %v1904, %v1857
        %1910 = vrot.lane.b32.xlu0 %v1906, 96
        %v1911 = vpop.permute.xlu0 %1910
        %1912 = vrot.lane.b32.xlu0 %v1907, 96
        %v1913 = vpop.permute.xlu0 %1912
        %v1916 = vadd.f32 %v1900, %v1911
        %v1917 = vadd.f32 %v1901, %v1913
        %1918 = vset.pattern.permute.xlu0 3
        %1919 = vperm.xlu0 %1918, %v1765
        %v1920 = vpop.permute.xlu0 %1919
        %v1922 = vmul.f32 %v1920, %v1856
        %v1923 = vmul.f32 %v1920, %v1857
        %1926 = vrot.lane.b32.xlu0 %v1922, 80
        %v1927 = vpop.permute.xlu0 %1926
        %1928 = vrot.lane.b32.xlu0 %v1923, 80
        %v1929 = vpop.permute.xlu0 %1928
        %v1932 = vadd.f32 %v1916, %v1927
        %v1933 = vadd.f32 %v1917, %v1929
        %1934 = vset.pattern.permute.xlu0 4
        %1935 = vperm.xlu0 %1934, %v1765
        %v1936 = vpop.permute.xlu0 %1935
        %v1938 = vmul.f32 %v1936, %v1856
        %v1939 = vmul.f32 %v1936, %v1857
        %1942 = vrot.lane.b32.xlu0 %v1938, 64
        %v1943 = vpop.permute.xlu0 %1942
        %1944 = vrot.lane.b32.xlu0 %v1939, 64
        %v1945 = vpop.permute.xlu0 %1944
        %v1948 = vadd.f32 %v1932, %v1943
        %v1949 = vadd.f32 %v1933, %v1945
        %1950 = vset.pattern.permute.xlu0 5
        %1951 = vperm.xlu0 %1950, %v1765
        %v1952 = vpop.permute.xlu0 %1951
        %v1954 = vmul.f32 %v1952, %v1856
        %v1955 = vmul.f32 %v1952, %v1857
        %1958 = vrot.lane.b32.xlu0 %v1954, 48
        %v1959 = vpop.permute.xlu0 %1958
        %1960 = vrot.lane.b32.xlu0 %v1955, 48
        %v1961 = vpop.permute.xlu0 %1960
        %v1964 = vadd.f32 %v1948, %v1959
        %v1965 = vadd.f32 %v1949, %v1961
        %1966 = vset.pattern.permute.xlu0 6
        %1967 = vperm.xlu0 %1966, %v1765
        %v1968 = vpop.permute.xlu0 %1967
        %v1970 = vmul.f32 %v1968, %v1856
        %v1971 = vmul.f32 %v1968, %v1857
        %1974 = vrot.lane.b32.xlu0 %v1970, 32
        %v1975 = vpop.permute.xlu0 %1974
        %1976 = vrot.lane.b32.xlu0 %v1971, 32
        %v1977 = vpop.permute.xlu0 %1976
        %v1980 = vadd.f32 %v1964, %v1975
        %v1981 = vadd.f32 %v1965, %v1977
        %1982 = vset.pattern.permute.xlu0 7
        %1983 = vperm.xlu0 %1982, %v1765
        %v1984 = vpop.permute.xlu0 %1983
        %v1986 = vmul.f32 %v1984, %v1856
        %v1987 = vmul.f32 %v1984, %v1857
        %1990 = vrot.lane.b32.xlu0 %v1986, 16
        %v1991 = vpop.permute.xlu0 %1990
        %1992 = vrot.lane.b32.xlu0 %v1987, 16
        %v1993 = vpop.permute.xlu0 %1992
        %v1996 = vadd.f32 %v1980, %v1991
        %v1997 = vadd.f32 %v1981, %v1993
        %v1998 = vsub.f32 0.0, %v1996
        %v1999 = vsub.f32 0.0, %v1997
        %v2000 = vmul.f32 %v1998, 1.442695
        %v2001 = vpow.pop %v2000
        %v2002 = vmul.f32 %v1999, 1.442695
        %v2003 = vpow.pop %v2002
        %v2004 = vadd.f32 %v2001, 1.0
        %v2005 = vadd.f32 %v2003, 1.0
        %v2006 = vrcp.pop %v2004
        %v2007 = vmul.f32 %v2004, %v2006
        %v2008 = vsub.f32 1.0, %v2007
        %v2009 = vmul.f32 %v2006, %v2008
        %v2010 = vadd.f32 %v2006, %v2009
        %vm2011 = vweird.f32 %v2004
        %vm2012 = vweird.f32 %v2006
        %vm2013 = vmor %vm2011, %vm2012
        %v2014 = vsel %vm2013, %v2006, %v2010
        %v2015 = vand.u32 2147483647, %v2004
        %vm2016 = vcmp.eq.f32.partialorder %v2015, 8.507059e+37
        %v2017 = vand.u32 %v2004, 2147483648
        %v2018 = vor.u32 1.1754944e-38, %v2017
        %v2019 = vsel %vm2016, %v2018, %v2014
        %v2020 = vmul.f32 1.0, %v2019
        %v2021 = vrcp.pop %v2005
        %v2022 = vmul.f32 %v2005, %v2021
        %v2023 = vsub.f32 1.0, %v2022
        %v2024 = vmul.f32 %v2021, %v2023
        %v2025 = vadd.f32 %v2021, %v2024
        %vm2026 = vweird.f32 %v2005
        %vm2027 = vweird.f32 %v2021
        %vm2028 = vmor %vm2026, %vm2027
        %v2029 = vsel %vm2028, %v2021, %v2025
        %v2030 = vand.u32 2147483647, %v2005
        %vm2031 = vcmp.eq.f32.partialorder %v2030, 8.507059e+37
        %v2032 = vand.u32 %v2005, 2147483648
        %v2033 = vor.u32 1.1754944e-38, %v2032
        %v2034 = vsel %vm2031, %v2033, %v2029
        %v2035 = vmul.f32 1.0, %v2034
        %v2036 = vadd.f32 %v1585, %v1730
        %v2037 = vadd.f32 %v1588, %v1733
        %v2038 = vadd.f32 %v1608, %v1753
        %v2039 = vadd.f32 %v1611, %v1756
        %v2040 = vperm.slane %v1490, 0
        %v2041 = vmul.f32 %v1444, %v2040
        %v2042 = vperm.slane %v1490, 1
        %v2043 = vadd.f32 %v2041, %v2042
        %v2045 = vsel %vm1415, %v2043, 0
        %2047 = vmatpush.xpose.msra.mxu0 0.0
        %2048 = vmatpush.xpose.msra.mxu0 0.0
        %2049 = vmatpush.xpose.msra.mxu0 0.0
        %2050 = vmatpush.xpose.msra.mxu0 0.0
        %2051 = vmatpush.xpose.msra.mxu0 0.0
        %2052 = vmatpush.xpose.msra.mxu0 0.0
        %2053 = vmatpush.xpose.msra.mxu0 0.0
        %2054 = vmatpush.xpose.msra.mxu0 0.0
        %2055 = vmatpush.xpose.msra.mxu0 0.0
        %2056 = vmatpush.xpose.msra.mxu0 0.0
        %2057 = vmatpush.xpose.msra.mxu0 0.0
        %2058 = vmatpush.xpose.msra.mxu0 0.0
        %2059 = vmatpush.xpose.msra.mxu0 0.0
        %2060 = vmatpush.xpose.msra.mxu0 0.0
        %2061 = vmatpush.xpose.msra.mxu0 0.0
        %2062 = vmatpush.xpose.msra.mxu0 %v2045
        %2063 = vmatmul.f32.gmra.mxu0 %v2045
        %v2064 = vpop.f32.mrf.mxu0
        %v2065 = vadd.f32 0.0, %v2064
        %2066 = vdwg.mxu0
        %v2067 = vsel %vm1415, %v2065, -inf
        %2068 = vmax.xlane.f32.xlu0 %v2067
        %v2069 = vpop.xlane.xlu0 %2068
        %v2070 = vsub.f32 %v2065, %v2069
        %v2071 = vmul.f32 %v2070, 1.442695
        %v2072 = vpow.pop %v2071
        %v2073 = vsel %vm1415, %v2072, 0.0
        %2074 = vadd.xlane.f32.xlu0 %v2073
        %v2075 = vpop.xlane.xlu0 %2074
        %v2076 = vrcp.pop %v2075
        %v2077 = vmul.f32 %v2075, %v2076
        %v2078 = vsub.f32 1.0, %v2077
        %v2079 = vmul.f32 %v2076, %v2078
        %v2080 = vadd.f32 %v2076, %v2079
        %vm2081 = vweird.f32 %v2075
        %vm2082 = vweird.f32 %v2076
        %vm2083 = vmor %vm2081, %vm2082
        %v2084 = vsel %vm2083, %v2076, %v2080
        %v2085 = vand.u32 2147483647, %v2075
        %vm2086 = vcmp.eq.f32.partialorder %v2085, 8.507059e+37
        %v2087 = vand.u32 %v2075, 2147483648
        %v2088 = vor.u32 1.1754944e-38, %v2087
        %v2089 = vsel %vm2086, %v2088, %v2084
        %v2090 = vmul.f32 %v2072, %v2089
        %v2092 = vsel %vm1415, %v2090, 0
        %2094 = vmatpush.msra.mxu0 0.0
        %2095 = vmatpush.msra.mxu0 0.0
        %2096 = vmatpush.msra.mxu0 0.0
        %2097 = vmatpush.msra.mxu0 0.0
        %2098 = vmatpush.msra.mxu0 0.0
        %2099 = vmatpush.msra.mxu0 0.0
        %2100 = vmatpush.msra.mxu0 0.0
        %2101 = vmatpush.msra.mxu0 0.0
        %2102 = vmatpush.msra.mxu0 0.0
        %2103 = vmatpush.msra.mxu0 0.0
        %2104 = vmatpush.msra.mxu0 0.0
        %2105 = vmatpush.msra.mxu0 0.0
        %2106 = vmatpush.msra.mxu0 0.0
        %2107 = vmatpush.msra.mxu0 0.0
        %2108 = vmatpush.msra.mxu0 0.0
        %2109 = vmatpush.msra.mxu0 %v2038
        %2110 = vmatmul.f32.gmra.mxu0 %v2092
        %v2111 = vpop.f32.mrf.mxu0
        %v2112 = vadd.f32 0.0, %v2111
        %2113 = vdwg.mxu0
        %2114 = vmatpush.msra.mxu0 0.0
        %2115 = vmatpush.msra.mxu0 0.0
        %2116 = vmatpush.msra.mxu0 0.0
        %2117 = vmatpush.msra.mxu0 0.0
        %2118 = vmatpush.msra.mxu0 0.0
        %2119 = vmatpush.msra.mxu0 0.0
        %2120 = vmatpush.msra.mxu0 0.0
        %2121 = vmatpush.msra.mxu0 0.0
        %2122 = vmatpush.msra.mxu0 0.0
        %2123 = vmatpush.msra.mxu0 0.0
        %2124 = vmatpush.msra.mxu0 0.0
        %2125 = vmatpush.msra.mxu0 0.0
        %2126 = vmatpush.msra.mxu0 0.0
        %2127 = vmatpush.msra.mxu0 0.0
        %2128 = vmatpush.msra.mxu0 0.0
        %2129 = vmatpush.msra.mxu0 %v2039
        %2130 = vmatmul.f32.gmra.mxu0 %v2092
        %v2131 = vpop.f32.mrf.mxu0
        %v2132 = vadd.f32 0.0, %v2131
        %2133 = vdwg.mxu0
        %v2134 = vadd.f32 %v2036, %v2112
        %v2135 = vadd.f32 %v2037, %v2132
        %2136 = vmatpush.msra.mxu0 0.0
        %2137 = vmatpush.msra.mxu0 0.0
        %2138 = vmatpush.msra.mxu0 0.0
        %2139 = vmatpush.msra.mxu0 0.0
        %2140 = vmatpush.msra.mxu0 0.0
        %2141 = vmatpush.msra.mxu0 0.0
        %2142 = vmatpush.msra.mxu0 0.0
        %2143 = vmatpush.msra.mxu0 0.0
        %2144 = vmatpush.msra.mxu0 0.0
        %2145 = vmatpush.msra.mxu0 0.0
        %2146 = vmatpush.msra.mxu0 0.0
        %2147 = vmatpush.msra.mxu0 0.0
        %2148 = vmatpush.msra.mxu0 0.0
        %2149 = vmatpush.msra.mxu0 0.0
        %2150 = vmatpush.msra.mxu0 0.0
        %2151 = vmatpush.msra.mxu0 %v1493
        %2152 = vmatmul.f32.gmra.mxu0 %v2045
        %v2153 = vpop.f32.mrf.mxu0
        %v2154 = vadd.f32 0.0, %v2153
        %2155 = vdwg.mxu0
        %2156 = vset.pattern.permute.xlu0 0
        %2157 = vperm.xlu0 %2156, %v2043
        %v2158 = vpop.permute.xlu0 %2157
        %v2160 = vmul.f32 %v2158, %v2134
        %v2161 = vmul.f32 %v2158, %v2135
        %v2162 = vadd.f32 %v2154, %v2160
        %v2163 = vadd.f32 %v2154, %v2161
        %2164 = vset.pattern.permute.xlu0 1
        %2165 = vperm.xlu0 %2164, %v2043
        %v2166 = vpop.permute.xlu0 %2165
        %v2168 = vmul.f32 %v2166, %v2134
        %v2169 = vmul.f32 %v2166, %v2135
        %2172 = vrot.lane.b32.xlu0 %v2168, 112
        %v2173 = vpop.permute.xlu0 %2172
        %2174 = vrot.lane.b32.xlu0 %v2169, 112
        %v2175 = vpop.permute.xlu0 %2174
        %v2178 = vadd.f32 %v2162, %v2173
        %v2179 = vadd.f32 %v2163, %v2175
        %2180 = vset.pattern.permute.xlu0 2
        %2181 = vperm.xlu0 %2180, %v2043
        %v2182 = vpop.permute.xlu0 %2181
        %v2184 = vmul.f32 %v2182, %v2134
        %v2185 = vmul.f32 %v2182, %v2135
        %2188 = vrot.lane.b32.xlu0 %v2184, 96
        %v2189 = vpop.permute.xlu0 %2188
        %2190 = vrot.lane.b32.xlu0 %v2185, 96
        %v2191 = vpop.permute.xlu0 %2190
        %v2194 = vadd.f32 %v2178, %v2189
        %v2195 = vadd.f32 %v2179, %v2191
        %2196 = vset.pattern.permute.xlu0 3
        %2197 = vperm.xlu0 %2196, %v2043
        %v2198 = vpop.permute.xlu0 %2197
        %v2200 = vmul.f32 %v2198, %v2134
        %v2201 = vmul.f32 %v2198, %v2135
        %2204 = vrot.lane.b32.xlu0 %v2200, 80
        %v2205 = vpop.permute.xlu0 %2204
        %2206 = vrot.lane.b32.xlu0 %v2201, 80
        %v2207 = vpop.permute.xlu0 %2206
        %v2210 = vadd.f32 %v2194, %v2205
        %v2211 = vadd.f32 %v2195, %v2207
        %2212 = vset.pattern.permute.xlu0 4
        %2213 = vperm.xlu0 %2212, %v2043
        %v2214 = vpop.permute.xlu0 %2213
        %v2216 = vmul.f32 %v2214, %v2134
        %v2217 = vmul.f32 %v2214, %v2135
        %2220 = vrot.lane.b32.xlu0 %v2216, 64
        %v2221 = vpop.permute.xlu0 %2220
        %2222 = vrot.lane.b32.xlu0 %v2217, 64
        %v2223 = vpop.permute.xlu0 %2222
        %v2226 = vadd.f32 %v2210, %v2221
        %v2227 = vadd.f32 %v2211, %v2223
        %2228 = vset.pattern.permute.xlu0 5
        %2229 = vperm.xlu0 %2228, %v2043
        %v2230 = vpop.permute.xlu0 %2229
        %v2232 = vmul.f32 %v2230, %v2134
        %v2233 = vmul.f32 %v2230, %v2135
        %2236 = vrot.lane.b32.xlu0 %v2232, 48
        %v2237 = vpop.permute.xlu0 %2236
        %2238 = vrot.lane.b32.xlu0 %v2233, 48
        %v2239 = vpop.permute.xlu0 %2238
        %v2242 = vadd.f32 %v2226, %v2237
        %v2243 = vadd.f32 %v2227, %v2239
        %2244 = vset.pattern.permute.xlu0 6
        %2245 = vperm.xlu0 %2244, %v2043
        %v2246 = vpop.permute.xlu0 %2245
        %v2248 = vmul.f32 %v2246, %v2134
        %v2249 = vmul.f32 %v2246, %v2135
        %2252 = vrot.lane.b32.xlu0 %v2248, 32
        %v2253 = vpop.permute.xlu0 %2252
        %2254 = vrot.lane.b32.xlu0 %v2249, 32
        %v2255 = vpop.permute.xlu0 %2254
        %v2258 = vadd.f32 %v2242, %v2253
        %v2259 = vadd.f32 %v2243, %v2255
        %2260 = vset.pattern.permute.xlu0 7
        %2261 = vperm.xlu0 %2260, %v2043
        %v2262 = vpop.permute.xlu0 %2261
        %v2264 = vmul.f32 %v2262, %v2134
        %v2265 = vmul.f32 %v2262, %v2135
        %2268 = vrot.lane.b32.xlu0 %v2264, 16
        %v2269 = vpop.permute.xlu0 %2268
        %2270 = vrot.lane.b32.xlu0 %v2265, 16
        %v2271 = vpop.permute.xlu0 %2270
        %v2274 = vadd.f32 %v2258, %v2269
        %v2275 = vadd.f32 %v2259, %v2271
        %v2276 = vsub.f32 0.0, %v2274
        %v2277 = vsub.f32 0.0, %v2275
        %v2278 = vmul.f32 %v2276, 1.442695
        %v2279 = vpow.pop %v2278
        %v2280 = vmul.f32 %v2277, 1.442695
        %v2281 = vpow.pop %v2280
        %v2282 = vadd.f32 %v2279, 1.0
        %v2283 = vadd.f32 %v2281, 1.0
        %v2284 = vrcp.pop %v2282
        %v2285 = vmul.f32 %v2282, %v2284
        %v2286 = vsub.f32 1.0, %v2285
        %v2287 = vmul.f32 %v2284, %v2286
        %v2288 = vadd.f32 %v2284, %v2287
        %vm2289 = vweird.f32 %v2282
        %vm2290 = vweird.f32 %v2284
        %vm2291 = vmor %vm2289, %vm2290
        %v2292 = vsel %vm2291, %v2284, %v2288
        %v2293 = vand.u32 2147483647, %v2282
        %vm2294 = vcmp.eq.f32.partialorder %v2293, 8.507059e+37
        %v2295 = vand.u32 %v2282, 2147483648
        %v2296 = vor.u32 1.1754944e-38, %v2295
        %v2297 = vsel %vm2294, %v2296, %v2292
        %v2298 = vmul.f32 1.0, %v2297
        %v2299 = vrcp.pop %v2283
        %v2300 = vmul.f32 %v2283, %v2299
        %v2301 = vsub.f32 1.0, %v2300
        %v2302 = vmul.f32 %v2299, %v2301
        %v2303 = vadd.f32 %v2299, %v2302
        %vm2304 = vweird.f32 %v2283
        %vm2305 = vweird.f32 %v2299
        %vm2306 = vmor %vm2304, %vm2305
        %v2307 = vsel %vm2306, %v2299, %v2303
        %v2308 = vand.u32 2147483647, %v2283
        %vm2309 = vcmp.eq.f32.partialorder %v2308, 8.507059e+37
        %v2310 = vand.u32 %v2283, 2147483648
        %v2311 = vor.u32 1.1754944e-38, %v2310
        %v2312 = vsel %vm2309, %v2311, %v2307
        %v2313 = vmul.f32 1.0, %v2312
        %v2314 = vmul.f32 %v2020, %v1445
        %v2315 = vmul.f32 %v2035, %v1446
        %v2317 = vsel %vm1659, %v2314, 0
        %v2320 = vsel %vm1659, %v2315, 0
        %2322 = vmatpush.msra.mxu0 0.0
        %2323 = vmatpush.msra.mxu0 0.0
        %2324 = vmatpush.msra.mxu0 0.0
        %2325 = vmatpush.msra.mxu0 0.0
        %2326 = vmatpush.msra.mxu0 0.0
        %2327 = vmatpush.msra.mxu0 0.0
        %2328 = vmatpush.msra.mxu0 0.0
        %2329 = vmatpush.msra.mxu0 0.0
        %2330 = vmatpush.msra.mxu0 0.0
        %2331 = vmatpush.msra.mxu0 0.0
        %2332 = vmatpush.msra.mxu0 0.0
        %2333 = vmatpush.msra.mxu0 0.0
        %2334 = vmatpush.msra.mxu0 0.0
        %2335 = vmatpush.msra.mxu0 0.0
        %2336 = vmatpush.msra.mxu0 %v1487
        %2337 = vmatpush.msra.mxu0 %v1485
        %2338 = vmatmul.f32.gmra.mxu0 %v2317
        %v2339 = vpop.f32.mrf.mxu0
        %v2340 = vadd.f32 0.0, %v2339
        %2341 = vmatmul.f32.gmra.mxu0 %v2320
        %v2342 = vpop.f32.mrf.mxu0
        %v2343 = vadd.f32 0.0, %v2342
        %2344 = vdwg.mxu0
        %2345 = vmatpush.msra.mxu0 0.0
        %2346 = vmatpush.msra.mxu0 0.0
        %2347 = vmatpush.msra.mxu0 0.0
        %2348 = vmatpush.msra.mxu0 0.0
        %2349 = vmatpush.msra.mxu0 0.0
        %2350 = vmatpush.msra.mxu0 0.0
        %2351 = vmatpush.msra.mxu0 0.0
        %2352 = vmatpush.msra.mxu0 0.0
        %2353 = vmatpush.msra.mxu0 0.0
        %2354 = vmatpush.msra.mxu0 0.0
        %2355 = vmatpush.msra.mxu0 0.0
        %2356 = vmatpush.msra.mxu0 0.0
        %2357 = vmatpush.msra.mxu0 0.0
        %2358 = vmatpush.msra.mxu0 0.0
        %2359 = vmatpush.msra.mxu0 %v1488
        %2360 = vmatpush.msra.mxu0 %v1486
        %2361 = vmatmul.f32.gmra.mxu0 %v2317
        %v2362 = vpop.f32.mrf.mxu0
        %v2363 = vadd.f32 0.0, %v2362
        %2364 = vmatmul.f32.gmra.mxu0 %v2320
        %v2365 = vpop.f32.mrf.mxu0
        %v2366 = vadd.f32 0.0, %v2365
        %2367 = vdwg.mxu0
        %v2368 = vadd.f32 %v1631, %v2340
        %v2369 = vadd.f32 %v1634, %v2343
        %v2370 = vadd.f32 %v1654, %v2363
        %v2371 = vadd.f32 %v1657, %v2366
        %v2372 = vperm.slane %v1491, 0
        %v2373 = vmul.f32 %v1444, %v2372
        %v2374 = vperm.slane %v1491, 1
        %v2375 = vadd.f32 %v2373, %v2374
        %v2377 = vsel %vm1415, %v2375, 0
        %2379 = vmatpush.xpose.msra.mxu0 0.0
        %2380 = vmatpush.xpose.msra.mxu0 0.0
        %2381 = vmatpush.xpose.msra.mxu0 0.0
        %2382 = vmatpush.xpose.msra.mxu0 0.0
        %2383 = vmatpush.xpose.msra.mxu0 0.0
        %2384 = vmatpush.xpose.msra.mxu0 0.0
        %2385 = vmatpush.xpose.msra.mxu0 0.0
        %2386 = vmatpush.xpose.msra.mxu0 0.0
        %2387 = vmatpush.xpose.msra.mxu0 0.0
        %2388 = vmatpush.xpose.msra.mxu0 0.0
        %2389 = vmatpush.xpose.msra.mxu0 0.0
        %2390 = vmatpush.xpose.msra.mxu0 0.0
        %2391 = vmatpush.xpose.msra.mxu0 0.0
        %2392 = vmatpush.xpose.msra.mxu0 0.0
        %2393 = vmatpush.xpose.msra.mxu0 0.0
        %2394 = vmatpush.xpose.msra.mxu0 %v2377
        %2395 = vmatmul.f32.gmra.mxu0 %v2377
        %v2396 = vpop.f32.mrf.mxu0
        %v2397 = vadd.f32 0.0, %v2396
        %2398 = vdwg.mxu0
        %v2399 = vsel %vm1415, %v2397, -inf
        %2400 = vmax.xlane.f32.xlu0 %v2399
        %v2401 = vpop.xlane.xlu0 %2400
        %v2402 = vsub.f32 %v2397, %v2401
        %v2403 = vmul.f32 %v2402, 1.442695
        %v2404 = vpow.pop %v2403
        %v2405 = vsel %vm1415, %v2404, 0.0
        %2406 = vadd.xlane.f32.xlu0 %v2405
        %v2407 = vpop.xlane.xlu0 %2406
        %v2408 = vrcp.pop %v2407
        %v2409 = vmul.f32 %v2407, %v2408
        %v2410 = vsub.f32 1.0, %v2409
        %v2411 = vmul.f32 %v2408, %v2410
        %v2412 = vadd.f32 %v2408, %v2411
        %vm2413 = vweird.f32 %v2407
        %vm2414 = vweird.f32 %v2408
        %vm2415 = vmor %vm2413, %vm2414
        %v2416 = vsel %vm2415, %v2408, %v2412
        %v2417 = vand.u32 2147483647, %v2407
        %vm2418 = vcmp.eq.f32.partialorder %v2417, 8.507059e+37
        %v2419 = vand.u32 %v2407, 2147483648
        %v2420 = vor.u32 1.1754944e-38, %v2419
        %v2421 = vsel %vm2418, %v2420, %v2416
        %v2422 = vmul.f32 %v2404, %v2421
        %v2424 = vsel %vm1415, %v2422, 0
        %2426 = vmatpush.msra.mxu0 0.0
        %2427 = vmatpush.msra.mxu0 0.0
        %2428 = vmatpush.msra.mxu0 0.0
        %2429 = vmatpush.msra.mxu0 0.0
        %2430 = vmatpush.msra.mxu0 0.0
        %2431 = vmatpush.msra.mxu0 0.0
        %2432 = vmatpush.msra.mxu0 0.0
        %2433 = vmatpush.msra.mxu0 0.0
        %2434 = vmatpush.msra.mxu0 0.0
        %2435 = vmatpush.msra.mxu0 0.0
        %2436 = vmatpush.msra.mxu0 0.0
        %2437 = vmatpush.msra.mxu0 0.0
        %2438 = vmatpush.msra.mxu0 0.0
        %2439 = vmatpush.msra.mxu0 0.0
        %2440 = vmatpush.msra.mxu0 0.0
        %2441 = vmatpush.msra.mxu0 %v2370
        %2442 = vmatmul.f32.gmra.mxu0 %v2424
        %v2443 = vpop.f32.mrf.mxu0
        %v2444 = vadd.f32 0.0, %v2443
        %2445 = vdwg.mxu0
        %2446 = vmatpush.msra.mxu0 0.0
        %2447 = vmatpush.msra.mxu0 0.0
        %2448 = vmatpush.msra.mxu0 0.0
        %2449 = vmatpush.msra.mxu0 0.0
        %2450 = vmatpush.msra.mxu0 0.0
        %2451 = vmatpush.msra.mxu0 0.0
        %2452 = vmatpush.msra.mxu0 0.0
        %2453 = vmatpush.msra.mxu0 0.0
        %2454 = vmatpush.msra.mxu0 0.0
        %2455 = vmatpush.msra.mxu0 0.0
        %2456 = vmatpush.msra.mxu0 0.0
        %2457 = vmatpush.msra.mxu0 0.0
        %2458 = vmatpush.msra.mxu0 0.0
        %2459 = vmatpush.msra.mxu0 0.0
        %2460 = vmatpush.msra.mxu0 0.0
        %2461 = vmatpush.msra.mxu0 %v2371
        %2462 = vmatmul.f32.gmra.mxu0 %v2424
        %v2463 = vpop.f32.mrf.mxu0
        %v2464 = vadd.f32 0.0, %v2463
        %2465 = vdwg.mxu0
        %v2466 = vadd.f32 %v2368, %v2444
        %v2467 = vadd.f32 %v2369, %v2464
        %2468 = vmatpush.msra.mxu0 0.0
        %2469 = vmatpush.msra.mxu0 0.0
        %2470 = vmatpush.msra.mxu0 0.0
        %2471 = vmatpush.msra.mxu0 0.0
        %2472 = vmatpush.msra.mxu0 0.0
        %2473 = vmatpush.msra.mxu0 0.0
        %2474 = vmatpush.msra.mxu0 0.0
        %2475 = vmatpush.msra.mxu0 0.0
        %2476 = vmatpush.msra.mxu0 0.0
        %2477 = vmatpush.msra.mxu0 0.0
        %2478 = vmatpush.msra.mxu0 0.0
        %2479 = vmatpush.msra.mxu0 0.0
        %2480 = vmatpush.msra.mxu0 0.0
        %2481 = vmatpush.msra.mxu0 0.0
        %2482 = vmatpush.msra.mxu0 0.0
        %2483 = vmatpush.msra.mxu0 %v1494
        %2484 = vmatmul.f32.gmra.mxu0 %v2377
        %v2485 = vpop.f32.mrf.mxu0
        %v2486 = vadd.f32 0.0, %v2485
        %2487 = vdwg.mxu0
        %2488 = vset.pattern.permute.xlu0 0
        %2489 = vperm.xlu0 %2488, %v2375
        %v2490 = vpop.permute.xlu0 %2489
        %v2492 = vmul.f32 %v2490, %v2466
        %v2493 = vmul.f32 %v2490, %v2467
        %v2494 = vadd.f32 %v2486, %v2492
        %v2495 = vadd.f32 %v2486, %v2493
        %2496 = vset.pattern.permute.xlu0 1
        %2497 = vperm.xlu0 %2496, %v2375
        %v2498 = vpop.permute.xlu0 %2497
        %v2500 = vmul.f32 %v2498, %v2466
        %v2501 = vmul.f32 %v2498, %v2467
        %2504 = vrot.lane.b32.xlu0 %v2500, 112
        %v2505 = vpop.permute.xlu0 %2504
        %2506 = vrot.lane.b32.xlu0 %v2501, 112
        %v2507 = vpop.permute.xlu0 %2506
        %v2510 = vadd.f32 %v2494, %v2505
        %v2511 = vadd.f32 %v2495, %v2507
        %2512 = vset.pattern.permute.xlu0 2
        %2513 = vperm.xlu0 %2512, %v2375
        %v2514 = vpop.permute.xlu0 %2513
        %v2516 = vmul.f32 %v2514, %v2466
        %v2517 = vmul.f32 %v2514, %v2467
        %2520 = vrot.lane.b32.xlu0 %v2516, 96
        %v2521 = vpop.permute.xlu0 %2520
        %2522 = vrot.lane.b32.xlu0 %v2517, 96
        %v2523 = vpop.permute.xlu0 %2522
        %v2526 = vadd.f32 %v2510, %v2521
        %v2527 = vadd.f32 %v2511, %v2523
        %2528 = vset.pattern.permute.xlu0 3
        %2529 = vperm.xlu0 %2528, %v2375
        %v2530 = vpop.permute.xlu0 %2529
        %v2532 = vmul.f32 %v2530, %v2466
        %v2533 = vmul.f32 %v2530, %v2467
        %2536 = vrot.lane.b32.xlu0 %v2532, 80
        %v2537 = vpop.permute.xlu0 %2536
        %2538 = vrot.lane.b32.xlu0 %v2533, 80
        %v2539 = vpop.permute.xlu0 %2538
        %v2542 = vadd.f32 %v2526, %v2537
        %v2543 = vadd.f32 %v2527, %v2539
        %2544 = vset.pattern.permute.xlu0 4
        %2545 = vperm.xlu0 %2544, %v2375
        %v2546 = vpop.permute.xlu0 %2545
        %v2548 = vmul.f32 %v2546, %v2466
        %v2549 = vmul.f32 %v2546, %v2467
        %2552 = vrot.lane.b32.xlu0 %v2548, 64
        %v2553 = vpop.permute.xlu0 %2552
        %2554 = vrot.lane.b32.xlu0 %v2549, 64
        %v2555 = vpop.permute.xlu0 %2554
        %v2558 = vadd.f32 %v2542, %v2553
        %v2559 = vadd.f32 %v2543, %v2555
        %2560 = vset.pattern.permute.xlu0 5
        %2561 = vperm.xlu0 %2560, %v2375
        %v2562 = vpop.permute.xlu0 %2561
        %v2564 = vmul.f32 %v2562, %v2466
        %v2565 = vmul.f32 %v2562, %v2467
        %2568 = vrot.lane.b32.xlu0 %v2564, 48
        %v2569 = vpop.permute.xlu0 %2568
        %2570 = vrot.lane.b32.xlu0 %v2565, 48
        %v2571 = vpop.permute.xlu0 %2570
        %v2574 = vadd.f32 %v2558, %v2569
        %v2575 = vadd.f32 %v2559, %v2571
        %2576 = vset.pattern.permute.xlu0 6
        %2577 = vperm.xlu0 %2576, %v2375
        %v2578 = vpop.permute.xlu0 %2577
        %v2580 = vmul.f32 %v2578, %v2466
        %v2581 = vmul.f32 %v2578, %v2467
        %2584 = vrot.lane.b32.xlu0 %v2580, 32
        %v2585 = vpop.permute.xlu0 %2584
        %2586 = vrot.lane.b32.xlu0 %v2581, 32
        %v2587 = vpop.permute.xlu0 %2586
        %v2590 = vadd.f32 %v2574, %v2585
        %v2591 = vadd.f32 %v2575, %v2587
        %2592 = vset.pattern.permute.xlu0 7
        %2593 = vperm.xlu0 %2592, %v2375
        %v2594 = vpop.permute.xlu0 %2593
        %v2596 = vmul.f32 %v2594, %v2466
        %v2597 = vmul.f32 %v2594, %v2467
        %2600 = vrot.lane.b32.xlu0 %v2596, 16
        %v2601 = vpop.permute.xlu0 %2600
        %2602 = vrot.lane.b32.xlu0 %v2597, 16
        %v2603 = vpop.permute.xlu0 %2602
        %v2606 = vadd.f32 %v2590, %v2601
        %v2607 = vadd.f32 %v2591, %v2603
        %v2608 = vtanh.pop %v2606
        %v2609 = vtanh.pop %v2607
        %v2610 = vmul.f32 %v2298, %v1445
        %v2611 = vmul.f32 %v2313, %v1446
        %v2612 = vsub.f32 1.0, %v2298
        %v2613 = vsub.f32 1.0, %v2313
        %v2614 = vmul.f32 %v2612, %v2608
        %v2615 = vmul.f32 %v2613, %v2609
        %v2616 = vadd.f32 %v2610, %v2614
        %v2617 = vadd.f32 %v2611, %v2615
        %2618 = vst.msk [vmem:[#allocation2] sm:$0xff] %vm1659, %v2616
        %2619 = vst.msk [vmem:[#allocation2 + $0x8] sm:$0xff] %vm1659, %v2617
        %v2620 = vld [vmem:[#allocation4] sm:$0xff]
        %v2621 = vld [vmem:[#allocation4 + $0x8] sm:$0xff]
        %v2622 = vld [vmem:[%s1227] sm:$0xff]
        %v2623 = vld [vmem:[%s1227 + $0x8] sm:$0xff]
        %v2624 = vld [vmem:[%s1227 + $0x10] sm:$0xff]
        %v2625 = vld [vmem:[%s1227 + $0x18] sm:$0xff]
        %v2626 = vld [vmem:[%s1227 + $0x20] sm:$0xff]
        %v2627 = vld [vmem:[%s1227 + $0x28] sm:$0xff]
        %v2628 = vld [vmem:[%s1227 + $0x30] sm:$0xff]
        %v2629 = vld [vmem:[%s1227 + $0x38] sm:$0xff]
        %v2630 = vld [vmem:[%s1227 + $0x40] sm:$0x1]
        %v2631 = vld [vmem:[%s1227 + $0x48] sm:$0x1]
        %v2633 = vsel %vm1495, %v2620, 0
        %v2636 = vsel %vm1495, %v2621, 0
        %v2639 = vsel %vm1502, %v2630, 0
        %v2642 = vsel %vm1502, %v2631, 0
        %2644 = vmatpush.msra.mxu0 0.0
        %2645 = vmatpush.msra.mxu0 0.0
        %2646 = vmatpush.msra.mxu0 0.0
        %2647 = vmatpush.msra.mxu0 0.0
        %2648 = vmatpush.msra.mxu0 0.0
        %2649 = vmatpush.msra.mxu0 0.0
        %2650 = vmatpush.msra.mxu0 0.0
        %2651 = vmatpush.msra.mxu0 0.0
        %2652 = vmatpush.msra.mxu0 0.0
        %2653 = vmatpush.msra.mxu0 0.0
        %2654 = vmatpush.msra.mxu0 0.0
        %2655 = vmatpush.msra.mxu0 %v2639
        %2656 = vmatpush.msra.mxu0 %v2628
        %2657 = vmatpush.msra.mxu0 %v2626
        %2658 = vmatpush.msra.mxu0 %v2624
        %2659 = vmatpush.msra.mxu0 %v2622
        %2660 = vmatmul.f32.gmra.mxu0 %v2633
        %v2661 = vpop.f32.mrf.mxu0
        %v2662 = vadd.f32 0.0, %v2661
        %2663 = vmatmul.f32.gmra.mxu0 %v1497
        %v2664 = vpop.f32.mrf.mxu0
        %v2665 = vadd.f32 0.0, %v2664
        %2666 = vmatmul.f32.gmra.mxu0 %v2636
        %v2667 = vpop.f32.mrf.mxu0
        %v2668 = vadd.f32 0.0, %v2667
        %2669 = vmatmul.f32.gmra.mxu0 %v1500
        %v2670 = vpop.f32.mrf.mxu0
        %v2671 = vadd.f32 0.0, %v2670
        %2672 = vdwg.mxu0
        %2673 = vmatpush.msra.mxu0 0.0
        %2674 = vmatpush.msra.mxu0 0.0
        %2675 = vmatpush.msra.mxu0 0.0
        %2676 = vmatpush.msra.mxu0 0.0
        %2677 = vmatpush.msra.mxu0 0.0
        %2678 = vmatpush.msra.mxu0 0.0
        %2679 = vmatpush.msra.mxu0 0.0
        %2680 = vmatpush.msra.mxu0 0.0
        %2681 = vmatpush.msra.mxu0 0.0
        %2682 = vmatpush.msra.mxu0 0.0
        %2683 = vmatpush.msra.mxu0 0.0
        %2684 = vmatpush.msra.mxu0 %v2642
        %2685 = vmatpush.msra.mxu0 %v2629
        %2686 = vmatpush.msra.mxu0 %v2627
        %2687 = vmatpush.msra.mxu0 %v2625
        %2688 = vmatpush.msra.mxu0 %v2623
        %2689 = vmatmul.f32.gmra.mxu0 %v2633
        %v2690 = vpop.f32.mrf.mxu0
        %v2691 = vadd.f32 0.0, %v2690
        %2692 = vmatmul.f32.gmra.mxu0 %v1497
        %v2693 = vpop.f32.mrf.mxu0
        %v2694 = vadd.f32 0.0, %v2693
        %2695 = vmatmul.f32.gmra.mxu0 %v2636
        %v2696 = vpop.f32.mrf.mxu0
        %v2697 = vadd.f32 0.0, %v2696
        %2698 = vmatmul.f32.gmra.mxu0 %v1500
        %v2699 = vpop.f32.mrf.mxu0
        %v2700 = vadd.f32 0.0, %v2699
        %2701 = vdwg.mxu0
        %v2702 = vld [vmem:[%s1232] sm:$0xff]
        %v2703 = vld [vmem:[%s1232 + $0x8] sm:$0xff]
        %v2704 = vld [vmem:[%s1232 + $0x10] sm:$0xff]
        %v2705 = vld [vmem:[%s1232 + $0x18] sm:$0xff]
        %v2706 = vld [vmem:[%s1232 + $0x20] sm:$0xff]
        %v2707 = vld [vmem:[%s1232 + $0x28] sm:$0xff]
        %v2708 = vld [vmem:[%s1232 + $0x30] sm:$0xff]
        %v2709 = vld [vmem:[%s1232 + $0x38] sm:$0xff]
        %v2710 = vld [vmem:[%s1232 + $0x40] sm:$0xff]
        %v2711 = vld [vmem:[%s1232 + $0x48] sm:$0xff]
        %v2712 = vld [vmem:[%s1232 + $0x50] sm:$0xff]
        %v2713 = vld [vmem:[%s1232 + $0x58] sm:$0xff]
        %v2714 = vld [vmem:[%s1232 + $0x60] sm:$0xff]
        %v2715 = vld [vmem:[%s1232 + $0x68] sm:$0xff]
        %v2716 = vld [vmem:[%s1232 + $0x70] sm:$0xff]
        %v2717 = vld [vmem:[%s1232 + $0x78] sm:$0xff]
        %v2718 = vld [vmem:[%s1232 + $0x80] sm:$0xff]
        %v2719 = vld [vmem:[%s1232 + $0x88] sm:$0xff]
        %v2720 = vld [vmem:[%s1232 + $0x90] sm:$0xff]
        %v2721 = vld [vmem:[%s1232 + $0x98] sm:$0xff]
        %v2722 = vld [vmem:[%s1232 + $0xa0] sm:$0xff]
        %v2723 = vld [vmem:[%s1232 + $0xa8] sm:$0xff]
        %v2724 = vld [vmem:[%s1232 + $0xb0] sm:$0xff]
        %v2725 = vld [vmem:[%s1232 + $0xb8] sm:$0xff]
        %v2726 = vld [vmem:[%s1232 + $0xc0] sm:$0xff]
        %v2727 = vld [vmem:[%s1232 + $0xc8] sm:$0xff]
        %v2728 = vld [vmem:[%s1232 + $0xd0] sm:$0xff]
        %v2729 = vld [vmem:[%s1232 + $0xd8] sm:$0xff]
        %v2730 = vld [vmem:[%s1232 + $0xe0] sm:$0xff]
        %v2731 = vld [vmem:[%s1232 + $0xe8] sm:$0xff]
        %v2732 = vld [vmem:[%s1232 + $0xf0] sm:$0xff]
        %v2733 = vld [vmem:[%s1232 + $0xf8] sm:$0xff]
        %2734 = vmatpush.msra.mxu0 %v2717
        %2735 = vmatpush.msra.mxu0 %v2716
        %2736 = vmatpush.msra.mxu0 %v2715
        %2737 = vmatpush.msra.mxu0 %v2714
        %2738 = vmatpush.msra.mxu0 %v2713
        %2739 = vmatpush.msra.mxu0 %v2712
        %2740 = vmatpush.msra.mxu0 %v2711
        %2741 = vmatpush.msra.mxu0 %v2710
        %2742 = vmatpush.msra.mxu0 %v2709
        %2743 = vmatpush.msra.mxu0 %v2708
        %2744 = vmatpush.msra.mxu0 %v2707
        %2745 = vmatpush.msra.mxu0 %v2706
        %2746 = vmatpush.msra.mxu0 %v2705
        %2747 = vmatpush.msra.mxu0 %v2704
        %2748 = vmatpush.msra.mxu0 %v2703
        %2749 = vmatpush.msra.mxu0 %v2702
        %2750 = vmatmul.f32.gmra.mxu0 %v2662
        %v2751 = vpop.f32.mrf.mxu0
        %v2752 = vadd.f32 0.0, %v2751
        %2753 = vmatmul.f32.gmra.mxu0 %v2665
        %v2754 = vpop.f32.mrf.mxu0
        %v2755 = vadd.f32 0.0, %v2754
        %2756 = vmatmul.f32.gmra.mxu0 %v2668
        %v2757 = vpop.f32.mrf.mxu0
        %v2758 = vadd.f32 0.0, %v2757
        %2759 = vmatmul.f32.gmra.mxu0 %v2671
        %v2760 = vpop.f32.mrf.mxu0
        %v2761 = vadd.f32 0.0, %v2760
        %2762 = vdwg.mxu0
        %2763 = vmatpush.msra.mxu0 %v2733
        %2764 = vmatpush.msra.mxu0 %v2732
        %2765 = vmatpush.msra.mxu0 %v2731
        %2766 = vmatpush.msra.mxu0 %v2730
        %2767 = vmatpush.msra.mxu0 %v2729
        %2768 = vmatpush.msra.mxu0 %v2728
        %2769 = vmatpush.msra.mxu0 %v2727
        %2770 = vmatpush.msra.mxu0 %v2726
        %2771 = vmatpush.msra.mxu0 %v2725
        %2772 = vmatpush.msra.mxu0 %v2724
        %2773 = vmatpush.msra.mxu0 %v2723
        %2774 = vmatpush.msra.mxu0 %v2722
        %2775 = vmatpush.msra.mxu0 %v2721
        %2776 = vmatpush.msra.mxu0 %v2720
        %2777 = vmatpush.msra.mxu0 %v2719
        %2778 = vmatpush.msra.mxu0 %v2718
        %2779 = vmatmul.f32.gmra.mxu0 %v2691
        %v2780 = vpop.f32.mrf.mxu0
        %v2781 = vadd.f32 %v2752, %v2780
        %2782 = vmatmul.f32.gmra.mxu0 %v2694
        %v2783 = vpop.f32.mrf.mxu0
        %v2784 = vadd.f32 %v2755, %v2783
        %2785 = vmatmul.f32.gmra.mxu0 %v2697
        %v2786 = vpop.f32.mrf.mxu0
        %v2787 = vadd.f32 %v2758, %v2786
        %2788 = vmatmul.f32.gmra.mxu0 %v2700
        %v2789 = vpop.f32.mrf.mxu0
        %v2790 = vadd.f32 %v2761, %v2789
        %2791 = vdwg.mxu0
        %v2792 = vld [vmem:[%s15] sm:$0xff]
        %v2793 = vld [vmem:[%s15 + $0x8] sm:$0xff]
        %2796 = vrot.lane.b32.xlu0 %v2781, 127
        %v2797 = vpop.permute.xlu0 %2796
        %2798 = vrot.lane.b32.xlu0 %v2784, 127
        %v2799 = vpop.permute.xlu0 %2798
        %2802 = vxpose.xlu0.b32.start [1/16] %v2797, 128
        %2803 = vxpose.xlu0.b32.cont [2/16] %v2799, 128
        %2804 = vxpose.xlu0.b32.cont [3/16] 0.0, 128
        %2805 = vxpose.xlu0.b32.cont [4/16] 0.0, 128
        %2806 = vxpose.xlu0.b32.cont [5/16] 0.0, 128
        %2807 = vxpose.xlu0.b32.cont [6/16] 0.0, 128
        %2808 = vxpose.xlu0.b32.cont [7/16] 0.0, 128
        %2809 = vxpose.xlu0.b32.cont [8/16] 0.0, 128
        %2810 = vxpose.xlu0.b32.cont [9/16] 0.0, 128
        %2811 = vxpose.xlu0.b32.cont [10/16] 0.0, 128
        %2812 = vxpose.xlu0.b32.cont [11/16] 0.0, 128
        %2813 = vxpose.xlu0.b32.cont [12/16] 0.0, 128
        %2814 = vxpose.xlu0.b32.cont [13/16] 0.0, 128
        %2815 = vxpose.xlu0.b32.cont [14/16] 0.0, 128
        %2816 = vxpose.xlu0.b32.cont [15/16] 0.0, 128
        %2817 = vxpose.xlu0.b32.end [16/16] 0.0, 128
        %v2818 = vpop.trf.xlu0
        %v2819 = vpop.trf.xlu0
        %v2820 = vpop.trf.xlu0
        %v2821 = vpop.trf.xlu0
        %v2822 = vpop.trf.xlu0
        %v2823 = vpop.trf.xlu0
        %v2824 = vpop.trf.xlu0
        %v2825 = vpop.trf.xlu0
        %v2826 = vpop.trf.xlu0
        %v2827 = vpop.trf.xlu0
        %v2828 = vpop.trf.xlu0
        %v2829 = vpop.trf.xlu0
        %v2830 = vpop.trf.xlu0
        %v2831 = vpop.trf.xlu0
        %v2832 = vpop.trf.xlu0
        %v2833 = vpop.trf.xlu0
        %2834 = vset.pattern.permute.xlu0 0
        %2835 = vperm.xlu0 %2834, %v2781
        %v2836 = vpop.permute.xlu0 %2835
        %2838 = vset.pattern.permute.xlu0 0
        %2839 = vperm.xlu0 %2838, %v2784
        %v2840 = vpop.permute.xlu0 %2839
        %v2842 = vperm.slane %v2818, 0
        %v2843 = vadd.f32 %v2836, %v2842
        %v2844 = vadd.f32 %v2840, %v2842
        %vm2845 = vcmp.gt.f32.partialorder %v2843, 0.0
        %vm2846 = vcmp.gt.f32.partialorder %v2844, 0.0
        %v2847 = vmul.f32 %v2843, 0.2
        %v2848 = vmul.f32 %v2844, 0.2
        %v2849 = vsel %vm2845, %v2843, %v2847
        %v2850 = vsel %vm2846, %v2844, %v2848
        %vm2851 = vcmp.gt.f32.partialorder %v2792, 0.0
        %vm2852 = vcmp.gt.f32.partialorder %v2793, 0.0
        %v2853 = vsel %vm2851, %v2849, -9e+15
        %v2854 = vsel %vm2852, %v2850, -9e+15
        %v2855 = vsel %vm1659, %v2853, -inf
        %v2856 = vsel %vm1659, %v2854, -inf
        %v2857 = vmax.f32 %v2855, %v2856
        %v2858 = vrot.slane %v2857, 4
        %v2859 = vmax.f32 %v2857, %v2858
        %v2860 = vrot.slane %v2859, 2
        %v2861 = vmax.f32 %v2859, %v2860
        %v2862 = vrot.slane %v2861, 1
        %v2863 = vmax.f32 %v2861, %v2862
        %v2864 = vsub.f32 %v2853, %v2863
        %v2865 = vsub.f32 %v2854, %v2863
        %v2866 = vmul.f32 %v2864, 1.442695
        %v2867 = vpow.pop %v2866
        %v2868 = vmul.f32 %v2865, 1.442695
        %v2869 = vpow.pop %v2868
        %v2870 = vsel %vm1659, %v2867, 0.0
        %v2871 = vsel %vm1659, %v2869, 0.0
        %v2872 = vadd.f32 %v2870, %v2871
        %v2873 = vrot.slane %v2872, 4
        %v2874 = vadd.f32 %v2872, %v2873
        %v2875 = vrot.slane %v2874, 2
        %v2876 = vadd.f32 %v2874, %v2875
        %v2877 = vrot.slane %v2876, 1
        %v2878 = vadd.f32 %v2876, %v2877
        %v2879 = vrcp.pop %v2878
        %v2880 = vmul.f32 %v2878, %v2879
        %v2881 = vsub.f32 1.0, %v2880
        %v2882 = vmul.f32 %v2879, %v2881
        %v2883 = vadd.f32 %v2879, %v2882
        %vm2884 = vweird.f32 %v2878
        %vm2885 = vweird.f32 %v2879
        %vm2886 = vmor %vm2884, %vm2885
        %v2887 = vsel %vm2886, %v2879, %v2883
        %v2888 = vand.u32 2147483647, %v2878
        %vm2889 = vcmp.eq.f32.partialorder %v2888, 8.507059e+37
        %v2890 = vand.u32 %v2878, 2147483648
        %v2891 = vor.u32 1.1754944e-38, %v2890
        %v2892 = vsel %vm2889, %v2891, %v2887
        %v2893 = vmul.f32 %v2867, %v2892
        %v2894 = vmul.f32 %v2869, %v2892
        %v2896 = vsel %vm1659, %v2893, 0
        %v2899 = vsel %vm1659, %v2894, 0
        %2901 = vmatpush.msra.mxu0 0.0
        %2902 = vmatpush.msra.mxu0 0.0
        %2903 = vmatpush.msra.mxu0 0.0
        %2904 = vmatpush.msra.mxu0 0.0
        %2905 = vmatpush.msra.mxu0 0.0
        %2906 = vmatpush.msra.mxu0 0.0
        %2907 = vmatpush.msra.mxu0 0.0
        %2908 = vmatpush.msra.mxu0 0.0
        %2909 = vmatpush.msra.mxu0 0.0
        %2910 = vmatpush.msra.mxu0 0.0
        %2911 = vmatpush.msra.mxu0 0.0
        %2912 = vmatpush.msra.mxu0 0.0
        %2913 = vmatpush.msra.mxu0 0.0
        %2914 = vmatpush.msra.mxu0 0.0
        %2915 = vmatpush.msra.mxu0 %v2665
        %2916 = vmatpush.msra.mxu0 %v2662
        %2917 = vmatmul.f32.gmra.mxu0 %v2896
        %v2918 = vpop.f32.mrf.mxu0
        %v2919 = vadd.f32 0.0, %v2918
        %2920 = vmatmul.f32.gmra.mxu0 %v2899
        %v2921 = vpop.f32.mrf.mxu0
        %v2922 = vadd.f32 0.0, %v2921
        %2923 = vdwg.mxu0
        %2924 = vmatpush.msra.mxu0 0.0
        %2925 = vmatpush.msra.mxu0 0.0
        %2926 = vmatpush.msra.mxu0 0.0
        %2927 = vmatpush.msra.mxu0 0.0
        %2928 = vmatpush.msra.mxu0 0.0
        %2929 = vmatpush.msra.mxu0 0.0
        %2930 = vmatpush.msra.mxu0 0.0
        %2931 = vmatpush.msra.mxu0 0.0
        %2932 = vmatpush.msra.mxu0 0.0
        %2933 = vmatpush.msra.mxu0 0.0
        %2934 = vmatpush.msra.mxu0 0.0
        %2935 = vmatpush.msra.mxu0 0.0
        %2936 = vmatpush.msra.mxu0 0.0
        %2937 = vmatpush.msra.mxu0 0.0
        %2938 = vmatpush.msra.mxu0 %v2694
        %2939 = vmatpush.msra.mxu0 %v2691
        %2940 = vmatmul.f32.gmra.mxu0 %v2896
        %v2941 = vpop.f32.mrf.mxu0
        %v2942 = vadd.f32 0.0, %v2941
        %2943 = vmatmul.f32.gmra.mxu0 %v2899
        %v2944 = vpop.f32.mrf.mxu0
        %v2945 = vadd.f32 0.0, %v2944
        %2946 = vdwg.mxu0
        %2949 = vrot.lane.b32.xlu0 %v2787, 127
        %v2950 = vpop.permute.xlu0 %2949
        %2951 = vrot.lane.b32.xlu0 %v2790, 127
        %v2952 = vpop.permute.xlu0 %2951
        %2955 = vxpose.xlu0.b32.start [1/16] %v2950, 128
        %2956 = vxpose.xlu0.b32.cont [2/16] %v2952, 128
        %2957 = vxpose.xlu0.b32.cont [3/16] 0.0, 128
        %2958 = vxpose.xlu0.b32.cont [4/16] 0.0, 128
        %2959 = vxpose.xlu0.b32.cont [5/16] 0.0, 128
        %2960 = vxpose.xlu0.b32.cont [6/16] 0.0, 128
        %2961 = vxpose.xlu0.b32.cont [7/16] 0.0, 128
        %2962 = vxpose.xlu0.b32.cont [8/16] 0.0, 128
        %2963 = vxpose.xlu0.b32.cont [9/16] 0.0, 128
        %2964 = vxpose.xlu0.b32.cont [10/16] 0.0, 128
        %2965 = vxpose.xlu0.b32.cont [11/16] 0.0, 128
        %2966 = vxpose.xlu0.b32.cont [12/16] 0.0, 128
        %2967 = vxpose.xlu0.b32.cont [13/16] 0.0, 128
        %2968 = vxpose.xlu0.b32.cont [14/16] 0.0, 128
        %2969 = vxpose.xlu0.b32.cont [15/16] 0.0, 128
        %2970 = vxpose.xlu0.b32.end [16/16] 0.0, 128
        %v2971 = vpop.trf.xlu0
        %v2972 = vpop.trf.xlu0
        %v2973 = vpop.trf.xlu0
        %v2974 = vpop.trf.xlu0
        %v2975 = vpop.trf.xlu0
        %v2976 = vpop.trf.xlu0
        %v2977 = vpop.trf.xlu0
        %v2978 = vpop.trf.xlu0
        %v2979 = vpop.trf.xlu0
        %v2980 = vpop.trf.xlu0
        %v2981 = vpop.trf.xlu0
        %v2982 = vpop.trf.xlu0
        %v2983 = vpop.trf.xlu0
        %v2984 = vpop.trf.xlu0
        %v2985 = vpop.trf.xlu0
        %v2986 = vpop.trf.xlu0
        %2987 = vset.pattern.permute.xlu0 0
        %2988 = vperm.xlu0 %2987, %v2787
        %v2989 = vpop.permute.xlu0 %2988
        %2991 = vset.pattern.permute.xlu0 0
        %2992 = vperm.xlu0 %2991, %v2790
        %v2993 = vpop.permute.xlu0 %2992
        %v2995 = vperm.slane %v2971, 0
        %v2996 = vadd.f32 %v2989, %v2995
        %v2997 = vadd.f32 %v2993, %v2995
        %vm2998 = vcmp.gt.f32.partialorder %v2996, 0.0
        %vm2999 = vcmp.gt.f32.partialorder %v2997, 0.0
        %v3000 = vmul.f32 %v2996, 0.2
        %v3001 = vmul.f32 %v2997, 0.2
        %v3002 = vsel %vm2998, %v2996, %v3000
        %v3003 = vsel %vm2999, %v2997, %v3001
        %v3004 = vsel %vm2851, %v3002, -9e+15
        %v3005 = vsel %vm2852, %v3003, -9e+15
        %v3006 = vsel %vm1659, %v3004, -inf
        %v3007 = vsel %vm1659, %v3005, -inf
        %v3008 = vmax.f32 %v3006, %v3007
        %v3009 = vrot.slane %v3008, 4
        %v3010 = vmax.f32 %v3008, %v3009
        %v3011 = vrot.slane %v3010, 2
        %v3012 = vmax.f32 %v3010, %v3011
        %v3013 = vrot.slane %v3012, 1
        %v3014 = vmax.f32 %v3012, %v3013
        %v3015 = vsub.f32 %v3004, %v3014
        %v3016 = vsub.f32 %v3005, %v3014
        %v3017 = vmul.f32 %v3015, 1.442695
        %v3018 = vpow.pop %v3017
        %v3019 = vmul.f32 %v3016, 1.442695
        %v3020 = vpow.pop %v3019
        %v3021 = vsel %vm1659, %v3018, 0.0
        %v3022 = vsel %vm1659, %v3020, 0.0
        %v3023 = vadd.f32 %v3021, %v3022
        %v3024 = vrot.slane %v3023, 4
        %v3025 = vadd.f32 %v3023, %v3024
        %v3026 = vrot.slane %v3025, 2
        %v3027 = vadd.f32 %v3025, %v3026
        %v3028 = vrot.slane %v3027, 1
        %v3029 = vadd.f32 %v3027, %v3028
        %v3030 = vrcp.pop %v3029
        %v3031 = vmul.f32 %v3029, %v3030
        %v3032 = vsub.f32 1.0, %v3031
        %v3033 = vmul.f32 %v3030, %v3032
        %v3034 = vadd.f32 %v3030, %v3033
        %vm3035 = vweird.f32 %v3029
        %vm3036 = vweird.f32 %v3030
        %vm3037 = vmor %vm3035, %vm3036
        %v3038 = vsel %vm3037, %v3030, %v3034
        %v3039 = vand.u32 2147483647, %v3029
        %vm3040 = vcmp.eq.f32.partialorder %v3039, 8.507059e+37
        %v3041 = vand.u32 %v3029, 2147483648
        %v3042 = vor.u32 1.1754944e-38, %v3041
        %v3043 = vsel %vm3040, %v3042, %v3038
        %v3044 = vmul.f32 %v3018, %v3043
        %v3045 = vmul.f32 %v3020, %v3043
        %v3047 = vsel %vm1659, %v3044, 0
        %v3050 = vsel %vm1659, %v3045, 0
        %3052 = vmatpush.msra.mxu0 0.0
        %3053 = vmatpush.msra.mxu0 0.0
        %3054 = vmatpush.msra.mxu0 0.0
        %3055 = vmatpush.msra.mxu0 0.0
        %3056 = vmatpush.msra.mxu0 0.0
        %3057 = vmatpush.msra.mxu0 0.0
        %3058 = vmatpush.msra.mxu0 0.0
        %3059 = vmatpush.msra.mxu0 0.0
        %3060 = vmatpush.msra.mxu0 0.0
        %3061 = vmatpush.msra.mxu0 0.0
        %3062 = vmatpush.msra.mxu0 0.0
        %3063 = vmatpush.msra.mxu0 0.0
        %3064 = vmatpush.msra.mxu0 0.0
        %3065 = vmatpush.msra.mxu0 0.0
        %3066 = vmatpush.msra.mxu0 %v2671
        %3067 = vmatpush.msra.mxu0 %v2668
        %3068 = vmatmul.f32.gmra.mxu0 %v3047
        %v3069 = vpop.f32.mrf.mxu0
        %v3070 = vadd.f32 0.0, %v3069
        %3071 = vmatmul.f32.gmra.mxu0 %v3050
        %v3072 = vpop.f32.mrf.mxu0
        %v3073 = vadd.f32 0.0, %v3072
        %3074 = vdwg.mxu0
        %3075 = vmatpush.msra.mxu0 0.0
        %3076 = vmatpush.msra.mxu0 0.0
        %3077 = vmatpush.msra.mxu0 0.0
        %3078 = vmatpush.msra.mxu0 0.0
        %3079 = vmatpush.msra.mxu0 0.0
        %3080 = vmatpush.msra.mxu0 0.0
        %3081 = vmatpush.msra.mxu0 0.0
        %3082 = vmatpush.msra.mxu0 0.0
        %3083 = vmatpush.msra.mxu0 0.0
        %3084 = vmatpush.msra.mxu0 0.0
        %3085 = vmatpush.msra.mxu0 0.0
        %3086 = vmatpush.msra.mxu0 0.0
        %3087 = vmatpush.msra.mxu0 0.0
        %3088 = vmatpush.msra.mxu0 0.0
        %3089 = vmatpush.msra.mxu0 %v2700
        %3090 = vmatpush.msra.mxu0 %v2697
        %3091 = vmatmul.f32.gmra.mxu0 %v3047
        %v3092 = vpop.f32.mrf.mxu0
        %v3093 = vadd.f32 0.0, %v3092
        %3094 = vmatmul.f32.gmra.mxu0 %v3050
        %v3095 = vpop.f32.mrf.mxu0
        %v3096 = vadd.f32 0.0, %v3095
        %3097 = vdwg.mxu0
        %vm3098 = vcmp.gt.f32.partialorder %v2919, 0.0
        %vm3099 = vcmp.gt.f32.partialorder %v2942, 0.0
        %vm3100 = vcmp.gt.f32.partialorder %v2922, 0.0
        %vm3101 = vcmp.gt.f32.partialorder %v2945, 0.0
        %vm3102 = vcmp.gt.f32.partialorder %v3070, 0.0
        %vm3103 = vcmp.gt.f32.partialorder %v3093, 0.0
        %vm3104 = vcmp.gt.f32.partialorder %v3073, 0.0
        %vm3105 = vcmp.gt.f32.partialorder %v3096, 0.0
        %v3106 = vmin.f32 %v2919, 0.0
        %v3107 = vmin.f32 %v2942, 0.0
        %v3108 = vmin.f32 %v2922, 0.0
        %v3109 = vmin.f32 %v2945, 0.0
        %v3110 = vmin.f32 %v3070, 0.0
        %v3111 = vmin.f32 %v3093, 0.0
        %v3112 = vmin.f32 %v3073, 0.0
        %v3113 = vmin.f32 %v3096, 0.0
        %v3114 = vmul.f32 %v3106, 1.442695
        %v3115 = vpow.pop %v3114
        %v3116 = vmul.f32 %v3107, 1.442695
        %v3117 = vpow.pop %v3116
        %v3118 = vmul.f32 %v3108, 1.442695
        %v3119 = vpow.pop %v3118
        %v3120 = vmul.f32 %v3109, 1.442695
        %v3121 = vpow.pop %v3120
        %v3122 = vmul.f32 %v3110, 1.442695
        %v3123 = vpow.pop %v3122
        %v3124 = vmul.f32 %v3111, 1.442695
        %v3125 = vpow.pop %v3124
        %v3126 = vmul.f32 %v3112, 1.442695
        %v3127 = vpow.pop %v3126
        %v3128 = vmul.f32 %v3113, 1.442695
        %v3129 = vpow.pop %v3128
        %v3130 = vsub.f32 %v3115, 1.0
        %v3131 = vsub.f32 %v3117, 1.0
        %v3132 = vsub.f32 %v3119, 1.0
        %v3133 = vsub.f32 %v3121, 1.0
        %v3134 = vsub.f32 %v3123, 1.0
        %v3135 = vsub.f32 %v3125, 1.0
        %v3136 = vsub.f32 %v3127, 1.0
        %v3137 = vsub.f32 %v3129, 1.0
        %v3138 = vsel %vm3098, %v2919, %v3130
        %v3139 = vsel %vm3099, %v2942, %v3131
        %v3140 = vsel %vm3100, %v2922, %v3132
        %v3141 = vsel %vm3101, %v2945, %v3133
        %v3142 = vsel %vm3102, %v3070, %v3134
        %v3143 = vsel %vm3103, %v3093, %v3135
        %v3144 = vsel %vm3104, %v3073, %v3136
        %v3145 = vsel %vm3105, %v3096, %v3137
        %v3146 = vld [vmem:[%s1041] sm:$0xff]
        %v3147 = vld [vmem:[%s1041 + $0x8] sm:$0xff]
        %v3148 = vld [vmem:[%s1041 + $0x10] sm:$0xff]
        %v3149 = vld [vmem:[%s1041 + $0x18] sm:$0xff]
        %v3150 = vld [vmem:[%s1041 + $0x20] sm:$0xff]
        %v3151 = vld [vmem:[%s1041 + $0x28] sm:$0xff]
        %v3152 = vld [vmem:[%s1041 + $0x30] sm:$0xff]
        %v3153 = vld [vmem:[%s1041 + $0x38] sm:$0xff]
        %v3154 = vld [vmem:[%s1041 + $0x40] sm:$0xff]
        %v3155 = vld [vmem:[%s1041 + $0x48] sm:$0xff]
        %v3156 = vld [vmem:[%s1041 + $0x50] sm:$0xff]
        %v3157 = vld [vmem:[%s1041 + $0x58] sm:$0xff]
        %v3158 = vld [vmem:[%s1041 + $0x60] sm:$0xff]
        %v3159 = vld [vmem:[%s1041 + $0x68] sm:$0xff]
        %v3160 = vld [vmem:[%s1041 + $0x70] sm:$0xff]
        %v3161 = vld [vmem:[%s1041 + $0x78] sm:$0xff]
        %v3162 = vld [vmem:[%s1041 + $0x80] sm:$0xff]
        %v3163 = vld [vmem:[%s1041 + $0x88] sm:$0xff]
        %v3164 = vld [vmem:[%s1041 + $0x90] sm:$0xff]
        %v3165 = vld [vmem:[%s1041 + $0x98] sm:$0xff]
        %v3166 = vld [vmem:[%s1041 + $0xa0] sm:$0xff]
        %v3167 = vld [vmem:[%s1041 + $0xa8] sm:$0xff]
        %v3168 = vld [vmem:[%s1041 + $0xb0] sm:$0xff]
        %v3169 = vld [vmem:[%s1041 + $0xb8] sm:$0xff]
        %v3170 = vld [vmem:[%s1041 + $0xc0] sm:$0xff]
        %v3171 = vld [vmem:[%s1041 + $0xc8] sm:$0xff]
        %v3172 = vld [vmem:[%s1041 + $0xd0] sm:$0xff]
        %v3173 = vld [vmem:[%s1041 + $0xd8] sm:$0xff]
        %v3174 = vld [vmem:[%s1041 + $0xe0] sm:$0xff]
        %v3175 = vld [vmem:[%s1041 + $0xe8] sm:$0xff]
        %v3176 = vld [vmem:[%s1041 + $0xf0] sm:$0xff]
        %v3177 = vld [vmem:[%s1041 + $0xf8] sm:$0xff]
        %v3178 = vld [vmem:[%s1041 + $0x100] sm:$0xff]
        %v3179 = vld [vmem:[%s1041 + $0x108] sm:$0xff]
        %v3180 = vld [vmem:[%s1041 + $0x110] sm:$0xff]
        %v3181 = vld [vmem:[%s1041 + $0x118] sm:$0xff]
        %v3182 = vld [vmem:[%s1041 + $0x120] sm:$0xff]
        %v3183 = vld [vmem:[%s1041 + $0x128] sm:$0xff]
        %v3184 = vld [vmem:[%s1041 + $0x130] sm:$0xff]
        %v3185 = vld [vmem:[%s1041 + $0x138] sm:$0xff]
        %v3186 = vld [vmem:[%s1041 + $0x140] sm:$0xff]
        %v3187 = vld [vmem:[%s1041 + $0x148] sm:$0xff]
        %v3188 = vld [vmem:[%s1041 + $0x150] sm:$0xff]
        %v3189 = vld [vmem:[%s1041 + $0x158] sm:$0xff]
        %v3190 = vld [vmem:[%s1041 + $0x160] sm:$0xff]
        %v3191 = vld [vmem:[%s1041 + $0x168] sm:$0xff]
        %v3192 = vld [vmem:[%s1041 + $0x170] sm:$0xff]
        %v3193 = vld [vmem:[%s1041 + $0x178] sm:$0xff]
        %v3194 = vld [vmem:[%s1041 + $0x180] sm:$0xff]
        %v3195 = vld [vmem:[%s1041 + $0x188] sm:$0xff]
        %v3196 = vld [vmem:[%s1041 + $0x190] sm:$0xff]
        %v3197 = vld [vmem:[%s1041 + $0x198] sm:$0xff]
        %v3198 = vld [vmem:[%s1041 + $0x1a0] sm:$0xff]
        %v3199 = vld [vmem:[%s1041 + $0x1a8] sm:$0xff]
        %v3200 = vld [vmem:[%s1041 + $0x1b0] sm:$0xff]
        %v3201 = vld [vmem:[%s1041 + $0x1b8] sm:$0xff]
        %v3202 = vld [vmem:[%s1041 + $0x1c0] sm:$0xff]
        %v3203 = vld [vmem:[%s1041 + $0x1c8] sm:$0xff]
        %v3204 = vld [vmem:[%s1041 + $0x1d0] sm:$0xff]
        %v3205 = vld [vmem:[%s1041 + $0x1d8] sm:$0xff]
        %v3206 = vld [vmem:[%s1041 + $0x1e0] sm:$0xff]
        %v3207 = vld [vmem:[%s1041 + $0x1e8] sm:$0xff]
        %v3208 = vld [vmem:[%s1041 + $0x1f0] sm:$0xff]
        %v3209 = vld [vmem:[%s1041 + $0x1f8] sm:$0xff]
        %v3210 = vld [vmem:[%s1041 + $0x200] sm:$0xff]
        %v3211 = vld [vmem:[%s1041 + $0x208] sm:$0xff]
        %v3212 = vld [vmem:[%s1041 + $0x210] sm:$0xff]
        %v3213 = vld [vmem:[%s1041 + $0x218] sm:$0xff]
        %v3214 = vld [vmem:[%s1041 + $0x220] sm:$0xff]
        %v3215 = vld [vmem:[%s1041 + $0x228] sm:$0xff]
        %v3216 = vld [vmem:[%s1041 + $0x230] sm:$0xff]
        %v3217 = vld [vmem:[%s1041 + $0x238] sm:$0xff]
        %v3218 = vld [vmem:[%s1041 + $0x240] sm:$0xff]
        %v3219 = vld [vmem:[%s1041 + $0x248] sm:$0xff]
        %v3220 = vld [vmem:[%s1041 + $0x250] sm:$0xff]
        %v3221 = vld [vmem:[%s1041 + $0x258] sm:$0xff]
        %v3222 = vld [vmem:[%s1041 + $0x260] sm:$0xff]
        %v3223 = vld [vmem:[%s1041 + $0x268] sm:$0xff]
        %v3224 = vld [vmem:[%s1041 + $0x270] sm:$0xff]
        %v3225 = vld [vmem:[%s1041 + $0x278] sm:$0xff]
        %v3226 = vld [vmem:[%s1041 + $0x280] sm:$0xff]
        %v3227 = vld [vmem:[%s1041 + $0x288] sm:$0xff]
        %v3228 = vld [vmem:[%s1041 + $0x290] sm:$0xff]
        %v3229 = vld [vmem:[%s1041 + $0x298] sm:$0xff]
        %v3230 = vld [vmem:[%s1041 + $0x2a0] sm:$0xff]
        %v3231 = vld [vmem:[%s1041 + $0x2a8] sm:$0xff]
        %v3232 = vld [vmem:[%s1041 + $0x2b0] sm:$0xff]
        %v3233 = vld [vmem:[%s1041 + $0x2b8] sm:$0xff]
        %v3234 = vld [vmem:[%s1041 + $0x2c0] sm:$0xff]
        %v3235 = vld [vmem:[%s1041 + $0x2c8] sm:$0xff]
        %v3236 = vld [vmem:[%s1041 + $0x2d0] sm:$0xff]
        %v3237 = vld [vmem:[%s1041 + $0x2d8] sm:$0xff]
        %v3238 = vld [vmem:[%s1041 + $0x2e0] sm:$0xff]
        %v3239 = vld [vmem:[%s1041 + $0x2e8] sm:$0xff]
        %v3240 = vld [vmem:[%s1041 + $0x2f0] sm:$0xff]
        %v3241 = vld [vmem:[%s1041 + $0x2f8] sm:$0xff]
        %v3242 = vld [vmem:[%s1041 + $0x300] sm:$0xff]
        %v3243 = vld [vmem:[%s1041 + $0x308] sm:$0xff]
        %v3244 = vld [vmem:[%s1041 + $0x310] sm:$0xff]
        %v3245 = vld [vmem:[%s1041 + $0x318] sm:$0xff]
        %v3246 = vld [vmem:[%s1041 + $0x320] sm:$0xff]
        %v3247 = vld [vmem:[%s1041 + $0x328] sm:$0xff]
        %v3248 = vld [vmem:[%s1041 + $0x330] sm:$0xff]
        %v3249 = vld [vmem:[%s1041 + $0x338] sm:$0xff]
        %v3250 = vld [vmem:[%s1041 + $0x340] sm:$0xff]
        %v3251 = vld [vmem:[%s1041 + $0x348] sm:$0xff]
        %v3252 = vld [vmem:[%s1041 + $0x350] sm:$0xff]
        %v3253 = vld [vmem:[%s1041 + $0x358] sm:$0xff]
        %v3254 = vld [vmem:[%s1041 + $0x360] sm:$0xff]
        %v3255 = vld [vmem:[%s1041 + $0x368] sm:$0xff]
        %v3256 = vld [vmem:[%s1041 + $0x370] sm:$0xff]
        %v3257 = vld [vmem:[%s1041 + $0x378] sm:$0xff]
        %v3258 = vld [vmem:[%s1041 + $0x380] sm:$0xff]
        %v3259 = vld [vmem:[%s1041 + $0x388] sm:$0xff]
        %v3260 = vld [vmem:[%s1041 + $0x390] sm:$0xff]
        %v3261 = vld [vmem:[%s1041 + $0x398] sm:$0xff]
        %v3262 = vld [vmem:[%s1041 + $0x3a0] sm:$0xff]
        %v3263 = vld [vmem:[%s1041 + $0x3a8] sm:$0xff]
        %v3264 = vld [vmem:[%s1041 + $0x3b0] sm:$0xff]
        %v3265 = vld [vmem:[%s1041 + $0x3b8] sm:$0xff]
        %v3266 = vld [vmem:[%s1041 + $0x3c0] sm:$0xff]
        %v3267 = vld [vmem:[%s1041 + $0x3c8] sm:$0xff]
        %v3268 = vld [vmem:[%s1041 + $0x3d0] sm:$0xff]
        %v3269 = vld [vmem:[%s1041 + $0x3d8] sm:$0xff]
        %v3270 = vld [vmem:[%s1041 + $0x3e0] sm:$0xff]
        %v3271 = vld [vmem:[%s1041 + $0x3e8] sm:$0xff]
        %v3272 = vld [vmem:[%s1041 + $0x3f0] sm:$0xff]
        %v3273 = vld [vmem:[%s1041 + $0x3f8] sm:$0xff]
        %v3274 = vld [vmem:[%s1236] sm:$0x3]
        %v3276 = vperm.slane %v3274, 0
        %v3277 = vperm.slane %v3274, 1
        %3280 = vmatpush.msra.mxu0 %v3176
        %3281 = vmatpush.msra.mxu0 %v3174
        %3282 = vmatpush.msra.mxu0 %v3172
        %3283 = vmatpush.msra.mxu0 %v3170
        %3284 = vmatpush.msra.mxu0 %v3168
        %3285 = vmatpush.msra.mxu0 %v3166
        %3286 = vmatpush.msra.mxu0 %v3164
        %3287 = vmatpush.msra.mxu0 %v3162
        %3288 = vmatpush.msra.mxu0 %v3160
        %3289 = vmatpush.msra.mxu0 %v3158
        %3290 = vmatpush.msra.mxu0 %v3156
        %3291 = vmatpush.msra.mxu0 %v3154
        %3292 = vmatpush.msra.mxu0 %v3152
        %3293 = vmatpush.msra.mxu0 %v3150
        %3294 = vmatpush.msra.mxu0 %v3148
        %3295 = vmatpush.msra.mxu0 %v3146
        %3296 = vmatmul.f32.gmra.mxu0 %v3138
        %v3297 = vpop.f32.mrf.mxu0
        %v3298 = vadd.f32 %v3276, %v3297
        %3299 = vmatmul.f32.gmra.mxu0 %v3142
        %v3300 = vpop.f32.mrf.mxu0
        %v3301 = vadd.f32 %v3276, %v3300
        %3302 = vdwg.mxu0
        %3303 = vmatpush.msra.mxu0 %v3208
        %3304 = vmatpush.msra.mxu0 %v3206
        %3305 = vmatpush.msra.mxu0 %v3204
        %3306 = vmatpush.msra.mxu0 %v3202
        %3307 = vmatpush.msra.mxu0 %v3200
        %3308 = vmatpush.msra.mxu0 %v3198
        %3309 = vmatpush.msra.mxu0 %v3196
        %3310 = vmatpush.msra.mxu0 %v3194
        %3311 = vmatpush.msra.mxu0 %v3192
        %3312 = vmatpush.msra.mxu0 %v3190
        %3313 = vmatpush.msra.mxu0 %v3188
        %3314 = vmatpush.msra.mxu0 %v3186
        %3315 = vmatpush.msra.mxu0 %v3184
        %3316 = vmatpush.msra.mxu0 %v3182
        %3317 = vmatpush.msra.mxu0 %v3180
        %3318 = vmatpush.msra.mxu0 %v3178
        %3319 = vmatmul.f32.gmra.mxu0 %v3139
        %v3320 = vpop.f32.mrf.mxu0
        %v3321 = vadd.f32 %v3298, %v3320
        %3322 = vmatmul.f32.gmra.mxu0 %v3143
        %v3323 = vpop.f32.mrf.mxu0
        %v3324 = vadd.f32 %v3301, %v3323
        %3325 = vdwg.mxu0
        %3326 = vmatpush.msra.mxu0 %v3240
        %3327 = vmatpush.msra.mxu0 %v3238
        %3328 = vmatpush.msra.mxu0 %v3236
        %3329 = vmatpush.msra.mxu0 %v3234
        %3330 = vmatpush.msra.mxu0 %v3232
        %3331 = vmatpush.msra.mxu0 %v3230
        %3332 = vmatpush.msra.mxu0 %v3228
        %3333 = vmatpush.msra.mxu0 %v3226
        %3334 = vmatpush.msra.mxu0 %v3224
        %3335 = vmatpush.msra.mxu0 %v3222
        %3336 = vmatpush.msra.mxu0 %v3220
        %3337 = vmatpush.msra.mxu0 %v3218
        %3338 = vmatpush.msra.mxu0 %v3216
        %3339 = vmatpush.msra.mxu0 %v3214
        %3340 = vmatpush.msra.mxu0 %v3212
        %3341 = vmatpush.msra.mxu0 %v3210
        %3342 = vmatmul.f32.gmra.mxu0 %v3140
        %v3343 = vpop.f32.mrf.mxu0
        %v3344 = vadd.f32 %v3321, %v3343
        %3345 = vmatmul.f32.gmra.mxu0 %v3144
        %v3346 = vpop.f32.mrf.mxu0
        %v3347 = vadd.f32 %v3324, %v3346
        %3348 = vdwg.mxu0
        %3349 = vmatpush.msra.mxu0 %v3272
        %3350 = vmatpush.msra.mxu0 %v3270
        %3351 = vmatpush.msra.mxu0 %v3268
        %3352 = vmatpush.msra.mxu0 %v3266
        %3353 = vmatpush.msra.mxu0 %v3264
        %3354 = vmatpush.msra.mxu0 %v3262
        %3355 = vmatpush.msra.mxu0 %v3260
        %3356 = vmatpush.msra.mxu0 %v3258
        %3357 = vmatpush.msra.mxu0 %v3256
        %3358 = vmatpush.msra.mxu0 %v3254
        %3359 = vmatpush.msra.mxu0 %v3252
        %3360 = vmatpush.msra.mxu0 %v3250
        %3361 = vmatpush.msra.mxu0 %v3248
        %3362 = vmatpush.msra.mxu0 %v3246
        %3363 = vmatpush.msra.mxu0 %v3244
        %3364 = vmatpush.msra.mxu0 %v3242
        %3365 = vmatmul.f32.gmra.mxu0 %v3141
        %v3366 = vpop.f32.mrf.mxu0
        %v3367 = vadd.f32 %v3344, %v3366
        %3368 = vmatmul.f32.gmra.mxu0 %v3145
        %v3369 = vpop.f32.mrf.mxu0
        %v3370 = vadd.f32 %v3347, %v3369
        %3371 = vdwg.mxu0
        %3372 = vmatpush.msra.mxu0 %v3177
        %3373 = vmatpush.msra.mxu0 %v3175
        %3374 = vmatpush.msra.mxu0 %v3173
        %3375 = vmatpush.msra.mxu0 %v3171
        %3376 = vmatpush.msra.mxu0 %v3169
        %3377 = vmatpush.msra.mxu0 %v3167
        %3378 = vmatpush.msra.mxu0 %v3165
        %3379 = vmatpush.msra.mxu0 %v3163
        %3380 = vmatpush.msra.mxu0 %v3161
        %3381 = vmatpush.msra.mxu0 %v3159
        %3382 = vmatpush.msra.mxu0 %v3157
        %3383 = vmatpush.msra.mxu0 %v3155
        %3384 = vmatpush.msra.mxu0 %v3153
        %3385 = vmatpush.msra.mxu0 %v3151
        %3386 = vmatpush.msra.mxu0 %v3149
        %3387 = vmatpush.msra.mxu0 %v3147
        %3388 = vmatmul.f32.gmra.mxu0 %v3138
        %v3389 = vpop.f32.mrf.mxu0
        %v3390 = vadd.f32 %v3277, %v3389
        %3391 = vmatmul.f32.gmra.mxu0 %v3142
        %v3392 = vpop.f32.mrf.mxu0
        %v3393 = vadd.f32 %v3277, %v3392
        %3394 = vdwg.mxu0
        %3395 = vmatpush.msra.mxu0 %v3209
        %3396 = vmatpush.msra.mxu0 %v3207
        %3397 = vmatpush.msra.mxu0 %v3205
        %3398 = vmatpush.msra.mxu0 %v3203
        %3399 = vmatpush.msra.mxu0 %v3201
        %3400 = vmatpush.msra.mxu0 %v3199
        %3401 = vmatpush.msra.mxu0 %v3197
        %3402 = vmatpush.msra.mxu0 %v3195
        %3403 = vmatpush.msra.mxu0 %v3193
        %3404 = vmatpush.msra.mxu0 %v3191
        %3405 = vmatpush.msra.mxu0 %v3189
        %3406 = vmatpush.msra.mxu0 %v3187
        %3407 = vmatpush.msra.mxu0 %v3185
        %3408 = vmatpush.msra.mxu0 %v3183
        %3409 = vmatpush.msra.mxu0 %v3181
        %3410 = vmatpush.msra.mxu0 %v3179
        %3411 = vmatmul.f32.gmra.mxu0 %v3139
        %v3412 = vpop.f32.mrf.mxu0
        %v3413 = vadd.f32 %v3390, %v3412
        %3414 = vmatmul.f32.gmra.mxu0 %v3143
        %v3415 = vpop.f32.mrf.mxu0
        %v3416 = vadd.f32 %v3393, %v3415
        %3417 = vdwg.mxu0
        %3418 = vmatpush.msra.mxu0 %v3241
        %3419 = vmatpush.msra.mxu0 %v3239
        %3420 = vmatpush.msra.mxu0 %v3237
        %3421 = vmatpush.msra.mxu0 %v3235
        %3422 = vmatpush.msra.mxu0 %v3233
        %3423 = vmatpush.msra.mxu0 %v3231
        %3424 = vmatpush.msra.mxu0 %v3229
        %3425 = vmatpush.msra.mxu0 %v3227
        %3426 = vmatpush.msra.mxu0 %v3225
        %3427 = vmatpush.msra.mxu0 %v3223
        %3428 = vmatpush.msra.mxu0 %v3221
        %3429 = vmatpush.msra.mxu0 %v3219
        %3430 = vmatpush.msra.mxu0 %v3217
        %3431 = vmatpush.msra.mxu0 %v3215
        %3432 = vmatpush.msra.mxu0 %v3213
        %3433 = vmatpush.msra.mxu0 %v3211
        %3434 = vmatmul.f32.gmra.mxu0 %v3140
        %v3435 = vpop.f32.mrf.mxu0
        %v3436 = vadd.f32 %v3413, %v3435
        %3437 = vmatmul.f32.gmra.mxu0 %v3144
        %v3438 = vpop.f32.mrf.mxu0
        %v3439 = vadd.f32 %v3416, %v3438
        %3440 = vdwg.mxu0
        %3441 = vmatpush.msra.mxu0 %v3273
        %3442 = vmatpush.msra.mxu0 %v3271
        %3443 = vmatpush.msra.mxu0 %v3269
        %3444 = vmatpush.msra.mxu0 %v3267
        %3445 = vmatpush.msra.mxu0 %v3265
        %3446 = vmatpush.msra.mxu0 %v3263
        %3447 = vmatpush.msra.mxu0 %v3261
        %3448 = vmatpush.msra.mxu0 %v3259
        %3449 = vmatpush.msra.mxu0 %v3257
        %3450 = vmatpush.msra.mxu0 %v3255
        %3451 = vmatpush.msra.mxu0 %v3253
        %3452 = vmatpush.msra.mxu0 %v3251
        %3453 = vmatpush.msra.mxu0 %v3249
        %3454 = vmatpush.msra.mxu0 %v3247
        %3455 = vmatpush.msra.mxu0 %v3245
        %3456 = vmatpush.msra.mxu0 %v3243
        %3457 = vmatmul.f32.gmra.mxu0 %v3141
        %v3458 = vpop.f32.mrf.mxu0
        %v3459 = vadd.f32 %v3436, %v3458
        %3460 = vmatmul.f32.gmra.mxu0 %v3145
        %v3461 = vpop.f32.mrf.mxu0
        %v3462 = vadd.f32 %v3439, %v3461
        %3463 = vdwg.mxu0
        %v3464 = vmul.f32 %v3367, 0.5
        %v3465 = vmul.f32 %v3459, 0.5
        %v3466 = vmul.f32 %v3370, 0.5
        %v3467 = vmul.f32 %v3462, 0.5
        %v3468 = vmul.f32 %v3367, 0.044715
        %v3469 = vmul.f32 %v3459, 0.044715
        %v3470 = vmul.f32 %v3370, 0.044715
        %v3471 = vmul.f32 %v3462, 0.044715
        %v3472 = vmul.f32 %v3468, %v3367
        %v3473 = vmul.f32 %v3469, %v3459
        %v3474 = vmul.f32 %v3470, %v3370
        %v3475 = vmul.f32 %v3471, %v3462
        %v3476 = vmul.f32 %v3472, %v3367
        %v3477 = vmul.f32 %v3473, %v3459
        %v3478 = vmul.f32 %v3474, %v3370
        %v3479 = vmul.f32 %v3475, %v3462
        %v3480 = vadd.f32 %v3367, %v3476
        %v3481 = vadd.f32 %v3459, %v3477
        %v3482 = vadd.f32 %v3370, %v3478
        %v3483 = vadd.f32 %v3462, %v3479
        %v3484 = vmul.f32 %v3480, 0.7978846
        %v3485 = vmul.f32 %v3481, 0.7978846
        %v3486 = vmul.f32 %v3482, 0.7978846
        %v3487 = vmul.f32 %v3483, 0.7978846
        %v3488 = vtanh.pop %v3484
        %v3489 = vtanh.pop %v3485
        %v3490 = vtanh.pop %v3486
        %v3491 = vtanh.pop %v3487
        %v3492 = vadd.f32 %v3488, 1.0
        %v3493 = vadd.f32 %v3489, 1.0
        %v3494 = vadd.f32 %v3490, 1.0
        %v3495 = vadd.f32 %v3491, 1.0
        %v3496 = vmul.f32 %v3464, %v3492
        %v3497 = vmul.f32 %v3465, %v3493
        %v3498 = vmul.f32 %v3466, %v3494
        %v3499 = vmul.f32 %v3467, %v3495
        %v3500 = vld [vmem:[%s1241] sm:$0xff]
        %v3501 = vld [vmem:[%s1241 + $0x8] sm:$0xff]
        %v3502 = vld [vmem:[%s1241 + $0x10] sm:$0xff]
        %v3503 = vld [vmem:[%s1241 + $0x18] sm:$0xff]
        %v3504 = vld [vmem:[%s1241 + $0x20] sm:$0xff]
        %v3505 = vld [vmem:[%s1241 + $0x28] sm:$0xff]
        %v3506 = vld [vmem:[%s1241 + $0x30] sm:$0xff]
        %v3507 = vld [vmem:[%s1241 + $0x38] sm:$0xff]
        %v3508 = vld [vmem:[%s1241 + $0x40] sm:$0xff]
        %v3509 = vld [vmem:[%s1241 + $0x48] sm:$0xff]
        %v3510 = vld [vmem:[%s1241 + $0x50] sm:$0xff]
        %v3511 = vld [vmem:[%s1241 + $0x58] sm:$0xff]
        %v3512 = vld [vmem:[%s1241 + $0x60] sm:$0xff]
        %v3513 = vld [vmem:[%s1241 + $0x68] sm:$0xff]
        %v3514 = vld [vmem:[%s1241 + $0x70] sm:$0xff]
        %v3515 = vld [vmem:[%s1241 + $0x78] sm:$0xff]
        %v3516 = vld [vmem:[%s1241 + $0x80] sm:$0xff]
        %v3517 = vld [vmem:[%s1241 + $0x88] sm:$0xff]
        %v3518 = vld [vmem:[%s1241 + $0x90] sm:$0xff]
        %v3519 = vld [vmem:[%s1241 + $0x98] sm:$0xff]
        %v3520 = vld [vmem:[%s1241 + $0xa0] sm:$0xff]
        %v3521 = vld [vmem:[%s1241 + $0xa8] sm:$0xff]
        %v3522 = vld [vmem:[%s1241 + $0xb0] sm:$0xff]
        %v3523 = vld [vmem:[%s1241 + $0xb8] sm:$0xff]
        %v3524 = vld [vmem:[%s1241 + $0xc0] sm:$0xff]
        %v3525 = vld [vmem:[%s1241 + $0xc8] sm:$0xff]
        %v3526 = vld [vmem:[%s1241 + $0xd0] sm:$0xff]
        %v3527 = vld [vmem:[%s1241 + $0xd8] sm:$0xff]
        %v3528 = vld [vmem:[%s1241 + $0xe0] sm:$0xff]
        %v3529 = vld [vmem:[%s1241 + $0xe8] sm:$0xff]
        %v3530 = vld [vmem:[%s1241 + $0xf0] sm:$0xff]
        %v3531 = vld [vmem:[%s1241 + $0xf8] sm:$0xff]
        %v3532 = vld [vmem:[%s1244] sm:$0x1]
        %v3534 = vperm.slane %v3532, 0
        %3536 = vmatpush.msra.mxu0 %v3515
        %3537 = vmatpush.msra.mxu0 %v3514
        %3538 = vmatpush.msra.mxu0 %v3513
        %3539 = vmatpush.msra.mxu0 %v3512
        %3540 = vmatpush.msra.mxu0 %v3511
        %3541 = vmatpush.msra.mxu0 %v3510
        %3542 = vmatpush.msra.mxu0 %v3509
        %3543 = vmatpush.msra.mxu0 %v3508
        %3544 = vmatpush.msra.mxu0 %v3507
        %3545 = vmatpush.msra.mxu0 %v3506
        %3546 = vmatpush.msra.mxu0 %v3505
        %3547 = vmatpush.msra.mxu0 %v3504
        %3548 = vmatpush.msra.mxu0 %v3503
        %3549 = vmatpush.msra.mxu0 %v3502
        %3550 = vmatpush.msra.mxu0 %v3501
        %3551 = vmatpush.msra.mxu0 %v3500
        %3552 = vmatmul.f32.gmra.mxu0 %v3496
        %v3553 = vpop.f32.mrf.mxu0
        %v3554 = vadd.f32 %v3534, %v3553
        %3555 = vmatmul.f32.gmra.mxu0 %v3498
        %v3556 = vpop.f32.mrf.mxu0
        %v3557 = vadd.f32 %v3534, %v3556
        %3558 = vdwg.mxu0
        %3559 = vmatpush.msra.mxu0 %v3531
        %3560 = vmatpush.msra.mxu0 %v3530
        %3561 = vmatpush.msra.mxu0 %v3529
        %3562 = vmatpush.msra.mxu0 %v3528
        %3563 = vmatpush.msra.mxu0 %v3527
        %3564 = vmatpush.msra.mxu0 %v3526
        %3565 = vmatpush.msra.mxu0 %v3525
        %3566 = vmatpush.msra.mxu0 %v3524
        %3567 = vmatpush.msra.mxu0 %v3523
        %3568 = vmatpush.msra.mxu0 %v3522
        %3569 = vmatpush.msra.mxu0 %v3521
        %3570 = vmatpush.msra.mxu0 %v3520
        %3571 = vmatpush.msra.mxu0 %v3519
        %3572 = vmatpush.msra.mxu0 %v3518
        %3573 = vmatpush.msra.mxu0 %v3517
        %3574 = vmatpush.msra.mxu0 %v3516
        %3575 = vmatmul.f32.gmra.mxu0 %v3497
        %v3576 = vpop.f32.mrf.mxu0
        %v3577 = vadd.f32 %v3554, %v3576
        %3578 = vmatmul.f32.gmra.mxu0 %v3499
        %v3579 = vpop.f32.mrf.mxu0
        %v3580 = vadd.f32 %v3557, %v3579
        %3581 = vdwg.mxu0
        %v3582 = vand.u32 2147483647, %v3577
        %v3583 = vand.u32 2147483647, %v3580
        %v3584 = vadd.f32 %v2616, %v3582
        %v3585 = vadd.f32 %v2617, %v3583
        %v3586 = vsel %vm1659, %v3584, 0.0
        %3587 = vadd.xlane.f32.xlu0 %v3586
        %v3588 = vpop.xlane.xlu0 %3587
        %v3589 = vsel %vm1659, %v3585, 0.0
        %3590 = vadd.xlane.f32.xlu0 %v3589
        %v3591 = vpop.xlane.xlu0 %3590
        %v3592 = vrcp.pop 16.0
        %v3593 = vmul.f32 16.0, %v3592
        %v3594 = vsub.f32 1.0, %v3593
        %v3595 = vmul.f32 %v3592, %v3594
        %v3596 = vadd.f32 %v3592, %v3595
        %vm3597 = vweird.f32 %v3592
        %v3598 = vsel %vm3597, %v3592, %v3596
        %v3599 = vmul.f32 %v3588, %v3598
        %v3600 = vmul.f32 %v3591, %v3598
        %v3601 = vsub.f32 %v3584, %v3599
        %v3602 = vsub.f32 %v3585, %v3600
        %v3603 = vmul.f32 %v3601, %v3601
        %v3604 = vmul.f32 %v3602, %v3602
        %v3605 = vsel %vm1659, %v3603, 0.0
        %3606 = vadd.xlane.f32.xlu0 %v3605
        %v3607 = vpop.xlane.xlu0 %3606
        %v3608 = vsel %vm1659, %v3604, 0.0
        %3609 = vadd.xlane.f32.xlu0 %v3608
        %v3610 = vpop.xlane.xlu0 %3609
        %v3611 = vmul.f32 %v3607, %v3598
        %v3612 = vmul.f32 %v3610, %v3598
        %v3613 = vld [vmem:[%s1248] sm:$0x3]
        %v3614 = vadd.f32 %v3611, 1e-05
        %v3615 = vadd.f32 %v3612, 1e-05
        %v3616 = vrsqrt.pop %v3614
        %v3617 = vmul.f32 %v3616, %v3614
        %v3618 = vmul.f32 %v3617, %v3616
        %v3619 = vmul.f32 0.5, %v3618
        %v3620 = vsub.f32 1.5, %v3619
        %v3621 = vmul.f32 %v3616, %v3620
        %vm3622 = vweird.f32 %v3614
        %vm3623 = vweird.f32 %v3616
        %vm3624 = vmor %vm3622, %vm3623
        %v3625 = vsel %vm3624, %v3616, %v3621
        %v3626 = vrsqrt.pop %v3615
        %v3627 = vmul.f32 %v3626, %v3615
        %v3628 = vmul.f32 %v3627, %v3626
        %v3629 = vmul.f32 0.5, %v3628
        %v3630 = vsub.f32 1.5, %v3629
        %v3631 = vmul.f32 %v3626, %v3630
        %vm3632 = vweird.f32 %v3615
        %vm3633 = vweird.f32 %v3626
        %vm3634 = vmor %vm3632, %vm3633
        %v3635 = vsel %vm3634, %v3626, %v3631
        %v3636 = vmul.f32 %v3601, %v3625
        %v3637 = vmul.f32 %v3602, %v3635
        %v3638 = vperm.slane %v3613, 0
        %v3639 = vmul.f32 %v3636, %v3638
        %v3640 = vmul.f32 %v3637, %v3638
        %v3641 = vperm.slane %v3613, 1
        %v3642 = vadd.f32 %v3639, %v3641
        %v3643 = vadd.f32 %v3640, %v3641
        %3644 = vst.msk [vmem:[#allocation4] sm:$0xff] %vm1495, %v1394
        %3645 = vst.msk [vmem:[#allocation4 + $0x8] sm:$0xff] %vm1495, %v1395
        %p3646 = scmp.lt.s32.totalorder %s39, 0
        %s3647 = ssub.s32 0, %s39
        %s3648 = scalar_select %p3646, %s3647, %s39
        %s3649 = sand.u32 %s3648, 1
        %s3650 = ssub.s32 0, %s3649
        %s3651 = scalar_select %p3646, %s3650, %s3649
        %p3652 = scmp.ne.s32.totalorder %s3651, 0
        %p3653 = scmp.lt.s32.totalorder %s3651, 0
        %p3654 = pnand %p3653, %p3652
        %p3655 = pneg %p3654
        %s3656 = sadd.s32 %s3651, 2
        %s3657 = scalar_select %p3655, %s3656, %s3651
        %s3658 = smul.u32 %s3657, 16
        %s3659 = scalar_lea.vmem [#allocation3], %s3658
        %v3660 = vld [vmem:[%s3659] sm:$0xff]
        %v3661 = vld [vmem:[%s3659 + $0x8] sm:$0xff]
        %v3662 = vld [vmem:[%s1265] sm:$0xff]
        %v3663 = vld [vmem:[%s1265 + $0x8] sm:$0xff]
        %v3664 = vld [vmem:[%s1265 + $0x10] sm:$0xff]
        %v3665 = vld [vmem:[%s1265 + $0x18] sm:$0xff]
        %v3666 = vld [vmem:[%s1265 + $0x20] sm:$0xff]
        %v3667 = vld [vmem:[%s1265 + $0x28] sm:$0xff]
        %v3668 = vld [vmem:[%s1265 + $0x30] sm:$0xff]
        %v3669 = vld [vmem:[%s1265 + $0x38] sm:$0xff]
        %v3670 = vld [vmem:[%s1265 + $0x40] sm:$0xff]
        %v3671 = vld [vmem:[%s1265 + $0x48] sm:$0xff]
        %v3672 = vld [vmem:[%s1265 + $0x50] sm:$0xff]
        %v3673 = vld [vmem:[%s1265 + $0x58] sm:$0xff]
        %v3674 = vld [vmem:[%s1294] sm:$0xff]
        %v3675 = vld [vmem:[%s1294 + $0x8] sm:$0xff]
        %v3676 = vld [vmem:[%s1294 + $0x10] sm:$0xff]
        %v3677 = vld [vmem:[%s1294 + $0x18] sm:$0xff]
        %v3678 = vld [vmem:[%s1294 + $0x20] sm:$0xff]
        %v3679 = vld [vmem:[%s1294 + $0x28] sm:$0xff]
        %v3680 = vld [vmem:[%s1294 + $0x30] sm:$0xff]
        %v3681 = vld [vmem:[%s1294 + $0x38] sm:$0xff]
        %v3682 = vld [vmem:[%s1323] sm:$0xff]
        %v3683 = vld [vmem:[%s1323 + $0x8] sm:$0xff]
        %v3684 = vld [vmem:[%s1323 + $0x10] sm:$0xff]
        %v3685 = vld [vmem:[%s1323 + $0x18] sm:$0xff]
        %v3686 = vld [vmem:[%s1352] sm:$0x3]
        %v3687 = vld [vmem:[%s1352 + $0x2] sm:$0x3]
        %v3688 = vld [vmem:[%s1352 + $0x4] sm:$0x3]
        %v3689 = vld [vmem:[%s1381] sm:$0xff]
        %v3690 = vld [vmem:[%s1381 + $0x8] sm:$0xff]
        %v3691 = vld [vmem:[%s1381 + $0x10] sm:$0xff]
        %v3693 = vsel %vm1659, %v3642, 0
        %v3696 = vsel %vm1659, %v3643, 0
        %3698 = vmatpush.msra.mxu0 0.0
        %3699 = vmatpush.msra.mxu0 0.0
        %3700 = vmatpush.msra.mxu0 0.0
        %3701 = vmatpush.msra.mxu0 0.0
        %3702 = vmatpush.msra.mxu0 0.0
        %3703 = vmatpush.msra.mxu0 0.0
        %3704 = vmatpush.msra.mxu0 0.0
        %3705 = vmatpush.msra.mxu0 0.0
        %3706 = vmatpush.msra.mxu0 0.0
        %3707 = vmatpush.msra.mxu0 0.0
        %3708 = vmatpush.msra.mxu0 0.0
        %3709 = vmatpush.msra.mxu0 0.0
        %3710 = vmatpush.msra.mxu0 0.0
        %3711 = vmatpush.msra.mxu0 0.0
        %3712 = vmatpush.msra.mxu0 %v3668
        %3713 = vmatpush.msra.mxu0 %v3662
        %3714 = vmatmul.f32.gmra.mxu0 %v3693
        %v3715 = vpop.f32.mrf.mxu0
        %v3716 = vadd.f32 0.0, %v3715
        %3717 = vmatmul.f32.gmra.mxu0 %v3696
        %v3718 = vpop.f32.mrf.mxu0
        %v3719 = vadd.f32 0.0, %v3718
        %3720 = vdwg.mxu0
        %3721 = vmatpush.msra.mxu0 0.0
        %3722 = vmatpush.msra.mxu0 0.0
        %3723 = vmatpush.msra.mxu0 0.0
        %3724 = vmatpush.msra.mxu0 0.0
        %3725 = vmatpush.msra.mxu0 0.0
        %3726 = vmatpush.msra.mxu0 0.0
        %3727 = vmatpush.msra.mxu0 0.0
        %3728 = vmatpush.msra.mxu0 0.0
        %3729 = vmatpush.msra.mxu0 0.0
        %3730 = vmatpush.msra.mxu0 0.0
        %3731 = vmatpush.msra.mxu0 0.0
        %3732 = vmatpush.msra.mxu0 0.0
        %3733 = vmatpush.msra.mxu0 0.0
        %3734 = vmatpush.msra.mxu0 0.0
        %3735 = vmatpush.msra.mxu0 %v3669
        %3736 = vmatpush.msra.mxu0 %v3663
        %3737 = vmatmul.f32.gmra.mxu0 %v3693
        %v3738 = vpop.f32.mrf.mxu0
        %v3739 = vadd.f32 0.0, %v3738
        %3740 = vmatmul.f32.gmra.mxu0 %v3696
        %v3741 = vpop.f32.mrf.mxu0
        %v3742 = vadd.f32 0.0, %v3741
        %3743 = vdwg.mxu0
        %3744 = vmatpush.msra.mxu0 0.0
        %3745 = vmatpush.msra.mxu0 0.0
        %3746 = vmatpush.msra.mxu0 0.0
        %3747 = vmatpush.msra.mxu0 0.0
        %3748 = vmatpush.msra.mxu0 0.0
        %3749 = vmatpush.msra.mxu0 0.0
        %3750 = vmatpush.msra.mxu0 0.0
        %3751 = vmatpush.msra.mxu0 0.0
        %3752 = vmatpush.msra.mxu0 0.0
        %3753 = vmatpush.msra.mxu0 0.0
        %3754 = vmatpush.msra.mxu0 0.0
        %3755 = vmatpush.msra.mxu0 0.0
        %3756 = vmatpush.msra.mxu0 0.0
        %3757 = vmatpush.msra.mxu0 0.0
        %3758 = vmatpush.msra.mxu0 %v3670
        %3759 = vmatpush.msra.mxu0 %v3664
        %3760 = vmatmul.f32.gmra.mxu0 %v3693
        %v3761 = vpop.f32.mrf.mxu0
        %v3762 = vadd.f32 0.0, %v3761
        %3763 = vmatmul.f32.gmra.mxu0 %v3696
        %v3764 = vpop.f32.mrf.mxu0
        %v3765 = vadd.f32 0.0, %v3764
        %3766 = vdwg.mxu0
        %3767 = vmatpush.msra.mxu0 0.0
        %3768 = vmatpush.msra.mxu0 0.0
        %3769 = vmatpush.msra.mxu0 0.0
        %3770 = vmatpush.msra.mxu0 0.0
        %3771 = vmatpush.msra.mxu0 0.0
        %3772 = vmatpush.msra.mxu0 0.0
        %3773 = vmatpush.msra.mxu0 0.0
        %3774 = vmatpush.msra.mxu0 0.0
        %3775 = vmatpush.msra.mxu0 0.0
        %3776 = vmatpush.msra.mxu0 0.0
        %3777 = vmatpush.msra.mxu0 0.0
        %3778 = vmatpush.msra.mxu0 0.0
        %3779 = vmatpush.msra.mxu0 0.0
        %3780 = vmatpush.msra.mxu0 0.0
        %3781 = vmatpush.msra.mxu0 %v3671
        %3782 = vmatpush.msra.mxu0 %v3665
        %3783 = vmatmul.f32.gmra.mxu0 %v3693
        %v3784 = vpop.f32.mrf.mxu0
        %v3785 = vadd.f32 0.0, %v3784
        %3786 = vmatmul.f32.gmra.mxu0 %v3696
        %v3787 = vpop.f32.mrf.mxu0
        %v3788 = vadd.f32 0.0, %v3787
        %3789 = vdwg.mxu0
        %3790 = vmatpush.msra.mxu0 0.0
        %3791 = vmatpush.msra.mxu0 0.0
        %3792 = vmatpush.msra.mxu0 0.0
        %3793 = vmatpush.msra.mxu0 0.0
        %3794 = vmatpush.msra.mxu0 0.0
        %3795 = vmatpush.msra.mxu0 0.0
        %3796 = vmatpush.msra.mxu0 0.0
        %3797 = vmatpush.msra.mxu0 0.0
        %3798 = vmatpush.msra.mxu0 0.0
        %3799 = vmatpush.msra.mxu0 0.0
        %3800 = vmatpush.msra.mxu0 0.0
        %3801 = vmatpush.msra.mxu0 0.0
        %3802 = vmatpush.msra.mxu0 0.0
        %3803 = vmatpush.msra.mxu0 0.0
        %3804 = vmatpush.msra.mxu0 %v3672
        %3805 = vmatpush.msra.mxu0 %v3666
        %3806 = vmatmul.f32.gmra.mxu0 %v3693
        %v3807 = vpop.f32.mrf.mxu0
        %v3808 = vadd.f32 0.0, %v3807
        %3809 = vmatmul.f32.gmra.mxu0 %v3696
        %v3810 = vpop.f32.mrf.mxu0
        %v3811 = vadd.f32 0.0, %v3810
        %3812 = vdwg.mxu0
        %3813 = vmatpush.msra.mxu0 0.0
        %3814 = vmatpush.msra.mxu0 0.0
        %3815 = vmatpush.msra.mxu0 0.0
        %3816 = vmatpush.msra.mxu0 0.0
        %3817 = vmatpush.msra.mxu0 0.0
        %3818 = vmatpush.msra.mxu0 0.0
        %3819 = vmatpush.msra.mxu0 0.0
        %3820 = vmatpush.msra.mxu0 0.0
        %3821 = vmatpush.msra.mxu0 0.0
        %3822 = vmatpush.msra.mxu0 0.0
        %3823 = vmatpush.msra.mxu0 0.0
        %3824 = vmatpush.msra.mxu0 0.0
        %3825 = vmatpush.msra.mxu0 0.0
        %3826 = vmatpush.msra.mxu0 0.0
        %3827 = vmatpush.msra.mxu0 %v3673
        %3828 = vmatpush.msra.mxu0 %v3667
        %3829 = vmatmul.f32.gmra.mxu0 %v3693
        %v3830 = vpop.f32.mrf.mxu0
        %v3831 = vadd.f32 0.0, %v3830
        %3832 = vmatmul.f32.gmra.mxu0 %v3696
        %v3833 = vpop.f32.mrf.mxu0
        %v3834 = vadd.f32 0.0, %v3833
        %3835 = vdwg.mxu0
        %v3837 = vsel %vm1659, %v3660, 0
        %v3840 = vsel %vm1659, %v3661, 0
        %3842 = vmatpush.msra.mxu0 0.0
        %3843 = vmatpush.msra.mxu0 0.0
        %3844 = vmatpush.msra.mxu0 0.0
        %3845 = vmatpush.msra.mxu0 0.0
        %3846 = vmatpush.msra.mxu0 0.0
        %3847 = vmatpush.msra.mxu0 0.0
        %3848 = vmatpush.msra.mxu0 0.0
        %3849 = vmatpush.msra.mxu0 0.0
        %3850 = vmatpush.msra.mxu0 0.0
        %3851 = vmatpush.msra.mxu0 0.0
        %3852 = vmatpush.msra.mxu0 0.0
        %3853 = vmatpush.msra.mxu0 0.0
        %3854 = vmatpush.msra.mxu0 0.0
        %3855 = vmatpush.msra.mxu0 0.0
        %3856 = vmatpush.msra.mxu0 %v3678
        %3857 = vmatpush.msra.mxu0 %v3674
        %3858 = vmatmul.f32.gmra.mxu0 %v3837
        %v3859 = vpop.f32.mrf.mxu0
        %v3860 = vadd.f32 0.0, %v3859
        %3861 = vmatmul.f32.gmra.mxu0 %v3840
        %v3862 = vpop.f32.mrf.mxu0
        %v3863 = vadd.f32 0.0, %v3862
        %3864 = vdwg.mxu0
        %3865 = vmatpush.msra.mxu0 0.0
        %3866 = vmatpush.msra.mxu0 0.0
        %3867 = vmatpush.msra.mxu0 0.0
        %3868 = vmatpush.msra.mxu0 0.0
        %3869 = vmatpush.msra.mxu0 0.0
        %3870 = vmatpush.msra.mxu0 0.0
        %3871 = vmatpush.msra.mxu0 0.0
        %3872 = vmatpush.msra.mxu0 0.0
        %3873 = vmatpush.msra.mxu0 0.0
        %3874 = vmatpush.msra.mxu0 0.0
        %3875 = vmatpush.msra.mxu0 0.0
        %3876 = vmatpush.msra.mxu0 0.0
        %3877 = vmatpush.msra.mxu0 0.0
        %3878 = vmatpush.msra.mxu0 0.0
        %3879 = vmatpush.msra.mxu0 %v3679
        %3880 = vmatpush.msra.mxu0 %v3675
        %3881 = vmatmul.f32.gmra.mxu0 %v3837
        %v3882 = vpop.f32.mrf.mxu0
        %v3883 = vadd.f32 0.0, %v3882
        %3884 = vmatmul.f32.gmra.mxu0 %v3840
        %v3885 = vpop.f32.mrf.mxu0
        %v3886 = vadd.f32 0.0, %v3885
        %3887 = vdwg.mxu0
        %3888 = vmatpush.msra.mxu0 0.0
        %3889 = vmatpush.msra.mxu0 0.0
        %3890 = vmatpush.msra.mxu0 0.0
        %3891 = vmatpush.msra.mxu0 0.0
        %3892 = vmatpush.msra.mxu0 0.0
        %3893 = vmatpush.msra.mxu0 0.0
        %3894 = vmatpush.msra.mxu0 0.0
        %3895 = vmatpush.msra.mxu0 0.0
        %3896 = vmatpush.msra.mxu0 0.0
        %3897 = vmatpush.msra.mxu0 0.0
        %3898 = vmatpush.msra.mxu0 0.0
        %3899 = vmatpush.msra.mxu0 0.0
        %3900 = vmatpush.msra.mxu0 0.0
        %3901 = vmatpush.msra.mxu0 0.0
        %3902 = vmatpush.msra.mxu0 %v3680
        %3903 = vmatpush.msra.mxu0 %v3676
        %3904 = vmatmul.f32.gmra.mxu0 %v3837
        %v3905 = vpop.f32.mrf.mxu0
        %v3906 = vadd.f32 0.0, %v3905
        %3907 = vmatmul.f32.gmra.mxu0 %v3840
        %v3908 = vpop.f32.mrf.mxu0
        %v3909 = vadd.f32 0.0, %v3908
        %3910 = vdwg.mxu0
        %3911 = vmatpush.msra.mxu0 0.0
        %3912 = vmatpush.msra.mxu0 0.0
        %3913 = vmatpush.msra.mxu0 0.0
        %3914 = vmatpush.msra.mxu0 0.0
        %3915 = vmatpush.msra.mxu0 0.0
        %3916 = vmatpush.msra.mxu0 0.0
        %3917 = vmatpush.msra.mxu0 0.0
        %3918 = vmatpush.msra.mxu0 0.0
        %3919 = vmatpush.msra.mxu0 0.0
        %3920 = vmatpush.msra.mxu0 0.0
        %3921 = vmatpush.msra.mxu0 0.0
        %3922 = vmatpush.msra.mxu0 0.0
        %3923 = vmatpush.msra.mxu0 0.0
        %3924 = vmatpush.msra.mxu0 0.0
        %3925 = vmatpush.msra.mxu0 %v3681
        %3926 = vmatpush.msra.mxu0 %v3677
        %3927 = vmatmul.f32.gmra.mxu0 %v3837
        %v3928 = vpop.f32.mrf.mxu0
        %v3929 = vadd.f32 0.0, %v3928
        %3930 = vmatmul.f32.gmra.mxu0 %v3840
        %v3931 = vpop.f32.mrf.mxu0
        %v3932 = vadd.f32 0.0, %v3931
        %3933 = vdwg.mxu0
        %v3934 = vadd.f32 %v3716, %v3860
        %v3935 = vadd.f32 %v3719, %v3863
        %v3936 = vadd.f32 %v3739, %v3883
        %v3937 = vadd.f32 %v3742, %v3886
        %v3938 = vperm.slane %v3686, 0
        %v3939 = vmul.f32 %v1444, %v3938
        %v3940 = vperm.slane %v3686, 1
        %v3941 = vadd.f32 %v3939, %v3940
        %v3943 = vsel %vm1415, %v3941, 0
        %3945 = vmatpush.xpose.msra.mxu0 0.0
        %3946 = vmatpush.xpose.msra.mxu0 0.0
        %3947 = vmatpush.xpose.msra.mxu0 0.0
        %3948 = vmatpush.xpose.msra.mxu0 0.0
        %3949 = vmatpush.xpose.msra.mxu0 0.0
        %3950 = vmatpush.xpose.msra.mxu0 0.0
        %3951 = vmatpush.xpose.msra.mxu0 0.0
        %3952 = vmatpush.xpose.msra.mxu0 0.0
        %3953 = vmatpush.xpose.msra.mxu0 0.0
        %3954 = vmatpush.xpose.msra.mxu0 0.0
        %3955 = vmatpush.xpose.msra.mxu0 0.0
        %3956 = vmatpush.xpose.msra.mxu0 0.0
        %3957 = vmatpush.xpose.msra.mxu0 0.0
        %3958 = vmatpush.xpose.msra.mxu0 0.0
        %3959 = vmatpush.xpose.msra.mxu0 0.0
        %3960 = vmatpush.xpose.msra.mxu0 %v3943
        %3961 = vmatmul.f32.gmra.mxu0 %v3943
        %v3962 = vpop.f32.mrf.mxu0
        %v3963 = vadd.f32 0.0, %v3962
        %3964 = vdwg.mxu0
        %v3965 = vsel %vm1415, %v3963, -inf
        %3966 = vmax.xlane.f32.xlu0 %v3965
        %v3967 = vpop.xlane.xlu0 %3966
        %v3968 = vsub.f32 %v3963, %v3967
        %v3969 = vmul.f32 %v3968, 1.442695
        %v3970 = vpow.pop %v3969
        %v3971 = vsel %vm1415, %v3970, 0.0
        %3972 = vadd.xlane.f32.xlu0 %v3971
        %v3973 = vpop.xlane.xlu0 %3972
        %v3974 = vrcp.pop %v3973
        %v3975 = vmul.f32 %v3973, %v3974
        %v3976 = vsub.f32 1.0, %v3975
        %v3977 = vmul.f32 %v3974, %v3976
        %v3978 = vadd.f32 %v3974, %v3977
        %vm3979 = vweird.f32 %v3973
        %vm3980 = vweird.f32 %v3974
        %vm3981 = vmor %vm3979, %vm3980
        %v3982 = vsel %vm3981, %v3974, %v3978
        %v3983 = vand.u32 2147483647, %v3973
        %vm3984 = vcmp.eq.f32.partialorder %v3983, 8.507059e+37
        %v3985 = vand.u32 %v3973, 2147483648
        %v3986 = vor.u32 1.1754944e-38, %v3985
        %v3987 = vsel %vm3984, %v3986, %v3982
        %v3988 = vmul.f32 %v3970, %v3987
        %v3990 = vsel %vm1415, %v3988, 0
        %3992 = vmatpush.msra.mxu0 0.0
        %3993 = vmatpush.msra.mxu0 0.0
        %3994 = vmatpush.msra.mxu0 0.0
        %3995 = vmatpush.msra.mxu0 0.0
        %3996 = vmatpush.msra.mxu0 0.0
        %3997 = vmatpush.msra.mxu0 0.0
        %3998 = vmatpush.msra.mxu0 0.0
        %3999 = vmatpush.msra.mxu0 0.0
        %4000 = vmatpush.msra.mxu0 0.0
        %4001 = vmatpush.msra.mxu0 0.0
        %4002 = vmatpush.msra.mxu0 0.0
        %4003 = vmatpush.msra.mxu0 0.0
        %4004 = vmatpush.msra.mxu0 0.0
        %4005 = vmatpush.msra.mxu0 0.0
        %4006 = vmatpush.msra.mxu0 0.0
        %4007 = vmatpush.msra.mxu0 %v3936
        %4008 = vmatmul.f32.gmra.mxu0 %v3990
        %v4009 = vpop.f32.mrf.mxu0
        %v4010 = vadd.f32 0.0, %v4009
        %4011 = vdwg.mxu0
        %4012 = vmatpush.msra.mxu0 0.0
        %4013 = vmatpush.msra.mxu0 0.0
        %4014 = vmatpush.msra.mxu0 0.0
        %4015 = vmatpush.msra.mxu0 0.0
        %4016 = vmatpush.msra.mxu0 0.0
        %4017 = vmatpush.msra.mxu0 0.0
        %4018 = vmatpush.msra.mxu0 0.0
        %4019 = vmatpush.msra.mxu0 0.0
        %4020 = vmatpush.msra.mxu0 0.0
        %4021 = vmatpush.msra.mxu0 0.0
        %4022 = vmatpush.msra.mxu0 0.0
        %4023 = vmatpush.msra.mxu0 0.0
        %4024 = vmatpush.msra.mxu0 0.0
        %4025 = vmatpush.msra.mxu0 0.0
        %4026 = vmatpush.msra.mxu0 0.0
        %4027 = vmatpush.msra.mxu0 %v3937
        %4028 = vmatmul.f32.gmra.mxu0 %v3990
        %v4029 = vpop.f32.mrf.mxu0
        %v4030 = vadd.f32 0.0, %v4029
        %4031 = vdwg.mxu0
        %v4032 = vadd.f32 %v3934, %v4010
        %v4033 = vadd.f32 %v3935, %v4030
        %4034 = vmatpush.msra.mxu0 0.0
        %4035 = vmatpush.msra.mxu0 0.0
        %4036 = vmatpush.msra.mxu0 0.0
        %4037 = vmatpush.msra.mxu0 0.0
        %4038 = vmatpush.msra.mxu0 0.0
        %4039 = vmatpush.msra.mxu0 0.0
        %4040 = vmatpush.msra.mxu0 0.0
        %4041 = vmatpush.msra.mxu0 0.0
        %4042 = vmatpush.msra.mxu0 0.0
        %4043 = vmatpush.msra.mxu0 0.0
        %4044 = vmatpush.msra.mxu0 0.0
        %4045 = vmatpush.msra.mxu0 0.0
        %4046 = vmatpush.msra.mxu0 0.0
        %4047 = vmatpush.msra.mxu0 0.0
        %4048 = vmatpush.msra.mxu0 0.0
        %4049 = vmatpush.msra.mxu0 %v3689
        %4050 = vmatmul.f32.gmra.mxu0 %v3943
        %v4051 = vpop.f32.mrf.mxu0
        %v4052 = vadd.f32 0.0, %v4051
        %4053 = vdwg.mxu0
        %4054 = vset.pattern.permute.xlu0 0
        %4055 = vperm.xlu0 %4054, %v3941
        %v4056 = vpop.permute.xlu0 %4055
        %v4058 = vmul.f32 %v4056, %v4032
        %v4059 = vmul.f32 %v4056, %v4033
        %v4060 = vadd.f32 %v4052, %v4058
        %v4061 = vadd.f32 %v4052, %v4059
        %4062 = vset.pattern.permute.xlu0 1
        %4063 = vperm.xlu0 %4062, %v3941
        %v4064 = vpop.permute.xlu0 %4063
        %v4066 = vmul.f32 %v4064, %v4032
        %v4067 = vmul.f32 %v4064, %v4033
        %4070 = vrot.lane.b32.xlu0 %v4066, 112
        %v4071 = vpop.permute.xlu0 %4070
        %4072 = vrot.lane.b32.xlu0 %v4067, 112
        %v4073 = vpop.permute.xlu0 %4072
        %v4076 = vadd.f32 %v4060, %v4071
        %v4077 = vadd.f32 %v4061, %v4073
        %4078 = vset.pattern.permute.xlu0 2
        %4079 = vperm.xlu0 %4078, %v3941
        %v4080 = vpop.permute.xlu0 %4079
        %v4082 = vmul.f32 %v4080, %v4032
        %v4083 = vmul.f32 %v4080, %v4033
        %4086 = vrot.lane.b32.xlu0 %v4082, 96
        %v4087 = vpop.permute.xlu0 %4086
        %4088 = vrot.lane.b32.xlu0 %v4083, 96
        %v4089 = vpop.permute.xlu0 %4088
        %v4092 = vadd.f32 %v4076, %v4087
        %v4093 = vadd.f32 %v4077, %v4089
        %4094 = vset.pattern.permute.xlu0 3
        %4095 = vperm.xlu0 %4094, %v3941
        %v4096 = vpop.permute.xlu0 %4095
        %v4098 = vmul.f32 %v4096, %v4032
        %v4099 = vmul.f32 %v4096, %v4033
        %4102 = vrot.lane.b32.xlu0 %v4098, 80
        %v4103 = vpop.permute.xlu0 %4102
        %4104 = vrot.lane.b32.xlu0 %v4099, 80
        %v4105 = vpop.permute.xlu0 %4104
        %v4108 = vadd.f32 %v4092, %v4103
        %v4109 = vadd.f32 %v4093, %v4105
        %4110 = vset.pattern.permute.xlu0 4
        %4111 = vperm.xlu0 %4110, %v3941
        %v4112 = vpop.permute.xlu0 %4111
        %v4114 = vmul.f32 %v4112, %v4032
        %v4115 = vmul.f32 %v4112, %v4033
        %4118 = vrot.lane.b32.xlu0 %v4114, 64
        %v4119 = vpop.permute.xlu0 %4118
        %4120 = vrot.lane.b32.xlu0 %v4115, 64
        %v4121 = vpop.permute.xlu0 %4120
        %v4124 = vadd.f32 %v4108, %v4119
        %v4125 = vadd.f32 %v4109, %v4121
        %4126 = vset.pattern.permute.xlu0 5
        %4127 = vperm.xlu0 %4126, %v3941
        %v4128 = vpop.permute.xlu0 %4127
        %v4130 = vmul.f32 %v4128, %v4032
        %v4131 = vmul.f32 %v4128, %v4033
        %4134 = vrot.lane.b32.xlu0 %v4130, 48
        %v4135 = vpop.permute.xlu0 %4134
        %4136 = vrot.lane.b32.xlu0 %v4131, 48
        %v4137 = vpop.permute.xlu0 %4136
        %v4140 = vadd.f32 %v4124, %v4135
        %v4141 = vadd.f32 %v4125, %v4137
        %4142 = vset.pattern.permute.xlu0 6
        %4143 = vperm.xlu0 %4142, %v3941
        %v4144 = vpop.permute.xlu0 %4143
        %v4146 = vmul.f32 %v4144, %v4032
        %v4147 = vmul.f32 %v4144, %v4033
        %4150 = vrot.lane.b32.xlu0 %v4146, 32
        %v4151 = vpop.permute.xlu0 %4150
        %4152 = vrot.lane.b32.xlu0 %v4147, 32
        %v4153 = vpop.permute.xlu0 %4152
        %v4156 = vadd.f32 %v4140, %v4151
        %v4157 = vadd.f32 %v4141, %v4153
        %4158 = vset.pattern.permute.xlu0 7
        %4159 = vperm.xlu0 %4158, %v3941
        %v4160 = vpop.permute.xlu0 %4159
        %v4162 = vmul.f32 %v4160, %v4032
        %v4163 = vmul.f32 %v4160, %v4033
        %4166 = vrot.lane.b32.xlu0 %v4162, 16
        %v4167 = vpop.permute.xlu0 %4166
        %4168 = vrot.lane.b32.xlu0 %v4163, 16
        %v4169 = vpop.permute.xlu0 %4168
        %v4172 = vadd.f32 %v4156, %v4167
        %v4173 = vadd.f32 %v4157, %v4169
        %v4174 = vsub.f32 0.0, %v4172
        %v4175 = vsub.f32 0.0, %v4173
        %v4176 = vmul.f32 %v4174, 1.442695
        %v4177 = vpow.pop %v4176
        %v4178 = vmul.f32 %v4175, 1.442695
        %v4179 = vpow.pop %v4178
        %v4180 = vadd.f32 %v4177, 1.0
        %v4181 = vadd.f32 %v4179, 1.0
        %v4182 = vrcp.pop %v4180
        %v4183 = vmul.f32 %v4180, %v4182
        %v4184 = vsub.f32 1.0, %v4183
        %v4185 = vmul.f32 %v4182, %v4184
        %v4186 = vadd.f32 %v4182, %v4185
        %vm4187 = vweird.f32 %v4180
        %vm4188 = vweird.f32 %v4182
        %vm4189 = vmor %vm4187, %vm4188
        %v4190 = vsel %vm4189, %v4182, %v4186
        %v4191 = vand.u32 2147483647, %v4180
        %vm4192 = vcmp.eq.f32.partialorder %v4191, 8.507059e+37
        %v4193 = vand.u32 %v4180, 2147483648
        %v4194 = vor.u32 1.1754944e-38, %v4193
        %v4195 = vsel %vm4192, %v4194, %v4190
        %v4196 = vmul.f32 1.0, %v4195
        %v4197 = vrcp.pop %v4181
        %v4198 = vmul.f32 %v4181, %v4197
        %v4199 = vsub.f32 1.0, %v4198
        %v4200 = vmul.f32 %v4197, %v4199
        %v4201 = vadd.f32 %v4197, %v4200
        %vm4202 = vweird.f32 %v4181
        %vm4203 = vweird.f32 %v4197
        %vm4204 = vmor %vm4202, %vm4203
        %v4205 = vsel %vm4204, %v4197, %v4201
        %v4206 = vand.u32 2147483647, %v4181
        %vm4207 = vcmp.eq.f32.partialorder %v4206, 8.507059e+37
        %v4208 = vand.u32 %v4181, 2147483648
        %v4209 = vor.u32 1.1754944e-38, %v4208
        %v4210 = vsel %vm4207, %v4209, %v4205
        %v4211 = vmul.f32 1.0, %v4210
        %v4212 = vadd.f32 %v3762, %v3906
        %v4213 = vadd.f32 %v3765, %v3909
        %v4214 = vadd.f32 %v3785, %v3929
        %v4215 = vadd.f32 %v3788, %v3932
        %v4216 = vperm.slane %v3687, 0
        %v4217 = vmul.f32 %v1444, %v4216
        %v4218 = vperm.slane %v3687, 1
        %v4219 = vadd.f32 %v4217, %v4218
        %v4221 = vsel %vm1415, %v4219, 0
        %4223 = vmatpush.xpose.msra.mxu0 0.0
        %4224 = vmatpush.xpose.msra.mxu0 0.0
        %4225 = vmatpush.xpose.msra.mxu0 0.0
        %4226 = vmatpush.xpose.msra.mxu0 0.0
        %4227 = vmatpush.xpose.msra.mxu0 0.0
        %4228 = vmatpush.xpose.msra.mxu0 0.0
        %4229 = vmatpush.xpose.msra.mxu0 0.0
        %4230 = vmatpush.xpose.msra.mxu0 0.0
        %4231 = vmatpush.xpose.msra.mxu0 0.0
        %4232 = vmatpush.xpose.msra.mxu0 0.0
        %4233 = vmatpush.xpose.msra.mxu0 0.0
        %4234 = vmatpush.xpose.msra.mxu0 0.0
        %4235 = vmatpush.xpose.msra.mxu0 0.0
        %4236 = vmatpush.xpose.msra.mxu0 0.0
        %4237 = vmatpush.xpose.msra.mxu0 0.0
        %4238 = vmatpush.xpose.msra.mxu0 %v4221
        %4239 = vmatmul.f32.gmra.mxu0 %v4221
        %v4240 = vpop.f32.mrf.mxu0
        %v4241 = vadd.f32 0.0, %v4240
        %4242 = vdwg.mxu0
        %v4243 = vsel %vm1415, %v4241, -inf
        %4244 = vmax.xlane.f32.xlu0 %v4243
        %v4245 = vpop.xlane.xlu0 %4244
        %v4246 = vsub.f32 %v4241, %v4245
        %v4247 = vmul.f32 %v4246, 1.442695
        %v4248 = vpow.pop %v4247
        %v4249 = vsel %vm1415, %v4248, 0.0
        %4250 = vadd.xlane.f32.xlu0 %v4249
        %v4251 = vpop.xlane.xlu0 %4250
        %v4252 = vrcp.pop %v4251
        %v4253 = vmul.f32 %v4251, %v4252
        %v4254 = vsub.f32 1.0, %v4253
        %v4255 = vmul.f32 %v4252, %v4254
        %v4256 = vadd.f32 %v4252, %v4255
        %vm4257 = vweird.f32 %v4251
        %vm4258 = vweird.f32 %v4252
        %vm4259 = vmor %vm4257, %vm4258
        %v4260 = vsel %vm4259, %v4252, %v4256
        %v4261 = vand.u32 2147483647, %v4251
        %vm4262 = vcmp.eq.f32.partialorder %v4261, 8.507059e+37
        %v4263 = vand.u32 %v4251, 2147483648
        %v4264 = vor.u32 1.1754944e-38, %v4263
        %v4265 = vsel %vm4262, %v4264, %v4260
        %v4266 = vmul.f32 %v4248, %v4265
        %v4268 = vsel %vm1415, %v4266, 0
        %4270 = vmatpush.msra.mxu0 0.0
        %4271 = vmatpush.msra.mxu0 0.0
        %4272 = vmatpush.msra.mxu0 0.0
        %4273 = vmatpush.msra.mxu0 0.0
        %4274 = vmatpush.msra.mxu0 0.0
        %4275 = vmatpush.msra.mxu0 0.0
        %4276 = vmatpush.msra.mxu0 0.0
        %4277 = vmatpush.msra.mxu0 0.0
        %4278 = vmatpush.msra.mxu0 0.0
        %4279 = vmatpush.msra.mxu0 0.0
        %4280 = vmatpush.msra.mxu0 0.0
        %4281 = vmatpush.msra.mxu0 0.0
        %4282 = vmatpush.msra.mxu0 0.0
        %4283 = vmatpush.msra.mxu0 0.0
        %4284 = vmatpush.msra.mxu0 0.0
        %4285 = vmatpush.msra.mxu0 %v4214
        %4286 = vmatmul.f32.gmra.mxu0 %v4268
        %v4287 = vpop.f32.mrf.mxu0
        %v4288 = vadd.f32 0.0, %v4287
        %4289 = vdwg.mxu0
        %4290 = vmatpush.msra.mxu0 0.0
        %4291 = vmatpush.msra.mxu0 0.0
        %4292 = vmatpush.msra.mxu0 0.0
        %4293 = vmatpush.msra.mxu0 0.0
        %4294 = vmatpush.msra.mxu0 0.0
        %4295 = vmatpush.msra.mxu0 0.0
        %4296 = vmatpush.msra.mxu0 0.0
        %4297 = vmatpush.msra.mxu0 0.0
        %4298 = vmatpush.msra.mxu0 0.0
        %4299 = vmatpush.msra.mxu0 0.0
        %4300 = vmatpush.msra.mxu0 0.0
        %4301 = vmatpush.msra.mxu0 0.0
        %4302 = vmatpush.msra.mxu0 0.0
        %4303 = vmatpush.msra.mxu0 0.0
        %4304 = vmatpush.msra.mxu0 0.0
        %4305 = vmatpush.msra.mxu0 %v4215
        %4306 = vmatmul.f32.gmra.mxu0 %v4268
        %v4307 = vpop.f32.mrf.mxu0
        %v4308 = vadd.f32 0.0, %v4307
        %4309 = vdwg.mxu0
        %v4310 = vadd.f32 %v4212, %v4288
        %v4311 = vadd.f32 %v4213, %v4308
        %4312 = vmatpush.msra.mxu0 0.0
        %4313 = vmatpush.msra.mxu0 0.0
        %4314 = vmatpush.msra.mxu0 0.0
        %4315 = vmatpush.msra.mxu0 0.0
        %4316 = vmatpush.msra.mxu0 0.0
        %4317 = vmatpush.msra.mxu0 0.0
        %4318 = vmatpush.msra.mxu0 0.0
        %4319 = vmatpush.msra.mxu0 0.0
        %4320 = vmatpush.msra.mxu0 0.0
        %4321 = vmatpush.msra.mxu0 0.0
        %4322 = vmatpush.msra.mxu0 0.0
        %4323 = vmatpush.msra.mxu0 0.0
        %4324 = vmatpush.msra.mxu0 0.0
        %4325 = vmatpush.msra.mxu0 0.0
        %4326 = vmatpush.msra.mxu0 0.0
        %4327 = vmatpush.msra.mxu0 %v3690
        %4328 = vmatmul.f32.gmra.mxu0 %v4221
        %v4329 = vpop.f32.mrf.mxu0
        %v4330 = vadd.f32 0.0, %v4329
        %4331 = vdwg.mxu0
        %4332 = vset.pattern.permute.xlu0 0
        %4333 = vperm.xlu0 %4332, %v4219
        %v4334 = vpop.permute.xlu0 %4333
        %v4336 = vmul.f32 %v4334, %v4310
        %v4337 = vmul.f32 %v4334, %v4311
        %v4338 = vadd.f32 %v4330, %v4336
        %v4339 = vadd.f32 %v4330, %v4337
        %4340 = vset.pattern.permute.xlu0 1
        %4341 = vperm.xlu0 %4340, %v4219
        %v4342 = vpop.permute.xlu0 %4341
        %v4344 = vmul.f32 %v4342, %v4310
        %v4345 = vmul.f32 %v4342, %v4311
        %4348 = vrot.lane.b32.xlu0 %v4344, 112
        %v4349 = vpop.permute.xlu0 %4348
        %4350 = vrot.lane.b32.xlu0 %v4345, 112
        %v4351 = vpop.permute.xlu0 %4350
        %v4354 = vadd.f32 %v4338, %v4349
        %v4355 = vadd.f32 %v4339, %v4351
        %4356 = vset.pattern.permute.xlu0 2
        %4357 = vperm.xlu0 %4356, %v4219
        %v4358 = vpop.permute.xlu0 %4357
        %v4360 = vmul.f32 %v4358, %v4310
        %v4361 = vmul.f32 %v4358, %v4311
        %4364 = vrot.lane.b32.xlu0 %v4360, 96
        %v4365 = vpop.permute.xlu0 %4364
        %4366 = vrot.lane.b32.xlu0 %v4361, 96
        %v4367 = vpop.permute.xlu0 %4366
        %v4370 = vadd.f32 %v4354, %v4365
        %v4371 = vadd.f32 %v4355, %v4367
        %4372 = vset.pattern.permute.xlu0 3
        %4373 = vperm.xlu0 %4372, %v4219
        %v4374 = vpop.permute.xlu0 %4373
        %v4376 = vmul.f32 %v4374, %v4310
        %v4377 = vmul.f32 %v4374, %v4311
        %4380 = vrot.lane.b32.xlu0 %v4376, 80
        %v4381 = vpop.permute.xlu0 %4380
        %4382 = vrot.lane.b32.xlu0 %v4377, 80
        %v4383 = vpop.permute.xlu0 %4382
        %v4386 = vadd.f32 %v4370, %v4381
        %v4387 = vadd.f32 %v4371, %v4383
        %4388 = vset.pattern.permute.xlu0 4
        %4389 = vperm.xlu0 %4388, %v4219
        %v4390 = vpop.permute.xlu0 %4389
        %v4392 = vmul.f32 %v4390, %v4310
        %v4393 = vmul.f32 %v4390, %v4311
        %4396 = vrot.lane.b32.xlu0 %v4392, 64
        %v4397 = vpop.permute.xlu0 %4396
        %4398 = vrot.lane.b32.xlu0 %v4393, 64
        %v4399 = vpop.permute.xlu0 %4398
        %v4402 = vadd.f32 %v4386, %v4397
        %v4403 = vadd.f32 %v4387, %v4399
        %4404 = vset.pattern.permute.xlu0 5
        %4405 = vperm.xlu0 %4404, %v4219
        %v4406 = vpop.permute.xlu0 %4405
        %v4408 = vmul.f32 %v4406, %v4310
        %v4409 = vmul.f32 %v4406, %v4311
        %4412 = vrot.lane.b32.xlu0 %v4408, 48
        %v4413 = vpop.permute.xlu0 %4412
        %4414 = vrot.lane.b32.xlu0 %v4409, 48
        %v4415 = vpop.permute.xlu0 %4414
        %v4418 = vadd.f32 %v4402, %v4413
        %v4419 = vadd.f32 %v4403, %v4415
        %4420 = vset.pattern.permute.xlu0 6
        %4421 = vperm.xlu0 %4420, %v4219
        %v4422 = vpop.permute.xlu0 %4421
        %v4424 = vmul.f32 %v4422, %v4310
        %v4425 = vmul.f32 %v4422, %v4311
        %4428 = vrot.lane.b32.xlu0 %v4424, 32
        %v4429 = vpop.permute.xlu0 %4428
        %4430 = vrot.lane.b32.xlu0 %v4425, 32
        %v4431 = vpop.permute.xlu0 %4430
        %v4434 = vadd.f32 %v4418, %v4429
        %v4435 = vadd.f32 %v4419, %v4431
        %4436 = vset.pattern.permute.xlu0 7
        %4437 = vperm.xlu0 %4436, %v4219
        %v4438 = vpop.permute.xlu0 %4437
        %v4440 = vmul.f32 %v4438, %v4310
        %v4441 = vmul.f32 %v4438, %v4311
        %4444 = vrot.lane.b32.xlu0 %v4440, 16
        %v4445 = vpop.permute.xlu0 %4444
        %4446 = vrot.lane.b32.xlu0 %v4441, 16
        %v4447 = vpop.permute.xlu0 %4446
        %v4450 = vadd.f32 %v4434, %v4445
        %v4451 = vadd.f32 %v4435, %v4447
        %v4452 = vsub.f32 0.0, %v4450
        %v4453 = vsub.f32 0.0, %v4451
        %v4454 = vmul.f32 %v4452, 1.442695
        %v4455 = vpow.pop %v4454
        %v4456 = vmul.f32 %v4453, 1.442695
        %v4457 = vpow.pop %v4456
        %v4458 = vadd.f32 %v4455, 1.0
        %v4459 = vadd.f32 %v4457, 1.0
        %v4460 = vrcp.pop %v4458
        %v4461 = vmul.f32 %v4458, %v4460
        %v4462 = vsub.f32 1.0, %v4461
        %v4463 = vmul.f32 %v4460, %v4462
        %v4464 = vadd.f32 %v4460, %v4463
        %vm4465 = vweird.f32 %v4458
        %vm4466 = vweird.f32 %v4460
        %vm4467 = vmor %vm4465, %vm4466
        %v4468 = vsel %vm4467, %v4460, %v4464
        %v4469 = vand.u32 2147483647, %v4458
        %vm4470 = vcmp.eq.f32.partialorder %v4469, 8.507059e+37
        %v4471 = vand.u32 %v4458, 2147483648
        %v4472 = vor.u32 1.1754944e-38, %v4471
        %v4473 = vsel %vm4470, %v4472, %v4468
        %v4474 = vmul.f32 1.0, %v4473
        %v4475 = vrcp.pop %v4459
        %v4476 = vmul.f32 %v4459, %v4475
        %v4477 = vsub.f32 1.0, %v4476
        %v4478 = vmul.f32 %v4475, %v4477
        %v4479 = vadd.f32 %v4475, %v4478
        %vm4480 = vweird.f32 %v4459
        %vm4481 = vweird.f32 %v4475
        %vm4482 = vmor %vm4480, %vm4481
        %v4483 = vsel %vm4482, %v4475, %v4479
        %v4484 = vand.u32 2147483647, %v4459
        %vm4485 = vcmp.eq.f32.partialorder %v4484, 8.507059e+37
        %v4486 = vand.u32 %v4459, 2147483648
        %v4487 = vor.u32 1.1754944e-38, %v4486
        %v4488 = vsel %vm4485, %v4487, %v4483
        %v4489 = vmul.f32 1.0, %v4488
        %v4490 = vmul.f32 %v4196, %v3660
        %v4491 = vmul.f32 %v4211, %v3661
        %v4493 = vsel %vm1659, %v4490, 0
        %v4496 = vsel %vm1659, %v4491, 0
        %4498 = vmatpush.msra.mxu0 0.0
        %4499 = vmatpush.msra.mxu0 0.0
        %4500 = vmatpush.msra.mxu0 0.0
        %4501 = vmatpush.msra.mxu0 0.0
        %4502 = vmatpush.msra.mxu0 0.0
        %4503 = vmatpush.msra.mxu0 0.0
        %4504 = vmatpush.msra.mxu0 0.0
        %4505 = vmatpush.msra.mxu0 0.0
        %4506 = vmatpush.msra.mxu0 0.0
        %4507 = vmatpush.msra.mxu0 0.0
        %4508 = vmatpush.msra.mxu0 0.0
        %4509 = vmatpush.msra.mxu0 0.0
        %4510 = vmatpush.msra.mxu0 0.0
        %4511 = vmatpush.msra.mxu0 0.0
        %4512 = vmatpush.msra.mxu0 %v3684
        %4513 = vmatpush.msra.mxu0 %v3682
        %4514 = vmatmul.f32.gmra.mxu0 %v4493
        %v4515 = vpop.f32.mrf.mxu0
        %v4516 = vadd.f32 0.0, %v4515
        %4517 = vmatmul.f32.gmra.mxu0 %v4496
        %v4518 = vpop.f32.mrf.mxu0
        %v4519 = vadd.f32 0.0, %v4518
        %4520 = vdwg.mxu0
        %4521 = vmatpush.msra.mxu0 0.0
        %4522 = vmatpush.msra.mxu0 0.0
        %4523 = vmatpush.msra.mxu0 0.0
        %4524 = vmatpush.msra.mxu0 0.0
        %4525 = vmatpush.msra.mxu0 0.0
        %4526 = vmatpush.msra.mxu0 0.0
        %4527 = vmatpush.msra.mxu0 0.0
        %4528 = vmatpush.msra.mxu0 0.0
        %4529 = vmatpush.msra.mxu0 0.0
        %4530 = vmatpush.msra.mxu0 0.0
        %4531 = vmatpush.msra.mxu0 0.0
        %4532 = vmatpush.msra.mxu0 0.0
        %4533 = vmatpush.msra.mxu0 0.0
        %4534 = vmatpush.msra.mxu0 0.0
        %4535 = vmatpush.msra.mxu0 %v3685
        %4536 = vmatpush.msra.mxu0 %v3683
        %4537 = vmatmul.f32.gmra.mxu0 %v4493
        %v4538 = vpop.f32.mrf.mxu0
        %v4539 = vadd.f32 0.0, %v4538
        %4540 = vmatmul.f32.gmra.mxu0 %v4496
        %v4541 = vpop.f32.mrf.mxu0
        %v4542 = vadd.f32 0.0, %v4541
        %4543 = vdwg.mxu0
        %v4544 = vadd.f32 %v3808, %v4516
        %v4545 = vadd.f32 %v3811, %v4519
        %v4546 = vadd.f32 %v3831, %v4539
        %v4547 = vadd.f32 %v3834, %v4542
        %v4548 = vperm.slane %v3688, 0
        %v4549 = vmul.f32 %v1444, %v4548
        %v4550 = vperm.slane %v3688, 1
        %v4551 = vadd.f32 %v4549, %v4550
        %v4553 = vsel %vm1415, %v4551, 0
        %4555 = vmatpush.xpose.msra.mxu0 0.0
        %4556 = vmatpush.xpose.msra.mxu0 0.0
        %4557 = vmatpush.xpose.msra.mxu0 0.0
        %4558 = vmatpush.xpose.msra.mxu0 0.0
        %4559 = vmatpush.xpose.msra.mxu0 0.0
        %4560 = vmatpush.xpose.msra.mxu0 0.0
        %4561 = vmatpush.xpose.msra.mxu0 0.0
        %4562 = vmatpush.xpose.msra.mxu0 0.0
        %4563 = vmatpush.xpose.msra.mxu0 0.0
        %4564 = vmatpush.xpose.msra.mxu0 0.0
        %4565 = vmatpush.xpose.msra.mxu0 0.0
        %4566 = vmatpush.xpose.msra.mxu0 0.0
        %4567 = vmatpush.xpose.msra.mxu0 0.0
        %4568 = vmatpush.xpose.msra.mxu0 0.0
        %4569 = vmatpush.xpose.msra.mxu0 0.0
        %4570 = vmatpush.xpose.msra.mxu0 %v4553
        %4571 = vmatmul.f32.gmra.mxu0 %v4553
        %v4572 = vpop.f32.mrf.mxu0
        %v4573 = vadd.f32 0.0, %v4572
        %4574 = vdwg.mxu0
        %v4575 = vsel %vm1415, %v4573, -inf
        %4576 = vmax.xlane.f32.xlu0 %v4575
        %v4577 = vpop.xlane.xlu0 %4576
        %v4578 = vsub.f32 %v4573, %v4577
        %v4579 = vmul.f32 %v4578, 1.442695
        %v4580 = vpow.pop %v4579
        %v4581 = vsel %vm1415, %v4580, 0.0
        %4582 = vadd.xlane.f32.xlu0 %v4581
        %v4583 = vpop.xlane.xlu0 %4582
        %v4584 = vrcp.pop %v4583
        %v4585 = vmul.f32 %v4583, %v4584
        %v4586 = vsub.f32 1.0, %v4585
        %v4587 = vmul.f32 %v4584, %v4586
        %v4588 = vadd.f32 %v4584, %v4587
        %vm4589 = vweird.f32 %v4583
        %vm4590 = vweird.f32 %v4584
        %vm4591 = vmor %vm4589, %vm4590
        %v4592 = vsel %vm4591, %v4584, %v4588
        %v4593 = vand.u32 2147483647, %v4583
        %vm4594 = vcmp.eq.f32.partialorder %v4593, 8.507059e+37
        %v4595 = vand.u32 %v4583, 2147483648
        %v4596 = vor.u32 1.1754944e-38, %v4595
        %v4597 = vsel %vm4594, %v4596, %v4592
        %v4598 = vmul.f32 %v4580, %v4597
        %v4600 = vsel %vm1415, %v4598, 0
        %4602 = vmatpush.msra.mxu0 0.0
        %4603 = vmatpush.msra.mxu0 0.0
        %4604 = vmatpush.msra.mxu0 0.0
        %4605 = vmatpush.msra.mxu0 0.0
        %4606 = vmatpush.msra.mxu0 0.0
        %4607 = vmatpush.msra.mxu0 0.0
        %4608 = vmatpush.msra.mxu0 0.0
        %4609 = vmatpush.msra.mxu0 0.0
        %4610 = vmatpush.msra.mxu0 0.0
        %4611 = vmatpush.msra.mxu0 0.0
        %4612 = vmatpush.msra.mxu0 0.0
        %4613 = vmatpush.msra.mxu0 0.0
        %4614 = vmatpush.msra.mxu0 0.0
        %4615 = vmatpush.msra.mxu0 0.0
        %4616 = vmatpush.msra.mxu0 0.0
        %4617 = vmatpush.msra.mxu0 %v4546
        %4618 = vmatmul.f32.gmra.mxu0 %v4600
        %v4619 = vpop.f32.mrf.mxu0
        %v4620 = vadd.f32 0.0, %v4619
        %4621 = vdwg.mxu0
        %4622 = vmatpush.msra.mxu0 0.0
        %4623 = vmatpush.msra.mxu0 0.0
        %4624 = vmatpush.msra.mxu0 0.0
        %4625 = vmatpush.msra.mxu0 0.0
        %4626 = vmatpush.msra.mxu0 0.0
        %4627 = vmatpush.msra.mxu0 0.0
        %4628 = vmatpush.msra.mxu0 0.0
        %4629 = vmatpush.msra.mxu0 0.0
        %4630 = vmatpush.msra.mxu0 0.0
        %4631 = vmatpush.msra.mxu0 0.0
        %4632 = vmatpush.msra.mxu0 0.0
        %4633 = vmatpush.msra.mxu0 0.0
        %4634 = vmatpush.msra.mxu0 0.0
        %4635 = vmatpush.msra.mxu0 0.0
        %4636 = vmatpush.msra.mxu0 0.0
        %4637 = vmatpush.msra.mxu0 %v4547
        %4638 = vmatmul.f32.gmra.mxu0 %v4600
        %v4639 = vpop.f32.mrf.mxu0
        %v4640 = vadd.f32 0.0, %v4639
        %4641 = vdwg.mxu0
        %v4642 = vadd.f32 %v4544, %v4620
        %v4643 = vadd.f32 %v4545, %v4640
        %4644 = vmatpush.msra.mxu0 0.0
        %4645 = vmatpush.msra.mxu0 0.0
        %4646 = vmatpush.msra.mxu0 0.0
        %4647 = vmatpush.msra.mxu0 0.0
        %4648 = vmatpush.msra.mxu0 0.0
        %4649 = vmatpush.msra.mxu0 0.0
        %4650 = vmatpush.msra.mxu0 0.0
        %4651 = vmatpush.msra.mxu0 0.0
        %4652 = vmatpush.msra.mxu0 0.0
        %4653 = vmatpush.msra.mxu0 0.0
        %4654 = vmatpush.msra.mxu0 0.0
        %4655 = vmatpush.msra.mxu0 0.0
        %4656 = vmatpush.msra.mxu0 0.0
        %4657 = vmatpush.msra.mxu0 0.0
        %4658 = vmatpush.msra.mxu0 0.0
        %4659 = vmatpush.msra.mxu0 %v3691
        %4660 = vmatmul.f32.gmra.mxu0 %v4553
        %v4661 = vpop.f32.mrf.mxu0
        %v4662 = vadd.f32 0.0, %v4661
        %4663 = vdwg.mxu0
        %4664 = vset.pattern.permute.xlu0 0
        %4665 = vperm.xlu0 %4664, %v4551
        %v4666 = vpop.permute.xlu0 %4665
        %v4668 = vmul.f32 %v4666, %v4642
        %v4669 = vmul.f32 %v4666, %v4643
        %v4670 = vadd.f32 %v4662, %v4668
        %v4671 = vadd.f32 %v4662, %v4669
        %4672 = vset.pattern.permute.xlu0 1
        %4673 = vperm.xlu0 %4672, %v4551
        %v4674 = vpop.permute.xlu0 %4673
        %v4676 = vmul.f32 %v4674, %v4642
        %v4677 = vmul.f32 %v4674, %v4643
        %4680 = vrot.lane.b32.xlu0 %v4676, 112
        %v4681 = vpop.permute.xlu0 %4680
        %4682 = vrot.lane.b32.xlu0 %v4677, 112
        %v4683 = vpop.permute.xlu0 %4682
        %v4686 = vadd.f32 %v4670, %v4681
        %v4687 = vadd.f32 %v4671, %v4683
        %4688 = vset.pattern.permute.xlu0 2
        %4689 = vperm.xlu0 %4688, %v4551
        %v4690 = vpop.permute.xlu0 %4689
        %v4692 = vmul.f32 %v4690, %v4642
        %v4693 = vmul.f32 %v4690, %v4643
        %4696 = vrot.lane.b32.xlu0 %v4692, 96
        %v4697 = vpop.permute.xlu0 %4696
        %4698 = vrot.lane.b32.xlu0 %v4693, 96
        %v4699 = vpop.permute.xlu0 %4698
        %v4702 = vadd.f32 %v4686, %v4697
        %v4703 = vadd.f32 %v4687, %v4699
        %4704 = vset.pattern.permute.xlu0 3
        %4705 = vperm.xlu0 %4704, %v4551
        %v4706 = vpop.permute.xlu0 %4705
        %v4708 = vmul.f32 %v4706, %v4642
        %v4709 = vmul.f32 %v4706, %v4643
        %4712 = vrot.lane.b32.xlu0 %v4708, 80
        %v4713 = vpop.permute.xlu0 %4712
        %4714 = vrot.lane.b32.xlu0 %v4709, 80
        %v4715 = vpop.permute.xlu0 %4714
        %v4718 = vadd.f32 %v4702, %v4713
        %v4719 = vadd.f32 %v4703, %v4715
        %4720 = vset.pattern.permute.xlu0 4
        %4721 = vperm.xlu0 %4720, %v4551
        %v4722 = vpop.permute.xlu0 %4721
        %v4724 = vmul.f32 %v4722, %v4642
        %v4725 = vmul.f32 %v4722, %v4643
        %4728 = vrot.lane.b32.xlu0 %v4724, 64
        %v4729 = vpop.permute.xlu0 %4728
        %4730 = vrot.lane.b32.xlu0 %v4725, 64
        %v4731 = vpop.permute.xlu0 %4730
        %v4734 = vadd.f32 %v4718, %v4729
        %v4735 = vadd.f32 %v4719, %v4731
        %4736 = vset.pattern.permute.xlu0 5
        %4737 = vperm.xlu0 %4736, %v4551
        %v4738 = vpop.permute.xlu0 %4737
        %v4740 = vmul.f32 %v4738, %v4642
        %v4741 = vmul.f32 %v4738, %v4643
        %4744 = vrot.lane.b32.xlu0 %v4740, 48
        %v4745 = vpop.permute.xlu0 %4744
        %4746 = vrot.lane.b32.xlu0 %v4741, 48
        %v4747 = vpop.permute.xlu0 %4746
        %v4750 = vadd.f32 %v4734, %v4745
        %v4751 = vadd.f32 %v4735, %v4747
        %4752 = vset.pattern.permute.xlu0 6
        %4753 = vperm.xlu0 %4752, %v4551
        %v4754 = vpop.permute.xlu0 %4753
        %v4756 = vmul.f32 %v4754, %v4642
        %v4757 = vmul.f32 %v4754, %v4643
        %4760 = vrot.lane.b32.xlu0 %v4756, 32
        %v4761 = vpop.permute.xlu0 %4760
        %4762 = vrot.lane.b32.xlu0 %v4757, 32
        %v4763 = vpop.permute.xlu0 %4762
        %v4766 = vadd.f32 %v4750, %v4761
        %v4767 = vadd.f32 %v4751, %v4763
        %4768 = vset.pattern.permute.xlu0 7
        %4769 = vperm.xlu0 %4768, %v4551
        %v4770 = vpop.permute.xlu0 %4769
        %v4772 = vmul.f32 %v4770, %v4642
        %v4773 = vmul.f32 %v4770, %v4643
        %4776 = vrot.lane.b32.xlu0 %v4772, 16
        %v4777 = vpop.permute.xlu0 %4776
        %4778 = vrot.lane.b32.xlu0 %v4773, 16
        %v4779 = vpop.permute.xlu0 %4778
        %v4782 = vadd.f32 %v4766, %v4777
        %v4783 = vadd.f32 %v4767, %v4779
        %v4784 = vtanh.pop %v4782
        %v4785 = vtanh.pop %v4783
        %v4786 = vmul.f32 %v4474, %v3660
        %v4787 = vmul.f32 %v4489, %v3661
        %v4788 = vsub.f32 1.0, %v4474
        %v4789 = vsub.f32 1.0, %v4489
        %v4790 = vmul.f32 %v4788, %v4784
        %v4791 = vmul.f32 %v4789, %v4785
        %v4792 = vadd.f32 %v4786, %v4790
        %v4793 = vadd.f32 %v4787, %v4791
        %4794 = vst.msk [vmem:[%s3659] sm:$0xff] %vm1659, %v4792
        %4795 = vst.msk [vmem:[%s3659 + $0x8] sm:$0xff] %vm1659, %v4793
        %p4796 = scmp.eq.s32.totalorder %s39, 11
        // Predicated region
        $region125: #{network_forward.1} parent=115 // pred_check
          %p4797 = pneg %p4796
        $region126: #{network_forward.1} parent=115 // pred_check_branch
          %4799 = sbr.rel (%p4797) target = $region128
        $region127: #{network_forward.1} parent=115 // pred_region
          %v4800 = vld [vmem:[%s21] sm:$0x3]
          %s4801 = scalar_lea.vmem [#allocation3], 16
          %v4802 = vld [vmem:[%s4801] sm:$0xff]
          %v4803 = vld [vmem:[%s4801 + $0x8] sm:$0xff]
          %v4804 = vsel %vm1659, %v4802, 0.0
          %4805 = vadd.xlane.f32.xlu0 %v4804
          %v4806 = vpop.xlane.xlu0 %4805
          %v4807 = vsel %vm1659, %v4803, 0.0
          %4808 = vadd.xlane.f32.xlu0 %v4807
          %v4809 = vpop.xlane.xlu0 %4808
          %v4810 = vmul.f32 %v4806, %v3598
          %v4811 = vmul.f32 %v4809, %v3598
          %v4812 = vsub.f32 %v4802, %v4810
          %v4813 = vsub.f32 %v4803, %v4811
          %v4814 = vmul.f32 %v4812, %v4812
          %v4815 = vmul.f32 %v4813, %v4813
          %v4816 = vsel %vm1659, %v4814, 0.0
          %4817 = vadd.xlane.f32.xlu0 %v4816
          %v4818 = vpop.xlane.xlu0 %4817
          %v4819 = vsel %vm1659, %v4815, 0.0
          %4820 = vadd.xlane.f32.xlu0 %v4819
          %v4821 = vpop.xlane.xlu0 %4820
          %v4822 = vmul.f32 %v4818, %v3598
          %v4823 = vmul.f32 %v4821, %v3598
          %v4824 = vadd.f32 %v4822, 1e-12
          %v4825 = vadd.f32 %v4823, 1e-12
          %v4826 = vrsqrt.pop %v4824
          %v4827 = vmul.f32 %v4826, %v4824
          %v4828 = vmul.f32 %v4827, %v4826
          %v4829 = vmul.f32 0.5, %v4828
          %v4830 = vsub.f32 1.5, %v4829
          %v4831 = vmul.f32 %v4826, %v4830
          %vm4832 = vweird.f32 %v4824
          %vm4833 = vweird.f32 %v4826
          %vm4834 = vmor %vm4832, %vm4833
          %v4835 = vsel %vm4834, %v4826, %v4831
          %v4836 = vrsqrt.pop %v4825
          %v4837 = vmul.f32 %v4836, %v4825
          %v4838 = vmul.f32 %v4837, %v4836
          %v4839 = vmul.f32 0.5, %v4838
          %v4840 = vsub.f32 1.5, %v4839
          %v4841 = vmul.f32 %v4836, %v4840
          %vm4842 = vweird.f32 %v4825
          %vm4843 = vweird.f32 %v4836
          %vm4844 = vmor %vm4842, %vm4843
          %v4845 = vsel %vm4844, %v4836, %v4841
          %v4846 = vmul.f32 %v4812, %v4835
          %v4847 = vmul.f32 %v4813, %v4845
          %v4848 = vperm.slane %v4800, 0
          %v4849 = vmul.f32 %v4846, %v4848
          %v4850 = vmul.f32 %v4847, %v4848
          %v4851 = vperm.slane %v4800, 1
          %v4852 = vadd.f32 %v4849, %v4851
          %v4853 = vadd.f32 %v4850, %v4851
          %v4854 = vsel %vm1659, %v2616, 0.0
          %4855 = vadd.xlane.f32.xlu0 %v4854
          %v4856 = vpop.xlane.xlu0 %4855
          %v4857 = vsel %vm1659, %v2617, 0.0
          %4858 = vadd.xlane.f32.xlu0 %v4857
          %v4859 = vpop.xlane.xlu0 %4858
          %v4860 = vmul.f32 %v4856, %v3598
          %v4861 = vmul.f32 %v4859, %v3598
          %v4862 = vsub.f32 %v2616, %v4860
          %v4863 = vsub.f32 %v2617, %v4861
          %v4864 = vmul.f32 %v4862, %v4862
          %v4865 = vmul.f32 %v4863, %v4863
          %v4866 = vsel %vm1659, %v4864, 0.0
          %4867 = vadd.xlane.f32.xlu0 %v4866
          %v4868 = vpop.xlane.xlu0 %4867
          %v4869 = vsel %vm1659, %v4865, 0.0
          %4870 = vadd.xlane.f32.xlu0 %v4869
          %v4871 = vpop.xlane.xlu0 %4870
          %v4872 = vmul.f32 %v4868, %v3598
          %v4873 = vmul.f32 %v4871, %v3598
          %v4874 = vadd.f32 %v4872, 1e-12
          %v4875 = vadd.f32 %v4873, 1e-12
          %v4876 = vrsqrt.pop %v4874
          %v4877 = vmul.f32 %v4876, %v4874
          %v4878 = vmul.f32 %v4877, %v4876
          %v4879 = vmul.f32 0.5, %v4878
          %v4880 = vsub.f32 1.5, %v4879
          %v4881 = vmul.f32 %v4876, %v4880
          %vm4882 = vweird.f32 %v4874
          %vm4883 = vweird.f32 %v4876
          %vm4884 = vmor %vm4882, %vm4883
          %v4885 = vsel %vm4884, %v4876, %v4881
          %v4886 = vrsqrt.pop %v4875
          %v4887 = vmul.f32 %v4886, %v4875
          %v4888 = vmul.f32 %v4887, %v4886
          %v4889 = vmul.f32 0.5, %v4888
          %v4890 = vsub.f32 1.5, %v4889
          %v4891 = vmul.f32 %v4886, %v4890
          %vm4892 = vweird.f32 %v4875
          %vm4893 = vweird.f32 %v4886
          %vm4894 = vmor %vm4892, %vm4893
          %v4895 = vsel %vm4894, %v4886, %v4891
          %v4896 = vmul.f32 %v4862, %v4885
          %v4897 = vmul.f32 %v4863, %v4895
          %v4898 = vmul.f32 %v4896, %v4848
          %v4899 = vmul.f32 %v4897, %v4848
          %v4900 = vadd.f32 %v4898, %v4851
          %v4901 = vadd.f32 %v4899, %v4851
          %4904 = vrot.lane.b32.xlu0 %v4900, 16
          %v4905 = vpop.permute.xlu0 %4904
          %4906 = vrot.lane.b32.xlu0 %v4901, 16
          %v4907 = vpop.permute.xlu0 %4906
          %v4910 = vsel %vm1659, %v4852, %v4905
          %v4911 = vsel %vm1659, %v4853, %v4907
          %v4912 = vld [vmem:[%s22] sm:$0xff]
          %v4913 = vld [vmem:[%s22 + $0x8] sm:$0xff]
          %v4914 = vld [vmem:[%s22 + $0x10] sm:$0xff]
          %v4915 = vld [vmem:[%s22 + $0x18] sm:$0xff]
          %v4916 = vld [vmem:[%s23] sm:$0x1]
          %v4918 = vperm.slane %v4916, 0
          %vm4920 = vcmask 261120
          %v4922 = vsel %vm4920, %v4910, 0
          %v4925 = vsel %vm4920, %v4911, 0
          %4927 = vmatpush.msra.mxu0 0.0
          %4928 = vmatpush.msra.mxu0 0.0
          %4929 = vmatpush.msra.mxu0 0.0
          %4930 = vmatpush.msra.mxu0 0.0
          %4931 = vmatpush.msra.mxu0 0.0
          %4932 = vmatpush.msra.mxu0 0.0
          %4933 = vmatpush.msra.mxu0 0.0
          %4934 = vmatpush.msra.mxu0 0.0
          %4935 = vmatpush.msra.mxu0 0.0
          %4936 = vmatpush.msra.mxu0 0.0
          %4937 = vmatpush.msra.mxu0 0.0
          %4938 = vmatpush.msra.mxu0 0.0
          %4939 = vmatpush.msra.mxu0 %v4915
          %4940 = vmatpush.msra.mxu0 %v4914
          %4941 = vmatpush.msra.mxu0 %v4913
          %4942 = vmatpush.msra.mxu0 %v4912
          %4943 = vmatmul.f32.gmra.mxu0 %v4922
          %v4944 = vpop.f32.mrf.mxu0
          %v4945 = vadd.f32 %v4918, %v4944
          %4946 = vmatmul.f32.gmra.mxu0 %v4925
          %v4947 = vpop.f32.mrf.mxu0
          %v4948 = vadd.f32 %v4918, %v4947
          %4949 = vdwg.mxu0
          %vm4950 = vcmask 97280
          %4951 = vst.msk [vmem:[#allocation8] sm:$0xff] %vm4950, %v4945
          %4952 = vst.msk [vmem:[#allocation8 + $0x8] sm:$0xff] %vm4950, %v4948
        $region128: #{network_forward.1} parent=115 // pred_fallthru
          _
        // Predicated region
        $region129: #{network_forward.1} parent=115 // pred_check
          %p4953 = pneg %p741
        $region130: #{network_forward.1} parent=115 // pred_check_branch
          %4955 = sbr.rel (%p4953) target = $region132
        $region131: #{network_forward.1} parent=115 // pred_region
          %4957 = vsyncadd [#allocation7], 0
          %s4958 = sshll.u32 [#allocation8], 4
          %s4959 = int_to_ptr.vmem [resolvable:$true] %s4958
          %s4960 = sshll.u32 %s24, 4
          %s4961 = int_to_ptr.hbm [resolvable:$true] %s4960
          %4966 = dma.vmem_to_hbm [thread:$0]  %s4959, 256, %s4961, [#allocation7], 128, 128, 8
        $region132: #{network_forward.1} parent=115 // pred_fallthru
          _
        // Predicated region
        $region133: #{network_forward.1} parent=115 // pred_check
          %p4967 = pneg %p741
        $region134: #{network_forward.1} parent=115 // pred_check_branch
          %4969 = sbr.rel (%p4967) target = $region136
        $region135: #{network_forward.1} parent=115 // pred_region
          %4971 = dma.done [#allocation7], 256
        $region136: #{network_forward.1} parent=115 // pred_fallthru
          _
      $region116: #{network_forward.1} parent=5 // pred_fallthru
        _
      %p4972 = scmp.le.s32.totalorder 2, %s34
      // Predicated region
      $region137: #{network_forward.1} parent=5 // pred_check
        %p4973 = pneg %p4972
      $region138: #{network_forward.1} parent=5 // pred_check_branch
        %4975 = sbr.rel (%p4973) target = $region140
      $region139: #{network_forward.1} parent=5 // pred_region
        %s4976 = ssub.s32 %s34, 2
      $region140: #{network_forward.1} parent=5 // pred_fallthru
        _
    $region6: #{network_forward.1} parent=1 // loop_footer
      %s38 = sadd.s32 1, %s34
    $region7: #{network_forward.1} parent=1 // loop_footer_branch
      %33 = sbr.rel target = $region3
    $region8: #{network_forward.1} parent=1 // loop_exit
      _
    %4977 = vsyncpa [#allocation6], 1
    %s4978 = scalar_lea.sflag [#allocation6], 1
    %4979 = vsyncpa %s4978, 1
    %4980 = vsyncpa [#allocation7], 1
    %s4981 = scalar_lea.sflag [#allocation7], 1
    %4982 = vsyncpa %s4981, 1

</llo_original>
